<compile_context>
chip_gen: v5e
topology: v5e:2x2
jax: 0.10.0
libtpu: 0.0.40
codegen_flags: <defaults>
</compile_context>

<pallas_src>
import jax
import jax.numpy as jnp
from jax.experimental import pallas as pl
from jax.experimental.pallas import tpu as pltpu

V_NUM = 21          # number of graph vertices (subsampled SMPL mesh)
GROUP_SIZE = 8      # every GroupNorm in this module uses 8 channels per group
GN_EPS = 1e-5


# ----------------------------------------------------------------------------
# In-kernel helpers (traced inside the single fused kernel)
# ----------------------------------------------------------------------------

def _gn_relu(v, gamma, beta, gn_ones, n_rows):
    """GroupNorm(C//8, C) + ReLU.  v: (R, C) f32; gamma/beta: (1, C).

    The within-group sum + broadcast back to channels is ONE (1, C) @ (C, C)
    matmul against a host-precomputed block-diagonal ones matrix (no per-call
    iota masks).  Variance is two-pass (centered) for numerical stability.
    """
    c = v.shape[1]
    ones_blk = gn_ones[str(c)][...]                                   # (C, C) f32 const
    inv_n = 1.0 / float(n_rows * GROUP_SIZE)
    mean = jnp.dot(jnp.sum(v, axis=0, keepdims=True), ones_blk,
                   preferred_element_type=jnp.float32) * inv_n        # (1, C)
    d = v - mean
    var = jnp.dot(jnp.sum(d * d, axis=0, keepdims=True), ones_blk,
                  preferred_element_type=jnp.float32) * inv_n         # (1, C)
    scale = jax.lax.rsqrt(var + GN_EPS) * gamma
    return jnp.maximum(d * scale + beta, 0.0)


def _mm(x, w_ref, bias):
    """x @ W + b: bf16 MXU operands, f32 accumulation, f32 bias add."""
    return jnp.dot(x.astype(jnp.bfloat16), w_ref[...],
                   preferred_element_type=jnp.float32) + bias


def _res_block(x, blk, a_bf16, rowsum_a, gn_ones, broadcast_in):
    """One GraphResBlock.  x: (1, Cin) if broadcast_in (identical vertex rows)
    else (V, Cin).  Returns (V, Cout)."""
    v_num = a_bf16.shape[0]
    vin = blk["vec_in"][...]       # (2, Cin):  [pre_norm gamma, beta]
    vmid = blk["vec_mid"][...]     # (6, Cmid): [g1_w, g1_b, g2_w, g2_b, b_lin1, b_conv]
    vout = blk["vec_out"][...]     # (1|2, Cout): [b_lin2, b_skip?]
    n_in = 1 if broadcast_in else v_num

    y = _gn_relu(x, vin[0:1], vin[1:2], gn_ones, n_in)             # relu(pre_norm(x))
    y = _mm(y, blk["w1"], vmid[4:5])                                # lin1
    y = _gn_relu(y, vmid[0:1], vmid[1:2], gn_ones, n_in)           # relu(norm1(y))
    support = jnp.dot(y.astype(jnp.bfloat16), blk["wc"][...],
                      preferred_element_type=jnp.float32)           # (n_in, Cmid)
    if broadcast_in:
        # All vertex rows identical on entry -> A @ support == rowsum(A) (x) support
        # (exact for any A); avoids broadcasting the widest matmuls to 21 rows.
        y = rowsum_a * support + vmid[5:6]                          # (V, Cmid)
    else:
        y = jnp.dot(a_bf16, support.astype(jnp.bfloat16),
                    preferred_element_type=jnp.float32) + vmid[5:6]
    y = _gn_relu(y, vmid[2:3], vmid[3:4], gn_ones, v_num)          # relu(norm2(y))
    y = _mm(y, blk["w2"], vout[0:1])                                # lin2 -> (V, Cout)
    if "wsk" in blk:
        skip = _mm(x, blk["wsk"], vout[1:2])                        # (n_in, Cout)
    else:
        skip = x
    return y + skip                                                 # broadcast over V if needed


def _make_fused_kernel(treedef, inv_hw):
    """Whole GraphCNN forward for one batch element per grid program."""

    def kernel(*refs):
        img_ref = refs[0]
        o_ref = refs[-1]
        p = jax.tree_util.tree_unflatten(treedef, refs[1:-1])

        a_bf16 = p["A"][...]                                        # (V, V) bf16
        rowsum_a = p["rowsum_A"][...]                               # (V, 1) f32
        gn_ones = p["gn_ones"]                                      # dict of (C, C) refs
        v_num = a_bf16.shape[0]

        # Stand-in image encoder: global mean pool + linear(3 -> 2048).
        # TODO(synk): pretrained ResNet-50 backbone has no clean in-script equivalent.
        x_img = img_ref[0]                                          # (3, H*W) f32
        pooled = jnp.sum(x_img, axis=-1, keepdims=True) * inv_hw    # (3, 1)
        feat = (jnp.sum(pooled * p["w_enc"][...], axis=0, keepdims=True)
                + p["b_enc"][...])                                  # (1, 2048)

        # GraphLinear(2048, 2*nc) on the single per-batch row; the 21-vertex
        # broadcast of the image feature is resolved analytically in block 0.
        x = _mm(feat, p["gc_w"], p["gc_b"][...])                    # (1, 2*nc)

        blocks = p["blocks"]
        x = _res_block(x, blocks[0], a_bf16, rowsum_a, gn_ones, broadcast_in=True)
        for blk in blocks[1:]:
            x = _res_block(x, blk, a_bf16, rowsum_a, gn_ones, broadcast_in=False)

        # Fused head: GroupNorm(4,32) + ReLU -> GraphLinear(32,1) -> fc(21,out),
        # with the (32,1) and (21,out) contractions as lane/sublane reductions
        # (no N=1 MXU matmuls) and both biases folded host-side.
        head = p["head"]
        hp = head["pack"][...]                                      # (3, 32)
        z = _gn_relu(x, hp[0:1], hp[1:2], gn_ones, v_num)
        s = jnp.sum(z * hp[2:3], axis=-1, keepdims=True)            # (V, 1)
        out = jnp.sum(s * head["wfc"][...], axis=0, keepdims=True) + head["bias"][...]
        o_ref[0] = out.astype(o_ref.dtype)

    return kernel


# ----------------------------------------------------------------------------
# Pallas wrapper: the whole forward is ONE pallas_call
# ----------------------------------------------------------------------------

def _const_spec(shape):
    zeros = (0,) * len(shape)
    return pl.BlockSpec(shape, lambda b: zeros)


def graph_cnn_forward(consts, image):
    bsz, chan, h, w = image.shape
    hw = h * w
    img = image.reshape(bsz, chan, hw)
    out_size = consts["head"]["wfc"].shape[1]

    flat, treedef = jax.tree_util.tree_flatten(consts)
    in_specs = [pl.BlockSpec((1, chan, hw), lambda b: (b, 0, 0))]
    in_specs += [_const_spec(t.shape) for t in flat]

    y = pl.pallas_call(
        _make_fused_kernel(treedef, 1.0 / float(hw)),
        out_shape=jax.ShapeDtypeStruct((bsz, 1, out_size), jnp.float32),
        grid=(bsz,),
        in_specs=in_specs,
        out_specs=pl.BlockSpec((1, 1, out_size), lambda b: (b, 0, 0)),
        compiler_params=pltpu.CompilerParams(
            dimension_semantics=("parallel",),        # batch axis feeds v7x's 2 TCs
            vmem_limit_bytes=48 * 1024 * 1024),       # headroom under v7x's 64 MiB VMEM
    )(img, *flat)
    # Mirrors the PyTorch module's `y.reshape((-1, 2))` (assumes output_size == 2).
    return y.reshape(-1, 2)


# ----------------------------------------------------------------------------
# Parameters (deterministic init), one-time host-side packing, adjacency
# ----------------------------------------------------------------------------

def _init_linear(key, cin, cout, dtype=jnp.bfloat16):
    kw, kb = jax.random.split(key)
    w = (jax.random.normal(kw, (cin, cout), jnp.float32) / jnp.sqrt(cin)).astype(dtype)
    b = jax.random.normal(kb, (1, cout), jnp.float32) * 0.01
    return w, b


def _init_gn(c):
    # PyTorch GroupNorm default affine init (weight=1, bias=0), packed as (2, C).
    return jnp.concatenate([jnp.ones((1, c), jnp.float32),
                            jnp.zeros((1, c), jnp.float32)], axis=0)


def _init_res_block(key, cin, cout):
    ks = jax.random.split(key, 4)
    p = {
        "gn_pre": _init_gn(cin),
        "lin1": _init_linear(ks[0], cin, cout // 2),
        "gn1": _init_gn(cout // 2),
        "conv": _init_linear(ks[1], cout // 2, cout // 2),
        "gn2": _init_gn(cout // 2),
        "lin2": _init_linear(ks[2], cout // 2, cout),
    }
    if cin != cout:
        p["skip"] = _init_linear(ks[3], cin, cout)
    return p


def init_graph_cnn(key, num_layers=5, num_channels=512, output_size=2, feat_dim=2048):
    ks = jax.random.split(key, num_layers + 8)
    return {
        "enc": _init_linear(ks[0], 3, feat_dim, dtype=jnp.float32),   # stand-in encoder head
        "gc_lin": _init_linear(ks[1], feat_dim, 2 * num_channels),
        "gc_blocks": [_init_res_block(ks[2], 2 * num_channels, num_channels)]
                     + [_init_res_block(ks[3 + i], num_channels, num_channels)
                        for i in range(num_layers)],
        "shape_block1": _init_res_block(ks[3 + num_layers], num_channels, 64),
        "shape_block2": _init_res_block(ks[4 + num_layers], 64, 32),
        "shape_gn": _init_gn(32),
        "shape_lin": _init_linear(ks[5 + num_layers], 32, 1, dtype=jnp.float32),
        "fc": _init_linear(ks[6 + num_layers], V_NUM, output_size, dtype=jnp.float32),
    }


def pack_graph_cnn_params(params, a):
    """One-time host-side packing into the fused kernel's constant inputs."""

    def pack_block(p):
        w1, b1 = p["lin1"]
        wc, bc = p["conv"]
        w2, b2 = p["lin2"]
        d = {"vec_in": p["gn_pre"],
             "vec_mid": jnp.concatenate([p["gn1"], p["gn2"], b1, bc], axis=0),
             "w1": w1, "wc": wc, "w2": w2}
        if "skip" in p:
            wsk, bsk = p["skip"]
            d["vec_out"] = jnp.concatenate([b2, bsk], axis=0)
            d["wsk"] = wsk
        else:
            d["vec_out"] = b2
        return d

    raw_blocks = params["gc_blocks"] + [params["shape_block1"], params["shape_block2"]]
    blocks = [pack_block(b) for b in raw_blocks]

    # Block-diagonal ones matrices (group-sum + broadcast back) per channel width.
    widths = {int(params["shape_gn"].shape[1])}
    for b in raw_blocks:
        widths.add(int(b["gn_pre"].shape[1]))
        widths.add(int(b["gn1"].shape[1]))

    def block_ones(c):
        idx = jnp.arange(c)
        return (idx[:, None] // GROUP_SIZE == idx[None, :] // GROUP_SIZE).astype(jnp.float32)

    gn_ones = {str(c): block_ones(c) for c in sorted(widths)}

    wl, bl = params["shape_lin"]          # (32, 1), (1, 1) f32
    wfc, bfc = params["fc"]               # (V, out), (1, out) f32
    head = {
        "pack": jnp.concatenate([params["shape_gn"],
                                 wl.astype(jnp.float32).T], axis=0),  # (3, 32)
        "wfc": wfc.astype(jnp.float32),
        # GraphLinear(32,1) bias folded through the vertex fc: bl * colsum(Wfc) + bfc.
        "bias": bl[0, 0] * jnp.sum(wfc, axis=0, keepdims=True) + bfc,
    }

    a32 = a.astype(jnp.float32)
    return {
        "A": a32.astype(jnp.bfloat16),                 # MXU operand for the graph conv
        "rowsum_A": jnp.sum(a32, axis=1, keepdims=True),
        "gn_ones": gn_ones,
        "w_enc": params["enc"][0],
        "b_enc": params["enc"][1],
        "gc_w": params["gc_lin"][0],
        "gc_b": params["gc_lin"][1],
        "blocks": blocks,
        "head": head,
    }


def build_adjacency(v):
    # Row-normalized ring graph (general adjacency matrices are supported too).
    a = jnp.eye(v, dtype=jnp.float32)
    a = a + jnp.roll(jnp.eye(v, dtype=jnp.float32), 1, axis=1)
    a = a + jnp.roll(jnp.eye(v, dtype=jnp.float32), -1, axis=1)
    return a / a.sum(axis=1, keepdims=True)


# ----------------------------------------------------------------------------
# Main
# ----------------------------------------------------------------------------

if __name__ == "__main__":
    key = jax.random.PRNGKey(0)
    k_img, k_par = jax.random.split(key)

    B = 2
    image = jax.random.normal(k_img, (B, 3, 224, 224), jnp.float32)   # NCHW input
    A = build_adjacency(V_NUM)

    # Small but structurally faithful configuration (constructor args of GraphCNN).
    params = init_graph_cnn(k_par, num_layers=2, num_channels=128, output_size=2)
    consts = pack_graph_cnn_params(params, A)          # one-time host-side packing

    fwd = jax.jit(graph_cnn_forward)
    y = jax.block_until_ready(fwd(consts, image))

    assert y.shape == (B, 2), y.shape
    assert bool(jnp.all(jnp.isfinite(y)))
    print("KERNEL_OK")
</pallas_src>

<mosaic_0001>
module attributes {stable_mosaic.version = 11 : i64} {
  func.func @kernel(%arg0: i32, %arg1: memref<1x3x50176xf32, #tpu.memory_space<vmem>>, %arg2: memref<21x21xbf16, #tpu.memory_space<vmem>>, %arg3: memref<1x2048xf32, #tpu.memory_space<vmem>>, %arg4: memref<2x256xf32, #tpu.memory_space<vmem>>, %arg5: memref<6x64xf32, #tpu.memory_space<vmem>>, %arg6: memref<2x128xf32, #tpu.memory_space<vmem>>, %arg7: memref<256x64xbf16, #tpu.memory_space<vmem>>, %arg8: memref<64x128xbf16, #tpu.memory_space<vmem>>, %arg9: memref<64x64xbf16, #tpu.memory_space<vmem>>, %arg10: memref<256x128xbf16, #tpu.memory_space<vmem>>, %arg11: memref<2x128xf32, #tpu.memory_space<vmem>>, %arg12: memref<6x64xf32, #tpu.memory_space<vmem>>, %arg13: memref<1x128xf32, #tpu.memory_space<vmem>>, %arg14: memref<128x64xbf16, #tpu.memory_space<vmem>>, %arg15: memref<64x128xbf16, #tpu.memory_space<vmem>>, %arg16: memref<64x64xbf16, #tpu.memory_space<vmem>>, %arg17: memref<2x128xf32, #tpu.memory_space<vmem>>, %arg18: memref<6x64xf32, #tpu.memory_space<vmem>>, %arg19: memref<1x128xf32, #tpu.memory_space<vmem>>, %arg20: memref<128x64xbf16, #tpu.memory_space<vmem>>, %arg21: memref<64x128xbf16, #tpu.memory_space<vmem>>, %arg22: memref<64x64xbf16, #tpu.memory_space<vmem>>, %arg23: memref<2x128xf32, #tpu.memory_space<vmem>>, %arg24: memref<6x32xf32, #tpu.memory_space<vmem>>, %arg25: memref<2x64xf32, #tpu.memory_space<vmem>>, %arg26: memref<128x32xbf16, #tpu.memory_space<vmem>>, %arg27: memref<32x64xbf16, #tpu.memory_space<vmem>>, %arg28: memref<32x32xbf16, #tpu.memory_space<vmem>>, %arg29: memref<128x64xbf16, #tpu.memory_space<vmem>>, %arg30: memref<2x64xf32, #tpu.memory_space<vmem>>, %arg31: memref<6x16xf32, #tpu.memory_space<vmem>>, %arg32: memref<2x32xf32, #tpu.memory_space<vmem>>, %arg33: memref<64x16xbf16, #tpu.memory_space<vmem>>, %arg34: memref<16x32xbf16, #tpu.memory_space<vmem>>, %arg35: memref<16x16xbf16, #tpu.memory_space<vmem>>, %arg36: memref<64x32xbf16, #tpu.memory_space<vmem>>, %arg37: memref<1x256xf32, #tpu.memory_space<vmem>>, %arg38: memref<2048x256xbf16, #tpu.memory_space<vmem>>, %arg39: memref<128x128xf32, #tpu.memory_space<vmem>>, %arg40: memref<16x16xf32, #tpu.memory_space<vmem>>, %arg41: memref<256x256xf32, #tpu.memory_space<vmem>>, %arg42: memref<32x32xf32, #tpu.memory_space<vmem>>, %arg43: memref<64x64xf32, #tpu.memory_space<vmem>>, %arg44: memref<1x2xf32, #tpu.memory_space<vmem>>, %arg45: memref<3x32xf32, #tpu.memory_space<vmem>>, %arg46: memref<21x2xf32, #tpu.memory_space<vmem>>, %arg47: memref<21x1xf32, #tpu.memory_space<vmem>>, %arg48: memref<3x2048xf32, #tpu.memory_space<vmem>>, %arg49: memref<1x1x2xf32, #tpu.memory_space<vmem>>) attributes {dimension_semantics = [#tpu.dimension_semantics<parallel>], iteration_bounds = array<i64: 2>, scalar_prefetch = 0 : i64, scratch_operands = 0 : i64, tpu.core_type = #tpu.core_type<tc>, window_params = [{transform_indices = @transform_0, window_bounds = array<i64: 1, 3, 50176>}, {pipeline_mode = #tpu.pipeline_mode<synchronous>, transform_indices = @transform_1, window_bounds = array<i64: 21, 21>}, {pipeline_mode = #tpu.pipeline_mode<synchronous>, transform_indices = @transform_2, window_bounds = array<i64: 1, 2048>}, {pipeline_mode = #tpu.pipeline_mode<synchronous>, transform_indices = @transform_3, window_bounds = array<i64: 2, 256>}, {pipeline_mode = #tpu.pipeline_mode<synchronous>, transform_indices = @transform_4, window_bounds = array<i64: 6, 64>}, {pipeline_mode = #tpu.pipeline_mode<synchronous>, transform_indices = @transform_5, window_bounds = array<i64: 2, 128>}, {pipeline_mode = #tpu.pipeline_mode<synchronous>, transform_indices = @transform_6, window_bounds = array<i64: 256, 64>}, {pipeline_mode = #tpu.pipeline_mode<synchronous>, transform_indices = @transform_7, window_bounds = array<i64: 64, 128>}, {pipeline_mode = #tpu.pipeline_mode<synchronous>, transform_indices = @transform_8, window_bounds = array<i64: 64, 64>}, {pipeline_mode = #tpu.pipeline_mode<synchronous>, transform_indices = @transform_9, window_bounds = array<i64: 256, 128>}, {pipeline_mode = #tpu.pipeline_mode<synchronous>, transform_indices = @transform_10, window_bounds = array<i64: 2, 128>}, {pipeline_mode = #tpu.pipeline_mode<synchronous>, transform_indices = @transform_11, window_bounds = array<i64: 6, 64>}, {pipeline_mode = #tpu.pipeline_mode<synchronous>, transform_indices = @transform_12, window_bounds = array<i64: 1, 128>}, {pipeline_mode = #tpu.pipeline_mode<synchronous>, transform_indices = @transform_13, window_bounds = array<i64: 128, 64>}, {pipeline_mode = #tpu.pipeline_mode<synchronous>, transform_indices = @transform_14, window_bounds = array<i64: 64, 128>}, {pipeline_mode = #tpu.pipeline_mode<synchronous>, transform_indices = @transform_15, window_bounds = array<i64: 64, 64>}, {pipeline_mode = #tpu.pipeline_mode<synchronous>, transform_indices = @transform_16, window_bounds = array<i64: 2, 128>}, {pipeline_mode = #tpu.pipeline_mode<synchronous>, transform_indices = @transform_17, window_bounds = array<i64: 6, 64>}, {pipeline_mode = #tpu.pipeline_mode<synchronous>, transform_indices = @transform_18, window_bounds = array<i64: 1, 128>}, {pipeline_mode = #tpu.pipeline_mode<synchronous>, transform_indices = @transform_19, window_bounds = array<i64: 128, 64>}, {pipeline_mode = #tpu.pipeline_mode<synchronous>, transform_indices = @transform_20, window_bounds = array<i64: 64, 128>}, {pipeline_mode = #tpu.pipeline_mode<synchronous>, transform_indices = @transform_21, window_bounds = array<i64: 64, 64>}, {pipeline_mode = #tpu.pipeline_mode<synchronous>, transform_indices = @transform_22, window_bounds = array<i64: 2, 128>}, {pipeline_mode = #tpu.pipeline_mode<synchronous>, transform_indices = @transform_23, window_bounds = array<i64: 6, 32>}, {pipeline_mode = #tpu.pipeline_mode<synchronous>, transform_indices = @transform_24, window_bounds = array<i64: 2, 64>}, {pipeline_mode = #tpu.pipeline_mode<synchronous>, transform_indices = @transform_25, window_bounds = array<i64: 128, 32>}, {pipeline_mode = #tpu.pipeline_mode<synchronous>, transform_indices = @transform_26, window_bounds = array<i64: 32, 64>}, {pipeline_mode = #tpu.pipeline_mode<synchronous>, transform_indices = @transform_27, window_bounds = array<i64: 32, 32>}, {pipeline_mode = #tpu.pipeline_mode<synchronous>, transform_indices = @transform_28, window_bounds = array<i64: 128, 64>}, {pipeline_mode = #tpu.pipeline_mode<synchronous>, transform_indices = @transform_29, window_bounds = array<i64: 2, 64>}, {pipeline_mode = #tpu.pipeline_mode<synchronous>, transform_indices = @transform_30, window_bounds = array<i64: 6, 16>}, {pipeline_mode = #tpu.pipeline_mode<synchronous>, transform_indices = @transform_31, window_bounds = array<i64: 2, 32>}, {pipeline_mode = #tpu.pipeline_mode<synchronous>, transform_indices = @transform_32, window_bounds = array<i64: 64, 16>}, {pipeline_mode = #tpu.pipeline_mode<synchronous>, transform_indices = @transform_33, window_bounds = array<i64: 16, 32>}, {pipeline_mode = #tpu.pipeline_mode<synchronous>, transform_indices = @transform_34, window_bounds = array<i64: 16, 16>}, {pipeline_mode = #tpu.pipeline_mode<synchronous>, transform_indices = @transform_35, window_bounds = array<i64: 64, 32>}, {pipeline_mode = #tpu.pipeline_mode<synchronous>, transform_indices = @transform_36, window_bounds = array<i64: 1, 256>}, {pipeline_mode = #tpu.pipeline_mode<synchronous>, transform_indices = @transform_37, window_bounds = array<i64: 2048, 256>}, {pipeline_mode = #tpu.pipeline_mode<synchronous>, transform_indices = @transform_38, window_bounds = array<i64: 128, 128>}, {pipeline_mode = #tpu.pipeline_mode<synchronous>, transform_indices = @transform_39, window_bounds = array<i64: 16, 16>}, {pipeline_mode = #tpu.pipeline_mode<synchronous>, transform_indices = @transform_40, window_bounds = array<i64: 256, 256>}, {pipeline_mode = #tpu.pipeline_mode<synchronous>, transform_indices = @transform_41, window_bounds = array<i64: 32, 32>}, {pipeline_mode = #tpu.pipeline_mode<synchronous>, transform_indices = @transform_42, window_bounds = array<i64: 64, 64>}, {pipeline_mode = #tpu.pipeline_mode<synchronous>, transform_indices = @transform_43, window_bounds = array<i64: 1, 2>}, {pipeline_mode = #tpu.pipeline_mode<synchronous>, transform_indices = @transform_44, window_bounds = array<i64: 3, 32>}, {pipeline_mode = #tpu.pipeline_mode<synchronous>, transform_indices = @transform_45, window_bounds = array<i64: 21, 2>}, {pipeline_mode = #tpu.pipeline_mode<synchronous>, transform_indices = @transform_46, window_bounds = array<i64: 21, 1>}, {pipeline_mode = #tpu.pipeline_mode<synchronous>, transform_indices = @transform_47, window_bounds = array<i64: 3, 2048>}, {transform_indices = @transform_48, window_bounds = array<i64: 1, 1, 2>}]} {
    %c0 = arith.constant 0 : index
    %c0_0 = arith.constant 0 : index
    %0 = vector.load %arg2[%c0, %c0_0] : memref<21x21xbf16, #tpu.memory_space<vmem>>, vector<21x21xbf16>
    %c0_1 = arith.constant 0 : index
    %c0_2 = arith.constant 0 : index
    %1 = vector.load %arg47[%c0_1, %c0_2] : memref<21x1xf32, #tpu.memory_space<vmem>>, vector<21x1xf32>
    %c0_3 = arith.constant 0 : index
    %c0_4 = arith.constant 0 : index
    %c0_5 = arith.constant 0 : index
    %2 = vector.load %arg1[%c0_3, %c0_4, %c0_5] : memref<1x3x50176xf32, #tpu.memory_space<vmem>>, vector<1x3x50176xf32>
    %3 = vector.shape_cast %2 : vector<1x3x50176xf32> to vector<3x50176xf32>
    %cst = arith.constant dense<0.000000e+00> : vector<3xf32>
    %4 = vector.multi_reduction <add>, %3, %cst [1] : vector<3x50176xf32> to vector<3xf32>
    %5 = vector.shape_cast %4 : vector<3xf32> to vector<3x1xf32>
    %cst_6 = arith.constant 1.99298465E-5 : f32
    %6 = vector.broadcast %cst_6 : f32 to vector<3x1xf32>
    %7 = arith.mulf %5, %6 : vector<3x1xf32>
    %c0_7 = arith.constant 0 : index
    %c0_8 = arith.constant 0 : index
    %8 = vector.load %arg48[%c0_7, %c0_8] : memref<3x2048xf32, #tpu.memory_space<vmem>>, vector<3x2048xf32>
    %9 = vector.broadcast %7 : vector<3x1xf32> to vector<3x2048xf32>
    %10 = arith.mulf %9, %8 : vector<3x2048xf32>
    %cst_9 = arith.constant dense<0.000000e+00> : vector<2048xf32>
    %11 = vector.multi_reduction <add>, %10, %cst_9 [0] : vector<3x2048xf32> to vector<2048xf32>
    %12 = vector.shape_cast %11 : vector<2048xf32> to vector<1x2048xf32>
    %c0_10 = arith.constant 0 : index
    %c0_11 = arith.constant 0 : index
    %13 = vector.load %arg3[%c0_10, %c0_11] : memref<1x2048xf32, #tpu.memory_space<vmem>>, vector<1x2048xf32>
    %14 = arith.addf %12, %13 : vector<1x2048xf32>
    %c0_12 = arith.constant 0 : index
    %c0_13 = arith.constant 0 : index
    %15 = vector.load %arg37[%c0_12, %c0_13] : memref<1x256xf32, #tpu.memory_space<vmem>>, vector<1x256xf32>
    %16 = arith.truncf %14 : vector<1x2048xf32> to vector<1x2048xbf16>
    %c0_14 = arith.constant 0 : index
    %c0_15 = arith.constant 0 : index
    %17 = vector.load %arg38[%c0_14, %c0_15] : memref<2048x256xbf16, #tpu.memory_space<vmem>>, vector<2048x256xbf16>
    %cst_16 = arith.constant dense<0.000000e+00> : vector<1x256xf32>
    %18 = tpu.matmul %16, %17, %cst_16 {dimension_numbers = #tpu.dot_dimension_numbers<[1], [0], [0], [1], [0, 0, 1, 1], [], []>} : vector<1x2048xbf16>, vector<2048x256xbf16>, vector<1x256xf32> -> vector<1x256xf32>
    %19 = arith.addf %18, %15 : vector<1x256xf32>
    %c0_17 = arith.constant 0 : index
    %c0_18 = arith.constant 0 : index
    %20 = vector.load %arg4[%c0_17, %c0_18] : memref<2x256xf32, #tpu.memory_space<vmem>>, vector<2x256xf32>
    %c0_19 = arith.constant 0 : index
    %c0_20 = arith.constant 0 : index
    %21 = vector.load %arg5[%c0_19, %c0_20] : memref<6x64xf32, #tpu.memory_space<vmem>>, vector<6x64xf32>
    %c0_21 = arith.constant 0 : index
    %c0_22 = arith.constant 0 : index
    %22 = vector.load %arg6[%c0_21, %c0_22] : memref<2x128xf32, #tpu.memory_space<vmem>>, vector<2x128xf32>
    %23 = vector.extract_strided_slice %20 {offsets = [0, 0], sizes = [1, 256], strides = [1, 1]} : vector<2x256xf32> to vector<1x256xf32>
    %24 = vector.extract_strided_slice %20 {offsets = [1, 0], sizes = [1, 256], strides = [1, 1]} : vector<2x256xf32> to vector<1x256xf32>
    %c0_23 = arith.constant 0 : index
    %c0_24 = arith.constant 0 : index
    %25 = vector.load %arg41[%c0_23, %c0_24] : memref<256x256xf32, #tpu.memory_space<vmem>>, vector<256x256xf32>
    %cst_25 = arith.constant dense<0.000000e+00> : vector<256xf32>
    %26 = vector.multi_reduction <add>, %19, %cst_25 [0] : vector<1x256xf32> to vector<256xf32>
    %27 = vector.shape_cast %26 : vector<256xf32> to vector<1x256xf32>
    %cst_26 = arith.constant dense<0.000000e+00> : vector<1x256xf32>
    %28 = tpu.matmul %27, %25, %cst_26 {dimension_numbers = #tpu.dot_dimension_numbers<[1], [0], [0], [1], [0, 0, 1, 1], [], []>} : vector<1x256xf32>, vector<256x256xf32>, vector<1x256xf32> -> vector<1x256xf32>
    %cst_27 = arith.constant 1.250000e-01 : f32
    %29 = vector.broadcast %cst_27 : f32 to vector<1x256xf32>
    %30 = arith.mulf %28, %29 : vector<1x256xf32>
    %31 = arith.subf %19, %30 : vector<1x256xf32>
    %32 = arith.mulf %31, %31 : vector<1x256xf32>
    %cst_28 = arith.constant dense<0.000000e+00> : vector<256xf32>
    %33 = vector.multi_reduction <add>, %32, %cst_28 [0] : vector<1x256xf32> to vector<256xf32>
    %34 = vector.shape_cast %33 : vector<256xf32> to vector<1x256xf32>
    %cst_29 = arith.constant dense<0.000000e+00> : vector<1x256xf32>
    %35 = tpu.matmul %34, %25, %cst_29 {dimension_numbers = #tpu.dot_dimension_numbers<[1], [0], [0], [1], [0, 0, 1, 1], [], []>} : vector<1x256xf32>, vector<256x256xf32>, vector<1x256xf32> -> vector<1x256xf32>
    %cst_30 = arith.constant 1.250000e-01 : f32
    %36 = vector.broadcast %cst_30 : f32 to vector<1x256xf32>
    %37 = arith.mulf %35, %36 : vector<1x256xf32>
    %cst_31 = arith.constant 9.99999974E-6 : f32
    %38 = vector.broadcast %cst_31 : f32 to vector<1x256xf32>
    %39 = arith.addf %37, %38 : vector<1x256xf32>
    %40 = math.rsqrt %39 : vector<1x256xf32>
    %41 = arith.mulf %40, %23 : vector<1x256xf32>
    %42 = arith.mulf %31, %41 : vector<1x256xf32>
    %43 = arith.addf %42, %24 : vector<1x256xf32>
    %cst_32 = arith.constant 0.000000e+00 : f32
    %44 = vector.broadcast %cst_32 : f32 to vector<1x256xf32>
    %45 = arith.maximumf %43, %44 : vector<1x256xf32>
    %46 = vector.extract_strided_slice %21 {offsets = [4, 0], sizes = [1, 64], strides = [1, 1]} : vector<6x64xf32> to vector<1x64xf32>
    %47 = arith.truncf %45 : vector<1x256xf32> to vector<1x256xbf16>
    %c0_33 = arith.constant 0 : index
    %c0_34 = arith.constant 0 : index
    %48 = vector.load %arg7[%c0_33, %c0_34] : memref<256x64xbf16, #tpu.memory_space<vmem>>, vector<256x64xbf16>
    %cst_35 = arith.constant dense<0.000000e+00> : vector<1x64xf32>
    %49 = tpu.matmul %47, %48, %cst_35 {dimension_numbers = #tpu.dot_dimension_numbers<[1], [0], [0], [1], [0, 0, 1, 1], [], []>} : vector<1x256xbf16>, vector<256x64xbf16>, vector<1x64xf32> -> vector<1x64xf32>
    %50 = arith.addf %49, %46 : vector<1x64xf32>
    %51 = vector.extract_strided_slice %21 {offsets = [0, 0], sizes = [1, 64], strides = [1, 1]} : vector<6x64xf32> to vector<1x64xf32>
    %52 = vector.extract_strided_slice %21 {offsets = [1, 0], sizes = [1, 64], strides = [1, 1]} : vector<6x64xf32> to vector<1x64xf32>
    %c0_36 = arith.constant 0 : index
    %c0_37 = arith.constant 0 : index
    %53 = vector.load %arg43[%c0_36, %c0_37] : memref<64x64xf32, #tpu.memory_space<vmem>>, vector<64x64xf32>
    %cst_38 = arith.constant dense<0.000000e+00> : vector<64xf32>
    %54 = vector.multi_reduction <add>, %50, %cst_38 [0] : vector<1x64xf32> to vector<64xf32>
    %55 = vector.shape_cast %54 : vector<64xf32> to vector<1x64xf32>
    %cst_39 = arith.constant dense<0.000000e+00> : vector<1x64xf32>
    %56 = tpu.matmul %55, %53, %cst_39 {dimension_numbers = #tpu.dot_dimension_numbers<[1], [0], [0], [1], [0, 0, 1, 1], [], []>} : vector<1x64xf32>, vector<64x64xf32>, vector<1x64xf32> -> vector<1x64xf32>
    %cst_40 = arith.constant 1.250000e-01 : f32
    %57 = vector.broadcast %cst_40 : f32 to vector<1x64xf32>
    %58 = arith.mulf %56, %57 : vector<1x64xf32>
    %59 = arith.subf %50, %58 : vector<1x64xf32>
    %60 = arith.mulf %59, %59 : vector<1x64xf32>
    %cst_41 = arith.constant dense<0.000000e+00> : vector<64xf32>
    %61 = vector.multi_reduction <add>, %60, %cst_41 [0] : vector<1x64xf32> to vector<64xf32>
    %62 = vector.shape_cast %61 : vector<64xf32> to vector<1x64xf32>
    %cst_42 = arith.constant dense<0.000000e+00> : vector<1x64xf32>
    %63 = tpu.matmul %62, %53, %cst_42 {dimension_numbers = #tpu.dot_dimension_numbers<[1], [0], [0], [1], [0, 0, 1, 1], [], []>} : vector<1x64xf32>, vector<64x64xf32>, vector<1x64xf32> -> vector<1x64xf32>
    %cst_43 = arith.constant 1.250000e-01 : f32
    %64 = vector.broadcast %cst_43 : f32 to vector<1x64xf32>
    %65 = arith.mulf %63, %64 : vector<1x64xf32>
    %cst_44 = arith.constant 9.99999974E-6 : f32
    %66 = vector.broadcast %cst_44 : f32 to vector<1x64xf32>
    %67 = arith.addf %65, %66 : vector<1x64xf32>
    %68 = math.rsqrt %67 : vector<1x64xf32>
    %69 = arith.mulf %68, %51 : vector<1x64xf32>
    %70 = arith.mulf %59, %69 : vector<1x64xf32>
    %71 = arith.addf %70, %52 : vector<1x64xf32>
    %cst_45 = arith.constant 0.000000e+00 : f32
    %72 = vector.broadcast %cst_45 : f32 to vector<1x64xf32>
    %73 = arith.maximumf %71, %72 : vector<1x64xf32>
    %74 = arith.truncf %73 : vector<1x64xf32> to vector<1x64xbf16>
    %c0_46 = arith.constant 0 : index
    %c0_47 = arith.constant 0 : index
    %75 = vector.load %arg9[%c0_46, %c0_47] : memref<64x64xbf16, #tpu.memory_space<vmem>>, vector<64x64xbf16>
    %cst_48 = arith.constant dense<0.000000e+00> : vector<1x64xf32>
    %76 = tpu.matmul %74, %75, %cst_48 {dimension_numbers = #tpu.dot_dimension_numbers<[1], [0], [0], [1], [0, 0, 1, 1], [], []>} : vector<1x64xbf16>, vector<64x64xbf16>, vector<1x64xf32> -> vector<1x64xf32>
    %77 = vector.broadcast %1 : vector<21x1xf32> to vector<21x64xf32>
    %78 = vector.broadcast %76 : vector<1x64xf32> to vector<21x64xf32>
    %79 = arith.mulf %77, %78 : vector<21x64xf32>
    %80 = vector.extract_strided_slice %21 {offsets = [5, 0], sizes = [1, 64], strides = [1, 1]} : vector<6x64xf32> to vector<1x64xf32>
    %81 = vector.broadcast %80 : vector<1x64xf32> to vector<21x64xf32>
    %82 = arith.addf %79, %81 : vector<21x64xf32>
    %83 = vector.extract_strided_slice %21 {offsets = [2, 0], sizes = [1, 64], strides = [1, 1]} : vector<6x64xf32> to vector<1x64xf32>
    %84 = vector.extract_strided_slice %21 {offsets = [3, 0], sizes = [1, 64], strides = [1, 1]} : vector<6x64xf32> to vector<1x64xf32>
    %c0_49 = arith.constant 0 : index
    %c0_50 = arith.constant 0 : index
    %85 = vector.load %arg43[%c0_49, %c0_50] : memref<64x64xf32, #tpu.memory_space<vmem>>, vector<64x64xf32>
    %cst_51 = arith.constant dense<0.000000e+00> : vector<64xf32>
    %86 = vector.multi_reduction <add>, %82, %cst_51 [0] : vector<21x64xf32> to vector<64xf32>
    %87 = vector.shape_cast %86 : vector<64xf32> to vector<1x64xf32>
    %cst_52 = arith.constant dense<0.000000e+00> : vector<1x64xf32>
    %88 = tpu.matmul %87, %85, %cst_52 {dimension_numbers = #tpu.dot_dimension_numbers<[1], [0], [0], [1], [0, 0, 1, 1], [], []>} : vector<1x64xf32>, vector<64x64xf32>, vector<1x64xf32> -> vector<1x64xf32>
    %cst_53 = arith.constant 0.00595238106 : f32
    %89 = vector.broadcast %cst_53 : f32 to vector<1x64xf32>
    %90 = arith.mulf %88, %89 : vector<1x64xf32>
    %91 = vector.broadcast %90 : vector<1x64xf32> to vector<21x64xf32>
    %92 = arith.subf %82, %91 : vector<21x64xf32>
    %93 = arith.mulf %92, %92 : vector<21x64xf32>
    %cst_54 = arith.constant dense<0.000000e+00> : vector<64xf32>
    %94 = vector.multi_reduction <add>, %93, %cst_54 [0] : vector<21x64xf32> to vector<64xf32>
    %95 = vector.shape_cast %94 : vector<64xf32> to vector<1x64xf32>
    %cst_55 = arith.constant dense<0.000000e+00> : vector<1x64xf32>
    %96 = tpu.matmul %95, %85, %cst_55 {dimension_numbers = #tpu.dot_dimension_numbers<[1], [0], [0], [1], [0, 0, 1, 1], [], []>} : vector<1x64xf32>, vector<64x64xf32>, vector<1x64xf32> -> vector<1x64xf32>
    %cst_56 = arith.constant 0.00595238106 : f32
    %97 = vector.broadcast %cst_56 : f32 to vector<1x64xf32>
    %98 = arith.mulf %96, %97 : vector<1x64xf32>
    %cst_57 = arith.constant 9.99999974E-6 : f32
    %99 = vector.broadcast %cst_57 : f32 to vector<1x64xf32>
    %100 = arith.addf %98, %99 : vector<1x64xf32>
    %101 = math.rsqrt %100 : vector<1x64xf32>
    %102 = arith.mulf %101, %83 : vector<1x64xf32>
    %103 = vector.broadcast %102 : vector<1x64xf32> to vector<21x64xf32>
    %104 = arith.mulf %92, %103 : vector<21x64xf32>
    %105 = vector.broadcast %84 : vector<1x64xf32> to vector<21x64xf32>
    %106 = arith.addf %104, %105 : vector<21x64xf32>
    %cst_58 = arith.constant 0.000000e+00 : f32
    %107 = vector.broadcast %cst_58 : f32 to vector<21x64xf32>
    %108 = arith.maximumf %106, %107 : vector<21x64xf32>
    %109 = vector.extract_strided_slice %22 {offsets = [0, 0], sizes = [1, 128], strides = [1, 1]} : vector<2x128xf32> to vector<1x128xf32>
    %110 = arith.truncf %108 : vector<21x64xf32> to vector<21x64xbf16>
    %c0_59 = arith.constant 0 : index
    %c0_60 = arith.constant 0 : index
    %111 = vector.load %arg8[%c0_59, %c0_60] : memref<64x128xbf16, #tpu.memory_space<vmem>>, vector<64x128xbf16>
    %cst_61 = arith.constant dense<0.000000e+00> : vector<21x128xf32>
    %112 = tpu.matmul %110, %111, %cst_61 {dimension_numbers = #tpu.dot_dimension_numbers<[1], [0], [0], [1], [0, 0, 1, 1], [], []>} : vector<21x64xbf16>, vector<64x128xbf16>, vector<21x128xf32> -> vector<21x128xf32>
    %113 = vector.broadcast %109 : vector<1x128xf32> to vector<21x128xf32>
    %114 = arith.addf %112, %113 : vector<21x128xf32>
    %115 = vector.extract_strided_slice %22 {offsets = [1, 0], sizes = [1, 128], strides = [1, 1]} : vector<2x128xf32> to vector<1x128xf32>
    %116 = arith.truncf %19 : vector<1x256xf32> to vector<1x256xbf16>
    %c0_62 = arith.constant 0 : index
    %c0_63 = arith.constant 0 : index
    %117 = vector.load %arg10[%c0_62, %c0_63] : memref<256x128xbf16, #tpu.memory_space<vmem>>, vector<256x128xbf16>
    %cst_64 = arith.constant dense<0.000000e+00> : vector<1x128xf32>
    %118 = tpu.matmul %116, %117, %cst_64 {dimension_numbers = #tpu.dot_dimension_numbers<[1], [0], [0], [1], [0, 0, 1, 1], [], []>} : vector<1x256xbf16>, vector<256x128xbf16>, vector<1x128xf32> -> vector<1x128xf32>
    %119 = arith.addf %118, %115 : vector<1x128xf32>
    %120 = vector.broadcast %119 : vector<1x128xf32> to vector<21x128xf32>
    %121 = arith.addf %114, %120 : vector<21x128xf32>
    %c0_65 = arith.constant 0 : index
    %c0_66 = arith.constant 0 : index
    %122 = vector.load %arg11[%c0_65, %c0_66] : memref<2x128xf32, #tpu.memory_space<vmem>>, vector<2x128xf32>
    %c0_67 = arith.constant 0 : index
    %c0_68 = arith.constant 0 : index
    %123 = vector.load %arg12[%c0_67, %c0_68] : memref<6x64xf32, #tpu.memory_space<vmem>>, vector<6x64xf32>
    %c0_69 = arith.constant 0 : index
    %c0_70 = arith.constant 0 : index
    %124 = vector.load %arg13[%c0_69, %c0_70] : memref<1x128xf32, #tpu.memory_space<vmem>>, vector<1x128xf32>
    %125 = vector.extract_strided_slice %122 {offsets = [0, 0], sizes = [1, 128], strides = [1, 1]} : vector<2x128xf32> to vector<1x128xf32>
    %126 = vector.extract_strided_slice %122 {offsets = [1, 0], sizes = [1, 128], strides = [1, 1]} : vector<2x128xf32> to vector<1x128xf32>
    %c0_71 = arith.constant 0 : index
    %c0_72 = arith.constant 0 : index
    %127 = vector.load %arg39[%c0_71, %c0_72] : memref<128x128xf32, #tpu.memory_space<vmem>>, vector<128x128xf32>
    %cst_73 = arith.constant dense<0.000000e+00> : vector<128xf32>
    %128 = vector.multi_reduction <add>, %121, %cst_73 [0] : vector<21x128xf32> to vector<128xf32>
    %129 = vector.shape_cast %128 : vector<128xf32> to vector<1x128xf32>
    %cst_74 = arith.constant dense<0.000000e+00> : vector<1x128xf32>
    %130 = tpu.matmul %129, %127, %cst_74 {dimension_numbers = #tpu.dot_dimension_numbers<[1], [0], [0], [1], [0, 0, 1, 1], [], []>} : vector<1x128xf32>, vector<128x128xf32>, vector<1x128xf32> -> vector<1x128xf32>
    %cst_75 = arith.constant 0.00595238106 : f32
    %131 = vector.broadcast %cst_75 : f32 to vector<1x128xf32>
    %132 = arith.mulf %130, %131 : vector<1x128xf32>
    %133 = vector.broadcast %132 : vector<1x128xf32> to vector<21x128xf32>
    %134 = arith.subf %121, %133 : vector<21x128xf32>
    %135 = arith.mulf %134, %134 : vector<21x128xf32>
    %cst_76 = arith.constant dense<0.000000e+00> : vector<128xf32>
    %136 = vector.multi_reduction <add>, %135, %cst_76 [0] : vector<21x128xf32> to vector<128xf32>
    %137 = vector.shape_cast %136 : vector<128xf32> to vector<1x128xf32>
    %cst_77 = arith.constant dense<0.000000e+00> : vector<1x128xf32>
    %138 = tpu.matmul %137, %127, %cst_77 {dimension_numbers = #tpu.dot_dimension_numbers<[1], [0], [0], [1], [0, 0, 1, 1], [], []>} : vector<1x128xf32>, vector<128x128xf32>, vector<1x128xf32> -> vector<1x128xf32>
    %cst_78 = arith.constant 0.00595238106 : f32
    %139 = vector.broadcast %cst_78 : f32 to vector<1x128xf32>
    %140 = arith.mulf %138, %139 : vector<1x128xf32>
    %cst_79 = arith.constant 9.99999974E-6 : f32
    %141 = vector.broadcast %cst_79 : f32 to vector<1x128xf32>
    %142 = arith.addf %140, %141 : vector<1x128xf32>
    %143 = math.rsqrt %142 : vector<1x128xf32>
    %144 = arith.mulf %143, %125 : vector<1x128xf32>
    %145 = vector.broadcast %144 : vector<1x128xf32> to vector<21x128xf32>
    %146 = arith.mulf %134, %145 : vector<21x128xf32>
    %147 = vector.broadcast %126 : vector<1x128xf32> to vector<21x128xf32>
    %148 = arith.addf %146, %147 : vector<21x128xf32>
    %cst_80 = arith.constant 0.000000e+00 : f32
    %149 = vector.broadcast %cst_80 : f32 to vector<21x128xf32>
    %150 = arith.maximumf %148, %149 : vector<21x128xf32>
    %151 = vector.extract_strided_slice %123 {offsets = [4, 0], sizes = [1, 64], strides = [1, 1]} : vector<6x64xf32> to vector<1x64xf32>
    %152 = arith.truncf %150 : vector<21x128xf32> to vector<21x128xbf16>
    %c0_81 = arith.constant 0 : index
    %c0_82 = arith.constant 0 : index
    %153 = vector.load %arg14[%c0_81, %c0_82] : memref<128x64xbf16, #tpu.memory_space<vmem>>, vector<128x64xbf16>
    %cst_83 = arith.constant dense<0.000000e+00> : vector<21x64xf32>
    %154 = tpu.matmul %152, %153, %cst_83 {dimension_numbers = #tpu.dot_dimension_numbers<[1], [0], [0], [1], [0, 0, 1, 1], [], []>} : vector<21x128xbf16>, vector<128x64xbf16>, vector<21x64xf32> -> vector<21x64xf32>
    %155 = vector.broadcast %151 : vector<1x64xf32> to vector<21x64xf32>
    %156 = arith.addf %154, %155 : vector<21x64xf32>
    %157 = vector.extract_strided_slice %123 {offsets = [0, 0], sizes = [1, 64], strides = [1, 1]} : vector<6x64xf32> to vector<1x64xf32>
    %158 = vector.extract_strided_slice %123 {offsets = [1, 0], sizes = [1, 64], strides = [1, 1]} : vector<6x64xf32> to vector<1x64xf32>
    %c0_84 = arith.constant 0 : index
    %c0_85 = arith.constant 0 : index
    %159 = vector.load %arg43[%c0_84, %c0_85] : memref<64x64xf32, #tpu.memory_space<vmem>>, vector<64x64xf32>
    %cst_86 = arith.constant dense<0.000000e+00> : vector<64xf32>
    %160 = vector.multi_reduction <add>, %156, %cst_86 [0] : vector<21x64xf32> to vector<64xf32>
    %161 = vector.shape_cast %160 : vector<64xf32> to vector<1x64xf32>
    %cst_87 = arith.constant dense<0.000000e+00> : vector<1x64xf32>
    %162 = tpu.matmul %161, %159, %cst_87 {dimension_numbers = #tpu.dot_dimension_numbers<[1], [0], [0], [1], [0, 0, 1, 1], [], []>} : vector<1x64xf32>, vector<64x64xf32>, vector<1x64xf32> -> vector<1x64xf32>
    %cst_88 = arith.constant 0.00595238106 : f32
    %163 = vector.broadcast %cst_88 : f32 to vector<1x64xf32>
    %164 = arith.mulf %162, %163 : vector<1x64xf32>
    %165 = vector.broadcast %164 : vector<1x64xf32> to vector<21x64xf32>
    %166 = arith.subf %156, %165 : vector<21x64xf32>
    %167 = arith.mulf %166, %166 : vector<21x64xf32>
    %cst_89 = arith.constant dense<0.000000e+00> : vector<64xf32>
    %168 = vector.multi_reduction <add>, %167, %cst_89 [0] : vector<21x64xf32> to vector<64xf32>
    %169 = vector.shape_cast %168 : vector<64xf32> to vector<1x64xf32>
    %cst_90 = arith.constant dense<0.000000e+00> : vector<1x64xf32>
    %170 = tpu.matmul %169, %159, %cst_90 {dimension_numbers = #tpu.dot_dimension_numbers<[1], [0], [0], [1], [0, 0, 1, 1], [], []>} : vector<1x64xf32>, vector<64x64xf32>, vector<1x64xf32> -> vector<1x64xf32>
    %cst_91 = arith.constant 0.00595238106 : f32
    %171 = vector.broadcast %cst_91 : f32 to vector<1x64xf32>
    %172 = arith.mulf %170, %171 : vector<1x64xf32>
    %cst_92 = arith.constant 9.99999974E-6 : f32
    %173 = vector.broadcast %cst_92 : f32 to vector<1x64xf32>
    %174 = arith.addf %172, %173 : vector<1x64xf32>
    %175 = math.rsqrt %174 : vector<1x64xf32>
    %176 = arith.mulf %175, %157 : vector<1x64xf32>
    %177 = vector.broadcast %176 : vector<1x64xf32> to vector<21x64xf32>
    %178 = arith.mulf %166, %177 : vector<21x64xf32>
    %179 = vector.broadcast %158 : vector<1x64xf32> to vector<21x64xf32>
    %180 = arith.addf %178, %179 : vector<21x64xf32>
    %cst_93 = arith.constant 0.000000e+00 : f32
    %181 = vector.broadcast %cst_93 : f32 to vector<21x64xf32>
    %182 = arith.maximumf %180, %181 : vector<21x64xf32>
    %183 = arith.truncf %182 : vector<21x64xf32> to vector<21x64xbf16>
    %c0_94 = arith.constant 0 : index
    %c0_95 = arith.constant 0 : index
    %184 = vector.load %arg16[%c0_94, %c0_95] : memref<64x64xbf16, #tpu.memory_space<vmem>>, vector<64x64xbf16>
    %cst_96 = arith.constant dense<0.000000e+00> : vector<21x64xf32>
    %185 = tpu.matmul %183, %184, %cst_96 {dimension_numbers = #tpu.dot_dimension_numbers<[1], [0], [0], [1], [0, 0, 1, 1], [], []>} : vector<21x64xbf16>, vector<64x64xbf16>, vector<21x64xf32> -> vector<21x64xf32>
    %186 = arith.truncf %185 : vector<21x64xf32> to vector<21x64xbf16>
    %cst_97 = arith.constant dense<0.000000e+00> : vector<21x64xf32>
    %187 = tpu.matmul %0, %186, %cst_97 {dimension_numbers = #tpu.dot_dimension_numbers<[1], [0], [0], [1], [0, 0, 1, 1], [], []>} : vector<21x21xbf16>, vector<21x64xbf16>, vector<21x64xf32> -> vector<21x64xf32>
    %188 = vector.extract_strided_slice %123 {offsets = [5, 0], sizes = [1, 64], strides = [1, 1]} : vector<6x64xf32> to vector<1x64xf32>
    %189 = vector.broadcast %188 : vector<1x64xf32> to vector<21x64xf32>
    %190 = arith.addf %187, %189 : vector<21x64xf32>
    %191 = vector.extract_strided_slice %123 {offsets = [2, 0], sizes = [1, 64], strides = [1, 1]} : vector<6x64xf32> to vector<1x64xf32>
    %192 = vector.extract_strided_slice %123 {offsets = [3, 0], sizes = [1, 64], strides = [1, 1]} : vector<6x64xf32> to vector<1x64xf32>
    %c0_98 = arith.constant 0 : index
    %c0_99 = arith.constant 0 : index
    %193 = vector.load %arg43[%c0_98, %c0_99] : memref<64x64xf32, #tpu.memory_space<vmem>>, vector<64x64xf32>
    %cst_100 = arith.constant dense<0.000000e+00> : vector<64xf32>
    %194 = vector.multi_reduction <add>, %190, %cst_100 [0] : vector<21x64xf32> to vector<64xf32>
    %195 = vector.shape_cast %194 : vector<64xf32> to vector<1x64xf32>
    %cst_101 = arith.constant dense<0.000000e+00> : vector<1x64xf32>
    %196 = tpu.matmul %195, %193, %cst_101 {dimension_numbers = #tpu.dot_dimension_numbers<[1], [0], [0], [1], [0, 0, 1, 1], [], []>} : vector<1x64xf32>, vector<64x64xf32>, vector<1x64xf32> -> vector<1x64xf32>
    %cst_102 = arith.constant 0.00595238106 : f32
    %197 = vector.broadcast %cst_102 : f32 to vector<1x64xf32>
    %198 = arith.mulf %196, %197 : vector<1x64xf32>
    %199 = vector.broadcast %198 : vector<1x64xf32> to vector<21x64xf32>
    %200 = arith.subf %190, %199 : vector<21x64xf32>
    %201 = arith.mulf %200, %200 : vector<21x64xf32>
    %cst_103 = arith.constant dense<0.000000e+00> : vector<64xf32>
    %202 = vector.multi_reduction <add>, %201, %cst_103 [0] : vector<21x64xf32> to vector<64xf32>
    %203 = vector.shape_cast %202 : vector<64xf32> to vector<1x64xf32>
    %cst_104 = arith.constant dense<0.000000e+00> : vector<1x64xf32>
    %204 = tpu.matmul %203, %193, %cst_104 {dimension_numbers = #tpu.dot_dimension_numbers<[1], [0], [0], [1], [0, 0, 1, 1], [], []>} : vector<1x64xf32>, vector<64x64xf32>, vector<1x64xf32> -> vector<1x64xf32>
    %cst_105 = arith.constant 0.00595238106 : f32
    %205 = vector.broadcast %cst_105 : f32 to vector<1x64xf32>
    %206 = arith.mulf %204, %205 : vector<1x64xf32>
    %cst_106 = arith.constant 9.99999974E-6 : f32
    %207 = vector.broadcast %cst_106 : f32 to vector<1x64xf32>
    %208 = arith.addf %206, %207 : vector<1x64xf32>
    %209 = math.rsqrt %208 : vector<1x64xf32>
    %210 = arith.mulf %209, %191 : vector<1x64xf32>
    %211 = vector.broadcast %210 : vector<1x64xf32> to vector<21x64xf32>
    %212 = arith.mulf %200, %211 : vector<21x64xf32>
    %213 = vector.broadcast %192 : vector<1x64xf32> to vector<21x64xf32>
    %214 = arith.addf %212, %213 : vector<21x64xf32>
    %cst_107 = arith.constant 0.000000e+00 : f32
    %215 = vector.broadcast %cst_107 : f32 to vector<21x64xf32>
    %216 = arith.maximumf %214, %215 : vector<21x64xf32>
    %217 = arith.truncf %216 : vector<21x64xf32> to vector<21x64xbf16>
    %c0_108 = arith.constant 0 : index
    %c0_109 = arith.constant 0 : index
    %218 = vector.load %arg15[%c0_108, %c0_109] : memref<64x128xbf16, #tpu.memory_space<vmem>>, vector<64x128xbf16>
    %cst_110 = arith.constant dense<0.000000e+00> : vector<21x128xf32>
    %219 = tpu.matmul %217, %218, %cst_110 {dimension_numbers = #tpu.dot_dimension_numbers<[1], [0], [0], [1], [0, 0, 1, 1], [], []>} : vector<21x64xbf16>, vector<64x128xbf16>, vector<21x128xf32> -> vector<21x128xf32>
    %220 = vector.broadcast %124 : vector<1x128xf32> to vector<21x128xf32>
    %221 = arith.addf %219, %220 : vector<21x128xf32>
    %222 = arith.addf %221, %121 : vector<21x128xf32>
    %c0_111 = arith.constant 0 : index
    %c0_112 = arith.constant 0 : index
    %223 = vector.load %arg17[%c0_111, %c0_112] : memref<2x128xf32, #tpu.memory_space<vmem>>, vector<2x128xf32>
    %c0_113 = arith.constant 0 : index
    %c0_114 = arith.constant 0 : index
    %224 = vector.load %arg18[%c0_113, %c0_114] : memref<6x64xf32, #tpu.memory_space<vmem>>, vector<6x64xf32>
    %c0_115 = arith.constant 0 : index
    %c0_116 = arith.constant 0 : index
    %225 = vector.load %arg19[%c0_115, %c0_116] : memref<1x128xf32, #tpu.memory_space<vmem>>, vector<1x128xf32>
    %226 = vector.extract_strided_slice %223 {offsets = [0, 0], sizes = [1, 128], strides = [1, 1]} : vector<2x128xf32> to vector<1x128xf32>
    %227 = vector.extract_strided_slice %223 {offsets = [1, 0], sizes = [1, 128], strides = [1, 1]} : vector<2x128xf32> to vector<1x128xf32>
    %c0_117 = arith.constant 0 : index
    %c0_118 = arith.constant 0 : index
    %228 = vector.load %arg39[%c0_117, %c0_118] : memref<128x128xf32, #tpu.memory_space<vmem>>, vector<128x128xf32>
    %cst_119 = arith.constant dense<0.000000e+00> : vector<128xf32>
    %229 = vector.multi_reduction <add>, %222, %cst_119 [0] : vector<21x128xf32> to vector<128xf32>
    %230 = vector.shape_cast %229 : vector<128xf32> to vector<1x128xf32>
    %cst_120 = arith.constant dense<0.000000e+00> : vector<1x128xf32>
    %231 = tpu.matmul %230, %228, %cst_120 {dimension_numbers = #tpu.dot_dimension_numbers<[1], [0], [0], [1], [0, 0, 1, 1], [], []>} : vector<1x128xf32>, vector<128x128xf32>, vector<1x128xf32> -> vector<1x128xf32>
    %cst_121 = arith.constant 0.00595238106 : f32
    %232 = vector.broadcast %cst_121 : f32 to vector<1x128xf32>
    %233 = arith.mulf %231, %232 : vector<1x128xf32>
    %234 = vector.broadcast %233 : vector<1x128xf32> to vector<21x128xf32>
    %235 = arith.subf %222, %234 : vector<21x128xf32>
    %236 = arith.mulf %235, %235 : vector<21x128xf32>
    %cst_122 = arith.constant dense<0.000000e+00> : vector<128xf32>
    %237 = vector.multi_reduction <add>, %236, %cst_122 [0] : vector<21x128xf32> to vector<128xf32>
    %238 = vector.shape_cast %237 : vector<128xf32> to vector<1x128xf32>
    %cst_123 = arith.constant dense<0.000000e+00> : vector<1x128xf32>
    %239 = tpu.matmul %238, %228, %cst_123 {dimension_numbers = #tpu.dot_dimension_numbers<[1], [0], [0], [1], [0, 0, 1, 1], [], []>} : vector<1x128xf32>, vector<128x128xf32>, vector<1x128xf32> -> vector<1x128xf32>
    %cst_124 = arith.constant 0.00595238106 : f32
    %240 = vector.broadcast %cst_124 : f32 to vector<1x128xf32>
    %241 = arith.mulf %239, %240 : vector<1x128xf32>
    %cst_125 = arith.constant 9.99999974E-6 : f32
    %242 = vector.broadcast %cst_125 : f32 to vector<1x128xf32>
    %243 = arith.addf %241, %242 : vector<1x128xf32>
    %244 = math.rsqrt %243 : vector<1x128xf32>
    %245 = arith.mulf %244, %226 : vector<1x128xf32>
    %246 = vector.broadcast %245 : vector<1x128xf32> to vector<21x128xf32>
    %247 = arith.mulf %235, %246 : vector<21x128xf32>
    %248 = vector.broadcast %227 : vector<1x128xf32> to vector<21x128xf32>
    %249 = arith.addf %247, %248 : vector<21x128xf32>
    %cst_126 = arith.constant 0.000000e+00 : f32
    %250 = vector.broadcast %cst_126 : f32 to vector<21x128xf32>
    %251 = arith.maximumf %249, %250 : vector<21x128xf32>
    %252 = vector.extract_strided_slice %224 {offsets = [4, 0], sizes = [1, 64], strides = [1, 1]} : vector<6x64xf32> to vector<1x64xf32>
    %253 = arith.truncf %251 : vector<21x128xf32> to vector<21x128xbf16>
    %c0_127 = arith.constant 0 : index
    %c0_128 = arith.constant 0 : index
    %254 = vector.load %arg20[%c0_127, %c0_128] : memref<128x64xbf16, #tpu.memory_space<vmem>>, vector<128x64xbf16>
    %cst_129 = arith.constant dense<0.000000e+00> : vector<21x64xf32>
    %255 = tpu.matmul %253, %254, %cst_129 {dimension_numbers = #tpu.dot_dimension_numbers<[1], [0], [0], [1], [0, 0, 1, 1], [], []>} : vector<21x128xbf16>, vector<128x64xbf16>, vector<21x64xf32> -> vector<21x64xf32>
    %256 = vector.broadcast %252 : vector<1x64xf32> to vector<21x64xf32>
    %257 = arith.addf %255, %256 : vector<21x64xf32>
    %258 = vector.extract_strided_slice %224 {offsets = [0, 0], sizes = [1, 64], strides = [1, 1]} : vector<6x64xf32> to vector<1x64xf32>
    %259 = vector.extract_strided_slice %224 {offsets = [1, 0], sizes = [1, 64], strides = [1, 1]} : vector<6x64xf32> to vector<1x64xf32>
    %c0_130 = arith.constant 0 : index
    %c0_131 = arith.constant 0 : index
    %260 = vector.load %arg43[%c0_130, %c0_131] : memref<64x64xf32, #tpu.memory_space<vmem>>, vector<64x64xf32>
    %cst_132 = arith.constant dense<0.000000e+00> : vector<64xf32>
    %261 = vector.multi_reduction <add>, %257, %cst_132 [0] : vector<21x64xf32> to vector<64xf32>
    %262 = vector.shape_cast %261 : vector<64xf32> to vector<1x64xf32>
    %cst_133 = arith.constant dense<0.000000e+00> : vector<1x64xf32>
    %263 = tpu.matmul %262, %260, %cst_133 {dimension_numbers = #tpu.dot_dimension_numbers<[1], [0], [0], [1], [0, 0, 1, 1], [], []>} : vector<1x64xf32>, vector<64x64xf32>, vector<1x64xf32> -> vector<1x64xf32>
    %cst_134 = arith.constant 0.00595238106 : f32
    %264 = vector.broadcast %cst_134 : f32 to vector<1x64xf32>
    %265 = arith.mulf %263, %264 : vector<1x64xf32>
    %266 = vector.broadcast %265 : vector<1x64xf32> to vector<21x64xf32>
    %267 = arith.subf %257, %266 : vector<21x64xf32>
    %268 = arith.mulf %267, %267 : vector<21x64xf32>
    %cst_135 = arith.constant dense<0.000000e+00> : vector<64xf32>
    %269 = vector.multi_reduction <add>, %268, %cst_135 [0] : vector<21x64xf32> to vector<64xf32>
    %270 = vector.shape_cast %269 : vector<64xf32> to vector<1x64xf32>
    %cst_136 = arith.constant dense<0.000000e+00> : vector<1x64xf32>
    %271 = tpu.matmul %270, %260, %cst_136 {dimension_numbers = #tpu.dot_dimension_numbers<[1], [0], [0], [1], [0, 0, 1, 1], [], []>} : vector<1x64xf32>, vector<64x64xf32>, vector<1x64xf32> -> vector<1x64xf32>
    %cst_137 = arith.constant 0.00595238106 : f32
    %272 = vector.broadcast %cst_137 : f32 to vector<1x64xf32>
    %273 = arith.mulf %271, %272 : vector<1x64xf32>
    %cst_138 = arith.constant 9.99999974E-6 : f32
    %274 = vector.broadcast %cst_138 : f32 to vector<1x64xf32>
    %275 = arith.addf %273, %274 : vector<1x64xf32>
    %276 = math.rsqrt %275 : vector<1x64xf32>
    %277 = arith.mulf %276, %258 : vector<1x64xf32>
    %278 = vector.broadcast %277 : vector<1x64xf32> to vector<21x64xf32>
    %279 = arith.mulf %267, %278 : vector<21x64xf32>
    %280 = vector.broadcast %259 : vector<1x64xf32> to vector<21x64xf32>
    %281 = arith.addf %279, %280 : vector<21x64xf32>
    %cst_139 = arith.constant 0.000000e+00 : f32
    %282 = vector.broadcast %cst_139 : f32 to vector<21x64xf32>
    %283 = arith.maximumf %281, %282 : vector<21x64xf32>
    %284 = arith.truncf %283 : vector<21x64xf32> to vector<21x64xbf16>
    %c0_140 = arith.constant 0 : index
    %c0_141 = arith.constant 0 : index
    %285 = vector.load %arg22[%c0_140, %c0_141] : memref<64x64xbf16, #tpu.memory_space<vmem>>, vector<64x64xbf16>
    %cst_142 = arith.constant dense<0.000000e+00> : vector<21x64xf32>
    %286 = tpu.matmul %284, %285, %cst_142 {dimension_numbers = #tpu.dot_dimension_numbers<[1], [0], [0], [1], [0, 0, 1, 1], [], []>} : vector<21x64xbf16>, vector<64x64xbf16>, vector<21x64xf32> -> vector<21x64xf32>
    %287 = arith.truncf %286 : vector<21x64xf32> to vector<21x64xbf16>
    %cst_143 = arith.constant dense<0.000000e+00> : vector<21x64xf32>
    %288 = tpu.matmul %0, %287, %cst_143 {dimension_numbers = #tpu.dot_dimension_numbers<[1], [0], [0], [1], [0, 0, 1, 1], [], []>} : vector<21x21xbf16>, vector<21x64xbf16>, vector<21x64xf32> -> vector<21x64xf32>
    %289 = vector.extract_strided_slice %224 {offsets = [5, 0], sizes = [1, 64], strides = [1, 1]} : vector<6x64xf32> to vector<1x64xf32>
    %290 = vector.broadcast %289 : vector<1x64xf32> to vector<21x64xf32>
    %291 = arith.addf %288, %290 : vector<21x64xf32>
    %292 = vector.extract_strided_slice %224 {offsets = [2, 0], sizes = [1, 64], strides = [1, 1]} : vector<6x64xf32> to vector<1x64xf32>
    %293 = vector.extract_strided_slice %224 {offsets = [3, 0], sizes = [1, 64], strides = [1, 1]} : vector<6x64xf32> to vector<1x64xf32>
    %c0_144 = arith.constant 0 : index
    %c0_145 = arith.constant 0 : index
    %294 = vector.load %arg43[%c0_144, %c0_145] : memref<64x64xf32, #tpu.memory_space<vmem>>, vector<64x64xf32>
    %cst_146 = arith.constant dense<0.000000e+00> : vector<64xf32>
    %295 = vector.multi_reduction <add>, %291, %cst_146 [0] : vector<21x64xf32> to vector<64xf32>
    %296 = vector.shape_cast %295 : vector<64xf32> to vector<1x64xf32>
    %cst_147 = arith.constant dense<0.000000e+00> : vector<1x64xf32>
    %297 = tpu.matmul %296, %294, %cst_147 {dimension_numbers = #tpu.dot_dimension_numbers<[1], [0], [0], [1], [0, 0, 1, 1], [], []>} : vector<1x64xf32>, vector<64x64xf32>, vector<1x64xf32> -> vector<1x64xf32>
    %cst_148 = arith.constant 0.00595238106 : f32
    %298 = vector.broadcast %cst_148 : f32 to vector<1x64xf32>
    %299 = arith.mulf %297, %298 : vector<1x64xf32>
    %300 = vector.broadcast %299 : vector<1x64xf32> to vector<21x64xf32>
    %301 = arith.subf %291, %300 : vector<21x64xf32>
    %302 = arith.mulf %301, %301 : vector<21x64xf32>
    %cst_149 = arith.constant dense<0.000000e+00> : vector<64xf32>
    %303 = vector.multi_reduction <add>, %302, %cst_149 [0] : vector<21x64xf32> to vector<64xf32>
    %304 = vector.shape_cast %303 : vector<64xf32> to vector<1x64xf32>
    %cst_150 = arith.constant dense<0.000000e+00> : vector<1x64xf32>
    %305 = tpu.matmul %304, %294, %cst_150 {dimension_numbers = #tpu.dot_dimension_numbers<[1], [0], [0], [1], [0, 0, 1, 1], [], []>} : vector<1x64xf32>, vector<64x64xf32>, vector<1x64xf32> -> vector<1x64xf32>
    %cst_151 = arith.constant 0.00595238106 : f32
    %306 = vector.broadcast %cst_151 : f32 to vector<1x64xf32>
    %307 = arith.mulf %305, %306 : vector<1x64xf32>
    %cst_152 = arith.constant 9.99999974E-6 : f32
    %308 = vector.broadcast %cst_152 : f32 to vector<1x64xf32>
    %309 = arith.addf %307, %308 : vector<1x64xf32>
    %310 = math.rsqrt %309 : vector<1x64xf32>
    %311 = arith.mulf %310, %292 : vector<1x64xf32>
    %312 = vector.broadcast %311 : vector<1x64xf32> to vector<21x64xf32>
    %313 = arith.mulf %301, %312 : vector<21x64xf32>
    %314 = vector.broadcast %293 : vector<1x64xf32> to vector<21x64xf32>
    %315 = arith.addf %313, %314 : vector<21x64xf32>
    %cst_153 = arith.constant 0.000000e+00 : f32
    %316 = vector.broadcast %cst_153 : f32 to vector<21x64xf32>
    %317 = arith.maximumf %315, %316 : vector<21x64xf32>
    %318 = arith.truncf %317 : vector<21x64xf32> to vector<21x64xbf16>
    %c0_154 = arith.constant 0 : index
    %c0_155 = arith.constant 0 : index
    %319 = vector.load %arg21[%c0_154, %c0_155] : memref<64x128xbf16, #tpu.memory_space<vmem>>, vector<64x128xbf16>
    %cst_156 = arith.constant dense<0.000000e+00> : vector<21x128xf32>
    %320 = tpu.matmul %318, %319, %cst_156 {dimension_numbers = #tpu.dot_dimension_numbers<[1], [0], [0], [1], [0, 0, 1, 1], [], []>} : vector<21x64xbf16>, vector<64x128xbf16>, vector<21x128xf32> -> vector<21x128xf32>
    %321 = vector.broadcast %225 : vector<1x128xf32> to vector<21x128xf32>
    %322 = arith.addf %320, %321 : vector<21x128xf32>
    %323 = arith.addf %322, %222 : vector<21x128xf32>
    %c0_157 = arith.constant 0 : index
    %c0_158 = arith.constant 0 : index
    %324 = vector.load %arg23[%c0_157, %c0_158] : memref<2x128xf32, #tpu.memory_space<vmem>>, vector<2x128xf32>
    %c0_159 = arith.constant 0 : index
    %c0_160 = arith.constant 0 : index
    %325 = vector.load %arg24[%c0_159, %c0_160] : memref<6x32xf32, #tpu.memory_space<vmem>>, vector<6x32xf32>
    %c0_161 = arith.constant 0 : index
    %c0_162 = arith.constant 0 : index
    %326 = vector.load %arg25[%c0_161, %c0_162] : memref<2x64xf32, #tpu.memory_space<vmem>>, vector<2x64xf32>
    %327 = vector.extract_strided_slice %324 {offsets = [0, 0], sizes = [1, 128], strides = [1, 1]} : vector<2x128xf32> to vector<1x128xf32>
    %328 = vector.extract_strided_slice %324 {offsets = [1, 0], sizes = [1, 128], strides = [1, 1]} : vector<2x128xf32> to vector<1x128xf32>
    %c0_163 = arith.constant 0 : index
    %c0_164 = arith.constant 0 : index
    %329 = vector.load %arg39[%c0_163, %c0_164] : memref<128x128xf32, #tpu.memory_space<vmem>>, vector<128x128xf32>
    %cst_165 = arith.constant dense<0.000000e+00> : vector<128xf32>
    %330 = vector.multi_reduction <add>, %323, %cst_165 [0] : vector<21x128xf32> to vector<128xf32>
    %331 = vector.shape_cast %330 : vector<128xf32> to vector<1x128xf32>
    %cst_166 = arith.constant dense<0.000000e+00> : vector<1x128xf32>
    %332 = tpu.matmul %331, %329, %cst_166 {dimension_numbers = #tpu.dot_dimension_numbers<[1], [0], [0], [1], [0, 0, 1, 1], [], []>} : vector<1x128xf32>, vector<128x128xf32>, vector<1x128xf32> -> vector<1x128xf32>
    %cst_167 = arith.constant 0.00595238106 : f32
    %333 = vector.broadcast %cst_167 : f32 to vector<1x128xf32>
    %334 = arith.mulf %332, %333 : vector<1x128xf32>
    %335 = vector.broadcast %334 : vector<1x128xf32> to vector<21x128xf32>
    %336 = arith.subf %323, %335 : vector<21x128xf32>
    %337 = arith.mulf %336, %336 : vector<21x128xf32>
    %cst_168 = arith.constant dense<0.000000e+00> : vector<128xf32>
    %338 = vector.multi_reduction <add>, %337, %cst_168 [0] : vector<21x128xf32> to vector<128xf32>
    %339 = vector.shape_cast %338 : vector<128xf32> to vector<1x128xf32>
    %cst_169 = arith.constant dense<0.000000e+00> : vector<1x128xf32>
    %340 = tpu.matmul %339, %329, %cst_169 {dimension_numbers = #tpu.dot_dimension_numbers<[1], [0], [0], [1], [0, 0, 1, 1], [], []>} : vector<1x128xf32>, vector<128x128xf32>, vector<1x128xf32> -> vector<1x128xf32>
    %cst_170 = arith.constant 0.00595238106 : f32
    %341 = vector.broadcast %cst_170 : f32 to vector<1x128xf32>
    %342 = arith.mulf %340, %341 : vector<1x128xf32>
    %cst_171 = arith.constant 9.99999974E-6 : f32
    %343 = vector.broadcast %cst_171 : f32 to vector<1x128xf32>
    %344 = arith.addf %342, %343 : vector<1x128xf32>
    %345 = math.rsqrt %344 : vector<1x128xf32>
    %346 = arith.mulf %345, %327 : vector<1x128xf32>
    %347 = vector.broadcast %346 : vector<1x128xf32> to vector<21x128xf32>
    %348 = arith.mulf %336, %347 : vector<21x128xf32>
    %349 = vector.broadcast %328 : vector<1x128xf32> to vector<21x128xf32>
    %350 = arith.addf %348, %349 : vector<21x128xf32>
    %cst_172 = arith.constant 0.000000e+00 : f32
    %351 = vector.broadcast %cst_172 : f32 to vector<21x128xf32>
    %352 = arith.maximumf %350, %351 : vector<21x128xf32>
    %353 = vector.extract_strided_slice %325 {offsets = [4, 0], sizes = [1, 32], strides = [1, 1]} : vector<6x32xf32> to vector<1x32xf32>
    %354 = arith.truncf %352 : vector<21x128xf32> to vector<21x128xbf16>
    %c0_173 = arith.constant 0 : index
    %c0_174 = arith.constant 0 : index
    %355 = vector.load %arg26[%c0_173, %c0_174] : memref<128x32xbf16, #tpu.memory_space<vmem>>, vector<128x32xbf16>
    %cst_175 = arith.constant dense<0.000000e+00> : vector<21x32xf32>
    %356 = tpu.matmul %354, %355, %cst_175 {dimension_numbers = #tpu.dot_dimension_numbers<[1], [0], [0], [1], [0, 0, 1, 1], [], []>} : vector<21x128xbf16>, vector<128x32xbf16>, vector<21x32xf32> -> vector<21x32xf32>
    %357 = vector.broadcast %353 : vector<1x32xf32> to vector<21x32xf32>
    %358 = arith.addf %356, %357 : vector<21x32xf32>
    %359 = vector.extract_strided_slice %325 {offsets = [0, 0], sizes = [1, 32], strides = [1, 1]} : vector<6x32xf32> to vector<1x32xf32>
    %360 = vector.extract_strided_slice %325 {offsets = [1, 0], sizes = [1, 32], strides = [1, 1]} : vector<6x32xf32> to vector<1x32xf32>
    %c0_176 = arith.constant 0 : index
    %c0_177 = arith.constant 0 : index
    %361 = vector.load %arg42[%c0_176, %c0_177] : memref<32x32xf32, #tpu.memory_space<vmem>>, vector<32x32xf32>
    %cst_178 = arith.constant dense<0.000000e+00> : vector<32xf32>
    %362 = vector.multi_reduction <add>, %358, %cst_178 [0] : vector<21x32xf32> to vector<32xf32>
    %363 = vector.shape_cast %362 : vector<32xf32> to vector<1x32xf32>
    %cst_179 = arith.constant dense<0.000000e+00> : vector<1x32xf32>
    %364 = tpu.matmul %363, %361, %cst_179 {dimension_numbers = #tpu.dot_dimension_numbers<[1], [0], [0], [1], [0, 0, 1, 1], [], []>} : vector<1x32xf32>, vector<32x32xf32>, vector<1x32xf32> -> vector<1x32xf32>
    %cst_180 = arith.constant 0.00595238106 : f32
    %365 = vector.broadcast %cst_180 : f32 to vector<1x32xf32>
    %366 = arith.mulf %364, %365 : vector<1x32xf32>
    %367 = vector.broadcast %366 : vector<1x32xf32> to vector<21x32xf32>
    %368 = arith.subf %358, %367 : vector<21x32xf32>
    %369 = arith.mulf %368, %368 : vector<21x32xf32>
    %cst_181 = arith.constant dense<0.000000e+00> : vector<32xf32>
    %370 = vector.multi_reduction <add>, %369, %cst_181 [0] : vector<21x32xf32> to vector<32xf32>
    %371 = vector.shape_cast %370 : vector<32xf32> to vector<1x32xf32>
    %cst_182 = arith.constant dense<0.000000e+00> : vector<1x32xf32>
    %372 = tpu.matmul %371, %361, %cst_182 {dimension_numbers = #tpu.dot_dimension_numbers<[1], [0], [0], [1], [0, 0, 1, 1], [], []>} : vector<1x32xf32>, vector<32x32xf32>, vector<1x32xf32> -> vector<1x32xf32>
    %cst_183 = arith.constant 0.00595238106 : f32
    %373 = vector.broadcast %cst_183 : f32 to vector<1x32xf32>
    %374 = arith.mulf %372, %373 : vector<1x32xf32>
    %cst_184 = arith.constant 9.99999974E-6 : f32
    %375 = vector.broadcast %cst_184 : f32 to vector<1x32xf32>
    %376 = arith.addf %374, %375 : vector<1x32xf32>
    %377 = math.rsqrt %376 : vector<1x32xf32>
    %378 = arith.mulf %377, %359 : vector<1x32xf32>
    %379 = vector.broadcast %378 : vector<1x32xf32> to vector<21x32xf32>
    %380 = arith.mulf %368, %379 : vector<21x32xf32>
    %381 = vector.broadcast %360 : vector<1x32xf32> to vector<21x32xf32>
    %382 = arith.addf %380, %381 : vector<21x32xf32>
    %cst_185 = arith.constant 0.000000e+00 : f32
    %383 = vector.broadcast %cst_185 : f32 to vector<21x32xf32>
    %384 = arith.maximumf %382, %383 : vector<21x32xf32>
    %385 = arith.truncf %384 : vector<21x32xf32> to vector<21x32xbf16>
    %c0_186 = arith.constant 0 : index
    %c0_187 = arith.constant 0 : index
    %386 = vector.load %arg28[%c0_186, %c0_187] : memref<32x32xbf16, #tpu.memory_space<vmem>>, vector<32x32xbf16>
    %cst_188 = arith.constant dense<0.000000e+00> : vector<21x32xf32>
    %387 = tpu.matmul %385, %386, %cst_188 {dimension_numbers = #tpu.dot_dimension_numbers<[1], [0], [0], [1], [0, 0, 1, 1], [], []>} : vector<21x32xbf16>, vector<32x32xbf16>, vector<21x32xf32> -> vector<21x32xf32>
    %388 = arith.truncf %387 : vector<21x32xf32> to vector<21x32xbf16>
    %cst_189 = arith.constant dense<0.000000e+00> : vector<21x32xf32>
    %389 = tpu.matmul %0, %388, %cst_189 {dimension_numbers = #tpu.dot_dimension_numbers<[1], [0], [0], [1], [0, 0, 1, 1], [], []>} : vector<21x21xbf16>, vector<21x32xbf16>, vector<21x32xf32> -> vector<21x32xf32>
    %390 = vector.extract_strided_slice %325 {offsets = [5, 0], sizes = [1, 32], strides = [1, 1]} : vector<6x32xf32> to vector<1x32xf32>
    %391 = vector.broadcast %390 : vector<1x32xf32> to vector<21x32xf32>
    %392 = arith.addf %389, %391 : vector<21x32xf32>
    %393 = vector.extract_strided_slice %325 {offsets = [2, 0], sizes = [1, 32], strides = [1, 1]} : vector<6x32xf32> to vector<1x32xf32>
    %394 = vector.extract_strided_slice %325 {offsets = [3, 0], sizes = [1, 32], strides = [1, 1]} : vector<6x32xf32> to vector<1x32xf32>
    %c0_190 = arith.constant 0 : index
    %c0_191 = arith.constant 0 : index
    %395 = vector.load %arg42[%c0_190, %c0_191] : memref<32x32xf32, #tpu.memory_space<vmem>>, vector<32x32xf32>
    %cst_192 = arith.constant dense<0.000000e+00> : vector<32xf32>
    %396 = vector.multi_reduction <add>, %392, %cst_192 [0] : vector<21x32xf32> to vector<32xf32>
    %397 = vector.shape_cast %396 : vector<32xf32> to vector<1x32xf32>
    %cst_193 = arith.constant dense<0.000000e+00> : vector<1x32xf32>
    %398 = tpu.matmul %397, %395, %cst_193 {dimension_numbers = #tpu.dot_dimension_numbers<[1], [0], [0], [1], [0, 0, 1, 1], [], []>} : vector<1x32xf32>, vector<32x32xf32>, vector<1x32xf32> -> vector<1x32xf32>
    %cst_194 = arith.constant 0.00595238106 : f32
    %399 = vector.broadcast %cst_194 : f32 to vector<1x32xf32>
    %400 = arith.mulf %398, %399 : vector<1x32xf32>
    %401 = vector.broadcast %400 : vector<1x32xf32> to vector<21x32xf32>
    %402 = arith.subf %392, %401 : vector<21x32xf32>
    %403 = arith.mulf %402, %402 : vector<21x32xf32>
    %cst_195 = arith.constant dense<0.000000e+00> : vector<32xf32>
    %404 = vector.multi_reduction <add>, %403, %cst_195 [0] : vector<21x32xf32> to vector<32xf32>
    %405 = vector.shape_cast %404 : vector<32xf32> to vector<1x32xf32>
    %cst_196 = arith.constant dense<0.000000e+00> : vector<1x32xf32>
    %406 = tpu.matmul %405, %395, %cst_196 {dimension_numbers = #tpu.dot_dimension_numbers<[1], [0], [0], [1], [0, 0, 1, 1], [], []>} : vector<1x32xf32>, vector<32x32xf32>, vector<1x32xf32> -> vector<1x32xf32>
    %cst_197 = arith.constant 0.00595238106 : f32
    %407 = vector.broadcast %cst_197 : f32 to vector<1x32xf32>
    %408 = arith.mulf %406, %407 : vector<1x32xf32>
    %cst_198 = arith.constant 9.99999974E-6 : f32
    %409 = vector.broadcast %cst_198 : f32 to vector<1x32xf32>
    %410 = arith.addf %408, %409 : vector<1x32xf32>
    %411 = math.rsqrt %410 : vector<1x32xf32>
    %412 = arith.mulf %411, %393 : vector<1x32xf32>
    %413 = vector.broadcast %412 : vector<1x32xf32> to vector<21x32xf32>
    %414 = arith.mulf %402, %413 : vector<21x32xf32>
    %415 = vector.broadcast %394 : vector<1x32xf32> to vector<21x32xf32>
    %416 = arith.addf %414, %415 : vector<21x32xf32>
    %cst_199 = arith.constant 0.000000e+00 : f32
    %417 = vector.broadcast %cst_199 : f32 to vector<21x32xf32>
    %418 = arith.maximumf %416, %417 : vector<21x32xf32>
    %419 = vector.extract_strided_slice %326 {offsets = [0, 0], sizes = [1, 64], strides = [1, 1]} : vector<2x64xf32> to vector<1x64xf32>
    %420 = arith.truncf %418 : vector<21x32xf32> to vector<21x32xbf16>
    %c0_200 = arith.constant 0 : index
    %c0_201 = arith.constant 0 : index
    %421 = vector.load %arg27[%c0_200, %c0_201] : memref<32x64xbf16, #tpu.memory_space<vmem>>, vector<32x64xbf16>
    %cst_202 = arith.constant dense<0.000000e+00> : vector<21x64xf32>
    %422 = tpu.matmul %420, %421, %cst_202 {dimension_numbers = #tpu.dot_dimension_numbers<[1], [0], [0], [1], [0, 0, 1, 1], [], []>} : vector<21x32xbf16>, vector<32x64xbf16>, vector<21x64xf32> -> vector<21x64xf32>
    %423 = vector.broadcast %419 : vector<1x64xf32> to vector<21x64xf32>
    %424 = arith.addf %422, %423 : vector<21x64xf32>
    %425 = vector.extract_strided_slice %326 {offsets = [1, 0], sizes = [1, 64], strides = [1, 1]} : vector<2x64xf32> to vector<1x64xf32>
    %426 = arith.truncf %323 : vector<21x128xf32> to vector<21x128xbf16>
    %c0_203 = arith.constant 0 : index
    %c0_204 = arith.constant 0 : index
    %427 = vector.load %arg29[%c0_203, %c0_204] : memref<128x64xbf16, #tpu.memory_space<vmem>>, vector<128x64xbf16>
    %cst_205 = arith.constant dense<0.000000e+00> : vector<21x64xf32>
    %428 = tpu.matmul %426, %427, %cst_205 {dimension_numbers = #tpu.dot_dimension_numbers<[1], [0], [0], [1], [0, 0, 1, 1], [], []>} : vector<21x128xbf16>, vector<128x64xbf16>, vector<21x64xf32> -> vector<21x64xf32>
    %429 = vector.broadcast %425 : vector<1x64xf32> to vector<21x64xf32>
    %430 = arith.addf %428, %429 : vector<21x64xf32>
    %431 = arith.addf %424, %430 : vector<21x64xf32>
    %c0_206 = arith.constant 0 : index
    %c0_207 = arith.constant 0 : index
    %432 = vector.load %arg30[%c0_206, %c0_207] : memref<2x64xf32, #tpu.memory_space<vmem>>, vector<2x64xf32>
    %c0_208 = arith.constant 0 : index
    %c0_209 = arith.constant 0 : index
    %433 = vector.load %arg31[%c0_208, %c0_209] : memref<6x16xf32, #tpu.memory_space<vmem>>, vector<6x16xf32>
    %c0_210 = arith.constant 0 : index
    %c0_211 = arith.constant 0 : index
    %434 = vector.load %arg32[%c0_210, %c0_211] : memref<2x32xf32, #tpu.memory_space<vmem>>, vector<2x32xf32>
    %435 = vector.extract_strided_slice %432 {offsets = [0, 0], sizes = [1, 64], strides = [1, 1]} : vector<2x64xf32> to vector<1x64xf32>
    %436 = vector.extract_strided_slice %432 {offsets = [1, 0], sizes = [1, 64], strides = [1, 1]} : vector<2x64xf32> to vector<1x64xf32>
    %c0_212 = arith.constant 0 : index
    %c0_213 = arith.constant 0 : index
    %437 = vector.load %arg43[%c0_212, %c0_213] : memref<64x64xf32, #tpu.memory_space<vmem>>, vector<64x64xf32>
    %cst_214 = arith.constant dense<0.000000e+00> : vector<64xf32>
    %438 = vector.multi_reduction <add>, %431, %cst_214 [0] : vector<21x64xf32> to vector<64xf32>
    %439 = vector.shape_cast %438 : vector<64xf32> to vector<1x64xf32>
    %cst_215 = arith.constant dense<0.000000e+00> : vector<1x64xf32>
    %440 = tpu.matmul %439, %437, %cst_215 {dimension_numbers = #tpu.dot_dimension_numbers<[1], [0], [0], [1], [0, 0, 1, 1], [], []>} : vector<1x64xf32>, vector<64x64xf32>, vector<1x64xf32> -> vector<1x64xf32>
    %cst_216 = arith.constant 0.00595238106 : f32
    %441 = vector.broadcast %cst_216 : f32 to vector<1x64xf32>
    %442 = arith.mulf %440, %441 : vector<1x64xf32>
    %443 = vector.broadcast %442 : vector<1x64xf32> to vector<21x64xf32>
    %444 = arith.subf %431, %443 : vector<21x64xf32>
    %445 = arith.mulf %444, %444 : vector<21x64xf32>
    %cst_217 = arith.constant dense<0.000000e+00> : vector<64xf32>
    %446 = vector.multi_reduction <add>, %445, %cst_217 [0] : vector<21x64xf32> to vector<64xf32>
    %447 = vector.shape_cast %446 : vector<64xf32> to vector<1x64xf32>
    %cst_218 = arith.constant dense<0.000000e+00> : vector<1x64xf32>
    %448 = tpu.matmul %447, %437, %cst_218 {dimension_numbers = #tpu.dot_dimension_numbers<[1], [0], [0], [1], [0, 0, 1, 1], [], []>} : vector<1x64xf32>, vector<64x64xf32>, vector<1x64xf32> -> vector<1x64xf32>
    %cst_219 = arith.constant 0.00595238106 : f32
    %449 = vector.broadcast %cst_219 : f32 to vector<1x64xf32>
    %450 = arith.mulf %448, %449 : vector<1x64xf32>
    %cst_220 = arith.constant 9.99999974E-6 : f32
    %451 = vector.broadcast %cst_220 : f32 to vector<1x64xf32>
    %452 = arith.addf %450, %451 : vector<1x64xf32>
    %453 = math.rsqrt %452 : vector<1x64xf32>
    %454 = arith.mulf %453, %435 : vector<1x64xf32>
    %455 = vector.broadcast %454 : vector<1x64xf32> to vector<21x64xf32>
    %456 = arith.mulf %444, %455 : vector<21x64xf32>
    %457 = vector.broadcast %436 : vector<1x64xf32> to vector<21x64xf32>
    %458 = arith.addf %456, %457 : vector<21x64xf32>
    %cst_221 = arith.constant 0.000000e+00 : f32
    %459 = vector.broadcast %cst_221 : f32 to vector<21x64xf32>
    %460 = arith.maximumf %458, %459 : vector<21x64xf32>
    %461 = vector.extract_strided_slice %433 {offsets = [4, 0], sizes = [1, 16], strides = [1, 1]} : vector<6x16xf32> to vector<1x16xf32>
    %462 = arith.truncf %460 : vector<21x64xf32> to vector<21x64xbf16>
    %c0_222 = arith.constant 0 : index
    %c0_223 = arith.constant 0 : index
    %463 = vector.load %arg33[%c0_222, %c0_223] : memref<64x16xbf16, #tpu.memory_space<vmem>>, vector<64x16xbf16>
    %cst_224 = arith.constant dense<0.000000e+00> : vector<21x16xf32>
    %464 = tpu.matmul %462, %463, %cst_224 {dimension_numbers = #tpu.dot_dimension_numbers<[1], [0], [0], [1], [0, 0, 1, 1], [], []>} : vector<21x64xbf16>, vector<64x16xbf16>, vector<21x16xf32> -> vector<21x16xf32>
    %465 = vector.broadcast %461 : vector<1x16xf32> to vector<21x16xf32>
    %466 = arith.addf %464, %465 : vector<21x16xf32>
    %467 = vector.extract_strided_slice %433 {offsets = [0, 0], sizes = [1, 16], strides = [1, 1]} : vector<6x16xf32> to vector<1x16xf32>
    %468 = vector.extract_strided_slice %433 {offsets = [1, 0], sizes = [1, 16], strides = [1, 1]} : vector<6x16xf32> to vector<1x16xf32>
    %c0_225 = arith.constant 0 : index
    %c0_226 = arith.constant 0 : index
    %469 = vector.load %arg40[%c0_225, %c0_226] : memref<16x16xf32, #tpu.memory_space<vmem>>, vector<16x16xf32>
    %cst_227 = arith.constant dense<0.000000e+00> : vector<16xf32>
    %470 = vector.multi_reduction <add>, %466, %cst_227 [0] : vector<21x16xf32> to vector<16xf32>
    %471 = vector.shape_cast %470 : vector<16xf32> to vector<1x16xf32>
    %cst_228 = arith.constant dense<0.000000e+00> : vector<1x16xf32>
    %472 = tpu.matmul %471, %469, %cst_228 {dimension_numbers = #tpu.dot_dimension_numbers<[1], [0], [0], [1], [0, 0, 1, 1], [], []>} : vector<1x16xf32>, vector<16x16xf32>, vector<1x16xf32> -> vector<1x16xf32>
    %cst_229 = arith.constant 0.00595238106 : f32
    %473 = vector.broadcast %cst_229 : f32 to vector<1x16xf32>
    %474 = arith.mulf %472, %473 : vector<1x16xf32>
    %475 = vector.broadcast %474 : vector<1x16xf32> to vector<21x16xf32>
    %476 = arith.subf %466, %475 : vector<21x16xf32>
    %477 = arith.mulf %476, %476 : vector<21x16xf32>
    %cst_230 = arith.constant dense<0.000000e+00> : vector<16xf32>
    %478 = vector.multi_reduction <add>, %477, %cst_230 [0] : vector<21x16xf32> to vector<16xf32>
    %479 = vector.shape_cast %478 : vector<16xf32> to vector<1x16xf32>
    %cst_231 = arith.constant dense<0.000000e+00> : vector<1x16xf32>
    %480 = tpu.matmul %479, %469, %cst_231 {dimension_numbers = #tpu.dot_dimension_numbers<[1], [0], [0], [1], [0, 0, 1, 1], [], []>} : vector<1x16xf32>, vector<16x16xf32>, vector<1x16xf32> -> vector<1x16xf32>
    %cst_232 = arith.constant 0.00595238106 : f32
    %481 = vector.broadcast %cst_232 : f32 to vector<1x16xf32>
    %482 = arith.mulf %480, %481 : vector<1x16xf32>
    %cst_233 = arith.constant 9.99999974E-6 : f32
    %483 = vector.broadcast %cst_233 : f32 to vector<1x16xf32>
    %484 = arith.addf %482, %483 : vector<1x16xf32>
    %485 = math.rsqrt %484 : vector<1x16xf32>
    %486 = arith.mulf %485, %467 : vector<1x16xf32>
    %487 = vector.broadcast %486 : vector<1x16xf32> to vector<21x16xf32>
    %488 = arith.mulf %476, %487 : vector<21x16xf32>
    %489 = vector.broadcast %468 : vector<1x16xf32> to vector<21x16xf32>
    %490 = arith.addf %488, %489 : vector<21x16xf32>
    %cst_234 = arith.constant 0.000000e+00 : f32
    %491 = vector.broadcast %cst_234 : f32 to vector<21x16xf32>
    %492 = arith.maximumf %490, %491 : vector<21x16xf32>
    %493 = arith.truncf %492 : vector<21x16xf32> to vector<21x16xbf16>
    %c0_235 = arith.constant 0 : index
    %c0_236 = arith.constant 0 : index
    %494 = vector.load %arg35[%c0_235, %c0_236] : memref<16x16xbf16, #tpu.memory_space<vmem>>, vector<16x16xbf16>
    %cst_237 = arith.constant dense<0.000000e+00> : vector<21x16xf32>
    %495 = tpu.matmul %493, %494, %cst_237 {dimension_numbers = #tpu.dot_dimension_numbers<[1], [0], [0], [1], [0, 0, 1, 1], [], []>} : vector<21x16xbf16>, vector<16x16xbf16>, vector<21x16xf32> -> vector<21x16xf32>
    %496 = arith.truncf %495 : vector<21x16xf32> to vector<21x16xbf16>
    %cst_238 = arith.constant dense<0.000000e+00> : vector<21x16xf32>
    %497 = tpu.matmul %0, %496, %cst_238 {dimension_numbers = #tpu.dot_dimension_numbers<[1], [0], [0], [1], [0, 0, 1, 1], [], []>} : vector<21x21xbf16>, vector<21x16xbf16>, vector<21x16xf32> -> vector<21x16xf32>
    %498 = vector.extract_strided_slice %433 {offsets = [5, 0], sizes = [1, 16], strides = [1, 1]} : vector<6x16xf32> to vector<1x16xf32>
    %499 = vector.broadcast %498 : vector<1x16xf32> to vector<21x16xf32>
    %500 = arith.addf %497, %499 : vector<21x16xf32>
    %501 = vector.extract_strided_slice %433 {offsets = [2, 0], sizes = [1, 16], strides = [1, 1]} : vector<6x16xf32> to vector<1x16xf32>
    %502 = vector.extract_strided_slice %433 {offsets = [3, 0], sizes = [1, 16], strides = [1, 1]} : vector<6x16xf32> to vector<1x16xf32>
    %c0_239 = arith.constant 0 : index
    %c0_240 = arith.constant 0 : index
    %503 = vector.load %arg40[%c0_239, %c0_240] : memref<16x16xf32, #tpu.memory_space<vmem>>, vector<16x16xf32>
    %cst_241 = arith.constant dense<0.000000e+00> : vector<16xf32>
    %504 = vector.multi_reduction <add>, %500, %cst_241 [0] : vector<21x16xf32> to vector<16xf32>
    %505 = vector.shape_cast %504 : vector<16xf32> to vector<1x16xf32>
    %cst_242 = arith.constant dense<0.000000e+00> : vector<1x16xf32>
    %506 = tpu.matmul %505, %503, %cst_242 {dimension_numbers = #tpu.dot_dimension_numbers<[1], [0], [0], [1], [0, 0, 1, 1], [], []>} : vector<1x16xf32>, vector<16x16xf32>, vector<1x16xf32> -> vector<1x16xf32>
    %cst_243 = arith.constant 0.00595238106 : f32
    %507 = vector.broadcast %cst_243 : f32 to vector<1x16xf32>
    %508 = arith.mulf %506, %507 : vector<1x16xf32>
    %509 = vector.broadcast %508 : vector<1x16xf32> to vector<21x16xf32>
    %510 = arith.subf %500, %509 : vector<21x16xf32>
    %511 = arith.mulf %510, %510 : vector<21x16xf32>
    %cst_244 = arith.constant dense<0.000000e+00> : vector<16xf32>
    %512 = vector.multi_reduction <add>, %511, %cst_244 [0] : vector<21x16xf32> to vector<16xf32>
    %513 = vector.shape_cast %512 : vector<16xf32> to vector<1x16xf32>
    %cst_245 = arith.constant dense<0.000000e+00> : vector<1x16xf32>
    %514 = tpu.matmul %513, %503, %cst_245 {dimension_numbers = #tpu.dot_dimension_numbers<[1], [0], [0], [1], [0, 0, 1, 1], [], []>} : vector<1x16xf32>, vector<16x16xf32>, vector<1x16xf32> -> vector<1x16xf32>
    %cst_246 = arith.constant 0.00595238106 : f32
    %515 = vector.broadcast %cst_246 : f32 to vector<1x16xf32>
    %516 = arith.mulf %514, %515 : vector<1x16xf32>
    %cst_247 = arith.constant 9.99999974E-6 : f32
    %517 = vector.broadcast %cst_247 : f32 to vector<1x16xf32>
    %518 = arith.addf %516, %517 : vector<1x16xf32>
    %519 = math.rsqrt %518 : vector<1x16xf32>
    %520 = arith.mulf %519, %501 : vector<1x16xf32>
    %521 = vector.broadcast %520 : vector<1x16xf32> to vector<21x16xf32>
    %522 = arith.mulf %510, %521 : vector<21x16xf32>
    %523 = vector.broadcast %502 : vector<1x16xf32> to vector<21x16xf32>
    %524 = arith.addf %522, %523 : vector<21x16xf32>
    %cst_248 = arith.constant 0.000000e+00 : f32
    %525 = vector.broadcast %cst_248 : f32 to vector<21x16xf32>
    %526 = arith.maximumf %524, %525 : vector<21x16xf32>
    %527 = vector.extract_strided_slice %434 {offsets = [0, 0], sizes = [1, 32], strides = [1, 1]} : vector<2x32xf32> to vector<1x32xf32>
    %528 = arith.truncf %526 : vector<21x16xf32> to vector<21x16xbf16>
    %c0_249 = arith.constant 0 : index
    %c0_250 = arith.constant 0 : index
    %529 = vector.load %arg34[%c0_249, %c0_250] : memref<16x32xbf16, #tpu.memory_space<vmem>>, vector<16x32xbf16>
    %cst_251 = arith.constant dense<0.000000e+00> : vector<21x32xf32>
    %530 = tpu.matmul %528, %529, %cst_251 {dimension_numbers = #tpu.dot_dimension_numbers<[1], [0], [0], [1], [0, 0, 1, 1], [], []>} : vector<21x16xbf16>, vector<16x32xbf16>, vector<21x32xf32> -> vector<21x32xf32>
    %531 = vector.broadcast %527 : vector<1x32xf32> to vector<21x32xf32>
    %532 = arith.addf %530, %531 : vector<21x32xf32>
    %533 = vector.extract_strided_slice %434 {offsets = [1, 0], sizes = [1, 32], strides = [1, 1]} : vector<2x32xf32> to vector<1x32xf32>
    %534 = arith.truncf %431 : vector<21x64xf32> to vector<21x64xbf16>
    %c0_252 = arith.constant 0 : index
    %c0_253 = arith.constant 0 : index
    %535 = vector.load %arg36[%c0_252, %c0_253] : memref<64x32xbf16, #tpu.memory_space<vmem>>, vector<64x32xbf16>
    %cst_254 = arith.constant dense<0.000000e+00> : vector<21x32xf32>
    %536 = tpu.matmul %534, %535, %cst_254 {dimension_numbers = #tpu.dot_dimension_numbers<[1], [0], [0], [1], [0, 0, 1, 1], [], []>} : vector<21x64xbf16>, vector<64x32xbf16>, vector<21x32xf32> -> vector<21x32xf32>
    %537 = vector.broadcast %533 : vector<1x32xf32> to vector<21x32xf32>
    %538 = arith.addf %536, %537 : vector<21x32xf32>
    %539 = arith.addf %532, %538 : vector<21x32xf32>
    %c0_255 = arith.constant 0 : index
    %c0_256 = arith.constant 0 : index
    %540 = vector.load %arg45[%c0_255, %c0_256] : memref<3x32xf32, #tpu.memory_space<vmem>>, vector<3x32xf32>
    %541 = vector.extract_strided_slice %540 {offsets = [0, 0], sizes = [1, 32], strides = [1, 1]} : vector<3x32xf32> to vector<1x32xf32>
    %542 = vector.extract_strided_slice %540 {offsets = [1, 0], sizes = [1, 32], strides = [1, 1]} : vector<3x32xf32> to vector<1x32xf32>
    %c0_257 = arith.constant 0 : index
    %c0_258 = arith.constant 0 : index
    %543 = vector.load %arg42[%c0_257, %c0_258] : memref<32x32xf32, #tpu.memory_space<vmem>>, vector<32x32xf32>
    %cst_259 = arith.constant dense<0.000000e+00> : vector<32xf32>
    %544 = vector.multi_reduction <add>, %539, %cst_259 [0] : vector<21x32xf32> to vector<32xf32>
    %545 = vector.shape_cast %544 : vector<32xf32> to vector<1x32xf32>
    %cst_260 = arith.constant dense<0.000000e+00> : vector<1x32xf32>
    %546 = tpu.matmul %545, %543, %cst_260 {dimension_numbers = #tpu.dot_dimension_numbers<[1], [0], [0], [1], [0, 0, 1, 1], [], []>} : vector<1x32xf32>, vector<32x32xf32>, vector<1x32xf32> -> vector<1x32xf32>
    %cst_261 = arith.constant 0.00595238106 : f32
    %547 = vector.broadcast %cst_261 : f32 to vector<1x32xf32>
    %548 = arith.mulf %546, %547 : vector<1x32xf32>
    %549 = vector.broadcast %548 : vector<1x32xf32> to vector<21x32xf32>
    %550 = arith.subf %539, %549 : vector<21x32xf32>
    %551 = arith.mulf %550, %550 : vector<21x32xf32>
    %cst_262 = arith.constant dense<0.000000e+00> : vector<32xf32>
    %552 = vector.multi_reduction <add>, %551, %cst_262 [0] : vector<21x32xf32> to vector<32xf32>
    %553 = vector.shape_cast %552 : vector<32xf32> to vector<1x32xf32>
    %cst_263 = arith.constant dense<0.000000e+00> : vector<1x32xf32>
    %554 = tpu.matmul %553, %543, %cst_263 {dimension_numbers = #tpu.dot_dimension_numbers<[1], [0], [0], [1], [0, 0, 1, 1], [], []>} : vector<1x32xf32>, vector<32x32xf32>, vector<1x32xf32> -> vector<1x32xf32>
    %cst_264 = arith.constant 0.00595238106 : f32
    %555 = vector.broadcast %cst_264 : f32 to vector<1x32xf32>
    %556 = arith.mulf %554, %555 : vector<1x32xf32>
    %cst_265 = arith.constant 9.99999974E-6 : f32
    %557 = vector.broadcast %cst_265 : f32 to vector<1x32xf32>
    %558 = arith.addf %556, %557 : vector<1x32xf32>
    %559 = math.rsqrt %558 : vector<1x32xf32>
    %560 = arith.mulf %559, %541 : vector<1x32xf32>
    %561 = vector.broadcast %560 : vector<1x32xf32> to vector<21x32xf32>
    %562 = arith.mulf %550, %561 : vector<21x32xf32>
    %563 = vector.broadcast %542 : vector<1x32xf32> to vector<21x32xf32>
    %564 = arith.addf %562, %563 : vector<21x32xf32>
    %cst_266 = arith.constant 0.000000e+00 : f32
    %565 = vector.broadcast %cst_266 : f32 to vector<21x32xf32>
    %566 = arith.maximumf %564, %565 : vector<21x32xf32>
    %567 = vector.extract_strided_slice %540 {offsets = [2, 0], sizes = [1, 32], strides = [1, 1]} : vector<3x32xf32> to vector<1x32xf32>
    %568 = vector.broadcast %567 : vector<1x32xf32> to vector<21x32xf32>
    %569 = arith.mulf %566, %568 : vector<21x32xf32>
    %cst_267 = arith.constant dense<0.000000e+00> : vector<21xf32>
    %570 = vector.multi_reduction <add>, %569, %cst_267 [1] : vector<21x32xf32> to vector<21xf32>
    %571 = vector.shape_cast %570 : vector<21xf32> to vector<21x1xf32>
    %c0_268 = arith.constant 0 : index
    %c0_269 = arith.constant 0 : index
    %572 = vector.load %arg46[%c0_268, %c0_269] : memref<21x2xf32, #tpu.memory_space<vmem>>, vector<21x2xf32>
    %573 = vector.broadcast %571 : vector<21x1xf32> to vector<21x2xf32>
    %574 = arith.mulf %573, %572 : vector<21x2xf32>
    %cst_270 = arith.constant dense<0.000000e+00> : vector<2xf32>
    %575 = vector.multi_reduction <add>, %574, %cst_270 [0] : vector<21x2xf32> to vector<2xf32>
    %576 = vector.shape_cast %575 : vector<2xf32> to vector<1x2xf32>
    %c0_271 = arith.constant 0 : index
    %c0_272 = arith.constant 0 : index
    %577 = vector.load %arg44[%c0_271, %c0_272] : memref<1x2xf32, #tpu.memory_space<vmem>>, vector<1x2xf32>
    %578 = arith.addf %576, %577 : vector<1x2xf32>
    %c0_273 = arith.constant 0 : index
    %c0_274 = arith.constant 0 : index
    %c0_275 = arith.constant 0 : index
    %579 = vector.load %arg49[%c0_273, %c0_274, %c0_275] : memref<1x1x2xf32, #tpu.memory_space<vmem>>, vector<1x1x2xf32>
    %580 = vector.shape_cast %579 : vector<1x1x2xf32> to vector<1x2xf32>
    %581 = vector.shape_cast %578 : vector<1x2xf32> to vector<1x1x2xf32>
    tpu.vector_store %arg49[%c0_273, %c0_274, %c0_275], %581 {strides = array<i32>} : memref<1x1x2xf32, #tpu.memory_space<vmem>>, vector<1x1x2xf32>,
    return
  }
  func.func @transform_0(%arg0: i32) -> (i32, i32, i32) {
    %c0_i32 = arith.constant 0 : i32
    %c0_i32_0 = arith.constant 0 : i32
    %c0_i32_1 = arith.constant 0 : i32
    return %arg0, %c0_i32, %c0_i32_0 : i32, i32, i32
  }
  func.func @transform_1(%arg0: i32) -> (i32, i32) {
    %c0_i32 = arith.constant 0 : i32
    %c0_i32_0 = arith.constant 0 : i32
    %c0_i32_1 = arith.constant 0 : i32
    return %c0_i32, %c0_i32_0 : i32, i32
  }
  func.func @transform_2(%arg0: i32) -> (i32, i32) {
    %c0_i32 = arith.constant 0 : i32
    %c0_i32_0 = arith.constant 0 : i32
    %c0_i32_1 = arith.constant 0 : i32
    return %c0_i32, %c0_i32_0 : i32, i32
  }
  func.func @transform_3(%arg0: i32) -> (i32, i32) {
    %c0_i32 = arith.constant 0 : i32
    %c0_i32_0 = arith.constant 0 : i32
    %c0_i32_1 = arith.constant 0 : i32
    return %c0_i32, %c0_i32_0 : i32, i32
  }
  func.func @transform_4(%arg0: i32) -> (i32, i32) {
    %c0_i32 = arith.constant 0 : i32
    %c0_i32_0 = arith.constant 0 : i32
    %c0_i32_1 = arith.constant 0 : i32
    return %c0_i32, %c0_i32_0 : i32, i32
  }
  func.func @transform_5(%arg0: i32) -> (i32, i32) {
    %c0_i32 = arith.constant 0 : i32
    %c0_i32_0 = arith.constant 0 : i32
    %c0_i32_1 = arith.constant 0 : i32
    return %c0_i32, %c0_i32_0 : i32, i32
  }
  func.func @transform_6(%arg0: i32) -> (i32, i32) {
    %c0_i32 = arith.constant 0 : i32
    %c0_i32_0 = arith.constant 0 : i32
    %c0_i32_1 = arith.constant 0 : i32
    return %c0_i32, %c0_i32_0 : i32, i32
  }
  func.func @transform_7(%arg0: i32) -> (i32, i32) {
    %c0_i32 = arith.constant 0 : i32
    %c0_i32_0 = arith.constant 0 : i32
    %c0_i32_1 = arith.constant 0 : i32
    return %c0_i32, %c0_i32_0 : i32, i32
  }
  func.func @transform_8(%arg0: i32) -> (i32, i32) {
    %c0_i32 = arith.constant 0 : i32
    %c0_i32_0 = arith.constant 0 : i32
    %c0_i32_1 = arith.constant 0 : i32
    return %c0_i32, %c0_i32_0 : i32, i32
  }
  func.func @transform_9(%arg0: i32) -> (i32, i32) {
    %c0_i32 = arith.constant 0 : i32
    %c0_i32_0 = arith.constant 0 : i32
    %c0_i32_1 = arith.constant 0 : i32
    return %c0_i32, %c0_i32_0 : i32, i32
  }
  func.func @transform_10(%arg0: i32) -> (i32, i32) {
    %c0_i32 = arith.constant 0 : i32
    %c0_i32_0 = arith.constant 0 : i32
    %c0_i32_1 = arith.constant 0 : i32
    return %c0_i32, %c0_i32_0 : i32, i32
  }
  func.func @transform_11(%arg0: i32) -> (i32, i32) {
    %c0_i32 = arith.constant 0 : i32
    %c0_i32_0 = arith.constant 0 : i32
    %c0_i32_1 = arith.constant 0 : i32
    return %c0_i32, %c0_i32_0 : i32, i32
  }
  func.func @transform_12(%arg0: i32) -> (i32, i32) {
    %c0_i32 = arith.constant 0 : i32
    %c0_i32_0 = arith.constant 0 : i32
    %c0_i32_1 = arith.constant 0 : i32
    return %c0_i32, %c0_i32_0 : i32, i32
  }
  func.func @transform_13(%arg0: i32) -> (i32, i32) {
    %c0_i32 = arith.constant 0 : i32
    %c0_i32_0 = arith.constant 0 : i32
    %c0_i32_1 = arith.constant 0 : i32
    return %c0_i32, %c0_i32_0 : i32, i32
  }
  func.func @transform_14(%arg0: i32) -> (i32, i32) {
    %c0_i32 = arith.constant 0 : i32
    %c0_i32_0 = arith.constant 0 : i32
    %c0_i32_1 = arith.constant 0 : i32
    return %c0_i32, %c0_i32_0 : i32, i32
  }
  func.func @transform_15(%arg0: i32) -> (i32, i32) {
    %c0_i32 = arith.constant 0 : i32
    %c0_i32_0 = arith.constant 0 : i32
    %c0_i32_1 = arith.constant 0 : i32
    return %c0_i32, %c0_i32_0 : i32, i32
  }
  func.func @transform_16(%arg0: i32) -> (i32, i32) {
    %c0_i32 = arith.constant 0 : i32
    %c0_i32_0 = arith.constant 0 : i32
    %c0_i32_1 = arith.constant 0 : i32
    return %c0_i32, %c0_i32_0 : i32, i32
  }
  func.func @transform_17(%arg0: i32) -> (i32, i32) {
    %c0_i32 = arith.constant 0 : i32
    %c0_i32_0 = arith.constant 0 : i32
    %c0_i32_1 = arith.constant 0 : i32
    return %c0_i32, %c0_i32_0 : i32, i32
  }
  func.func @transform_18(%arg0: i32) -> (i32, i32) {
    %c0_i32 = arith.constant 0 : i32
    %c0_i32_0 = arith.constant 0 : i32
    %c0_i32_1 = arith.constant 0 : i32
    return %c0_i32, %c0_i32_0 : i32, i32
  }
  func.func @transform_19(%arg0: i32) -> (i32, i32) {
    %c0_i32 = arith.constant 0 : i32
    %c0_i32_0 = arith.constant 0 : i32
    %c0_i32_1 = arith.constant 0 : i32
    return %c0_i32, %c0_i32_0 : i32, i32
  }
  func.func @transform_20(%arg0: i32) -> (i32, i32) {
    %c0_i32 = arith.constant 0 : i32
    %c0_i32_0 = arith.constant 0 : i32
    %c0_i32_1 = arith.constant 0 : i32
    return %c0_i32, %c0_i32_0 : i32, i32
  }
  func.func @transform_21(%arg0: i32) -> (i32, i32) {
    %c0_i32 = arith.constant 0 : i32
    %c0_i32_0 = arith.constant 0 : i32
    %c0_i32_1 = arith.constant 0 : i32
    return %c0_i32, %c0_i32_0 : i32, i32
  }
  func.func @transform_22(%arg0: i32) -> (i32, i32) {
    %c0_i32 = arith.constant 0 : i32
    %c0_i32_0 = arith.constant 0 : i32
    %c0_i32_1 = arith.constant 0 : i32
    return %c0_i32, %c0_i32_0 : i32, i32
  }
  func.func @transform_23(%arg0: i32) -> (i32, i32) {
    %c0_i32 = arith.constant 0 : i32
    %c0_i32_0 = arith.constant 0 : i32
    %c0_i32_1 = arith.constant 0 : i32
    return %c0_i32, %c0_i32_0 : i32, i32
  }
  func.func @transform_24(%arg0: i32) -> (i32, i32) {
    %c0_i32 = arith.constant 0 : i32
    %c0_i32_0 = arith.constant 0 : i32
    %c0_i32_1 = arith.constant 0 : i32
    return %c0_i32, %c0_i32_0 : i32, i32
  }
  func.func @transform_25(%arg0: i32) -> (i32, i32) {
    %c0_i32 = arith.constant 0 : i32
    %c0_i32_0 = arith.constant 0 : i32
    %c0_i32_1 = arith.constant 0 : i32
    return %c0_i32, %c0_i32_0 : i32, i32
  }
  func.func @transform_26(%arg0: i32) -> (i32, i32) {
    %c0_i32 = arith.constant 0 : i32
    %c0_i32_0 = arith.constant 0 : i32
    %c0_i32_1 = arith.constant 0 : i32
    return %c0_i32, %c0_i32_0 : i32, i32
  }
  func.func @transform_27(%arg0: i32) -> (i32, i32) {
    %c0_i32 = arith.constant 0 : i32
    %c0_i32_0 = arith.constant 0 : i32
    %c0_i32_1 = arith.constant 0 : i32
    return %c0_i32, %c0_i32_0 : i32, i32
  }
  func.func @transform_28(%arg0: i32) -> (i32, i32) {
    %c0_i32 = arith.constant 0 : i32
    %c0_i32_0 = arith.constant 0 : i32
    %c0_i32_1 = arith.constant 0 : i32
    return %c0_i32, %c0_i32_0 : i32, i32
  }
  func.func @transform_29(%arg0: i32) -> (i32, i32) {
    %c0_i32 = arith.constant 0 : i32
    %c0_i32_0 = arith.constant 0 : i32
    %c0_i32_1 = arith.constant 0 : i32
    return %c0_i32, %c0_i32_0 : i32, i32
  }
  func.func @transform_30(%arg0: i32) -> (i32, i32) {
    %c0_i32 = arith.constant 0 : i32
    %c0_i32_0 = arith.constant 0 : i32
    %c0_i32_1 = arith.constant 0 : i32
    return %c0_i32, %c0_i32_0 : i32, i32
  }
  func.func @transform_31(%arg0: i32) -> (i32, i32) {
    %c0_i32 = arith.constant 0 : i32
    %c0_i32_0 = arith.constant 0 : i32
    %c0_i32_1 = arith.constant 0 : i32
    return %c0_i32, %c0_i32_0 : i32, i32
  }
  func.func @transform_32(%arg0: i32) -> (i32, i32) {
    %c0_i32 = arith.constant 0 : i32
    %c0_i32_0 = arith.constant 0 : i32
    %c0_i32_1 = arith.constant 0 : i32
    return %c0_i32, %c0_i32_0 : i32, i32
  }
  func.func @transform_33(%arg0: i32) -> (i32, i32) {
    %c0_i32 = arith.constant 0 : i32
    %c0_i32_0 = arith.constant 0 : i32
    %c0_i32_1 = arith.constant 0 : i32
    return %c0_i32, %c0_i32_0 : i32, i32
  }
  func.func @transform_34(%arg0: i32) -> (i32, i32) {
    %c0_i32 = arith.constant 0 : i32
    %c0_i32_0 = arith.constant 0 : i32
    %c0_i32_1 = arith.constant 0 : i32
    return %c0_i32, %c0_i32_0 : i32, i32
  }
  func.func @transform_35(%arg0: i32) -> (i32, i32) {
    %c0_i32 = arith.constant 0 : i32
    %c0_i32_0 = arith.constant 0 : i32
    %c0_i32_1 = arith.constant 0 : i32
    return %c0_i32, %c0_i32_0 : i32, i32
  }
  func.func @transform_36(%arg0: i32) -> (i32, i32) {
    %c0_i32 = arith.constant 0 : i32
    %c0_i32_0 = arith.constant 0 : i32
    %c0_i32_1 = arith.constant 0 : i32
    return %c0_i32, %c0_i32_0 : i32, i32
  }
  func.func @transform_37(%arg0: i32) -> (i32, i32) {
    %c0_i32 = arith.constant 0 : i32
    %c0_i32_0 = arith.constant 0 : i32
    %c0_i32_1 = arith.constant 0 : i32
    return %c0_i32, %c0_i32_0 : i32, i32
  }
  func.func @transform_38(%arg0: i32) -> (i32, i32) {
    %c0_i32 = arith.constant 0 : i32
    %c0_i32_0 = arith.constant 0 : i32
    %c0_i32_1 = arith.constant 0 : i32
    return %c0_i32, %c0_i32_0 : i32, i32
  }
  func.func @transform_39(%arg0: i32) -> (i32, i32) {
    %c0_i32 = arith.constant 0 : i32
    %c0_i32_0 = arith.constant 0 : i32
    %c0_i32_1 = arith.constant 0 : i32
    return %c0_i32, %c0_i32_0 : i32, i32
  }
  func.func @transform_40(%arg0: i32) -> (i32, i32) {
    %c0_i32 = arith.constant 0 : i32
    %c0_i32_0 = arith.constant 0 : i32
    %c0_i32_1 = arith.constant 0 : i32
    return %c0_i32, %c0_i32_0 : i32, i32
  }
  func.func @transform_41(%arg0: i32) -> (i32, i32) {
    %c0_i32 = arith.constant 0 : i32
    %c0_i32_0 = arith.constant 0 : i32
    %c0_i32_1 = arith.constant 0 : i32
    return %c0_i32, %c0_i32_0 : i32, i32
  }
  func.func @transform_42(%arg0: i32) -> (i32, i32) {
    %c0_i32 = arith.constant 0 : i32
    %c0_i32_0 = arith.constant 0 : i32
    %c0_i32_1 = arith.constant 0 : i32
    return %c0_i32, %c0_i32_0 : i32, i32
  }
  func.func @transform_43(%arg0: i32) -> (i32, i32) {
    %c0_i32 = arith.constant 0 : i32
    %c0_i32_0 = arith.constant 0 : i32
    %c0_i32_1 = arith.constant 0 : i32
    return %c0_i32, %c0_i32_0 : i32, i32
  }
  func.func @transform_44(%arg0: i32) -> (i32, i32) {
    %c0_i32 = arith.constant 0 : i32
    %c0_i32_0 = arith.constant 0 : i32
    %c0_i32_1 = arith.constant 0 : i32
    return %c0_i32, %c0_i32_0 : i32, i32
  }
  func.func @transform_45(%arg0: i32) -> (i32, i32) {
    %c0_i32 = arith.constant 0 : i32
    %c0_i32_0 = arith.constant 0 : i32
    %c0_i32_1 = arith.constant 0 : i32
    return %c0_i32, %c0_i32_0 : i32, i32
  }
  func.func @transform_46(%arg0: i32) -> (i32, i32) {
    %c0_i32 = arith.constant 0 : i32
    %c0_i32_0 = arith.constant 0 : i32
    %c0_i32_1 = arith.constant 0 : i32
    return %c0_i32, %c0_i32_0 : i32, i32
  }
  func.func @transform_47(%arg0: i32) -> (i32, i32) {
    %c0_i32 = arith.constant 0 : i32
    %c0_i32_0 = arith.constant 0 : i32
    %c0_i32_1 = arith.constant 0 : i32
    return %c0_i32, %c0_i32_0 : i32, i32
  }
  func.func @transform_48(%arg0: i32) -> (i32, i32, i32) {
    %c0_i32 = arith.constant 0 : i32
    %c0_i32_0 = arith.constant 0 : i32
    %c0_i32_1 = arith.constant 0 : i32
    return %arg0, %c0_i32, %c0_i32_0 : i32, i32, i32
  }
}

</mosaic_0001>

<llo_original>
// kernel: graph_cnn_forward.1
$region0: #{graph_cnn_forward.1}
  #allocation0 [shape = 'u32[]', space=smem, size = 0x4, offset = 0x4, fixed_abs, tag = 'smem constant byte address 0x4 - core index']
  #allocation1 [shape = 'u32[72,128]{1,0:T(1,128)}', space=vmem, size = 0x9000, scoped, tag = 'internal scratch']
  %s0 = inlined_call_operand.smem [shape: u32[49], index: -1, kind: input, shape index: {}]
  %s1 = sld [smem:[%s0]]
  %s2 = scalar_lea.smem %s0, 1
  %s3 = sld [smem:[%s2]]
  %s4 = scalar_lea.smem %s0, 2
  %s5 = sld [smem:[%s4]]
  %s6 = scalar_lea.smem %s0, 3
  %s7 = sld [smem:[%s6]]
  %s8 = scalar_lea.smem %s0, 4
  %s9 = sld [smem:[%s8]]
  %s10 = scalar_lea.smem %s0, 5
  %s11 = sld [smem:[%s10]]
  %s12 = scalar_lea.smem %s0, 6
  %s13 = sld [smem:[%s12]]
  %s14 = scalar_lea.smem %s0, 7
  %s15 = sld [smem:[%s14]]
  %s16 = scalar_lea.smem %s0, 8
  %s17 = sld [smem:[%s16]]
  %s18 = scalar_lea.smem %s0, 9
  %s19 = sld [smem:[%s18]]
  %s20 = scalar_lea.smem %s0, 10
  %s21 = sld [smem:[%s20]]
  %s22 = scalar_lea.smem %s0, 11
  %s23 = sld [smem:[%s22]]
  %s24 = scalar_lea.smem %s0, 12
  %s25 = sld [smem:[%s24]]
  %s26 = scalar_lea.smem %s0, 13
  %s27 = sld [smem:[%s26]]
  %s28 = scalar_lea.smem %s0, 14
  %s29 = sld [smem:[%s28]]
  %s30 = scalar_lea.smem %s0, 15
  %s31 = sld [smem:[%s30]]
  %s32 = scalar_lea.smem %s0, 16
  %s33 = sld [smem:[%s32]]
  %s34 = scalar_lea.smem %s0, 17
  %s35 = sld [smem:[%s34]]
  %s36 = scalar_lea.smem %s0, 18
  %s37 = sld [smem:[%s36]]
  %s38 = scalar_lea.smem %s0, 19
  %s39 = sld [smem:[%s38]]
  %s40 = scalar_lea.smem %s0, 20
  %s41 = sld [smem:[%s40]]
  %s42 = scalar_lea.smem %s0, 21
  %s43 = sld [smem:[%s42]]
  %s44 = scalar_lea.smem %s0, 22
  %s45 = sld [smem:[%s44]]
  %s46 = scalar_lea.smem %s0, 23
  %s47 = sld [smem:[%s46]]
  %s48 = scalar_lea.smem %s0, 24
  %s49 = sld [smem:[%s48]]
  %s50 = scalar_lea.smem %s0, 25
  %s51 = sld [smem:[%s50]]
  %s52 = scalar_lea.smem %s0, 26
  %s53 = sld [smem:[%s52]]
  %s54 = scalar_lea.smem %s0, 27
  %s55 = sld [smem:[%s54]]
  %s56 = scalar_lea.smem %s0, 28
  %s57 = sld [smem:[%s56]]
  %s58 = scalar_lea.smem %s0, 29
  %s59 = sld [smem:[%s58]]
  %s60 = scalar_lea.smem %s0, 30
  %s61 = sld [smem:[%s60]]
  %s62 = scalar_lea.smem %s0, 31
  %s63 = sld [smem:[%s62]]
  %s64 = scalar_lea.smem %s0, 32
  %s65 = sld [smem:[%s64]]
  %s66 = scalar_lea.smem %s0, 33
  %s67 = sld [smem:[%s66]]
  %s68 = scalar_lea.smem %s0, 34
  %s69 = sld [smem:[%s68]]
  %s70 = scalar_lea.smem %s0, 35
  %s71 = sld [smem:[%s70]]
  %s72 = scalar_lea.smem %s0, 36
  %s73 = sld [smem:[%s72]]
  %s74 = scalar_lea.smem %s0, 37
  %s75 = sld [smem:[%s74]]
  %s76 = scalar_lea.smem %s0, 38
  %s77 = sld [smem:[%s76]]
  %s78 = scalar_lea.smem %s0, 39
  %s79 = sld [smem:[%s78]]
  %s80 = scalar_lea.smem %s0, 40
  %s81 = sld [smem:[%s80]]
  %s82 = scalar_lea.smem %s0, 41
  %s83 = sld [smem:[%s82]]
  %s84 = scalar_lea.smem %s0, 42
  %s85 = sld [smem:[%s84]]
  %s86 = scalar_lea.smem %s0, 43
  %s87 = sld [smem:[%s86]]
  %s88 = scalar_lea.smem %s0, 44
  %s89 = sld [smem:[%s88]]
  %s90 = scalar_lea.smem %s0, 45
  %s91 = sld [smem:[%s90]]
  %s92 = scalar_lea.smem %s0, 46
  %s93 = sld [smem:[%s92]]
  %s94 = scalar_lea.smem %s0, 47
  %s95 = sld [smem:[%s94]]
  %s96 = scalar_lea.smem %s0, 48
  %s97 = sld [smem:[%s96]]
  %s98 = sld [smem:[#allocation0]]
  $region229: #{graph_cnn_forward.1} parent=0
    _
  %s100 = ssub.s32 1, %s98
  %s101 = scalar_select 0, %s100, %s98
  $region1: #{graph_cnn_forward.1} parent=0
    #allocation2 [shape = 'u8[512]{0}', space=vmem, size = 0x400, scoped, tag = 'input window, operand 43, single buffered']
    #allocation3 [shape = 's32[2]{0}', space=sflag, size = 0x8, scoped, tag = 'scoped memory for graph_cnn_forward.1']
    #allocation4 [shape = 's32[2]{0}', space=sflag, size = 0x8, scoped, tag = 'scoped memory for graph_cnn_forward.1']
    #allocation5 [shape = 'u8[1024]{0}', space=vmem, size = 0x400, scoped, tag = 'output window, operand 0']
    %102 = vsyncpa [#allocation3], 0
    %103 = vsyncpa [#allocation4], 0
    %s104 = scalar_lea.sflag [#allocation4], 1
    %105 = vsyncpa %s104, 0
    loop: start=0, step=1, limit=4
    $region2: #{graph_cnn_forward.1} parent=1 // loop_pre_header
      _
    $region3: #{graph_cnn_forward.1} parent=1 // loop_header
      %s107 = sphi 0, %s111
      %p108 = scmp.ge.s32.totalorder %s107, 4
      %s117 = sphi 0, %s119
      %s120 = sphi 0, %s117
      %s121 = sphi 0, %s120
      %s137 = sphi 0, %s121
      %s141 = sphi 0, %s141
      %s143 = sphi 0, %s141
      %s144 = sphi 0, %s143
      %s158 = sphi 0, %s144
      %s162 = sphi 0, %s162
      %s164 = sphi 0, %s162
      %s165 = sphi 0, %s164
      %s179 = sphi 0, %s165
      %s183 = sphi 0, %s183
      %s185 = sphi 0, %s183
      %s186 = sphi 0, %s185
      %s200 = sphi 0, %s186
      %s204 = sphi 0, %s204
      %s206 = sphi 0, %s204
      %s207 = sphi 0, %s206
      %s221 = sphi 0, %s207
      %s225 = sphi 0, %s225
      %s227 = sphi 0, %s225
      %s228 = sphi 0, %s227
      %s242 = sphi 0, %s228
      %s246 = sphi 0, %s246
      %s248 = sphi 0, %s246
      %s249 = sphi 0, %s248
      %s263 = sphi 0, %s249
      %s267 = sphi 0, %s267
      %s269 = sphi 0, %s267
      %s270 = sphi 0, %s269
      %s284 = sphi 0, %s270
      %s288 = sphi 0, %s288
      %s290 = sphi 0, %s288
      %s291 = sphi 0, %s290
      %s305 = sphi 0, %s291
      %s309 = sphi 0, %s309
      %s311 = sphi 0, %s309
      %s312 = sphi 0, %s311
      %s326 = sphi 0, %s312
      %s330 = sphi 0, %s330
      %s332 = sphi 0, %s330
      %s333 = sphi 0, %s332
      %s347 = sphi 0, %s333
      %s351 = sphi 0, %s351
      %s353 = sphi 0, %s351
      %s354 = sphi 0, %s353
      %s368 = sphi 0, %s354
      %s372 = sphi 0, %s372
      %s374 = sphi 0, %s372
      %s375 = sphi 0, %s374
      %s389 = sphi 0, %s375
      %s393 = sphi 0, %s393
      %s395 = sphi 0, %s393
      %s396 = sphi 0, %s395
      %s410 = sphi 0, %s396
      %s414 = sphi 0, %s414
      %s416 = sphi 0, %s414
      %s417 = sphi 0, %s416
      %s431 = sphi 0, %s417
      %s435 = sphi 0, %s435
      %s437 = sphi 0, %s435
      %s438 = sphi 0, %s437
      %s452 = sphi 0, %s438
      %s456 = sphi 0, %s456
      %s458 = sphi 0, %s456
      %s459 = sphi 0, %s458
      %s473 = sphi 0, %s459
      %s477 = sphi 0, %s477
      %s479 = sphi 0, %s477
      %s480 = sphi 0, %s479
      %s494 = sphi 0, %s480
      %s498 = sphi 0, %s498
      %s500 = sphi 0, %s498
      %s501 = sphi 0, %s500
      %s515 = sphi 0, %s501
      %s519 = sphi 0, %s519
      %s521 = sphi 0, %s519
      %s522 = sphi 0, %s521
      %s536 = sphi 0, %s522
      %s540 = sphi 0, %s540
      %s542 = sphi 0, %s540
      %s543 = sphi 0, %s542
      %s557 = sphi 0, %s543
      %s561 = sphi 0, %s561
      %s563 = sphi 0, %s561
      %s564 = sphi 0, %s563
      %s578 = sphi 0, %s564
      %s582 = sphi 0, %s582
      %s584 = sphi 0, %s582
      %s585 = sphi 0, %s584
      %s599 = sphi 0, %s585
      %s603 = sphi 0, %s603
      %s605 = sphi 0, %s603
      %s606 = sphi 0, %s605
      %s620 = sphi 0, %s606
      %s624 = sphi 0, %s624
      %s626 = sphi 0, %s624
      %s627 = sphi 0, %s626
      %s641 = sphi 0, %s627
      %s645 = sphi 0, %s645
      %s647 = sphi 0, %s645
      %s648 = sphi 0, %s647
      %s662 = sphi 0, %s648
      %s666 = sphi 0, %s666
      %s668 = sphi 0, %s666
      %s669 = sphi 0, %s668
      %s683 = sphi 0, %s669
      %s687 = sphi 0, %s687
      %s689 = sphi 0, %s687
      %s690 = sphi 0, %s689
      %s704 = sphi 0, %s690
      %s708 = sphi 0, %s708
      %s710 = sphi 0, %s708
      %s711 = sphi 0, %s710
      %s725 = sphi 0, %s711
      %s729 = sphi 0, %s729
      %s731 = sphi 0, %s729
      %s732 = sphi 0, %s731
      %s746 = sphi 0, %s732
      %s750 = sphi 0, %s750
      %s752 = sphi 0, %s750
      %s753 = sphi 0, %s752
      %s767 = sphi 0, %s753
      %s771 = sphi 0, %s771
      %s773 = sphi 0, %s771
      %s774 = sphi 0, %s773
      %s788 = sphi 0, %s774
      %s792 = sphi 0, %s792
      %s794 = sphi 0, %s792
      %s795 = sphi 0, %s794
      %s809 = sphi 0, %s795
      %s813 = sphi 0, %s813
      %s815 = sphi 0, %s813
      %s816 = sphi 0, %s815
      %s830 = sphi 0, %s816
      %s834 = sphi 0, %s834
      %s836 = sphi 0, %s834
      %s837 = sphi 0, %s836
      %s851 = sphi 0, %s837
      %s855 = sphi 0, %s855
      %s857 = sphi 0, %s855
      %s858 = sphi 0, %s857
      %s872 = sphi 0, %s858
      %s876 = sphi 0, %s876
      %s878 = sphi 0, %s876
      %s879 = sphi 0, %s878
      %s893 = sphi 0, %s879
      %s897 = sphi 0, %s897
      %s899 = sphi 0, %s897
      %s900 = sphi 0, %s899
      %s914 = sphi 0, %s900
      %s918 = sphi 0, %s918
      %s920 = sphi 0, %s918
      %s921 = sphi 0, %s920
      %s935 = sphi 0, %s921
      %s939 = sphi 0, %s939
      %s941 = sphi 0, %s939
      %s942 = sphi 0, %s941
      %s956 = sphi 0, %s942
      %s960 = sphi 0, %s960
      %s962 = sphi 0, %s960
      %s963 = sphi 0, %s962
      %s977 = sphi 0, %s963
      %s981 = sphi 0, %s981
      %s983 = sphi 0, %s981
      %s984 = sphi 0, %s983
      %s998 = sphi 0, %s984
      %s1002 = sphi 0, %s1002
      %s1004 = sphi 0, %s1002
      %s1005 = sphi 0, %s1004
      %s1019 = sphi 0, %s1005
      %s1023 = sphi 0, %s1023
      %s1025 = sphi 0, %s1023
      %s1026 = sphi 0, %s1025
      %s1040 = sphi 0, %s1026
      %s1044 = sphi 0, %s1044
      %s1046 = sphi 0, %s1044
      %s1047 = sphi 0, %s1046
      %s1061 = sphi 0, %s1047
      %s1065 = sphi 0, %s1065
      %s1067 = sphi 0, %s1065
      %s1068 = sphi 0, %s1067
      %s1082 = sphi 0, %s1068
      %s1086 = sphi 0, %s1086
      %s1088 = sphi 0, %s1086
      %s1089 = sphi 0, %s1088
      %s1103 = sphi 0, %s1089
      %s1107 = sphi 0, %s1107
      %s1109 = sphi 0, %s1107
      %s1110 = sphi 0, %s1109
      %s1124 = sphi 0, %s1110
      %s1130 = sphi 0, %s1132
      %s1133 = sphi 0, %s1130
      %s1134 = sphi 0, %s1133
      %s1150 = sphi 0, %s1134
    $region4: #{graph_cnn_forward.1} parent=1 // loop_header_branch
      %110 = sbr.rel (%p108) target = $region8
    $region5: #{graph_cnn_forward.1} parent=1 // loop_body
      %s112 = ssub.s32 %s107, 1
      %s113 = ssub.s32 %s107, 2
      %s114 = sadd.s32 %s107, 1
      %s115 = ssub.s32 %s107, %s114
      %p116 = scmp.eq.s32.totalorder %s115, 0
      %s118 = sadd.s32 %s117, 1
      %s119 = scalar_select %p116, %s117, %s118
      %p122 = pneg %p116
      %p123 = scmp.eq.s32.totalorder %s107, 1
      %p124 = por %p122, %p123
      %p125 = scmp.ne.s32.totalorder %s117, %s120
      %p126 = scmp.eq.s32.totalorder %s107, 0
      %p127 = por %p125, %p126
      %p128 = scmp.ne.s32.totalorder %s117, %s120
      %p129 = scmp.eq.s32.totalorder %s112, 1
      %p130 = por %p128, %p129
      %p131 = scmp.ne.s32.totalorder %s120, %s121
      %p132 = scmp.eq.s32.totalorder %s112, 0
      %p133 = por %p131, %p132
      %p134 = scmp.ne.s32.totalorder %s120, %s121
      %p135 = scmp.eq.s32.totalorder %s113, 1
      %p136 = por %p134, %p135
      %p138 = scmp.ne.s32.totalorder %s121, %s137
      %p139 = scmp.eq.s32.totalorder %s113, 0
      %p140 = por %p138, %p139
      %s142 = sadd.s32 %s141, 1
      %p145 = scmp.eq.s32.totalorder %s107, 1
      %p146 = scmp.ne.s32.totalorder %s141, %s143
      %p147 = scmp.eq.s32.totalorder %s107, 0
      %p148 = por %p146, %p147
      %p149 = scmp.ne.s32.totalorder %s141, %s143
      %p150 = scmp.eq.s32.totalorder %s112, 1
      %p151 = por %p149, %p150
      %p152 = scmp.ne.s32.totalorder %s143, %s144
      %p153 = scmp.eq.s32.totalorder %s112, 0
      %p154 = por %p152, %p153
      %p155 = scmp.ne.s32.totalorder %s143, %s144
      %p156 = scmp.eq.s32.totalorder %s113, 1
      %p157 = por %p155, %p156
      %p159 = scmp.ne.s32.totalorder %s144, %s158
      %p160 = scmp.eq.s32.totalorder %s113, 0
      %p161 = por %p159, %p160
      %s163 = sadd.s32 %s162, 1
      %p166 = scmp.eq.s32.totalorder %s107, 1
      %p167 = scmp.ne.s32.totalorder %s162, %s164
      %p168 = scmp.eq.s32.totalorder %s107, 0
      %p169 = por %p167, %p168
      %p170 = scmp.ne.s32.totalorder %s162, %s164
      %p171 = scmp.eq.s32.totalorder %s112, 1
      %p172 = por %p170, %p171
      %p173 = scmp.ne.s32.totalorder %s164, %s165
      %p174 = scmp.eq.s32.totalorder %s112, 0
      %p175 = por %p173, %p174
      %p176 = scmp.ne.s32.totalorder %s164, %s165
      %p177 = scmp.eq.s32.totalorder %s113, 1
      %p178 = por %p176, %p177
      %p180 = scmp.ne.s32.totalorder %s165, %s179
      %p181 = scmp.eq.s32.totalorder %s113, 0
      %p182 = por %p180, %p181
      %s184 = sadd.s32 %s183, 1
      %p187 = scmp.eq.s32.totalorder %s107, 1
      %p188 = scmp.ne.s32.totalorder %s183, %s185
      %p189 = scmp.eq.s32.totalorder %s107, 0
      %p190 = por %p188, %p189
      %p191 = scmp.ne.s32.totalorder %s183, %s185
      %p192 = scmp.eq.s32.totalorder %s112, 1
      %p193 = por %p191, %p192
      %p194 = scmp.ne.s32.totalorder %s185, %s186
      %p195 = scmp.eq.s32.totalorder %s112, 0
      %p196 = por %p194, %p195
      %p197 = scmp.ne.s32.totalorder %s185, %s186
      %p198 = scmp.eq.s32.totalorder %s113, 1
      %p199 = por %p197, %p198
      %p201 = scmp.ne.s32.totalorder %s186, %s200
      %p202 = scmp.eq.s32.totalorder %s113, 0
      %p203 = por %p201, %p202
      %s205 = sadd.s32 %s204, 1
      %p208 = scmp.eq.s32.totalorder %s107, 1
      %p209 = scmp.ne.s32.totalorder %s204, %s206
      %p210 = scmp.eq.s32.totalorder %s107, 0
      %p211 = por %p209, %p210
      %p212 = scmp.ne.s32.totalorder %s204, %s206
      %p213 = scmp.eq.s32.totalorder %s112, 1
      %p214 = por %p212, %p213
      %p215 = scmp.ne.s32.totalorder %s206, %s207
      %p216 = scmp.eq.s32.totalorder %s112, 0
      %p217 = por %p215, %p216
      %p218 = scmp.ne.s32.totalorder %s206, %s207
      %p219 = scmp.eq.s32.totalorder %s113, 1
      %p220 = por %p218, %p219
      %p222 = scmp.ne.s32.totalorder %s207, %s221
      %p223 = scmp.eq.s32.totalorder %s113, 0
      %p224 = por %p222, %p223
      %s226 = sadd.s32 %s225, 1
      %p229 = scmp.eq.s32.totalorder %s107, 1
      %p230 = scmp.ne.s32.totalorder %s225, %s227
      %p231 = scmp.eq.s32.totalorder %s107, 0
      %p232 = por %p230, %p231
      %p233 = scmp.ne.s32.totalorder %s225, %s227
      %p234 = scmp.eq.s32.totalorder %s112, 1
      %p235 = por %p233, %p234
      %p236 = scmp.ne.s32.totalorder %s227, %s228
      %p237 = scmp.eq.s32.totalorder %s112, 0
      %p238 = por %p236, %p237
      %p239 = scmp.ne.s32.totalorder %s227, %s228
      %p240 = scmp.eq.s32.totalorder %s113, 1
      %p241 = por %p239, %p240
      %p243 = scmp.ne.s32.totalorder %s228, %s242
      %p244 = scmp.eq.s32.totalorder %s113, 0
      %p245 = por %p243, %p244
      %s247 = sadd.s32 %s246, 1
      %p250 = scmp.eq.s32.totalorder %s107, 1
      %p251 = scmp.ne.s32.totalorder %s246, %s248
      %p252 = scmp.eq.s32.totalorder %s107, 0
      %p253 = por %p251, %p252
      %p254 = scmp.ne.s32.totalorder %s246, %s248
      %p255 = scmp.eq.s32.totalorder %s112, 1
      %p256 = por %p254, %p255
      %p257 = scmp.ne.s32.totalorder %s248, %s249
      %p258 = scmp.eq.s32.totalorder %s112, 0
      %p259 = por %p257, %p258
      %p260 = scmp.ne.s32.totalorder %s248, %s249
      %p261 = scmp.eq.s32.totalorder %s113, 1
      %p262 = por %p260, %p261
      %p264 = scmp.ne.s32.totalorder %s249, %s263
      %p265 = scmp.eq.s32.totalorder %s113, 0
      %p266 = por %p264, %p265
      %s268 = sadd.s32 %s267, 1
      %p271 = scmp.eq.s32.totalorder %s107, 1
      %p272 = scmp.ne.s32.totalorder %s267, %s269
      %p273 = scmp.eq.s32.totalorder %s107, 0
      %p274 = por %p272, %p273
      %p275 = scmp.ne.s32.totalorder %s267, %s269
      %p276 = scmp.eq.s32.totalorder %s112, 1
      %p277 = por %p275, %p276
      %p278 = scmp.ne.s32.totalorder %s269, %s270
      %p279 = scmp.eq.s32.totalorder %s112, 0
      %p280 = por %p278, %p279
      %p281 = scmp.ne.s32.totalorder %s269, %s270
      %p282 = scmp.eq.s32.totalorder %s113, 1
      %p283 = por %p281, %p282
      %p285 = scmp.ne.s32.totalorder %s270, %s284
      %p286 = scmp.eq.s32.totalorder %s113, 0
      %p287 = por %p285, %p286
      %s289 = sadd.s32 %s288, 1
      %p292 = scmp.eq.s32.totalorder %s107, 1
      %p293 = scmp.ne.s32.totalorder %s288, %s290
      %p294 = scmp.eq.s32.totalorder %s107, 0
      %p295 = por %p293, %p294
      %p296 = scmp.ne.s32.totalorder %s288, %s290
      %p297 = scmp.eq.s32.totalorder %s112, 1
      %p298 = por %p296, %p297
      %p299 = scmp.ne.s32.totalorder %s290, %s291
      %p300 = scmp.eq.s32.totalorder %s112, 0
      %p301 = por %p299, %p300
      %p302 = scmp.ne.s32.totalorder %s290, %s291
      %p303 = scmp.eq.s32.totalorder %s113, 1
      %p304 = por %p302, %p303
      %p306 = scmp.ne.s32.totalorder %s291, %s305
      %p307 = scmp.eq.s32.totalorder %s113, 0
      %p308 = por %p306, %p307
      %s310 = sadd.s32 %s309, 1
      %p313 = scmp.eq.s32.totalorder %s107, 1
      %p314 = scmp.ne.s32.totalorder %s309, %s311
      %p315 = scmp.eq.s32.totalorder %s107, 0
      %p316 = por %p314, %p315
      %p317 = scmp.ne.s32.totalorder %s309, %s311
      %p318 = scmp.eq.s32.totalorder %s112, 1
      %p319 = por %p317, %p318
      %p320 = scmp.ne.s32.totalorder %s311, %s312
      %p321 = scmp.eq.s32.totalorder %s112, 0
      %p322 = por %p320, %p321
      %p323 = scmp.ne.s32.totalorder %s311, %s312
      %p324 = scmp.eq.s32.totalorder %s113, 1
      %p325 = por %p323, %p324
      %p327 = scmp.ne.s32.totalorder %s312, %s326
      %p328 = scmp.eq.s32.totalorder %s113, 0
      %p329 = por %p327, %p328
      %s331 = sadd.s32 %s330, 1
      %p334 = scmp.eq.s32.totalorder %s107, 1
      %p335 = scmp.ne.s32.totalorder %s330, %s332
      %p336 = scmp.eq.s32.totalorder %s107, 0
      %p337 = por %p335, %p336
      %p338 = scmp.ne.s32.totalorder %s330, %s332
      %p339 = scmp.eq.s32.totalorder %s112, 1
      %p340 = por %p338, %p339
      %p341 = scmp.ne.s32.totalorder %s332, %s333
      %p342 = scmp.eq.s32.totalorder %s112, 0
      %p343 = por %p341, %p342
      %p344 = scmp.ne.s32.totalorder %s332, %s333
      %p345 = scmp.eq.s32.totalorder %s113, 1
      %p346 = por %p344, %p345
      %p348 = scmp.ne.s32.totalorder %s333, %s347
      %p349 = scmp.eq.s32.totalorder %s113, 0
      %p350 = por %p348, %p349
      %s352 = sadd.s32 %s351, 1
      %p355 = scmp.eq.s32.totalorder %s107, 1
      %p356 = scmp.ne.s32.totalorder %s351, %s353
      %p357 = scmp.eq.s32.totalorder %s107, 0
      %p358 = por %p356, %p357
      %p359 = scmp.ne.s32.totalorder %s351, %s353
      %p360 = scmp.eq.s32.totalorder %s112, 1
      %p361 = por %p359, %p360
      %p362 = scmp.ne.s32.totalorder %s353, %s354
      %p363 = scmp.eq.s32.totalorder %s112, 0
      %p364 = por %p362, %p363
      %p365 = scmp.ne.s32.totalorder %s353, %s354
      %p366 = scmp.eq.s32.totalorder %s113, 1
      %p367 = por %p365, %p366
      %p369 = scmp.ne.s32.totalorder %s354, %s368
      %p370 = scmp.eq.s32.totalorder %s113, 0
      %p371 = por %p369, %p370
      %s373 = sadd.s32 %s372, 1
      %p376 = scmp.eq.s32.totalorder %s107, 1
      %p377 = scmp.ne.s32.totalorder %s372, %s374
      %p378 = scmp.eq.s32.totalorder %s107, 0
      %p379 = por %p377, %p378
      %p380 = scmp.ne.s32.totalorder %s372, %s374
      %p381 = scmp.eq.s32.totalorder %s112, 1
      %p382 = por %p380, %p381
      %p383 = scmp.ne.s32.totalorder %s374, %s375
      %p384 = scmp.eq.s32.totalorder %s112, 0
      %p385 = por %p383, %p384
      %p386 = scmp.ne.s32.totalorder %s374, %s375
      %p387 = scmp.eq.s32.totalorder %s113, 1
      %p388 = por %p386, %p387
      %p390 = scmp.ne.s32.totalorder %s375, %s389
      %p391 = scmp.eq.s32.totalorder %s113, 0
      %p392 = por %p390, %p391
      %s394 = sadd.s32 %s393, 1
      %p397 = scmp.eq.s32.totalorder %s107, 1
      %p398 = scmp.ne.s32.totalorder %s393, %s395
      %p399 = scmp.eq.s32.totalorder %s107, 0
      %p400 = por %p398, %p399
      %p401 = scmp.ne.s32.totalorder %s393, %s395
      %p402 = scmp.eq.s32.totalorder %s112, 1
      %p403 = por %p401, %p402
      %p404 = scmp.ne.s32.totalorder %s395, %s396
      %p405 = scmp.eq.s32.totalorder %s112, 0
      %p406 = por %p404, %p405
      %p407 = scmp.ne.s32.totalorder %s395, %s396
      %p408 = scmp.eq.s32.totalorder %s113, 1
      %p409 = por %p407, %p408
      %p411 = scmp.ne.s32.totalorder %s396, %s410
      %p412 = scmp.eq.s32.totalorder %s113, 0
      %p413 = por %p411, %p412
      %s415 = sadd.s32 %s414, 1
      %p418 = scmp.eq.s32.totalorder %s107, 1
      %p419 = scmp.ne.s32.totalorder %s414, %s416
      %p420 = scmp.eq.s32.totalorder %s107, 0
      %p421 = por %p419, %p420
      %p422 = scmp.ne.s32.totalorder %s414, %s416
      %p423 = scmp.eq.s32.totalorder %s112, 1
      %p424 = por %p422, %p423
      %p425 = scmp.ne.s32.totalorder %s416, %s417
      %p426 = scmp.eq.s32.totalorder %s112, 0
      %p427 = por %p425, %p426
      %p428 = scmp.ne.s32.totalorder %s416, %s417
      %p429 = scmp.eq.s32.totalorder %s113, 1
      %p430 = por %p428, %p429
      %p432 = scmp.ne.s32.totalorder %s417, %s431
      %p433 = scmp.eq.s32.totalorder %s113, 0
      %p434 = por %p432, %p433
      %s436 = sadd.s32 %s435, 1
      %p439 = scmp.eq.s32.totalorder %s107, 1
      %p440 = scmp.ne.s32.totalorder %s435, %s437
      %p441 = scmp.eq.s32.totalorder %s107, 0
      %p442 = por %p440, %p441
      %p443 = scmp.ne.s32.totalorder %s435, %s437
      %p444 = scmp.eq.s32.totalorder %s112, 1
      %p445 = por %p443, %p444
      %p446 = scmp.ne.s32.totalorder %s437, %s438
      %p447 = scmp.eq.s32.totalorder %s112, 0
      %p448 = por %p446, %p447
      %p449 = scmp.ne.s32.totalorder %s437, %s438
      %p450 = scmp.eq.s32.totalorder %s113, 1
      %p451 = por %p449, %p450
      %p453 = scmp.ne.s32.totalorder %s438, %s452
      %p454 = scmp.eq.s32.totalorder %s113, 0
      %p455 = por %p453, %p454
      %s457 = sadd.s32 %s456, 1
      %p460 = scmp.eq.s32.totalorder %s107, 1
      %p461 = scmp.ne.s32.totalorder %s456, %s458
      %p462 = scmp.eq.s32.totalorder %s107, 0
      %p463 = por %p461, %p462
      %p464 = scmp.ne.s32.totalorder %s456, %s458
      %p465 = scmp.eq.s32.totalorder %s112, 1
      %p466 = por %p464, %p465
      %p467 = scmp.ne.s32.totalorder %s458, %s459
      %p468 = scmp.eq.s32.totalorder %s112, 0
      %p469 = por %p467, %p468
      %p470 = scmp.ne.s32.totalorder %s458, %s459
      %p471 = scmp.eq.s32.totalorder %s113, 1
      %p472 = por %p470, %p471
      %p474 = scmp.ne.s32.totalorder %s459, %s473
      %p475 = scmp.eq.s32.totalorder %s113, 0
      %p476 = por %p474, %p475
      %s478 = sadd.s32 %s477, 1
      %p481 = scmp.eq.s32.totalorder %s107, 1
      %p482 = scmp.ne.s32.totalorder %s477, %s479
      %p483 = scmp.eq.s32.totalorder %s107, 0
      %p484 = por %p482, %p483
      %p485 = scmp.ne.s32.totalorder %s477, %s479
      %p486 = scmp.eq.s32.totalorder %s112, 1
      %p487 = por %p485, %p486
      %p488 = scmp.ne.s32.totalorder %s479, %s480
      %p489 = scmp.eq.s32.totalorder %s112, 0
      %p490 = por %p488, %p489
      %p491 = scmp.ne.s32.totalorder %s479, %s480
      %p492 = scmp.eq.s32.totalorder %s113, 1
      %p493 = por %p491, %p492
      %p495 = scmp.ne.s32.totalorder %s480, %s494
      %p496 = scmp.eq.s32.totalorder %s113, 0
      %p497 = por %p495, %p496
      %s499 = sadd.s32 %s498, 1
      %p502 = scmp.eq.s32.totalorder %s107, 1
      %p503 = scmp.ne.s32.totalorder %s498, %s500
      %p504 = scmp.eq.s32.totalorder %s107, 0
      %p505 = por %p503, %p504
      %p506 = scmp.ne.s32.totalorder %s498, %s500
      %p507 = scmp.eq.s32.totalorder %s112, 1
      %p508 = por %p506, %p507
      %p509 = scmp.ne.s32.totalorder %s500, %s501
      %p510 = scmp.eq.s32.totalorder %s112, 0
      %p511 = por %p509, %p510
      %p512 = scmp.ne.s32.totalorder %s500, %s501
      %p513 = scmp.eq.s32.totalorder %s113, 1
      %p514 = por %p512, %p513
      %p516 = scmp.ne.s32.totalorder %s501, %s515
      %p517 = scmp.eq.s32.totalorder %s113, 0
      %p518 = por %p516, %p517
      %s520 = sadd.s32 %s519, 1
      %p523 = scmp.eq.s32.totalorder %s107, 1
      %p524 = scmp.ne.s32.totalorder %s519, %s521
      %p525 = scmp.eq.s32.totalorder %s107, 0
      %p526 = por %p524, %p525
      %p527 = scmp.ne.s32.totalorder %s519, %s521
      %p528 = scmp.eq.s32.totalorder %s112, 1
      %p529 = por %p527, %p528
      %p530 = scmp.ne.s32.totalorder %s521, %s522
      %p531 = scmp.eq.s32.totalorder %s112, 0
      %p532 = por %p530, %p531
      %p533 = scmp.ne.s32.totalorder %s521, %s522
      %p534 = scmp.eq.s32.totalorder %s113, 1
      %p535 = por %p533, %p534
      %p537 = scmp.ne.s32.totalorder %s522, %s536
      %p538 = scmp.eq.s32.totalorder %s113, 0
      %p539 = por %p537, %p538
      %s541 = sadd.s32 %s540, 1
      %p544 = scmp.eq.s32.totalorder %s107, 1
      %p545 = scmp.ne.s32.totalorder %s540, %s542
      %p546 = scmp.eq.s32.totalorder %s107, 0
      %p547 = por %p545, %p546
      %p548 = scmp.ne.s32.totalorder %s540, %s542
      %p549 = scmp.eq.s32.totalorder %s112, 1
      %p550 = por %p548, %p549
      %p551 = scmp.ne.s32.totalorder %s542, %s543
      %p552 = scmp.eq.s32.totalorder %s112, 0
      %p553 = por %p551, %p552
      %p554 = scmp.ne.s32.totalorder %s542, %s543
      %p555 = scmp.eq.s32.totalorder %s113, 1
      %p556 = por %p554, %p555
      %p558 = scmp.ne.s32.totalorder %s543, %s557
      %p559 = scmp.eq.s32.totalorder %s113, 0
      %p560 = por %p558, %p559
      %s562 = sadd.s32 %s561, 1
      %p565 = scmp.eq.s32.totalorder %s107, 1
      %p566 = scmp.ne.s32.totalorder %s561, %s563
      %p567 = scmp.eq.s32.totalorder %s107, 0
      %p568 = por %p566, %p567
      %p569 = scmp.ne.s32.totalorder %s561, %s563
      %p570 = scmp.eq.s32.totalorder %s112, 1
      %p571 = por %p569, %p570
      %p572 = scmp.ne.s32.totalorder %s563, %s564
      %p573 = scmp.eq.s32.totalorder %s112, 0
      %p574 = por %p572, %p573
      %p575 = scmp.ne.s32.totalorder %s563, %s564
      %p576 = scmp.eq.s32.totalorder %s113, 1
      %p577 = por %p575, %p576
      %p579 = scmp.ne.s32.totalorder %s564, %s578
      %p580 = scmp.eq.s32.totalorder %s113, 0
      %p581 = por %p579, %p580
      %s583 = sadd.s32 %s582, 1
      %p586 = scmp.eq.s32.totalorder %s107, 1
      %p587 = scmp.ne.s32.totalorder %s582, %s584
      %p588 = scmp.eq.s32.totalorder %s107, 0
      %p589 = por %p587, %p588
      %p590 = scmp.ne.s32.totalorder %s582, %s584
      %p591 = scmp.eq.s32.totalorder %s112, 1
      %p592 = por %p590, %p591
      %p593 = scmp.ne.s32.totalorder %s584, %s585
      %p594 = scmp.eq.s32.totalorder %s112, 0
      %p595 = por %p593, %p594
      %p596 = scmp.ne.s32.totalorder %s584, %s585
      %p597 = scmp.eq.s32.totalorder %s113, 1
      %p598 = por %p596, %p597
      %p600 = scmp.ne.s32.totalorder %s585, %s599
      %p601 = scmp.eq.s32.totalorder %s113, 0
      %p602 = por %p600, %p601
      %s604 = sadd.s32 %s603, 1
      %p607 = scmp.eq.s32.totalorder %s107, 1
      %p608 = scmp.ne.s32.totalorder %s603, %s605
      %p609 = scmp.eq.s32.totalorder %s107, 0
      %p610 = por %p608, %p609
      %p611 = scmp.ne.s32.totalorder %s603, %s605
      %p612 = scmp.eq.s32.totalorder %s112, 1
      %p613 = por %p611, %p612
      %p614 = scmp.ne.s32.totalorder %s605, %s606
      %p615 = scmp.eq.s32.totalorder %s112, 0
      %p616 = por %p614, %p615
      %p617 = scmp.ne.s32.totalorder %s605, %s606
      %p618 = scmp.eq.s32.totalorder %s113, 1
      %p619 = por %p617, %p618
      %p621 = scmp.ne.s32.totalorder %s606, %s620
      %p622 = scmp.eq.s32.totalorder %s113, 0
      %p623 = por %p621, %p622
      %s625 = sadd.s32 %s624, 1
      %p628 = scmp.eq.s32.totalorder %s107, 1
      %p629 = scmp.ne.s32.totalorder %s624, %s626
      %p630 = scmp.eq.s32.totalorder %s107, 0
      %p631 = por %p629, %p630
      %p632 = scmp.ne.s32.totalorder %s624, %s626
      %p633 = scmp.eq.s32.totalorder %s112, 1
      %p634 = por %p632, %p633
      %p635 = scmp.ne.s32.totalorder %s626, %s627
      %p636 = scmp.eq.s32.totalorder %s112, 0
      %p637 = por %p635, %p636
      %p638 = scmp.ne.s32.totalorder %s626, %s627
      %p639 = scmp.eq.s32.totalorder %s113, 1
      %p640 = por %p638, %p639
      %p642 = scmp.ne.s32.totalorder %s627, %s641
      %p643 = scmp.eq.s32.totalorder %s113, 0
      %p644 = por %p642, %p643
      %s646 = sadd.s32 %s645, 1
      %p649 = scmp.eq.s32.totalorder %s107, 1
      %p650 = scmp.ne.s32.totalorder %s645, %s647
      %p651 = scmp.eq.s32.totalorder %s107, 0
      %p652 = por %p650, %p651
      %p653 = scmp.ne.s32.totalorder %s645, %s647
      %p654 = scmp.eq.s32.totalorder %s112, 1
      %p655 = por %p653, %p654
      %p656 = scmp.ne.s32.totalorder %s647, %s648
      %p657 = scmp.eq.s32.totalorder %s112, 0
      %p658 = por %p656, %p657
      %p659 = scmp.ne.s32.totalorder %s647, %s648
      %p660 = scmp.eq.s32.totalorder %s113, 1
      %p661 = por %p659, %p660
      %p663 = scmp.ne.s32.totalorder %s648, %s662
      %p664 = scmp.eq.s32.totalorder %s113, 0
      %p665 = por %p663, %p664
      %s667 = sadd.s32 %s666, 1
      %p670 = scmp.eq.s32.totalorder %s107, 1
      %p671 = scmp.ne.s32.totalorder %s666, %s668
      %p672 = scmp.eq.s32.totalorder %s107, 0
      %p673 = por %p671, %p672
      %p674 = scmp.ne.s32.totalorder %s666, %s668
      %p675 = scmp.eq.s32.totalorder %s112, 1
      %p676 = por %p674, %p675
      %p677 = scmp.ne.s32.totalorder %s668, %s669
      %p678 = scmp.eq.s32.totalorder %s112, 0
      %p679 = por %p677, %p678
      %p680 = scmp.ne.s32.totalorder %s668, %s669
      %p681 = scmp.eq.s32.totalorder %s113, 1
      %p682 = por %p680, %p681
      %p684 = scmp.ne.s32.totalorder %s669, %s683
      %p685 = scmp.eq.s32.totalorder %s113, 0
      %p686 = por %p684, %p685
      %s688 = sadd.s32 %s687, 1
      %p691 = scmp.eq.s32.totalorder %s107, 1
      %p692 = scmp.ne.s32.totalorder %s687, %s689
      %p693 = scmp.eq.s32.totalorder %s107, 0
      %p694 = por %p692, %p693
      %p695 = scmp.ne.s32.totalorder %s687, %s689
      %p696 = scmp.eq.s32.totalorder %s112, 1
      %p697 = por %p695, %p696
      %p698 = scmp.ne.s32.totalorder %s689, %s690
      %p699 = scmp.eq.s32.totalorder %s112, 0
      %p700 = por %p698, %p699
      %p701 = scmp.ne.s32.totalorder %s689, %s690
      %p702 = scmp.eq.s32.totalorder %s113, 1
      %p703 = por %p701, %p702
      %p705 = scmp.ne.s32.totalorder %s690, %s704
      %p706 = scmp.eq.s32.totalorder %s113, 0
      %p707 = por %p705, %p706
      %s709 = sadd.s32 %s708, 1
      %p712 = scmp.eq.s32.totalorder %s107, 1
      %p713 = scmp.ne.s32.totalorder %s708, %s710
      %p714 = scmp.eq.s32.totalorder %s107, 0
      %p715 = por %p713, %p714
      %p716 = scmp.ne.s32.totalorder %s708, %s710
      %p717 = scmp.eq.s32.totalorder %s112, 1
      %p718 = por %p716, %p717
      %p719 = scmp.ne.s32.totalorder %s710, %s711
      %p720 = scmp.eq.s32.totalorder %s112, 0
      %p721 = por %p719, %p720
      %p722 = scmp.ne.s32.totalorder %s710, %s711
      %p723 = scmp.eq.s32.totalorder %s113, 1
      %p724 = por %p722, %p723
      %p726 = scmp.ne.s32.totalorder %s711, %s725
      %p727 = scmp.eq.s32.totalorder %s113, 0
      %p728 = por %p726, %p727
      %s730 = sadd.s32 %s729, 1
      %p733 = scmp.eq.s32.totalorder %s107, 1
      %p734 = scmp.ne.s32.totalorder %s729, %s731
      %p735 = scmp.eq.s32.totalorder %s107, 0
      %p736 = por %p734, %p735
      %p737 = scmp.ne.s32.totalorder %s729, %s731
      %p738 = scmp.eq.s32.totalorder %s112, 1
      %p739 = por %p737, %p738
      %p740 = scmp.ne.s32.totalorder %s731, %s732
      %p741 = scmp.eq.s32.totalorder %s112, 0
      %p742 = por %p740, %p741
      %p743 = scmp.ne.s32.totalorder %s731, %s732
      %p744 = scmp.eq.s32.totalorder %s113, 1
      %p745 = por %p743, %p744
      %p747 = scmp.ne.s32.totalorder %s732, %s746
      %p748 = scmp.eq.s32.totalorder %s113, 0
      %p749 = por %p747, %p748
      %s751 = sadd.s32 %s750, 1
      %p754 = scmp.eq.s32.totalorder %s107, 1
      %p755 = scmp.ne.s32.totalorder %s750, %s752
      %p756 = scmp.eq.s32.totalorder %s107, 0
      %p757 = por %p755, %p756
      %p758 = scmp.ne.s32.totalorder %s750, %s752
      %p759 = scmp.eq.s32.totalorder %s112, 1
      %p760 = por %p758, %p759
      %p761 = scmp.ne.s32.totalorder %s752, %s753
      %p762 = scmp.eq.s32.totalorder %s112, 0
      %p763 = por %p761, %p762
      %p764 = scmp.ne.s32.totalorder %s752, %s753
      %p765 = scmp.eq.s32.totalorder %s113, 1
      %p766 = por %p764, %p765
      %p768 = scmp.ne.s32.totalorder %s753, %s767
      %p769 = scmp.eq.s32.totalorder %s113, 0
      %p770 = por %p768, %p769
      %s772 = sadd.s32 %s771, 1
      %p775 = scmp.eq.s32.totalorder %s107, 1
      %p776 = scmp.ne.s32.totalorder %s771, %s773
      %p777 = scmp.eq.s32.totalorder %s107, 0
      %p778 = por %p776, %p777
      %p779 = scmp.ne.s32.totalorder %s771, %s773
      %p780 = scmp.eq.s32.totalorder %s112, 1
      %p781 = por %p779, %p780
      %p782 = scmp.ne.s32.totalorder %s773, %s774
      %p783 = scmp.eq.s32.totalorder %s112, 0
      %p784 = por %p782, %p783
      %p785 = scmp.ne.s32.totalorder %s773, %s774
      %p786 = scmp.eq.s32.totalorder %s113, 1
      %p787 = por %p785, %p786
      %p789 = scmp.ne.s32.totalorder %s774, %s788
      %p790 = scmp.eq.s32.totalorder %s113, 0
      %p791 = por %p789, %p790
      %s793 = sadd.s32 %s792, 1
      %p796 = scmp.eq.s32.totalorder %s107, 1
      %p797 = scmp.ne.s32.totalorder %s792, %s794
      %p798 = scmp.eq.s32.totalorder %s107, 0
      %p799 = por %p797, %p798
      %p800 = scmp.ne.s32.totalorder %s792, %s794
      %p801 = scmp.eq.s32.totalorder %s112, 1
      %p802 = por %p800, %p801
      %p803 = scmp.ne.s32.totalorder %s794, %s795
      %p804 = scmp.eq.s32.totalorder %s112, 0
      %p805 = por %p803, %p804
      %p806 = scmp.ne.s32.totalorder %s794, %s795
      %p807 = scmp.eq.s32.totalorder %s113, 1
      %p808 = por %p806, %p807
      %p810 = scmp.ne.s32.totalorder %s795, %s809
      %p811 = scmp.eq.s32.totalorder %s113, 0
      %p812 = por %p810, %p811
      %s814 = sadd.s32 %s813, 1
      %p817 = scmp.eq.s32.totalorder %s107, 1
      %p818 = scmp.ne.s32.totalorder %s813, %s815
      %p819 = scmp.eq.s32.totalorder %s107, 0
      %p820 = por %p818, %p819
      %p821 = scmp.ne.s32.totalorder %s813, %s815
      %p822 = scmp.eq.s32.totalorder %s112, 1
      %p823 = por %p821, %p822
      %p824 = scmp.ne.s32.totalorder %s815, %s816
      %p825 = scmp.eq.s32.totalorder %s112, 0
      %p826 = por %p824, %p825
      %p827 = scmp.ne.s32.totalorder %s815, %s816
      %p828 = scmp.eq.s32.totalorder %s113, 1
      %p829 = por %p827, %p828
      %p831 = scmp.ne.s32.totalorder %s816, %s830
      %p832 = scmp.eq.s32.totalorder %s113, 0
      %p833 = por %p831, %p832
      %s835 = sadd.s32 %s834, 1
      %p838 = scmp.eq.s32.totalorder %s107, 1
      %p839 = scmp.ne.s32.totalorder %s834, %s836
      %p840 = scmp.eq.s32.totalorder %s107, 0
      %p841 = por %p839, %p840
      %p842 = scmp.ne.s32.totalorder %s834, %s836
      %p843 = scmp.eq.s32.totalorder %s112, 1
      %p844 = por %p842, %p843
      %p845 = scmp.ne.s32.totalorder %s836, %s837
      %p846 = scmp.eq.s32.totalorder %s112, 0
      %p847 = por %p845, %p846
      %p848 = scmp.ne.s32.totalorder %s836, %s837
      %p849 = scmp.eq.s32.totalorder %s113, 1
      %p850 = por %p848, %p849
      %p852 = scmp.ne.s32.totalorder %s837, %s851
      %p853 = scmp.eq.s32.totalorder %s113, 0
      %p854 = por %p852, %p853
      %s856 = sadd.s32 %s855, 1
      %p859 = scmp.eq.s32.totalorder %s107, 1
      %p860 = scmp.ne.s32.totalorder %s855, %s857
      %p861 = scmp.eq.s32.totalorder %s107, 0
      %p862 = por %p860, %p861
      %p863 = scmp.ne.s32.totalorder %s855, %s857
      %p864 = scmp.eq.s32.totalorder %s112, 1
      %p865 = por %p863, %p864
      %p866 = scmp.ne.s32.totalorder %s857, %s858
      %p867 = scmp.eq.s32.totalorder %s112, 0
      %p868 = por %p866, %p867
      %p869 = scmp.ne.s32.totalorder %s857, %s858
      %p870 = scmp.eq.s32.totalorder %s113, 1
      %p871 = por %p869, %p870
      %p873 = scmp.ne.s32.totalorder %s858, %s872
      %p874 = scmp.eq.s32.totalorder %s113, 0
      %p875 = por %p873, %p874
      %s877 = sadd.s32 %s876, 1
      %p880 = scmp.eq.s32.totalorder %s107, 1
      %p881 = scmp.ne.s32.totalorder %s876, %s878
      %p882 = scmp.eq.s32.totalorder %s107, 0
      %p883 = por %p881, %p882
      %p884 = scmp.ne.s32.totalorder %s876, %s878
      %p885 = scmp.eq.s32.totalorder %s112, 1
      %p886 = por %p884, %p885
      %p887 = scmp.ne.s32.totalorder %s878, %s879
      %p888 = scmp.eq.s32.totalorder %s112, 0
      %p889 = por %p887, %p888
      %p890 = scmp.ne.s32.totalorder %s878, %s879
      %p891 = scmp.eq.s32.totalorder %s113, 1
      %p892 = por %p890, %p891
      %p894 = scmp.ne.s32.totalorder %s879, %s893
      %p895 = scmp.eq.s32.totalorder %s113, 0
      %p896 = por %p894, %p895
      %s898 = sadd.s32 %s897, 1
      %p901 = scmp.eq.s32.totalorder %s107, 1
      %p902 = scmp.ne.s32.totalorder %s897, %s899
      %p903 = scmp.eq.s32.totalorder %s107, 0
      %p904 = por %p902, %p903
      %p905 = scmp.ne.s32.totalorder %s897, %s899
      %p906 = scmp.eq.s32.totalorder %s112, 1
      %p907 = por %p905, %p906
      %p908 = scmp.ne.s32.totalorder %s899, %s900
      %p909 = scmp.eq.s32.totalorder %s112, 0
      %p910 = por %p908, %p909
      %p911 = scmp.ne.s32.totalorder %s899, %s900
      %p912 = scmp.eq.s32.totalorder %s113, 1
      %p913 = por %p911, %p912
      %p915 = scmp.ne.s32.totalorder %s900, %s914
      %p916 = scmp.eq.s32.totalorder %s113, 0
      %p917 = por %p915, %p916
      %s919 = sadd.s32 %s918, 1
      %p922 = scmp.eq.s32.totalorder %s107, 1
      %p923 = scmp.ne.s32.totalorder %s918, %s920
      %p924 = scmp.eq.s32.totalorder %s107, 0
      %p925 = por %p923, %p924
      %p926 = scmp.ne.s32.totalorder %s918, %s920
      %p927 = scmp.eq.s32.totalorder %s112, 1
      %p928 = por %p926, %p927
      %p929 = scmp.ne.s32.totalorder %s920, %s921
      %p930 = scmp.eq.s32.totalorder %s112, 0
      %p931 = por %p929, %p930
      %p932 = scmp.ne.s32.totalorder %s920, %s921
      %p933 = scmp.eq.s32.totalorder %s113, 1
      %p934 = por %p932, %p933
      %p936 = scmp.ne.s32.totalorder %s921, %s935
      %p937 = scmp.eq.s32.totalorder %s113, 0
      %p938 = por %p936, %p937
      %s940 = sadd.s32 %s939, 1
      %p943 = scmp.eq.s32.totalorder %s107, 1
      %p944 = scmp.ne.s32.totalorder %s939, %s941
      %p945 = scmp.eq.s32.totalorder %s107, 0
      %p946 = por %p944, %p945
      %p947 = scmp.ne.s32.totalorder %s939, %s941
      %p948 = scmp.eq.s32.totalorder %s112, 1
      %p949 = por %p947, %p948
      %p950 = scmp.ne.s32.totalorder %s941, %s942
      %p951 = scmp.eq.s32.totalorder %s112, 0
      %p952 = por %p950, %p951
      %p953 = scmp.ne.s32.totalorder %s941, %s942
      %p954 = scmp.eq.s32.totalorder %s113, 1
      %p955 = por %p953, %p954
      %p957 = scmp.ne.s32.totalorder %s942, %s956
      %p958 = scmp.eq.s32.totalorder %s113, 0
      %p959 = por %p957, %p958
      %s961 = sadd.s32 %s960, 1
      %p964 = scmp.eq.s32.totalorder %s107, 1
      %p965 = scmp.ne.s32.totalorder %s960, %s962
      %p966 = scmp.eq.s32.totalorder %s107, 0
      %p967 = por %p965, %p966
      %p968 = scmp.ne.s32.totalorder %s960, %s962
      %p969 = scmp.eq.s32.totalorder %s112, 1
      %p970 = por %p968, %p969
      %p971 = scmp.ne.s32.totalorder %s962, %s963
      %p972 = scmp.eq.s32.totalorder %s112, 0
      %p973 = por %p971, %p972
      %p974 = scmp.ne.s32.totalorder %s962, %s963
      %p975 = scmp.eq.s32.totalorder %s113, 1
      %p976 = por %p974, %p975
      %p978 = scmp.ne.s32.totalorder %s963, %s977
      %p979 = scmp.eq.s32.totalorder %s113, 0
      %p980 = por %p978, %p979
      %s982 = sadd.s32 %s981, 1
      %p985 = scmp.eq.s32.totalorder %s107, 1
      %p986 = scmp.ne.s32.totalorder %s981, %s983
      %p987 = scmp.eq.s32.totalorder %s107, 0
      %p988 = por %p986, %p987
      %p989 = scmp.ne.s32.totalorder %s981, %s983
      %p990 = scmp.eq.s32.totalorder %s112, 1
      %p991 = por %p989, %p990
      %p992 = scmp.ne.s32.totalorder %s983, %s984
      %p993 = scmp.eq.s32.totalorder %s112, 0
      %p994 = por %p992, %p993
      %p995 = scmp.ne.s32.totalorder %s983, %s984
      %p996 = scmp.eq.s32.totalorder %s113, 1
      %p997 = por %p995, %p996
      %p999 = scmp.ne.s32.totalorder %s984, %s998
      %p1000 = scmp.eq.s32.totalorder %s113, 0
      %p1001 = por %p999, %p1000
      %s1003 = sadd.s32 %s1002, 1
      %p1006 = scmp.eq.s32.totalorder %s107, 1
      %p1007 = scmp.ne.s32.totalorder %s1002, %s1004
      %p1008 = scmp.eq.s32.totalorder %s107, 0
      %p1009 = por %p1007, %p1008
      %p1010 = scmp.ne.s32.totalorder %s1002, %s1004
      %p1011 = scmp.eq.s32.totalorder %s112, 1
      %p1012 = por %p1010, %p1011
      %p1013 = scmp.ne.s32.totalorder %s1004, %s1005
      %p1014 = scmp.eq.s32.totalorder %s112, 0
      %p1015 = por %p1013, %p1014
      %p1016 = scmp.ne.s32.totalorder %s1004, %s1005
      %p1017 = scmp.eq.s32.totalorder %s113, 1
      %p1018 = por %p1016, %p1017
      %p1020 = scmp.ne.s32.totalorder %s1005, %s1019
      %p1021 = scmp.eq.s32.totalorder %s113, 0
      %p1022 = por %p1020, %p1021
      %s1024 = sadd.s32 %s1023, 1
      %p1027 = scmp.eq.s32.totalorder %s107, 1
      %p1028 = scmp.ne.s32.totalorder %s1023, %s1025
      %p1029 = scmp.eq.s32.totalorder %s107, 0
      %p1030 = por %p1028, %p1029
      %p1031 = scmp.ne.s32.totalorder %s1023, %s1025
      %p1032 = scmp.eq.s32.totalorder %s112, 1
      %p1033 = por %p1031, %p1032
      %p1034 = scmp.ne.s32.totalorder %s1025, %s1026
      %p1035 = scmp.eq.s32.totalorder %s112, 0
      %p1036 = por %p1034, %p1035
      %p1037 = scmp.ne.s32.totalorder %s1025, %s1026
      %p1038 = scmp.eq.s32.totalorder %s113, 1
      %p1039 = por %p1037, %p1038
      %p1041 = scmp.ne.s32.totalorder %s1026, %s1040
      %p1042 = scmp.eq.s32.totalorder %s113, 0
      %p1043 = por %p1041, %p1042
      %s1045 = sadd.s32 %s1044, 1
      %p1048 = scmp.eq.s32.totalorder %s107, 1
      %p1049 = scmp.ne.s32.totalorder %s1044, %s1046
      %p1050 = scmp.eq.s32.totalorder %s107, 0
      %p1051 = por %p1049, %p1050
      %p1052 = scmp.ne.s32.totalorder %s1044, %s1046
      %p1053 = scmp.eq.s32.totalorder %s112, 1
      %p1054 = por %p1052, %p1053
      %p1055 = scmp.ne.s32.totalorder %s1046, %s1047
      %p1056 = scmp.eq.s32.totalorder %s112, 0
      %p1057 = por %p1055, %p1056
      %p1058 = scmp.ne.s32.totalorder %s1046, %s1047
      %p1059 = scmp.eq.s32.totalorder %s113, 1
      %p1060 = por %p1058, %p1059
      %p1062 = scmp.ne.s32.totalorder %s1047, %s1061
      %p1063 = scmp.eq.s32.totalorder %s113, 0
      %p1064 = por %p1062, %p1063
      %s1066 = sadd.s32 %s1065, 1
      %p1069 = scmp.eq.s32.totalorder %s107, 1
      %p1070 = scmp.ne.s32.totalorder %s1065, %s1067
      %p1071 = scmp.eq.s32.totalorder %s107, 0
      %p1072 = por %p1070, %p1071
      %p1073 = scmp.ne.s32.totalorder %s1065, %s1067
      %p1074 = scmp.eq.s32.totalorder %s112, 1
      %p1075 = por %p1073, %p1074
      %p1076 = scmp.ne.s32.totalorder %s1067, %s1068
      %p1077 = scmp.eq.s32.totalorder %s112, 0
      %p1078 = por %p1076, %p1077
      %p1079 = scmp.ne.s32.totalorder %s1067, %s1068
      %p1080 = scmp.eq.s32.totalorder %s113, 1
      %p1081 = por %p1079, %p1080
      %p1083 = scmp.ne.s32.totalorder %s1068, %s1082
      %p1084 = scmp.eq.s32.totalorder %s113, 0
      %p1085 = por %p1083, %p1084
      %s1087 = sadd.s32 %s1086, 1
      %p1090 = scmp.eq.s32.totalorder %s107, 1
      %p1091 = scmp.ne.s32.totalorder %s1086, %s1088
      %p1092 = scmp.eq.s32.totalorder %s107, 0
      %p1093 = por %p1091, %p1092
      %p1094 = scmp.ne.s32.totalorder %s1086, %s1088
      %p1095 = scmp.eq.s32.totalorder %s112, 1
      %p1096 = por %p1094, %p1095
      %p1097 = scmp.ne.s32.totalorder %s1088, %s1089
      %p1098 = scmp.eq.s32.totalorder %s112, 0
      %p1099 = por %p1097, %p1098
      %p1100 = scmp.ne.s32.totalorder %s1088, %s1089
      %p1101 = scmp.eq.s32.totalorder %s113, 1
      %p1102 = por %p1100, %p1101
      %p1104 = scmp.ne.s32.totalorder %s1089, %s1103
      %p1105 = scmp.eq.s32.totalorder %s113, 0
      %p1106 = por %p1104, %p1105
      %s1108 = sadd.s32 %s1107, 1
      %p1111 = scmp.eq.s32.totalorder %s107, 1
      %p1112 = scmp.ne.s32.totalorder %s1107, %s1109
      %p1113 = scmp.eq.s32.totalorder %s107, 0
      %p1114 = por %p1112, %p1113
      %p1115 = scmp.ne.s32.totalorder %s1107, %s1109
      %p1116 = scmp.eq.s32.totalorder %s112, 1
      %p1117 = por %p1115, %p1116
      %p1118 = scmp.ne.s32.totalorder %s1109, %s1110
      %p1119 = scmp.eq.s32.totalorder %s112, 0
      %p1120 = por %p1118, %p1119
      %p1121 = scmp.ne.s32.totalorder %s1109, %s1110
      %p1122 = scmp.eq.s32.totalorder %s113, 1
      %p1123 = por %p1121, %p1122
      %p1125 = scmp.ne.s32.totalorder %s1110, %s1124
      %p1126 = scmp.eq.s32.totalorder %s113, 0
      %p1127 = por %p1125, %p1126
      %s1128 = ssub.s32 %s107, %s114
      %p1129 = scmp.eq.s32.totalorder %s1128, 0
      %s1131 = sadd.s32 %s1130, 1
      %s1132 = scalar_select %p1129, %s1130, %s1131
      %p1135 = pneg %p1129
      %p1136 = scmp.eq.s32.totalorder %s107, 1
      %p1137 = por %p1135, %p1136
      %p1138 = scmp.ne.s32.totalorder %s1130, %s1133
      %p1139 = scmp.eq.s32.totalorder %s107, 0
      %p1140 = por %p1138, %p1139
      %p1141 = scmp.ne.s32.totalorder %s1130, %s1133
      %p1142 = scmp.eq.s32.totalorder %s112, 1
      %p1143 = por %p1141, %p1142
      %p1144 = scmp.ne.s32.totalorder %s1133, %s1134
      %p1145 = scmp.eq.s32.totalorder %s112, 0
      %p1146 = por %p1144, %p1145
      %p1147 = scmp.ne.s32.totalorder %s1133, %s1134
      %p1148 = scmp.eq.s32.totalorder %s113, 1
      %p1149 = por %p1147, %p1148
      %p1151 = scmp.ne.s32.totalorder %s1134, %s1150
      %p1152 = scmp.eq.s32.totalorder %s113, 0
      %p1153 = por %p1151, %p1152
      %p1154 = scmp.le.s32.totalorder 1, %s107
      %p1155 = scmp.lt.s32.totalorder %s107, 3
      %p1156 = pnand %p1154, %p1155
      %p1157 = pneg %p1156
      // Predicated region
      $region9: #{graph_cnn_forward.1} parent=5 // pred_check
        _
      $region10: #{graph_cnn_forward.1} parent=5 // pred_check_branch
        %1159 = sbr.rel (%p1156) target = $region12
      $region11: #{graph_cnn_forward.1} parent=5 // pred_region
        %s1160 = ssub.s32 %s107, 1
        // Predicated region
        $region13: #{graph_cnn_forward.1} parent=11 // pred_check
          %p1161 = pneg %p154
        $region14: #{graph_cnn_forward.1} parent=11 // pred_check_branch
          %1163 = sbr.rel (%p1161) target = $region16
        $region15: #{graph_cnn_forward.1} parent=11 // pred_region
          _
        $region16: #{graph_cnn_forward.1} parent=11 // pred_fallthru
          _
        // Predicated region
        $region17: #{graph_cnn_forward.1} parent=11 // pred_check
          %p1164 = pneg %p175
        $region18: #{graph_cnn_forward.1} parent=11 // pred_check_branch
          %1166 = sbr.rel (%p1164) target = $region20
        $region19: #{graph_cnn_forward.1} parent=11 // pred_region
          _
        $region20: #{graph_cnn_forward.1} parent=11 // pred_fallthru
          _
        // Predicated region
        $region21: #{graph_cnn_forward.1} parent=11 // pred_check
          %p1167 = pneg %p196
        $region22: #{graph_cnn_forward.1} parent=11 // pred_check_branch
          %1169 = sbr.rel (%p1167) target = $region24
        $region23: #{graph_cnn_forward.1} parent=11 // pred_region
          _
        $region24: #{graph_cnn_forward.1} parent=11 // pred_fallthru
          _
        // Predicated region
        $region25: #{graph_cnn_forward.1} parent=11 // pred_check
          %p1170 = pneg %p217
        $region26: #{graph_cnn_forward.1} parent=11 // pred_check_branch
          %1172 = sbr.rel (%p1170) target = $region28
        $region27: #{graph_cnn_forward.1} parent=11 // pred_region
          _
        $region28: #{graph_cnn_forward.1} parent=11 // pred_fallthru
          _
        // Predicated region
        $region29: #{graph_cnn_forward.1} parent=11 // pred_check
          %p1173 = pneg %p238
        $region30: #{graph_cnn_forward.1} parent=11 // pred_check_branch
          %1175 = sbr.rel (%p1173) target = $region32
        $region31: #{graph_cnn_forward.1} parent=11 // pred_region
          _
        $region32: #{graph_cnn_forward.1} parent=11 // pred_fallthru
          _
        // Predicated region
        $region33: #{graph_cnn_forward.1} parent=11 // pred_check
          %p1176 = pneg %p259
        $region34: #{graph_cnn_forward.1} parent=11 // pred_check_branch
          %1178 = sbr.rel (%p1176) target = $region36
        $region35: #{graph_cnn_forward.1} parent=11 // pred_region
          _
        $region36: #{graph_cnn_forward.1} parent=11 // pred_fallthru
          _
        // Predicated region
        $region37: #{graph_cnn_forward.1} parent=11 // pred_check
          %p1179 = pneg %p280
        $region38: #{graph_cnn_forward.1} parent=11 // pred_check_branch
          %1181 = sbr.rel (%p1179) target = $region40
        $region39: #{graph_cnn_forward.1} parent=11 // pred_region
          _
        $region40: #{graph_cnn_forward.1} parent=11 // pred_fallthru
          _
        // Predicated region
        $region41: #{graph_cnn_forward.1} parent=11 // pred_check
          %p1182 = pneg %p301
        $region42: #{graph_cnn_forward.1} parent=11 // pred_check_branch
          %1184 = sbr.rel (%p1182) target = $region44
        $region43: #{graph_cnn_forward.1} parent=11 // pred_region
          _
        $region44: #{graph_cnn_forward.1} parent=11 // pred_fallthru
          _
        // Predicated region
        $region45: #{graph_cnn_forward.1} parent=11 // pred_check
          %p1185 = pneg %p322
        $region46: #{graph_cnn_forward.1} parent=11 // pred_check_branch
          %1187 = sbr.rel (%p1185) target = $region48
        $region47: #{graph_cnn_forward.1} parent=11 // pred_region
          _
        $region48: #{graph_cnn_forward.1} parent=11 // pred_fallthru
          _
        // Predicated region
        $region49: #{graph_cnn_forward.1} parent=11 // pred_check
          %p1188 = pneg %p343
        $region50: #{graph_cnn_forward.1} parent=11 // pred_check_branch
          %1190 = sbr.rel (%p1188) target = $region52
        $region51: #{graph_cnn_forward.1} parent=11 // pred_region
          _
        $region52: #{graph_cnn_forward.1} parent=11 // pred_fallthru
          _
        // Predicated region
        $region53: #{graph_cnn_forward.1} parent=11 // pred_check
          %p1191 = pneg %p364
        $region54: #{graph_cnn_forward.1} parent=11 // pred_check_branch
          %1193 = sbr.rel (%p1191) target = $region56
        $region55: #{graph_cnn_forward.1} parent=11 // pred_region
          _
        $region56: #{graph_cnn_forward.1} parent=11 // pred_fallthru
          _
        // Predicated region
        $region57: #{graph_cnn_forward.1} parent=11 // pred_check
          %p1194 = pneg %p385
        $region58: #{graph_cnn_forward.1} parent=11 // pred_check_branch
          %1196 = sbr.rel (%p1194) target = $region60
        $region59: #{graph_cnn_forward.1} parent=11 // pred_region
          _
        $region60: #{graph_cnn_forward.1} parent=11 // pred_fallthru
          _
        // Predicated region
        $region61: #{graph_cnn_forward.1} parent=11 // pred_check
          %p1197 = pneg %p406
        $region62: #{graph_cnn_forward.1} parent=11 // pred_check_branch
          %1199 = sbr.rel (%p1197) target = $region64
        $region63: #{graph_cnn_forward.1} parent=11 // pred_region
          _
        $region64: #{graph_cnn_forward.1} parent=11 // pred_fallthru
          _
        // Predicated region
        $region65: #{graph_cnn_forward.1} parent=11 // pred_check
          %p1200 = pneg %p427
        $region66: #{graph_cnn_forward.1} parent=11 // pred_check_branch
          %1202 = sbr.rel (%p1200) target = $region68
        $region67: #{graph_cnn_forward.1} parent=11 // pred_region
          _
        $region68: #{graph_cnn_forward.1} parent=11 // pred_fallthru
          _
        // Predicated region
        $region69: #{graph_cnn_forward.1} parent=11 // pred_check
          %p1203 = pneg %p448
        $region70: #{graph_cnn_forward.1} parent=11 // pred_check_branch
          %1205 = sbr.rel (%p1203) target = $region72
        $region71: #{graph_cnn_forward.1} parent=11 // pred_region
          _
        $region72: #{graph_cnn_forward.1} parent=11 // pred_fallthru
          _
        // Predicated region
        $region73: #{graph_cnn_forward.1} parent=11 // pred_check
          %p1206 = pneg %p469
        $region74: #{graph_cnn_forward.1} parent=11 // pred_check_branch
          %1208 = sbr.rel (%p1206) target = $region76
        $region75: #{graph_cnn_forward.1} parent=11 // pred_region
          _
        $region76: #{graph_cnn_forward.1} parent=11 // pred_fallthru
          _
        // Predicated region
        $region77: #{graph_cnn_forward.1} parent=11 // pred_check
          %p1209 = pneg %p490
        $region78: #{graph_cnn_forward.1} parent=11 // pred_check_branch
          %1211 = sbr.rel (%p1209) target = $region80
        $region79: #{graph_cnn_forward.1} parent=11 // pred_region
          _
        $region80: #{graph_cnn_forward.1} parent=11 // pred_fallthru
          _
        // Predicated region
        $region81: #{graph_cnn_forward.1} parent=11 // pred_check
          %p1212 = pneg %p511
        $region82: #{graph_cnn_forward.1} parent=11 // pred_check_branch
          %1214 = sbr.rel (%p1212) target = $region84
        $region83: #{graph_cnn_forward.1} parent=11 // pred_region
          _
        $region84: #{graph_cnn_forward.1} parent=11 // pred_fallthru
          _
        // Predicated region
        $region85: #{graph_cnn_forward.1} parent=11 // pred_check
          %p1215 = pneg %p532
        $region86: #{graph_cnn_forward.1} parent=11 // pred_check_branch
          %1217 = sbr.rel (%p1215) target = $region88
        $region87: #{graph_cnn_forward.1} parent=11 // pred_region
          _
        $region88: #{graph_cnn_forward.1} parent=11 // pred_fallthru
          _
        // Predicated region
        $region89: #{graph_cnn_forward.1} parent=11 // pred_check
          %p1218 = pneg %p553
        $region90: #{graph_cnn_forward.1} parent=11 // pred_check_branch
          %1220 = sbr.rel (%p1218) target = $region92
        $region91: #{graph_cnn_forward.1} parent=11 // pred_region
          _
        $region92: #{graph_cnn_forward.1} parent=11 // pred_fallthru
          _
        // Predicated region
        $region93: #{graph_cnn_forward.1} parent=11 // pred_check
          %p1221 = pneg %p574
        $region94: #{graph_cnn_forward.1} parent=11 // pred_check_branch
          %1223 = sbr.rel (%p1221) target = $region96
        $region95: #{graph_cnn_forward.1} parent=11 // pred_region
          _
        $region96: #{graph_cnn_forward.1} parent=11 // pred_fallthru
          _
        // Predicated region
        $region97: #{graph_cnn_forward.1} parent=11 // pred_check
          %p1224 = pneg %p595
        $region98: #{graph_cnn_forward.1} parent=11 // pred_check_branch
          %1226 = sbr.rel (%p1224) target = $region100
        $region99: #{graph_cnn_forward.1} parent=11 // pred_region
          _
        $region100: #{graph_cnn_forward.1} parent=11 // pred_fallthru
          _
        // Predicated region
        $region101: #{graph_cnn_forward.1} parent=11 // pred_check
          %p1227 = pneg %p616
        $region102: #{graph_cnn_forward.1} parent=11 // pred_check_branch
          %1229 = sbr.rel (%p1227) target = $region104
        $region103: #{graph_cnn_forward.1} parent=11 // pred_region
          _
        $region104: #{graph_cnn_forward.1} parent=11 // pred_fallthru
          _
        // Predicated region
        $region105: #{graph_cnn_forward.1} parent=11 // pred_check
          %p1230 = pneg %p637
        $region106: #{graph_cnn_forward.1} parent=11 // pred_check_branch
          %1232 = sbr.rel (%p1230) target = $region108
        $region107: #{graph_cnn_forward.1} parent=11 // pred_region
          _
        $region108: #{graph_cnn_forward.1} parent=11 // pred_fallthru
          _
        // Predicated region
        $region109: #{graph_cnn_forward.1} parent=11 // pred_check
          %p1233 = pneg %p658
        $region110: #{graph_cnn_forward.1} parent=11 // pred_check_branch
          %1235 = sbr.rel (%p1233) target = $region112
        $region111: #{graph_cnn_forward.1} parent=11 // pred_region
          _
        $region112: #{graph_cnn_forward.1} parent=11 // pred_fallthru
          _
        // Predicated region
        $region113: #{graph_cnn_forward.1} parent=11 // pred_check
          %p1236 = pneg %p679
        $region114: #{graph_cnn_forward.1} parent=11 // pred_check_branch
          %1238 = sbr.rel (%p1236) target = $region116
        $region115: #{graph_cnn_forward.1} parent=11 // pred_region
          _
        $region116: #{graph_cnn_forward.1} parent=11 // pred_fallthru
          _
        // Predicated region
        $region117: #{graph_cnn_forward.1} parent=11 // pred_check
          %p1239 = pneg %p700
        $region118: #{graph_cnn_forward.1} parent=11 // pred_check_branch
          %1241 = sbr.rel (%p1239) target = $region120
        $region119: #{graph_cnn_forward.1} parent=11 // pred_region
          _
        $region120: #{graph_cnn_forward.1} parent=11 // pred_fallthru
          _
        // Predicated region
        $region121: #{graph_cnn_forward.1} parent=11 // pred_check
          %p1242 = pneg %p721
        $region122: #{graph_cnn_forward.1} parent=11 // pred_check_branch
          %1244 = sbr.rel (%p1242) target = $region124
        $region123: #{graph_cnn_forward.1} parent=11 // pred_region
          _
        $region124: #{graph_cnn_forward.1} parent=11 // pred_fallthru
          _
        // Predicated region
        $region125: #{graph_cnn_forward.1} parent=11 // pred_check
          %p1245 = pneg %p742
        $region126: #{graph_cnn_forward.1} parent=11 // pred_check_branch
          %1247 = sbr.rel (%p1245) target = $region128
        $region127: #{graph_cnn_forward.1} parent=11 // pred_region
          _
        $region128: #{graph_cnn_forward.1} parent=11 // pred_fallthru
          _
        // Predicated region
        $region129: #{graph_cnn_forward.1} parent=11 // pred_check
          %p1248 = pneg %p763
        $region130: #{graph_cnn_forward.1} parent=11 // pred_check_branch
          %1250 = sbr.rel (%p1248) target = $region132
        $region131: #{graph_cnn_forward.1} parent=11 // pred_region
          _
        $region132: #{graph_cnn_forward.1} parent=11 // pred_fallthru
          _
        // Predicated region
        $region133: #{graph_cnn_forward.1} parent=11 // pred_check
          %p1251 = pneg %p784
        $region134: #{graph_cnn_forward.1} parent=11 // pred_check_branch
          %1253 = sbr.rel (%p1251) target = $region136
        $region135: #{graph_cnn_forward.1} parent=11 // pred_region
          _
        $region136: #{graph_cnn_forward.1} parent=11 // pred_fallthru
          _
        // Predicated region
        $region137: #{graph_cnn_forward.1} parent=11 // pred_check
          %p1254 = pneg %p805
        $region138: #{graph_cnn_forward.1} parent=11 // pred_check_branch
          %1256 = sbr.rel (%p1254) target = $region140
        $region139: #{graph_cnn_forward.1} parent=11 // pred_region
          _
        $region140: #{graph_cnn_forward.1} parent=11 // pred_fallthru
          _
        // Predicated region
        $region141: #{graph_cnn_forward.1} parent=11 // pred_check
          %p1257 = pneg %p826
        $region142: #{graph_cnn_forward.1} parent=11 // pred_check_branch
          %1259 = sbr.rel (%p1257) target = $region144
        $region143: #{graph_cnn_forward.1} parent=11 // pred_region
          _
        $region144: #{graph_cnn_forward.1} parent=11 // pred_fallthru
          _
        // Predicated region
        $region145: #{graph_cnn_forward.1} parent=11 // pred_check
          %p1260 = pneg %p847
        $region146: #{graph_cnn_forward.1} parent=11 // pred_check_branch
          %1262 = sbr.rel (%p1260) target = $region148
        $region147: #{graph_cnn_forward.1} parent=11 // pred_region
          _
        $region148: #{graph_cnn_forward.1} parent=11 // pred_fallthru
          _
        // Predicated region
        $region149: #{graph_cnn_forward.1} parent=11 // pred_check
          %p1263 = pneg %p868
        $region150: #{graph_cnn_forward.1} parent=11 // pred_check_branch
          %1265 = sbr.rel (%p1263) target = $region152
        $region151: #{graph_cnn_forward.1} parent=11 // pred_region
          _
        $region152: #{graph_cnn_forward.1} parent=11 // pred_fallthru
          _
        // Predicated region
        $region153: #{graph_cnn_forward.1} parent=11 // pred_check
          %p1266 = pneg %p889
        $region154: #{graph_cnn_forward.1} parent=11 // pred_check_branch
          %1268 = sbr.rel (%p1266) target = $region156
        $region155: #{graph_cnn_forward.1} parent=11 // pred_region
          _
        $region156: #{graph_cnn_forward.1} parent=11 // pred_fallthru
          _
        // Predicated region
        $region157: #{graph_cnn_forward.1} parent=11 // pred_check
          %p1269 = pneg %p910
        $region158: #{graph_cnn_forward.1} parent=11 // pred_check_branch
          %1271 = sbr.rel (%p1269) target = $region160
        $region159: #{graph_cnn_forward.1} parent=11 // pred_region
          _
        $region160: #{graph_cnn_forward.1} parent=11 // pred_fallthru
          _
        // Predicated region
        $region161: #{graph_cnn_forward.1} parent=11 // pred_check
          %p1272 = pneg %p931
        $region162: #{graph_cnn_forward.1} parent=11 // pred_check_branch
          %1274 = sbr.rel (%p1272) target = $region164
        $region163: #{graph_cnn_forward.1} parent=11 // pred_region
          _
        $region164: #{graph_cnn_forward.1} parent=11 // pred_fallthru
          _
        // Predicated region
        $region165: #{graph_cnn_forward.1} parent=11 // pred_check
          %p1275 = pneg %p952
        $region166: #{graph_cnn_forward.1} parent=11 // pred_check_branch
          %1277 = sbr.rel (%p1275) target = $region168
        $region167: #{graph_cnn_forward.1} parent=11 // pred_region
          _
        $region168: #{graph_cnn_forward.1} parent=11 // pred_fallthru
          _
        // Predicated region
        $region169: #{graph_cnn_forward.1} parent=11 // pred_check
          %p1278 = pneg %p973
        $region170: #{graph_cnn_forward.1} parent=11 // pred_check_branch
          %1280 = sbr.rel (%p1278) target = $region172
        $region171: #{graph_cnn_forward.1} parent=11 // pred_region
          _
        $region172: #{graph_cnn_forward.1} parent=11 // pred_fallthru
          _
        // Predicated region
        $region173: #{graph_cnn_forward.1} parent=11 // pred_check
          %p1281 = pneg %p994
        $region174: #{graph_cnn_forward.1} parent=11 // pred_check_branch
          %1283 = sbr.rel (%p1281) target = $region176
        $region175: #{graph_cnn_forward.1} parent=11 // pred_region
          _
        $region176: #{graph_cnn_forward.1} parent=11 // pred_fallthru
          _
        // Predicated region
        $region177: #{graph_cnn_forward.1} parent=11 // pred_check
          %p1284 = pneg %p1015
        $region178: #{graph_cnn_forward.1} parent=11 // pred_check_branch
          %1286 = sbr.rel (%p1284) target = $region180
        $region179: #{graph_cnn_forward.1} parent=11 // pred_region
          _
        $region180: #{graph_cnn_forward.1} parent=11 // pred_fallthru
          _
        // Predicated region
        $region181: #{graph_cnn_forward.1} parent=11 // pred_check
          %p1287 = pneg %p1036
        $region182: #{graph_cnn_forward.1} parent=11 // pred_check_branch
          %1289 = sbr.rel (%p1287) target = $region184
        $region183: #{graph_cnn_forward.1} parent=11 // pred_region
          %1291 = vsyncadd [#allocation3], 0
          %s1293 = sshll.u32 %s87, 4
          %s1294 = int_to_ptr.hbm [resolvable:$true] %s1293
          %s1295 = sshll.u32 [#allocation2], 4
          %s1296 = int_to_ptr.vmem [resolvable:$true] %s1295
          %1298 = dma.hbm_to_vmem [thread:$0]  %s1294, 16, %s1296, [#allocation3]
        $region184: #{graph_cnn_forward.1} parent=11 // pred_fallthru
          _
        // Predicated region
        $region185: #{graph_cnn_forward.1} parent=11 // pred_check
          %p1299 = pneg %p1057
        $region186: #{graph_cnn_forward.1} parent=11 // pred_check_branch
          %1301 = sbr.rel (%p1299) target = $region188
        $region187: #{graph_cnn_forward.1} parent=11 // pred_region
          _
        $region188: #{graph_cnn_forward.1} parent=11 // pred_fallthru
          _
        // Predicated region
        $region189: #{graph_cnn_forward.1} parent=11 // pred_check
          %p1302 = pneg %p1078
        $region190: #{graph_cnn_forward.1} parent=11 // pred_check_branch
          %1304 = sbr.rel (%p1302) target = $region192
        $region191: #{graph_cnn_forward.1} parent=11 // pred_region
          _
        $region192: #{graph_cnn_forward.1} parent=11 // pred_fallthru
          _
        // Predicated region
        $region193: #{graph_cnn_forward.1} parent=11 // pred_check
          %p1305 = pneg %p1099
        $region194: #{graph_cnn_forward.1} parent=11 // pred_check_branch
          %1307 = sbr.rel (%p1305) target = $region196
        $region195: #{graph_cnn_forward.1} parent=11 // pred_region
          _
        $region196: #{graph_cnn_forward.1} parent=11 // pred_fallthru
          _
        // Predicated region
        $region197: #{graph_cnn_forward.1} parent=11 // pred_check
          %p1308 = pneg %p1120
        $region198: #{graph_cnn_forward.1} parent=11 // pred_check_branch
          %1310 = sbr.rel (%p1308) target = $region200
        $region199: #{graph_cnn_forward.1} parent=11 // pred_region
          _
        $region200: #{graph_cnn_forward.1} parent=11 // pred_fallthru
          _
      $region12: #{graph_cnn_forward.1} parent=5 // pred_fallthru
        _
      %p1311 = scmp.lt.s32.totalorder %s107, 2
      // Predicated region
      $region201: #{graph_cnn_forward.1} parent=5 // pred_check
        %p1312 = pneg %p1311
      $region202: #{graph_cnn_forward.1} parent=5 // pred_check_branch
        %1314 = sbr.rel (%p1312) target = $region204
      $region203: #{graph_cnn_forward.1} parent=5 // pred_region
        // Predicated region
        $region205: #{graph_cnn_forward.1} parent=203 // pred_check
          %p1315 = pneg %p127
        $region206: #{graph_cnn_forward.1} parent=203 // pred_check_branch
          %1317 = sbr.rel (%p1315) target = $region208
        $region207: #{graph_cnn_forward.1} parent=203 // pred_region
          %p1318 = scmp.lt.s32.totalorder %s107, 1
          %s1319 = scalar_select %p1318, %s107, 1
          %s1320 = smul.addr %s1319, 392
          %s1321 = smul.addr %s1320, 4
          %s1322 = scalar_lea.vmem %s1, %s1321
        $region208: #{graph_cnn_forward.1} parent=203 // pred_fallthru
          _
      $region204: #{graph_cnn_forward.1} parent=5 // pred_fallthru
        _
      %p1323 = scmp.le.s32.totalorder 1, %s107
      %p1324 = scmp.lt.s32.totalorder %s107, 3
      %p1325 = pnand %p1323, %p1324
      %p1326 = pneg %p1325
      // Predicated region
      $region209: #{graph_cnn_forward.1} parent=5 // pred_check
        _
      $region210: #{graph_cnn_forward.1} parent=5 // pred_check_branch
        %1328 = sbr.rel (%p1325) target = $region212
      $region211: #{graph_cnn_forward.1} parent=5 // pred_region
        %s1329 = ssub.s32 %s107, 1
        // Predicated region
        $region213: #{graph_cnn_forward.1} parent=211 // pred_check
          %p1330 = pneg %p1036
        $region214: #{graph_cnn_forward.1} parent=211 // pred_check_branch
          %1332 = sbr.rel (%p1330) target = $region216
        $region215: #{graph_cnn_forward.1} parent=211 // pred_region
          %1334 = dma.done [#allocation3], 16
        $region216: #{graph_cnn_forward.1} parent=211 // pred_fallthru
          _
        %p1335 = scmp.lt.s32.totalorder %s112, 1
        %s1336 = scalar_select %p1335, %s112, 1
        %s1337 = smul.addr %s1336, 392
        %s1338 = smul.addr %s1337, 4
        %s1339 = scalar_lea.vmem %s1, %s1338
        %p1340 = pneg %p133
        %p1341 = pneg %p130
        %p1342 = pneg %p154
        %p1343 = pneg %p151
        %p1344 = pneg %p175
        %p1345 = pneg %p172
        %p1346 = pneg %p196
        %p1347 = pneg %p193
        %p1348 = pneg %p217
        %p1349 = pneg %p214
        %p1350 = pneg %p238
        %p1351 = pneg %p235
        %p1352 = pneg %p259
        %p1353 = pneg %p256
        %p1354 = pneg %p280
        %p1355 = pneg %p277
        %p1356 = pneg %p301
        %p1357 = pneg %p298
        %p1358 = pneg %p322
        %p1359 = pneg %p319
        %p1360 = pneg %p343
        %p1361 = pneg %p340
        %p1362 = pneg %p364
        %p1363 = pneg %p361
        %p1364 = pneg %p385
        %p1365 = pneg %p382
        %p1366 = pneg %p406
        %p1367 = pneg %p403
        %p1368 = pneg %p427
        %p1369 = pneg %p424
        %p1370 = pneg %p448
        %p1371 = pneg %p445
        %p1372 = pneg %p469
        %p1373 = pneg %p466
        %p1374 = pneg %p490
        %p1375 = pneg %p487
        %p1376 = pneg %p511
        %p1377 = pneg %p508
        %p1378 = pneg %p532
        %p1379 = pneg %p529
        %p1380 = pneg %p553
        %p1381 = pneg %p550
        %p1382 = pneg %p574
        %p1383 = pneg %p571
        %p1384 = pneg %p595
        %p1385 = pneg %p592
        %p1386 = pneg %p616
        %p1387 = pneg %p613
        %p1388 = pneg %p637
        %p1389 = pneg %p634
        %p1390 = pneg %p658
        %p1391 = pneg %p655
        %p1392 = pneg %p679
        %p1393 = pneg %p676
        %p1394 = pneg %p700
        %p1395 = pneg %p697
        %p1396 = pneg %p721
        %p1397 = pneg %p718
        %p1398 = pneg %p742
        %p1399 = pneg %p739
        %p1400 = pneg %p763
        %p1401 = pneg %p760
        %p1402 = pneg %p784
        %p1403 = pneg %p781
        %p1404 = pneg %p805
        %p1405 = pneg %p802
        %p1406 = pneg %p826
        %p1407 = pneg %p823
        %p1408 = pneg %p847
        %p1409 = pneg %p844
        %p1410 = pneg %p868
        %p1411 = pneg %p865
        %p1412 = pneg %p889
        %p1413 = pneg %p886
        %p1414 = pneg %p910
        %p1415 = pneg %p907
        %p1416 = pneg %p931
        %p1417 = pneg %p928
        %p1418 = pneg %p952
        %p1419 = pneg %p949
        %p1420 = pneg %p973
        %p1421 = pneg %p970
        %p1422 = pneg %p994
        %p1423 = pneg %p991
        %p1424 = pneg %p1015
        %p1425 = pneg %p1012
        %p1426 = pneg %p1036
        %p1427 = pneg %p1033
        %p1428 = pneg %p1057
        %p1429 = pneg %p1054
        %p1430 = pneg %p1078
        %p1431 = pneg %p1075
        %p1432 = pneg %p1099
        %p1433 = pneg %p1096
        %p1434 = pneg %p1120
        %p1435 = pneg %p1117
        %p1436 = pneg %p1146
        %p1437 = pneg %p1143
        %s1438 = sand.u32 %s1133, 1
        %s1439 = scalar_lea.sflag [#allocation4], %s1438
        %s1440 = sand.u32 %s1133, 1
        %s1441 = scalar_lea.vmem [#allocation5], %s1440
        %p1442 = scmp.lt.s32.totalorder %s112, 1
        %s1443 = scalar_select %p1442, %s112, 1
        %s1444 = smul.addr %s1443, 392
        %s1445 = smul.addr %s1444, 4
        %s1446 = scalar_lea.vmem %s1, %s1445
        %v1448 = vld [vmem:[%s3] sm:$0xf]
        %v1449 = vld [vmem:[%s3 + $0x4] sm:$0xf]
        %v1450 = vld [vmem:[%s3 + $0x8] sm:$0x7]
        %v1451 = vld [vmem:[%s93] sm:$0xff]
        %v1452 = vld [vmem:[%s93 + $0x8] sm:$0xff]
        %v1453 = vld [vmem:[%s93 + $0x10] sm:$0x1f]
        %v1454 = vld [vmem:[%s1446] sm:$0x77]
        %v1455 = vld [vmem:[%s1446 + $0x8] sm:$0x77]
        %v1456 = vld [vmem:[%s1446 + $0x10] sm:$0x77]
        %v1457 = vld [vmem:[%s1446 + $0x18] sm:$0x77]
        %v1458 = vld [vmem:[%s1446 + $0x20] sm:$0x77]
        %v1459 = vld [vmem:[%s1446 + $0x28] sm:$0x77]
        %v1460 = vld [vmem:[%s1446 + $0x30] sm:$0x77]
        %v1461 = vld [vmem:[%s1446 + $0x38] sm:$0x77]
        %v1462 = vld [vmem:[%s1446 + $0x40] sm:$0x77]
        %v1463 = vld [vmem:[%s1446 + $0x48] sm:$0x77]
        %v1464 = vld [vmem:[%s1446 + $0x50] sm:$0x77]
        %v1465 = vld [vmem:[%s1446 + $0x58] sm:$0x77]
        %v1466 = vld [vmem:[%s1446 + $0x60] sm:$0x77]
        %v1467 = vld [vmem:[%s1446 + $0x68] sm:$0x77]
        %v1468 = vld [vmem:[%s1446 + $0x70] sm:$0x77]
        %v1469 = vld [vmem:[%s1446 + $0x78] sm:$0x77]
        %v1470 = vld [vmem:[%s1446 + $0x80] sm:$0x77]
        %v1471 = vld [vmem:[%s1446 + $0x88] sm:$0x77]
        %v1472 = vld [vmem:[%s1446 + $0x90] sm:$0x77]
        %v1473 = vld [vmem:[%s1446 + $0x98] sm:$0x77]
        %v1474 = vld [vmem:[%s1446 + $0xa0] sm:$0x77]
        %v1475 = vld [vmem:[%s1446 + $0xa8] sm:$0x77]
        %v1476 = vld [vmem:[%s1446 + $0xb0] sm:$0x77]
        %v1477 = vld [vmem:[%s1446 + $0xb8] sm:$0x77]
        %v1478 = vld [vmem:[%s1446 + $0xc0] sm:$0x77]
        %v1479 = vld [vmem:[%s1446 + $0xc8] sm:$0x77]
        %v1480 = vld [vmem:[%s1446 + $0xd0] sm:$0x77]
        %v1481 = vld [vmem:[%s1446 + $0xd8] sm:$0x77]
        %v1482 = vld [vmem:[%s1446 + $0xe0] sm:$0x77]
        %v1483 = vld [vmem:[%s1446 + $0xe8] sm:$0x77]
        %v1484 = vld [vmem:[%s1446 + $0xf0] sm:$0x77]
        %v1485 = vld [vmem:[%s1446 + $0xf8] sm:$0x77]
        %v1486 = vld [vmem:[%s1446 + $0x100] sm:$0x77]
        %v1487 = vld [vmem:[%s1446 + $0x108] sm:$0x77]
        %v1488 = vld [vmem:[%s1446 + $0x110] sm:$0x77]
        %v1489 = vld [vmem:[%s1446 + $0x118] sm:$0x77]
        %v1490 = vld [vmem:[%s1446 + $0x120] sm:$0x77]
        %v1491 = vld [vmem:[%s1446 + $0x128] sm:$0x77]
        %v1492 = vld [vmem:[%s1446 + $0x130] sm:$0x77]
        %v1493 = vld [vmem:[%s1446 + $0x138] sm:$0x77]
        %v1494 = vld [vmem:[%s1446 + $0x140] sm:$0x77]
        %v1495 = vld [vmem:[%s1446 + $0x148] sm:$0x77]
        %v1496 = vld [vmem:[%s1446 + $0x150] sm:$0x77]
        %v1497 = vld [vmem:[%s1446 + $0x158] sm:$0x77]
        %v1498 = vld [vmem:[%s1446 + $0x160] sm:$0x77]
        %v1499 = vld [vmem:[%s1446 + $0x168] sm:$0x77]
        %v1500 = vld [vmem:[%s1446 + $0x170] sm:$0x77]
        %v1501 = vld [vmem:[%s1446 + $0x178] sm:$0x77]
        %v1502 = vld [vmem:[%s1446 + $0x180] sm:$0x77]
        %v1503 = vld [vmem:[%s1446 + $0x188] sm:$0x77]
        %v1504 = vld [vmem:[%s1446 + $0x190] sm:$0x77]
        %v1505 = vld [vmem:[%s1446 + $0x198] sm:$0x77]
        %v1506 = vld [vmem:[%s1446 + $0x1a0] sm:$0x77]
        %v1507 = vld [vmem:[%s1446 + $0x1a8] sm:$0x77]
        %v1508 = vld [vmem:[%s1446 + $0x1b0] sm:$0x77]
        %v1509 = vld [vmem:[%s1446 + $0x1b8] sm:$0x77]
        %v1510 = vld [vmem:[%s1446 + $0x1c0] sm:$0x77]
        %v1511 = vld [vmem:[%s1446 + $0x1c8] sm:$0x77]
        %v1512 = vld [vmem:[%s1446 + $0x1d0] sm:$0x77]
        %v1513 = vld [vmem:[%s1446 + $0x1d8] sm:$0x77]
        %v1514 = vld [vmem:[%s1446 + $0x1e0] sm:$0x77]
        %v1515 = vld [vmem:[%s1446 + $0x1e8] sm:$0x77]
        %v1516 = vld [vmem:[%s1446 + $0x1f0] sm:$0x77]
        %v1517 = vld [vmem:[%s1446 + $0x1f8] sm:$0x77]
        %v1518 = vld [vmem:[%s1446 + $0x200] sm:$0x77]
        %v1519 = vld [vmem:[%s1446 + $0x208] sm:$0x77]
        %v1520 = vld [vmem:[%s1446 + $0x210] sm:$0x77]
        %v1521 = vld [vmem:[%s1446 + $0x218] sm:$0x77]
        %v1522 = vld [vmem:[%s1446 + $0x220] sm:$0x77]
        %v1523 = vld [vmem:[%s1446 + $0x228] sm:$0x77]
        %v1524 = vld [vmem:[%s1446 + $0x230] sm:$0x77]
        %v1525 = vld [vmem:[%s1446 + $0x238] sm:$0x77]
        %v1526 = vld [vmem:[%s1446 + $0x240] sm:$0x77]
        %v1527 = vld [vmem:[%s1446 + $0x248] sm:$0x77]
        %v1528 = vld [vmem:[%s1446 + $0x250] sm:$0x77]
        %v1529 = vld [vmem:[%s1446 + $0x258] sm:$0x77]
        %v1530 = vld [vmem:[%s1446 + $0x260] sm:$0x77]
        %v1531 = vld [vmem:[%s1446 + $0x268] sm:$0x77]
        %v1532 = vld [vmem:[%s1446 + $0x270] sm:$0x77]
        %v1533 = vld [vmem:[%s1446 + $0x278] sm:$0x77]
        %v1534 = vld [vmem:[%s1446 + $0x280] sm:$0x77]
        %v1535 = vld [vmem:[%s1446 + $0x288] sm:$0x77]
        %v1536 = vld [vmem:[%s1446 + $0x290] sm:$0x77]
        %v1537 = vld [vmem:[%s1446 + $0x298] sm:$0x77]
        %v1538 = vld [vmem:[%s1446 + $0x2a0] sm:$0x77]
        %v1539 = vld [vmem:[%s1446 + $0x2a8] sm:$0x77]
        %v1540 = vld [vmem:[%s1446 + $0x2b0] sm:$0x77]
        %v1541 = vld [vmem:[%s1446 + $0x2b8] sm:$0x77]
        %v1542 = vld [vmem:[%s1446 + $0x2c0] sm:$0x77]
        %v1543 = vld [vmem:[%s1446 + $0x2c8] sm:$0x77]
        %v1544 = vld [vmem:[%s1446 + $0x2d0] sm:$0x77]
        %v1545 = vld [vmem:[%s1446 + $0x2d8] sm:$0x77]
        %v1546 = vld [vmem:[%s1446 + $0x2e0] sm:$0x77]
        %v1547 = vld [vmem:[%s1446 + $0x2e8] sm:$0x77]
        %v1548 = vld [vmem:[%s1446 + $0x2f0] sm:$0x77]
        %v1549 = vld [vmem:[%s1446 + $0x2f8] sm:$0x77]
        %v1550 = vld [vmem:[%s1446 + $0x300] sm:$0x77]
        %v1551 = vld [vmem:[%s1446 + $0x308] sm:$0x77]
        %v1552 = vld [vmem:[%s1446 + $0x310] sm:$0x77]
        %v1553 = vld [vmem:[%s1446 + $0x318] sm:$0x77]
        %v1554 = vld [vmem:[%s1446 + $0x320] sm:$0x77]
        %v1555 = vld [vmem:[%s1446 + $0x328] sm:$0x77]
        %v1556 = vld [vmem:[%s1446 + $0x330] sm:$0x77]
        %v1557 = vld [vmem:[%s1446 + $0x338] sm:$0x77]
        %v1558 = vld [vmem:[%s1446 + $0x340] sm:$0x77]
        %v1559 = vld [vmem:[%s1446 + $0x348] sm:$0x77]
        %v1560 = vld [vmem:[%s1446 + $0x350] sm:$0x77]
        %v1561 = vld [vmem:[%s1446 + $0x358] sm:$0x77]
        %v1562 = vld [vmem:[%s1446 + $0x360] sm:$0x77]
        %v1563 = vld [vmem:[%s1446 + $0x368] sm:$0x77]
        %v1564 = vld [vmem:[%s1446 + $0x370] sm:$0x77]
        %v1565 = vld [vmem:[%s1446 + $0x378] sm:$0x77]
        %v1566 = vld [vmem:[%s1446 + $0x380] sm:$0x77]
        %v1567 = vld [vmem:[%s1446 + $0x388] sm:$0x77]
        %v1568 = vld [vmem:[%s1446 + $0x390] sm:$0x77]
        %v1569 = vld [vmem:[%s1446 + $0x398] sm:$0x77]
        %v1570 = vld [vmem:[%s1446 + $0x3a0] sm:$0x77]
        %v1571 = vld [vmem:[%s1446 + $0x3a8] sm:$0x77]
        %v1572 = vld [vmem:[%s1446 + $0x3b0] sm:$0x77]
        %v1573 = vld [vmem:[%s1446 + $0x3b8] sm:$0x77]
        %v1574 = vld [vmem:[%s1446 + $0x3c0] sm:$0x77]
        %v1575 = vld [vmem:[%s1446 + $0x3c8] sm:$0x77]
        %v1576 = vld [vmem:[%s1446 + $0x3d0] sm:$0x77]
        %v1577 = vld [vmem:[%s1446 + $0x3d8] sm:$0x77]
        %v1578 = vld [vmem:[%s1446 + $0x3e0] sm:$0x77]
        %v1579 = vld [vmem:[%s1446 + $0x3e8] sm:$0x77]
        %v1580 = vld [vmem:[%s1446 + $0x3f0] sm:$0x77]
        %v1581 = vld [vmem:[%s1446 + $0x3f8] sm:$0x77]
        %v1582 = vld [vmem:[%s1446 + $0x400] sm:$0x77]
        %v1583 = vld [vmem:[%s1446 + $0x408] sm:$0x77]
        %v1584 = vld [vmem:[%s1446 + $0x410] sm:$0x77]
        %v1585 = vld [vmem:[%s1446 + $0x418] sm:$0x77]
        %v1586 = vld [vmem:[%s1446 + $0x420] sm:$0x77]
        %v1587 = vld [vmem:[%s1446 + $0x428] sm:$0x77]
        %v1588 = vld [vmem:[%s1446 + $0x430] sm:$0x77]
        %v1589 = vld [vmem:[%s1446 + $0x438] sm:$0x77]
        %v1590 = vld [vmem:[%s1446 + $0x440] sm:$0x77]
        %v1591 = vld [vmem:[%s1446 + $0x448] sm:$0x77]
        %v1592 = vld [vmem:[%s1446 + $0x450] sm:$0x77]
        %v1593 = vld [vmem:[%s1446 + $0x458] sm:$0x77]
        %v1594 = vld [vmem:[%s1446 + $0x460] sm:$0x77]
        %v1595 = vld [vmem:[%s1446 + $0x468] sm:$0x77]
        %v1596 = vld [vmem:[%s1446 + $0x470] sm:$0x77]
        %v1597 = vld [vmem:[%s1446 + $0x478] sm:$0x77]
        %v1598 = vld [vmem:[%s1446 + $0x480] sm:$0x77]
        %v1599 = vld [vmem:[%s1446 + $0x488] sm:$0x77]
        %v1600 = vld [vmem:[%s1446 + $0x490] sm:$0x77]
        %v1601 = vld [vmem:[%s1446 + $0x498] sm:$0x77]
        %v1602 = vld [vmem:[%s1446 + $0x4a0] sm:$0x77]
        %v1603 = vld [vmem:[%s1446 + $0x4a8] sm:$0x77]
        %v1604 = vld [vmem:[%s1446 + $0x4b0] sm:$0x77]
        %v1605 = vld [vmem:[%s1446 + $0x4b8] sm:$0x77]
        %v1606 = vld [vmem:[%s1446 + $0x4c0] sm:$0x77]
        %v1607 = vld [vmem:[%s1446 + $0x4c8] sm:$0x77]
        %v1608 = vld [vmem:[%s1446 + $0x4d0] sm:$0x77]
        %v1609 = vld [vmem:[%s1446 + $0x4d8] sm:$0x77]
        %v1610 = vld [vmem:[%s1446 + $0x4e0] sm:$0x77]
        %v1611 = vld [vmem:[%s1446 + $0x4e8] sm:$0x77]
        %v1612 = vld [vmem:[%s1446 + $0x4f0] sm:$0x77]
        %v1613 = vld [vmem:[%s1446 + $0x4f8] sm:$0x77]
        %v1614 = vld [vmem:[%s1446 + $0x500] sm:$0x77]
        %v1615 = vld [vmem:[%s1446 + $0x508] sm:$0x77]
        %v1616 = vld [vmem:[%s1446 + $0x510] sm:$0x77]
        %v1617 = vld [vmem:[%s1446 + $0x518] sm:$0x77]
        %v1618 = vld [vmem:[%s1446 + $0x520] sm:$0x77]
        %v1619 = vld [vmem:[%s1446 + $0x528] sm:$0x77]
        %v1620 = vld [vmem:[%s1446 + $0x530] sm:$0x77]
        %v1621 = vld [vmem:[%s1446 + $0x538] sm:$0x77]
        %v1622 = vld [vmem:[%s1446 + $0x540] sm:$0x77]
        %v1623 = vld [vmem:[%s1446 + $0x548] sm:$0x77]
        %v1624 = vld [vmem:[%s1446 + $0x550] sm:$0x77]
        %v1625 = vld [vmem:[%s1446 + $0x558] sm:$0x77]
        %v1626 = vld [vmem:[%s1446 + $0x560] sm:$0x77]
        %v1627 = vld [vmem:[%s1446 + $0x568] sm:$0x77]
        %v1628 = vld [vmem:[%s1446 + $0x570] sm:$0x77]
        %v1629 = vld [vmem:[%s1446 + $0x578] sm:$0x77]
        %v1630 = vld [vmem:[%s1446 + $0x580] sm:$0x77]
        %v1631 = vld [vmem:[%s1446 + $0x588] sm:$0x77]
        %v1632 = vld [vmem:[%s1446 + $0x590] sm:$0x77]
        %v1633 = vld [vmem:[%s1446 + $0x598] sm:$0x77]
        %v1634 = vld [vmem:[%s1446 + $0x5a0] sm:$0x77]
        %v1635 = vld [vmem:[%s1446 + $0x5a8] sm:$0x77]
        %v1636 = vld [vmem:[%s1446 + $0x5b0] sm:$0x77]
        %v1637 = vld [vmem:[%s1446 + $0x5b8] sm:$0x77]
        %v1638 = vld [vmem:[%s1446 + $0x5c0] sm:$0x77]
        %v1639 = vld [vmem:[%s1446 + $0x5c8] sm:$0x77]
        %v1640 = vld [vmem:[%s1446 + $0x5d0] sm:$0x77]
        %v1641 = vld [vmem:[%s1446 + $0x5d8] sm:$0x77]
        %v1642 = vld [vmem:[%s1446 + $0x5e0] sm:$0x77]
        %v1643 = vld [vmem:[%s1446 + $0x5e8] sm:$0x77]
        %v1644 = vld [vmem:[%s1446 + $0x5f0] sm:$0x77]
        %v1645 = vld [vmem:[%s1446 + $0x5f8] sm:$0x77]
        %v1646 = vld [vmem:[%s1446 + $0x600] sm:$0x77]
        %v1647 = vld [vmem:[%s1446 + $0x608] sm:$0x77]
        %v1648 = vld [vmem:[%s1446 + $0x610] sm:$0x77]
        %v1649 = vld [vmem:[%s1446 + $0x618] sm:$0x77]
        %1846 = vst [vmem:[#allocation1] ss:$2 sm:$0xff] %v1454
        %s1847 = scalar_lea.vmem [#allocation1], 16
        %1848 = vst [vmem:[%s1847] ss:$2 sm:$0xff] %v1455
        %s1849 = scalar_lea.vmem [#allocation1], 32
        %1850 = vst [vmem:[%s1849] ss:$2 sm:$0xff] %v1456
        %s1851 = scalar_lea.vmem [#allocation1], 48
        %1852 = vst [vmem:[%s1851] ss:$2 sm:$0xff] %v1457
        %v1853 = vld.sshfl [vmem:[#allocation1] sm:$0xff pattern:$0x75316420]
        %v1854 = vld.sshfl [vmem:[#allocation1 + $0x8] sm:$0xff pattern:$0x75316420]
        %v1855 = vld.sshfl [vmem:[#allocation1 + $0x10] sm:$0xff pattern:$0x75316420]
        %v1856 = vld.sshfl [vmem:[#allocation1 + $0x18] sm:$0xff pattern:$0x75316420]
        %v1857 = vld.sshfl [vmem:[#allocation1 + $0x20] sm:$0xff pattern:$0x75316420]
        %v1858 = vld.sshfl [vmem:[#allocation1 + $0x28] sm:$0xff pattern:$0x75316420]
        %v1859 = vld.sshfl [vmem:[#allocation1 + $0x30] sm:$0xff pattern:$0x75316420]
        %v1860 = vld.sshfl [vmem:[#allocation1 + $0x38] sm:$0xff pattern:$0x75316420]
        %1861 = vst [vmem:[#allocation1] ss:$2 sm:$0xff] %v1458
        %1862 = vst [vmem:[%s1847] ss:$2 sm:$0xff] %v1459
        %1863 = vst [vmem:[%s1849] ss:$2 sm:$0xff] %v1460
        %1864 = vst [vmem:[%s1851] ss:$2 sm:$0xff] %v1461
        %v1865 = vld.sshfl [vmem:[#allocation1] sm:$0xff pattern:$0x75316420]
        %v1866 = vld.sshfl [vmem:[#allocation1 + $0x8] sm:$0xff pattern:$0x75316420]
        %v1867 = vld.sshfl [vmem:[#allocation1 + $0x10] sm:$0xff pattern:$0x75316420]
        %v1868 = vld.sshfl [vmem:[#allocation1 + $0x18] sm:$0xff pattern:$0x75316420]
        %v1869 = vld.sshfl [vmem:[#allocation1 + $0x20] sm:$0xff pattern:$0x75316420]
        %v1870 = vld.sshfl [vmem:[#allocation1 + $0x28] sm:$0xff pattern:$0x75316420]
        %v1871 = vld.sshfl [vmem:[#allocation1 + $0x30] sm:$0xff pattern:$0x75316420]
        %v1872 = vld.sshfl [vmem:[#allocation1 + $0x38] sm:$0xff pattern:$0x75316420]
        %1873 = vst [vmem:[#allocation1] ss:$2 sm:$0xff] %v1462
        %1874 = vst [vmem:[%s1847] ss:$2 sm:$0xff] %v1463
        %1875 = vst [vmem:[%s1849] ss:$2 sm:$0xff] %v1464
        %1876 = vst [vmem:[%s1851] ss:$2 sm:$0xff] %v1465
        %v1877 = vld.sshfl [vmem:[#allocation1] sm:$0xff pattern:$0x75316420]
        %v1878 = vld.sshfl [vmem:[#allocation1 + $0x8] sm:$0xff pattern:$0x75316420]
        %v1879 = vld.sshfl [vmem:[#allocation1 + $0x10] sm:$0xff pattern:$0x75316420]
        %v1880 = vld.sshfl [vmem:[#allocation1 + $0x18] sm:$0xff pattern:$0x75316420]
        %v1881 = vld.sshfl [vmem:[#allocation1 + $0x20] sm:$0xff pattern:$0x75316420]
        %v1882 = vld.sshfl [vmem:[#allocation1 + $0x28] sm:$0xff pattern:$0x75316420]
        %v1883 = vld.sshfl [vmem:[#allocation1 + $0x30] sm:$0xff pattern:$0x75316420]
        %v1884 = vld.sshfl [vmem:[#allocation1 + $0x38] sm:$0xff pattern:$0x75316420]
        %1885 = vst [vmem:[#allocation1] ss:$2 sm:$0xff] %v1466
        %1886 = vst [vmem:[%s1847] ss:$2 sm:$0xff] %v1467
        %1887 = vst [vmem:[%s1849] ss:$2 sm:$0xff] %v1468
        %1888 = vst [vmem:[%s1851] ss:$2 sm:$0xff] %v1469
        %v1889 = vld.sshfl [vmem:[#allocation1] sm:$0xff pattern:$0x75316420]
        %v1890 = vld.sshfl [vmem:[#allocation1 + $0x8] sm:$0xff pattern:$0x75316420]
        %v1891 = vld.sshfl [vmem:[#allocation1 + $0x10] sm:$0xff pattern:$0x75316420]
        %v1892 = vld.sshfl [vmem:[#allocation1 + $0x18] sm:$0xff pattern:$0x75316420]
        %v1893 = vld.sshfl [vmem:[#allocation1 + $0x20] sm:$0xff pattern:$0x75316420]
        %v1894 = vld.sshfl [vmem:[#allocation1 + $0x28] sm:$0xff pattern:$0x75316420]
        %v1895 = vld.sshfl [vmem:[#allocation1 + $0x30] sm:$0xff pattern:$0x75316420]
        %v1896 = vld.sshfl [vmem:[#allocation1 + $0x38] sm:$0xff pattern:$0x75316420]
        %1897 = vst [vmem:[#allocation1] ss:$2 sm:$0xff] %v1470
        %1898 = vst [vmem:[%s1847] ss:$2 sm:$0xff] %v1471
        %1899 = vst [vmem:[%s1849] ss:$2 sm:$0xff] %v1472
        %1900 = vst [vmem:[%s1851] ss:$2 sm:$0xff] %v1473
        %v1901 = vld.sshfl [vmem:[#allocation1] sm:$0xff pattern:$0x75316420]
        %v1902 = vld.sshfl [vmem:[#allocation1 + $0x8] sm:$0xff pattern:$0x75316420]
        %v1903 = vld.sshfl [vmem:[#allocation1 + $0x10] sm:$0xff pattern:$0x75316420]
        %v1904 = vld.sshfl [vmem:[#allocation1 + $0x18] sm:$0xff pattern:$0x75316420]
        %v1905 = vld.sshfl [vmem:[#allocation1 + $0x20] sm:$0xff pattern:$0x75316420]
        %v1906 = vld.sshfl [vmem:[#allocation1 + $0x28] sm:$0xff pattern:$0x75316420]
        %v1907 = vld.sshfl [vmem:[#allocation1 + $0x30] sm:$0xff pattern:$0x75316420]
        %v1908 = vld.sshfl [vmem:[#allocation1 + $0x38] sm:$0xff pattern:$0x75316420]
        %1909 = vst [vmem:[#allocation1] ss:$2 sm:$0xff] %v1474
        %1910 = vst [vmem:[%s1847] ss:$2 sm:$0xff] %v1475
        %1911 = vst [vmem:[%s1849] ss:$2 sm:$0xff] %v1476
        %1912 = vst [vmem:[%s1851] ss:$2 sm:$0xff] %v1477
        %v1913 = vld.sshfl [vmem:[#allocation1] sm:$0xff pattern:$0x75316420]
        %v1914 = vld.sshfl [vmem:[#allocation1 + $0x8] sm:$0xff pattern:$0x75316420]
        %v1915 = vld.sshfl [vmem:[#allocation1 + $0x10] sm:$0xff pattern:$0x75316420]
        %v1916 = vld.sshfl [vmem:[#allocation1 + $0x18] sm:$0xff pattern:$0x75316420]
        %v1917 = vld.sshfl [vmem:[#allocation1 + $0x20] sm:$0xff pattern:$0x75316420]
        %v1918 = vld.sshfl [vmem:[#allocation1 + $0x28] sm:$0xff pattern:$0x75316420]
        %v1919 = vld.sshfl [vmem:[#allocation1 + $0x30] sm:$0xff pattern:$0x75316420]
        %v1920 = vld.sshfl [vmem:[#allocation1 + $0x38] sm:$0xff pattern:$0x75316420]
        %1921 = vst [vmem:[#allocation1] ss:$2 sm:$0xff] %v1478
        %1922 = vst [vmem:[%s1847] ss:$2 sm:$0xff] %v1479
        %1923 = vst [vmem:[%s1849] ss:$2 sm:$0xff] %v1480
        %1924 = vst [vmem:[%s1851] ss:$2 sm:$0xff] %v1481
        %v1925 = vld.sshfl [vmem:[#allocation1] sm:$0xff pattern:$0x75316420]
        %v1926 = vld.sshfl [vmem:[#allocation1 + $0x8] sm:$0xff pattern:$0x75316420]
        %v1927 = vld.sshfl [vmem:[#allocation1 + $0x10] sm:$0xff pattern:$0x75316420]
        %v1928 = vld.sshfl [vmem:[#allocation1 + $0x18] sm:$0xff pattern:$0x75316420]
        %v1929 = vld.sshfl [vmem:[#allocation1 + $0x20] sm:$0xff pattern:$0x75316420]
        %v1930 = vld.sshfl [vmem:[#allocation1 + $0x28] sm:$0xff pattern:$0x75316420]
        %v1931 = vld.sshfl [vmem:[#allocation1 + $0x30] sm:$0xff pattern:$0x75316420]
        %v1932 = vld.sshfl [vmem:[#allocation1 + $0x38] sm:$0xff pattern:$0x75316420]
        %1933 = vst [vmem:[#allocation1] ss:$2 sm:$0xff] %v1482
        %1934 = vst [vmem:[%s1847] ss:$2 sm:$0xff] %v1483
        %1935 = vst [vmem:[%s1849] ss:$2 sm:$0xff] %v1484
        %1936 = vst [vmem:[%s1851] ss:$2 sm:$0xff] %v1485
        %v1937 = vld.sshfl [vmem:[#allocation1] sm:$0xff pattern:$0x75316420]
        %v1938 = vld.sshfl [vmem:[#allocation1 + $0x8] sm:$0xff pattern:$0x75316420]
        %v1939 = vld.sshfl [vmem:[#allocation1 + $0x10] sm:$0xff pattern:$0x75316420]
        %v1940 = vld.sshfl [vmem:[#allocation1 + $0x18] sm:$0xff pattern:$0x75316420]
        %v1941 = vld.sshfl [vmem:[#allocation1 + $0x20] sm:$0xff pattern:$0x75316420]
        %v1942 = vld.sshfl [vmem:[#allocation1 + $0x28] sm:$0xff pattern:$0x75316420]
        %v1943 = vld.sshfl [vmem:[#allocation1 + $0x30] sm:$0xff pattern:$0x75316420]
        %v1944 = vld.sshfl [vmem:[#allocation1 + $0x38] sm:$0xff pattern:$0x75316420]
        %1945 = vst [vmem:[#allocation1] ss:$2 sm:$0xff] %v1486
        %1946 = vst [vmem:[%s1847] ss:$2 sm:$0xff] %v1487
        %1947 = vst [vmem:[%s1849] ss:$2 sm:$0xff] %v1488
        %1948 = vst [vmem:[%s1851] ss:$2 sm:$0xff] %v1489
        %v1949 = vld.sshfl [vmem:[#allocation1] sm:$0xff pattern:$0x75316420]
        %v1950 = vld.sshfl [vmem:[#allocation1 + $0x8] sm:$0xff pattern:$0x75316420]
        %v1951 = vld.sshfl [vmem:[#allocation1 + $0x10] sm:$0xff pattern:$0x75316420]
        %v1952 = vld.sshfl [vmem:[#allocation1 + $0x18] sm:$0xff pattern:$0x75316420]
        %v1953 = vld.sshfl [vmem:[#allocation1 + $0x20] sm:$0xff pattern:$0x75316420]
        %v1954 = vld.sshfl [vmem:[#allocation1 + $0x28] sm:$0xff pattern:$0x75316420]
        %v1955 = vld.sshfl [vmem:[#allocation1 + $0x30] sm:$0xff pattern:$0x75316420]
        %v1956 = vld.sshfl [vmem:[#allocation1 + $0x38] sm:$0xff pattern:$0x75316420]
        %1957 = vst [vmem:[#allocation1] ss:$2 sm:$0xff] %v1490
        %1958 = vst [vmem:[%s1847] ss:$2 sm:$0xff] %v1491
        %1959 = vst [vmem:[%s1849] ss:$2 sm:$0xff] %v1492
        %1960 = vst [vmem:[%s1851] ss:$2 sm:$0xff] %v1493
        %v1961 = vld.sshfl [vmem:[#allocation1] sm:$0xff pattern:$0x75316420]
        %v1962 = vld.sshfl [vmem:[#allocation1 + $0x8] sm:$0xff pattern:$0x75316420]
        %v1963 = vld.sshfl [vmem:[#allocation1 + $0x10] sm:$0xff pattern:$0x75316420]
        %v1964 = vld.sshfl [vmem:[#allocation1 + $0x18] sm:$0xff pattern:$0x75316420]
        %v1965 = vld.sshfl [vmem:[#allocation1 + $0x20] sm:$0xff pattern:$0x75316420]
        %v1966 = vld.sshfl [vmem:[#allocation1 + $0x28] sm:$0xff pattern:$0x75316420]
        %v1967 = vld.sshfl [vmem:[#allocation1 + $0x30] sm:$0xff pattern:$0x75316420]
        %v1968 = vld.sshfl [vmem:[#allocation1 + $0x38] sm:$0xff pattern:$0x75316420]
        %1969 = vst [vmem:[#allocation1] ss:$2 sm:$0xff] %v1494
        %1970 = vst [vmem:[%s1847] ss:$2 sm:$0xff] %v1495
        %1971 = vst [vmem:[%s1849] ss:$2 sm:$0xff] %v1496
        %1972 = vst [vmem:[%s1851] ss:$2 sm:$0xff] %v1497
        %v1973 = vld.sshfl [vmem:[#allocation1] sm:$0xff pattern:$0x75316420]
        %v1974 = vld.sshfl [vmem:[#allocation1 + $0x8] sm:$0xff pattern:$0x75316420]
        %v1975 = vld.sshfl [vmem:[#allocation1 + $0x10] sm:$0xff pattern:$0x75316420]
        %v1976 = vld.sshfl [vmem:[#allocation1 + $0x18] sm:$0xff pattern:$0x75316420]
        %v1977 = vld.sshfl [vmem:[#allocation1 + $0x20] sm:$0xff pattern:$0x75316420]
        %v1978 = vld.sshfl [vmem:[#allocation1 + $0x28] sm:$0xff pattern:$0x75316420]
        %v1979 = vld.sshfl [vmem:[#allocation1 + $0x30] sm:$0xff pattern:$0x75316420]
        %v1980 = vld.sshfl [vmem:[#allocation1 + $0x38] sm:$0xff pattern:$0x75316420]
        %1981 = vst [vmem:[#allocation1] ss:$2 sm:$0xff] %v1498
        %1982 = vst [vmem:[%s1847] ss:$2 sm:$0xff] %v1499
        %1983 = vst [vmem:[%s1849] ss:$2 sm:$0xff] %v1500
        %1984 = vst [vmem:[%s1851] ss:$2 sm:$0xff] %v1501
        %v1985 = vld.sshfl [vmem:[#allocation1] sm:$0xff pattern:$0x75316420]
        %v1986 = vld.sshfl [vmem:[#allocation1 + $0x8] sm:$0xff pattern:$0x75316420]
        %v1987 = vld.sshfl [vmem:[#allocation1 + $0x10] sm:$0xff pattern:$0x75316420]
        %v1988 = vld.sshfl [vmem:[#allocation1 + $0x18] sm:$0xff pattern:$0x75316420]
        %v1989 = vld.sshfl [vmem:[#allocation1 + $0x20] sm:$0xff pattern:$0x75316420]
        %v1990 = vld.sshfl [vmem:[#allocation1 + $0x28] sm:$0xff pattern:$0x75316420]
        %v1991 = vld.sshfl [vmem:[#allocation1 + $0x30] sm:$0xff pattern:$0x75316420]
        %v1992 = vld.sshfl [vmem:[#allocation1 + $0x38] sm:$0xff pattern:$0x75316420]
        %1993 = vst [vmem:[#allocation1] ss:$2 sm:$0xff] %v1502
        %1994 = vst [vmem:[%s1847] ss:$2 sm:$0xff] %v1503
        %1995 = vst [vmem:[%s1849] ss:$2 sm:$0xff] %v1504
        %1996 = vst [vmem:[%s1851] ss:$2 sm:$0xff] %v1505
        %v1997 = vld.sshfl [vmem:[#allocation1] sm:$0xff pattern:$0x75316420]
        %v1998 = vld.sshfl [vmem:[#allocation1 + $0x8] sm:$0xff pattern:$0x75316420]
        %v1999 = vld.sshfl [vmem:[#allocation1 + $0x10] sm:$0xff pattern:$0x75316420]
        %v2000 = vld.sshfl [vmem:[#allocation1 + $0x18] sm:$0xff pattern:$0x75316420]
        %v2001 = vld.sshfl [vmem:[#allocation1 + $0x20] sm:$0xff pattern:$0x75316420]
        %v2002 = vld.sshfl [vmem:[#allocation1 + $0x28] sm:$0xff pattern:$0x75316420]
        %v2003 = vld.sshfl [vmem:[#allocation1 + $0x30] sm:$0xff pattern:$0x75316420]
        %v2004 = vld.sshfl [vmem:[#allocation1 + $0x38] sm:$0xff pattern:$0x75316420]
        %2005 = vst [vmem:[#allocation1] ss:$2 sm:$0xff] %v1506
        %2006 = vst [vmem:[%s1847] ss:$2 sm:$0xff] %v1507
        %2007 = vst [vmem:[%s1849] ss:$2 sm:$0xff] %v1508
        %2008 = vst [vmem:[%s1851] ss:$2 sm:$0xff] %v1509
        %v2009 = vld.sshfl [vmem:[#allocation1] sm:$0xff pattern:$0x75316420]
        %v2010 = vld.sshfl [vmem:[#allocation1 + $0x8] sm:$0xff pattern:$0x75316420]
        %v2011 = vld.sshfl [vmem:[#allocation1 + $0x10] sm:$0xff pattern:$0x75316420]
        %v2012 = vld.sshfl [vmem:[#allocation1 + $0x18] sm:$0xff pattern:$0x75316420]
        %v2013 = vld.sshfl [vmem:[#allocation1 + $0x20] sm:$0xff pattern:$0x75316420]
        %v2014 = vld.sshfl [vmem:[#allocation1 + $0x28] sm:$0xff pattern:$0x75316420]
        %v2015 = vld.sshfl [vmem:[#allocation1 + $0x30] sm:$0xff pattern:$0x75316420]
        %v2016 = vld.sshfl [vmem:[#allocation1 + $0x38] sm:$0xff pattern:$0x75316420]
        %2017 = vst [vmem:[#allocation1] ss:$2 sm:$0xff] %v1510
        %2018 = vst [vmem:[%s1847] ss:$2 sm:$0xff] %v1511
        %2019 = vst [vmem:[%s1849] ss:$2 sm:$0xff] %v1512
        %2020 = vst [vmem:[%s1851] ss:$2 sm:$0xff] %v1513
        %v2021 = vld.sshfl [vmem:[#allocation1] sm:$0xff pattern:$0x75316420]
        %v2022 = vld.sshfl [vmem:[#allocation1 + $0x8] sm:$0xff pattern:$0x75316420]
        %v2023 = vld.sshfl [vmem:[#allocation1 + $0x10] sm:$0xff pattern:$0x75316420]
        %v2024 = vld.sshfl [vmem:[#allocation1 + $0x18] sm:$0xff pattern:$0x75316420]
        %v2025 = vld.sshfl [vmem:[#allocation1 + $0x20] sm:$0xff pattern:$0x75316420]
        %v2026 = vld.sshfl [vmem:[#allocation1 + $0x28] sm:$0xff pattern:$0x75316420]
        %v2027 = vld.sshfl [vmem:[#allocation1 + $0x30] sm:$0xff pattern:$0x75316420]
        %v2028 = vld.sshfl [vmem:[#allocation1 + $0x38] sm:$0xff pattern:$0x75316420]
        %2029 = vst [vmem:[#allocation1] ss:$2 sm:$0xff] %v1514
        %2030 = vst [vmem:[%s1847] ss:$2 sm:$0xff] %v1515
        %2031 = vst [vmem:[%s1849] ss:$2 sm:$0xff] %v1516
        %2032 = vst [vmem:[%s1851] ss:$2 sm:$0xff] %v1517
        %v2033 = vld.sshfl [vmem:[#allocation1] sm:$0xff pattern:$0x75316420]
        %v2034 = vld.sshfl [vmem:[#allocation1 + $0x8] sm:$0xff pattern:$0x75316420]
        %v2035 = vld.sshfl [vmem:[#allocation1 + $0x10] sm:$0xff pattern:$0x75316420]
        %v2036 = vld.sshfl [vmem:[#allocation1 + $0x18] sm:$0xff pattern:$0x75316420]
        %v2037 = vld.sshfl [vmem:[#allocation1 + $0x20] sm:$0xff pattern:$0x75316420]
        %v2038 = vld.sshfl [vmem:[#allocation1 + $0x28] sm:$0xff pattern:$0x75316420]
        %v2039 = vld.sshfl [vmem:[#allocation1 + $0x30] sm:$0xff pattern:$0x75316420]
        %v2040 = vld.sshfl [vmem:[#allocation1 + $0x38] sm:$0xff pattern:$0x75316420]
        %2041 = vst [vmem:[#allocation1] ss:$2 sm:$0xff] %v1518
        %2042 = vst [vmem:[%s1847] ss:$2 sm:$0xff] %v1519
        %2043 = vst [vmem:[%s1849] ss:$2 sm:$0xff] %v1520
        %2044 = vst [vmem:[%s1851] ss:$2 sm:$0xff] %v1521
        %v2045 = vld.sshfl [vmem:[#allocation1] sm:$0xff pattern:$0x75316420]
        %v2046 = vld.sshfl [vmem:[#allocation1 + $0x8] sm:$0xff pattern:$0x75316420]
        %v2047 = vld.sshfl [vmem:[#allocation1 + $0x10] sm:$0xff pattern:$0x75316420]
        %v2048 = vld.sshfl [vmem:[#allocation1 + $0x18] sm:$0xff pattern:$0x75316420]
        %v2049 = vld.sshfl [vmem:[#allocation1 + $0x20] sm:$0xff pattern:$0x75316420]
        %v2050 = vld.sshfl [vmem:[#allocation1 + $0x28] sm:$0xff pattern:$0x75316420]
        %v2051 = vld.sshfl [vmem:[#allocation1 + $0x30] sm:$0xff pattern:$0x75316420]
        %v2052 = vld.sshfl [vmem:[#allocation1 + $0x38] sm:$0xff pattern:$0x75316420]
        %2053 = vst [vmem:[#allocation1] ss:$2 sm:$0xff] %v1522
        %2054 = vst [vmem:[%s1847] ss:$2 sm:$0xff] %v1523
        %2055 = vst [vmem:[%s1849] ss:$2 sm:$0xff] %v1524
        %2056 = vst [vmem:[%s1851] ss:$2 sm:$0xff] %v1525
        %v2057 = vld.sshfl [vmem:[#allocation1] sm:$0xff pattern:$0x75316420]
        %v2058 = vld.sshfl [vmem:[#allocation1 + $0x8] sm:$0xff pattern:$0x75316420]
        %v2059 = vld.sshfl [vmem:[#allocation1 + $0x10] sm:$0xff pattern:$0x75316420]
        %v2060 = vld.sshfl [vmem:[#allocation1 + $0x18] sm:$0xff pattern:$0x75316420]
        %v2061 = vld.sshfl [vmem:[#allocation1 + $0x20] sm:$0xff pattern:$0x75316420]
        %v2062 = vld.sshfl [vmem:[#allocation1 + $0x28] sm:$0xff pattern:$0x75316420]
        %v2063 = vld.sshfl [vmem:[#allocation1 + $0x30] sm:$0xff pattern:$0x75316420]
        %v2064 = vld.sshfl [vmem:[#allocation1 + $0x38] sm:$0xff pattern:$0x75316420]
        %2065 = vst [vmem:[#allocation1] ss:$2 sm:$0xff] %v1526
        %2066 = vst [vmem:[%s1847] ss:$2 sm:$0xff] %v1527
        %2067 = vst [vmem:[%s1849] ss:$2 sm:$0xff] %v1528
        %2068 = vst [vmem:[%s1851] ss:$2 sm:$0xff] %v1529
        %v2069 = vld.sshfl [vmem:[#allocation1] sm:$0xff pattern:$0x75316420]
        %v2070 = vld.sshfl [vmem:[#allocation1 + $0x8] sm:$0xff pattern:$0x75316420]
        %v2071 = vld.sshfl [vmem:[#allocation1 + $0x10] sm:$0xff pattern:$0x75316420]
        %v2072 = vld.sshfl [vmem:[#allocation1 + $0x18] sm:$0xff pattern:$0x75316420]
        %v2073 = vld.sshfl [vmem:[#allocation1 + $0x20] sm:$0xff pattern:$0x75316420]
        %v2074 = vld.sshfl [vmem:[#allocation1 + $0x28] sm:$0xff pattern:$0x75316420]
        %v2075 = vld.sshfl [vmem:[#allocation1 + $0x30] sm:$0xff pattern:$0x75316420]
        %v2076 = vld.sshfl [vmem:[#allocation1 + $0x38] sm:$0xff pattern:$0x75316420]
        %2077 = vst [vmem:[#allocation1] ss:$2 sm:$0xff] %v1530
        %2078 = vst [vmem:[%s1847] ss:$2 sm:$0xff] %v1531
        %2079 = vst [vmem:[%s1849] ss:$2 sm:$0xff] %v1532
        %2080 = vst [vmem:[%s1851] ss:$2 sm:$0xff] %v1533
        %v2081 = vld.sshfl [vmem:[#allocation1] sm:$0xff pattern:$0x75316420]
        %v2082 = vld.sshfl [vmem:[#allocation1 + $0x8] sm:$0xff pattern:$0x75316420]
        %v2083 = vld.sshfl [vmem:[#allocation1 + $0x10] sm:$0xff pattern:$0x75316420]
        %v2084 = vld.sshfl [vmem:[#allocation1 + $0x18] sm:$0xff pattern:$0x75316420]
        %v2085 = vld.sshfl [vmem:[#allocation1 + $0x20] sm:$0xff pattern:$0x75316420]
        %v2086 = vld.sshfl [vmem:[#allocation1 + $0x28] sm:$0xff pattern:$0x75316420]
        %v2087 = vld.sshfl [vmem:[#allocation1 + $0x30] sm:$0xff pattern:$0x75316420]
        %v2088 = vld.sshfl [vmem:[#allocation1 + $0x38] sm:$0xff pattern:$0x75316420]
        %2089 = vst [vmem:[#allocation1] ss:$2 sm:$0xff] %v1534
        %2090 = vst [vmem:[%s1847] ss:$2 sm:$0xff] %v1535
        %2091 = vst [vmem:[%s1849] ss:$2 sm:$0xff] %v1536
        %2092 = vst [vmem:[%s1851] ss:$2 sm:$0xff] %v1537
        %v2093 = vld.sshfl [vmem:[#allocation1] sm:$0xff pattern:$0x75316420]
        %v2094 = vld.sshfl [vmem:[#allocation1 + $0x8] sm:$0xff pattern:$0x75316420]
        %v2095 = vld.sshfl [vmem:[#allocation1 + $0x10] sm:$0xff pattern:$0x75316420]
        %v2096 = vld.sshfl [vmem:[#allocation1 + $0x18] sm:$0xff pattern:$0x75316420]
        %v2097 = vld.sshfl [vmem:[#allocation1 + $0x20] sm:$0xff pattern:$0x75316420]
        %v2098 = vld.sshfl [vmem:[#allocation1 + $0x28] sm:$0xff pattern:$0x75316420]
        %v2099 = vld.sshfl [vmem:[#allocation1 + $0x30] sm:$0xff pattern:$0x75316420]
        %v2100 = vld.sshfl [vmem:[#allocation1 + $0x38] sm:$0xff pattern:$0x75316420]
        %2101 = vst [vmem:[#allocation1] ss:$2 sm:$0xff] %v1538
        %2102 = vst [vmem:[%s1847] ss:$2 sm:$0xff] %v1539
        %2103 = vst [vmem:[%s1849] ss:$2 sm:$0xff] %v1540
        %2104 = vst [vmem:[%s1851] ss:$2 sm:$0xff] %v1541
        %v2105 = vld.sshfl [vmem:[#allocation1] sm:$0xff pattern:$0x75316420]
        %v2106 = vld.sshfl [vmem:[#allocation1 + $0x8] sm:$0xff pattern:$0x75316420]
        %v2107 = vld.sshfl [vmem:[#allocation1 + $0x10] sm:$0xff pattern:$0x75316420]
        %v2108 = vld.sshfl [vmem:[#allocation1 + $0x18] sm:$0xff pattern:$0x75316420]
        %v2109 = vld.sshfl [vmem:[#allocation1 + $0x20] sm:$0xff pattern:$0x75316420]
        %v2110 = vld.sshfl [vmem:[#allocation1 + $0x28] sm:$0xff pattern:$0x75316420]
        %v2111 = vld.sshfl [vmem:[#allocation1 + $0x30] sm:$0xff pattern:$0x75316420]
        %v2112 = vld.sshfl [vmem:[#allocation1 + $0x38] sm:$0xff pattern:$0x75316420]
        %2113 = vst [vmem:[#allocation1] ss:$2 sm:$0xff] %v1542
        %2114 = vst [vmem:[%s1847] ss:$2 sm:$0xff] %v1543
        %2115 = vst [vmem:[%s1849] ss:$2 sm:$0xff] %v1544
        %2116 = vst [vmem:[%s1851] ss:$2 sm:$0xff] %v1545
        %v2117 = vld.sshfl [vmem:[#allocation1] sm:$0xff pattern:$0x75316420]
        %v2118 = vld.sshfl [vmem:[#allocation1 + $0x8] sm:$0xff pattern:$0x75316420]
        %v2119 = vld.sshfl [vmem:[#allocation1 + $0x10] sm:$0xff pattern:$0x75316420]
        %v2120 = vld.sshfl [vmem:[#allocation1 + $0x18] sm:$0xff pattern:$0x75316420]
        %v2121 = vld.sshfl [vmem:[#allocation1 + $0x20] sm:$0xff pattern:$0x75316420]
        %v2122 = vld.sshfl [vmem:[#allocation1 + $0x28] sm:$0xff pattern:$0x75316420]
        %v2123 = vld.sshfl [vmem:[#allocation1 + $0x30] sm:$0xff pattern:$0x75316420]
        %v2124 = vld.sshfl [vmem:[#allocation1 + $0x38] sm:$0xff pattern:$0x75316420]
        %2125 = vst [vmem:[#allocation1] ss:$2 sm:$0xff] %v1546
        %2126 = vst [vmem:[%s1847] ss:$2 sm:$0xff] %v1547
        %2127 = vst [vmem:[%s1849] ss:$2 sm:$0xff] %v1548
        %2128 = vst [vmem:[%s1851] ss:$2 sm:$0xff] %v1549
        %v2129 = vld.sshfl [vmem:[#allocation1] sm:$0xff pattern:$0x75316420]
        %v2130 = vld.sshfl [vmem:[#allocation1 + $0x8] sm:$0xff pattern:$0x75316420]
        %v2131 = vld.sshfl [vmem:[#allocation1 + $0x10] sm:$0xff pattern:$0x75316420]
        %v2132 = vld.sshfl [vmem:[#allocation1 + $0x18] sm:$0xff pattern:$0x75316420]
        %v2133 = vld.sshfl [vmem:[#allocation1 + $0x20] sm:$0xff pattern:$0x75316420]
        %v2134 = vld.sshfl [vmem:[#allocation1 + $0x28] sm:$0xff pattern:$0x75316420]
        %v2135 = vld.sshfl [vmem:[#allocation1 + $0x30] sm:$0xff pattern:$0x75316420]
        %v2136 = vld.sshfl [vmem:[#allocation1 + $0x38] sm:$0xff pattern:$0x75316420]
        %2137 = vst [vmem:[#allocation1] ss:$2 sm:$0xff] %v1550
        %2138 = vst [vmem:[%s1847] ss:$2 sm:$0xff] %v1551
        %2139 = vst [vmem:[%s1849] ss:$2 sm:$0xff] %v1552
        %2140 = vst [vmem:[%s1851] ss:$2 sm:$0xff] %v1553
        %v2141 = vld.sshfl [vmem:[#allocation1] sm:$0xff pattern:$0x75316420]
        %v2142 = vld.sshfl [vmem:[#allocation1 + $0x8] sm:$0xff pattern:$0x75316420]
        %v2143 = vld.sshfl [vmem:[#allocation1 + $0x10] sm:$0xff pattern:$0x75316420]
        %v2144 = vld.sshfl [vmem:[#allocation1 + $0x18] sm:$0xff pattern:$0x75316420]
        %v2145 = vld.sshfl [vmem:[#allocation1 + $0x20] sm:$0xff pattern:$0x75316420]
        %v2146 = vld.sshfl [vmem:[#allocation1 + $0x28] sm:$0xff pattern:$0x75316420]
        %v2147 = vld.sshfl [vmem:[#allocation1 + $0x30] sm:$0xff pattern:$0x75316420]
        %v2148 = vld.sshfl [vmem:[#allocation1 + $0x38] sm:$0xff pattern:$0x75316420]
        %2149 = vst [vmem:[#allocation1] ss:$2 sm:$0xff] %v1554
        %2150 = vst [vmem:[%s1847] ss:$2 sm:$0xff] %v1555
        %2151 = vst [vmem:[%s1849] ss:$2 sm:$0xff] %v1556
        %2152 = vst [vmem:[%s1851] ss:$2 sm:$0xff] %v1557
        %v2153 = vld.sshfl [vmem:[#allocation1] sm:$0xff pattern:$0x75316420]
        %v2154 = vld.sshfl [vmem:[#allocation1 + $0x8] sm:$0xff pattern:$0x75316420]
        %v2155 = vld.sshfl [vmem:[#allocation1 + $0x10] sm:$0xff pattern:$0x75316420]
        %v2156 = vld.sshfl [vmem:[#allocation1 + $0x18] sm:$0xff pattern:$0x75316420]
        %v2157 = vld.sshfl [vmem:[#allocation1 + $0x20] sm:$0xff pattern:$0x75316420]
        %v2158 = vld.sshfl [vmem:[#allocation1 + $0x28] sm:$0xff pattern:$0x75316420]
        %v2159 = vld.sshfl [vmem:[#allocation1 + $0x30] sm:$0xff pattern:$0x75316420]
        %v2160 = vld.sshfl [vmem:[#allocation1 + $0x38] sm:$0xff pattern:$0x75316420]
        %2161 = vst [vmem:[#allocation1] ss:$2 sm:$0xff] %v1558
        %2162 = vst [vmem:[%s1847] ss:$2 sm:$0xff] %v1559
        %2163 = vst [vmem:[%s1849] ss:$2 sm:$0xff] %v1560
        %2164 = vst [vmem:[%s1851] ss:$2 sm:$0xff] %v1561
        %v2165 = vld.sshfl [vmem:[#allocation1] sm:$0xff pattern:$0x75316420]
        %v2166 = vld.sshfl [vmem:[#allocation1 + $0x8] sm:$0xff pattern:$0x75316420]
        %v2167 = vld.sshfl [vmem:[#allocation1 + $0x10] sm:$0xff pattern:$0x75316420]
        %v2168 = vld.sshfl [vmem:[#allocation1 + $0x18] sm:$0xff pattern:$0x75316420]
        %v2169 = vld.sshfl [vmem:[#allocation1 + $0x20] sm:$0xff pattern:$0x75316420]
        %v2170 = vld.sshfl [vmem:[#allocation1 + $0x28] sm:$0xff pattern:$0x75316420]
        %v2171 = vld.sshfl [vmem:[#allocation1 + $0x30] sm:$0xff pattern:$0x75316420]
        %v2172 = vld.sshfl [vmem:[#allocation1 + $0x38] sm:$0xff pattern:$0x75316420]
        %2173 = vst [vmem:[#allocation1] ss:$2 sm:$0xff] %v1562
        %2174 = vst [vmem:[%s1847] ss:$2 sm:$0xff] %v1563
        %2175 = vst [vmem:[%s1849] ss:$2 sm:$0xff] %v1564
        %2176 = vst [vmem:[%s1851] ss:$2 sm:$0xff] %v1565
        %v2177 = vld.sshfl [vmem:[#allocation1] sm:$0xff pattern:$0x75316420]
        %v2178 = vld.sshfl [vmem:[#allocation1 + $0x8] sm:$0xff pattern:$0x75316420]
        %v2179 = vld.sshfl [vmem:[#allocation1 + $0x10] sm:$0xff pattern:$0x75316420]
        %v2180 = vld.sshfl [vmem:[#allocation1 + $0x18] sm:$0xff pattern:$0x75316420]
        %v2181 = vld.sshfl [vmem:[#allocation1 + $0x20] sm:$0xff pattern:$0x75316420]
        %v2182 = vld.sshfl [vmem:[#allocation1 + $0x28] sm:$0xff pattern:$0x75316420]
        %v2183 = vld.sshfl [vmem:[#allocation1 + $0x30] sm:$0xff pattern:$0x75316420]
        %v2184 = vld.sshfl [vmem:[#allocation1 + $0x38] sm:$0xff pattern:$0x75316420]
        %2185 = vst [vmem:[#allocation1] ss:$2 sm:$0xff] %v1566
        %2186 = vst [vmem:[%s1847] ss:$2 sm:$0xff] %v1567
        %2187 = vst [vmem:[%s1849] ss:$2 sm:$0xff] %v1568
        %2188 = vst [vmem:[%s1851] ss:$2 sm:$0xff] %v1569
        %v2189 = vld.sshfl [vmem:[#allocation1] sm:$0xff pattern:$0x75316420]
        %v2190 = vld.sshfl [vmem:[#allocation1 + $0x8] sm:$0xff pattern:$0x75316420]
        %v2191 = vld.sshfl [vmem:[#allocation1 + $0x10] sm:$0xff pattern:$0x75316420]
        %v2192 = vld.sshfl [vmem:[#allocation1 + $0x18] sm:$0xff pattern:$0x75316420]
        %v2193 = vld.sshfl [vmem:[#allocation1 + $0x20] sm:$0xff pattern:$0x75316420]
        %v2194 = vld.sshfl [vmem:[#allocation1 + $0x28] sm:$0xff pattern:$0x75316420]
        %v2195 = vld.sshfl [vmem:[#allocation1 + $0x30] sm:$0xff pattern:$0x75316420]
        %v2196 = vld.sshfl [vmem:[#allocation1 + $0x38] sm:$0xff pattern:$0x75316420]
        %2197 = vst [vmem:[#allocation1] ss:$2 sm:$0xff] %v1570
        %2198 = vst [vmem:[%s1847] ss:$2 sm:$0xff] %v1571
        %2199 = vst [vmem:[%s1849] ss:$2 sm:$0xff] %v1572
        %2200 = vst [vmem:[%s1851] ss:$2 sm:$0xff] %v1573
        %v2201 = vld.sshfl [vmem:[#allocation1] sm:$0xff pattern:$0x75316420]
        %v2202 = vld.sshfl [vmem:[#allocation1 + $0x8] sm:$0xff pattern:$0x75316420]
        %v2203 = vld.sshfl [vmem:[#allocation1 + $0x10] sm:$0xff pattern:$0x75316420]
        %v2204 = vld.sshfl [vmem:[#allocation1 + $0x18] sm:$0xff pattern:$0x75316420]
        %v2205 = vld.sshfl [vmem:[#allocation1 + $0x20] sm:$0xff pattern:$0x75316420]
        %v2206 = vld.sshfl [vmem:[#allocation1 + $0x28] sm:$0xff pattern:$0x75316420]
        %v2207 = vld.sshfl [vmem:[#allocation1 + $0x30] sm:$0xff pattern:$0x75316420]
        %v2208 = vld.sshfl [vmem:[#allocation1 + $0x38] sm:$0xff pattern:$0x75316420]
        %2209 = vst [vmem:[#allocation1] ss:$2 sm:$0xff] %v1574
        %2210 = vst [vmem:[%s1847] ss:$2 sm:$0xff] %v1575
        %2211 = vst [vmem:[%s1849] ss:$2 sm:$0xff] %v1576
        %2212 = vst [vmem:[%s1851] ss:$2 sm:$0xff] %v1577
        %v2213 = vld.sshfl [vmem:[#allocation1] sm:$0xff pattern:$0x75316420]
        %v2214 = vld.sshfl [vmem:[#allocation1 + $0x8] sm:$0xff pattern:$0x75316420]
        %v2215 = vld.sshfl [vmem:[#allocation1 + $0x10] sm:$0xff pattern:$0x75316420]
        %v2216 = vld.sshfl [vmem:[#allocation1 + $0x18] sm:$0xff pattern:$0x75316420]
        %v2217 = vld.sshfl [vmem:[#allocation1 + $0x20] sm:$0xff pattern:$0x75316420]
        %v2218 = vld.sshfl [vmem:[#allocation1 + $0x28] sm:$0xff pattern:$0x75316420]
        %v2219 = vld.sshfl [vmem:[#allocation1 + $0x30] sm:$0xff pattern:$0x75316420]
        %v2220 = vld.sshfl [vmem:[#allocation1 + $0x38] sm:$0xff pattern:$0x75316420]
        %2221 = vst [vmem:[#allocation1] ss:$2 sm:$0xff] %v1578
        %2222 = vst [vmem:[%s1847] ss:$2 sm:$0xff] %v1579
        %2223 = vst [vmem:[%s1849] ss:$2 sm:$0xff] %v1580
        %2224 = vst [vmem:[%s1851] ss:$2 sm:$0xff] %v1581
        %v2225 = vld.sshfl [vmem:[#allocation1] sm:$0xff pattern:$0x75316420]
        %v2226 = vld.sshfl [vmem:[#allocation1 + $0x8] sm:$0xff pattern:$0x75316420]
        %v2227 = vld.sshfl [vmem:[#allocation1 + $0x10] sm:$0xff pattern:$0x75316420]
        %v2228 = vld.sshfl [vmem:[#allocation1 + $0x18] sm:$0xff pattern:$0x75316420]
        %v2229 = vld.sshfl [vmem:[#allocation1 + $0x20] sm:$0xff pattern:$0x75316420]
        %v2230 = vld.sshfl [vmem:[#allocation1 + $0x28] sm:$0xff pattern:$0x75316420]
        %v2231 = vld.sshfl [vmem:[#allocation1 + $0x30] sm:$0xff pattern:$0x75316420]
        %v2232 = vld.sshfl [vmem:[#allocation1 + $0x38] sm:$0xff pattern:$0x75316420]
        %2233 = vst [vmem:[#allocation1] ss:$2 sm:$0xff] %v1582
        %2234 = vst [vmem:[%s1847] ss:$2 sm:$0xff] %v1583
        %2235 = vst [vmem:[%s1849] ss:$2 sm:$0xff] %v1584
        %2236 = vst [vmem:[%s1851] ss:$2 sm:$0xff] %v1585
        %v2237 = vld.sshfl [vmem:[#allocation1] sm:$0xff pattern:$0x75316420]
        %v2238 = vld.sshfl [vmem:[#allocation1 + $0x8] sm:$0xff pattern:$0x75316420]
        %v2239 = vld.sshfl [vmem:[#allocation1 + $0x10] sm:$0xff pattern:$0x75316420]
        %v2240 = vld.sshfl [vmem:[#allocation1 + $0x18] sm:$0xff pattern:$0x75316420]
        %v2241 = vld.sshfl [vmem:[#allocation1 + $0x20] sm:$0xff pattern:$0x75316420]
        %v2242 = vld.sshfl [vmem:[#allocation1 + $0x28] sm:$0xff pattern:$0x75316420]
        %v2243 = vld.sshfl [vmem:[#allocation1 + $0x30] sm:$0xff pattern:$0x75316420]
        %v2244 = vld.sshfl [vmem:[#allocation1 + $0x38] sm:$0xff pattern:$0x75316420]
        %2245 = vst [vmem:[#allocation1] ss:$2 sm:$0xff] %v1586
        %2246 = vst [vmem:[%s1847] ss:$2 sm:$0xff] %v1587
        %2247 = vst [vmem:[%s1849] ss:$2 sm:$0xff] %v1588
        %2248 = vst [vmem:[%s1851] ss:$2 sm:$0xff] %v1589
        %v2249 = vld.sshfl [vmem:[#allocation1] sm:$0xff pattern:$0x75316420]
        %v2250 = vld.sshfl [vmem:[#allocation1 + $0x8] sm:$0xff pattern:$0x75316420]
        %v2251 = vld.sshfl [vmem:[#allocation1 + $0x10] sm:$0xff pattern:$0x75316420]
        %v2252 = vld.sshfl [vmem:[#allocation1 + $0x18] sm:$0xff pattern:$0x75316420]
        %v2253 = vld.sshfl [vmem:[#allocation1 + $0x20] sm:$0xff pattern:$0x75316420]
        %v2254 = vld.sshfl [vmem:[#allocation1 + $0x28] sm:$0xff pattern:$0x75316420]
        %v2255 = vld.sshfl [vmem:[#allocation1 + $0x30] sm:$0xff pattern:$0x75316420]
        %v2256 = vld.sshfl [vmem:[#allocation1 + $0x38] sm:$0xff pattern:$0x75316420]
        %2257 = vst [vmem:[#allocation1] ss:$2 sm:$0xff] %v1590
        %2258 = vst [vmem:[%s1847] ss:$2 sm:$0xff] %v1591
        %2259 = vst [vmem:[%s1849] ss:$2 sm:$0xff] %v1592
        %2260 = vst [vmem:[%s1851] ss:$2 sm:$0xff] %v1593
        %v2261 = vld.sshfl [vmem:[#allocation1] sm:$0xff pattern:$0x75316420]
        %v2262 = vld.sshfl [vmem:[#allocation1 + $0x8] sm:$0xff pattern:$0x75316420]
        %v2263 = vld.sshfl [vmem:[#allocation1 + $0x10] sm:$0xff pattern:$0x75316420]
        %v2264 = vld.sshfl [vmem:[#allocation1 + $0x18] sm:$0xff pattern:$0x75316420]
        %v2265 = vld.sshfl [vmem:[#allocation1 + $0x20] sm:$0xff pattern:$0x75316420]
        %v2266 = vld.sshfl [vmem:[#allocation1 + $0x28] sm:$0xff pattern:$0x75316420]
        %v2267 = vld.sshfl [vmem:[#allocation1 + $0x30] sm:$0xff pattern:$0x75316420]
        %v2268 = vld.sshfl [vmem:[#allocation1 + $0x38] sm:$0xff pattern:$0x75316420]
        %2269 = vst [vmem:[#allocation1] ss:$2 sm:$0xff] %v1594
        %2270 = vst [vmem:[%s1847] ss:$2 sm:$0xff] %v1595
        %2271 = vst [vmem:[%s1849] ss:$2 sm:$0xff] %v1596
        %2272 = vst [vmem:[%s1851] ss:$2 sm:$0xff] %v1597
        %v2273 = vld.sshfl [vmem:[#allocation1] sm:$0xff pattern:$0x75316420]
        %v2274 = vld.sshfl [vmem:[#allocation1 + $0x8] sm:$0xff pattern:$0x75316420]
        %v2275 = vld.sshfl [vmem:[#allocation1 + $0x10] sm:$0xff pattern:$0x75316420]
        %v2276 = vld.sshfl [vmem:[#allocation1 + $0x18] sm:$0xff pattern:$0x75316420]
        %v2277 = vld.sshfl [vmem:[#allocation1 + $0x20] sm:$0xff pattern:$0x75316420]
        %v2278 = vld.sshfl [vmem:[#allocation1 + $0x28] sm:$0xff pattern:$0x75316420]
        %v2279 = vld.sshfl [vmem:[#allocation1 + $0x30] sm:$0xff pattern:$0x75316420]
        %v2280 = vld.sshfl [vmem:[#allocation1 + $0x38] sm:$0xff pattern:$0x75316420]
        %2281 = vst [vmem:[#allocation1] ss:$2 sm:$0xff] %v1598
        %2282 = vst [vmem:[%s1847] ss:$2 sm:$0xff] %v1599
        %2283 = vst [vmem:[%s1849] ss:$2 sm:$0xff] %v1600
        %2284 = vst [vmem:[%s1851] ss:$2 sm:$0xff] %v1601
        %v2285 = vld.sshfl [vmem:[#allocation1] sm:$0xff pattern:$0x75316420]
        %v2286 = vld.sshfl [vmem:[#allocation1 + $0x8] sm:$0xff pattern:$0x75316420]
        %v2287 = vld.sshfl [vmem:[#allocation1 + $0x10] sm:$0xff pattern:$0x75316420]
        %v2288 = vld.sshfl [vmem:[#allocation1 + $0x18] sm:$0xff pattern:$0x75316420]
        %v2289 = vld.sshfl [vmem:[#allocation1 + $0x20] sm:$0xff pattern:$0x75316420]
        %v2290 = vld.sshfl [vmem:[#allocation1 + $0x28] sm:$0xff pattern:$0x75316420]
        %v2291 = vld.sshfl [vmem:[#allocation1 + $0x30] sm:$0xff pattern:$0x75316420]
        %v2292 = vld.sshfl [vmem:[#allocation1 + $0x38] sm:$0xff pattern:$0x75316420]
        %2293 = vst [vmem:[#allocation1] ss:$2 sm:$0xff] %v1602
        %2294 = vst [vmem:[%s1847] ss:$2 sm:$0xff] %v1603
        %2295 = vst [vmem:[%s1849] ss:$2 sm:$0xff] %v1604
        %2296 = vst [vmem:[%s1851] ss:$2 sm:$0xff] %v1605
        %v2297 = vld.sshfl [vmem:[#allocation1] sm:$0xff pattern:$0x75316420]
        %v2298 = vld.sshfl [vmem:[#allocation1 + $0x8] sm:$0xff pattern:$0x75316420]
        %v2299 = vld.sshfl [vmem:[#allocation1 + $0x10] sm:$0xff pattern:$0x75316420]
        %v2300 = vld.sshfl [vmem:[#allocation1 + $0x18] sm:$0xff pattern:$0x75316420]
        %v2301 = vld.sshfl [vmem:[#allocation1 + $0x20] sm:$0xff pattern:$0x75316420]
        %v2302 = vld.sshfl [vmem:[#allocation1 + $0x28] sm:$0xff pattern:$0x75316420]
        %v2303 = vld.sshfl [vmem:[#allocation1 + $0x30] sm:$0xff pattern:$0x75316420]
        %v2304 = vld.sshfl [vmem:[#allocation1 + $0x38] sm:$0xff pattern:$0x75316420]
        %2305 = vst [vmem:[#allocation1] ss:$2 sm:$0xff] %v1606
        %2306 = vst [vmem:[%s1847] ss:$2 sm:$0xff] %v1607
        %2307 = vst [vmem:[%s1849] ss:$2 sm:$0xff] %v1608
        %2308 = vst [vmem:[%s1851] ss:$2 sm:$0xff] %v1609
        %v2309 = vld.sshfl [vmem:[#allocation1] sm:$0xff pattern:$0x75316420]
        %v2310 = vld.sshfl [vmem:[#allocation1 + $0x8] sm:$0xff pattern:$0x75316420]
        %v2311 = vld.sshfl [vmem:[#allocation1 + $0x10] sm:$0xff pattern:$0x75316420]
        %v2312 = vld.sshfl [vmem:[#allocation1 + $0x18] sm:$0xff pattern:$0x75316420]
        %v2313 = vld.sshfl [vmem:[#allocation1 + $0x20] sm:$0xff pattern:$0x75316420]
        %v2314 = vld.sshfl [vmem:[#allocation1 + $0x28] sm:$0xff pattern:$0x75316420]
        %v2315 = vld.sshfl [vmem:[#allocation1 + $0x30] sm:$0xff pattern:$0x75316420]
        %v2316 = vld.sshfl [vmem:[#allocation1 + $0x38] sm:$0xff pattern:$0x75316420]
        %2317 = vst [vmem:[#allocation1] ss:$2 sm:$0xff] %v1610
        %2318 = vst [vmem:[%s1847] ss:$2 sm:$0xff] %v1611
        %2319 = vst [vmem:[%s1849] ss:$2 sm:$0xff] %v1612
        %2320 = vst [vmem:[%s1851] ss:$2 sm:$0xff] %v1613
        %v2321 = vld.sshfl [vmem:[#allocation1] sm:$0xff pattern:$0x75316420]
        %v2322 = vld.sshfl [vmem:[#allocation1 + $0x8] sm:$0xff pattern:$0x75316420]
        %v2323 = vld.sshfl [vmem:[#allocation1 + $0x10] sm:$0xff pattern:$0x75316420]
        %v2324 = vld.sshfl [vmem:[#allocation1 + $0x18] sm:$0xff pattern:$0x75316420]
        %v2325 = vld.sshfl [vmem:[#allocation1 + $0x20] sm:$0xff pattern:$0x75316420]
        %v2326 = vld.sshfl [vmem:[#allocation1 + $0x28] sm:$0xff pattern:$0x75316420]
        %v2327 = vld.sshfl [vmem:[#allocation1 + $0x30] sm:$0xff pattern:$0x75316420]
        %v2328 = vld.sshfl [vmem:[#allocation1 + $0x38] sm:$0xff pattern:$0x75316420]
        %2329 = vst [vmem:[#allocation1] ss:$2 sm:$0xff] %v1614
        %2330 = vst [vmem:[%s1847] ss:$2 sm:$0xff] %v1615
        %2331 = vst [vmem:[%s1849] ss:$2 sm:$0xff] %v1616
        %2332 = vst [vmem:[%s1851] ss:$2 sm:$0xff] %v1617
        %v2333 = vld.sshfl [vmem:[#allocation1] sm:$0xff pattern:$0x75316420]
        %v2334 = vld.sshfl [vmem:[#allocation1 + $0x8] sm:$0xff pattern:$0x75316420]
        %v2335 = vld.sshfl [vmem:[#allocation1 + $0x10] sm:$0xff pattern:$0x75316420]
        %v2336 = vld.sshfl [vmem:[#allocation1 + $0x18] sm:$0xff pattern:$0x75316420]
        %v2337 = vld.sshfl [vmem:[#allocation1 + $0x20] sm:$0xff pattern:$0x75316420]
        %v2338 = vld.sshfl [vmem:[#allocation1 + $0x28] sm:$0xff pattern:$0x75316420]
        %v2339 = vld.sshfl [vmem:[#allocation1 + $0x30] sm:$0xff pattern:$0x75316420]
        %v2340 = vld.sshfl [vmem:[#allocation1 + $0x38] sm:$0xff pattern:$0x75316420]
        %2341 = vst [vmem:[#allocation1] ss:$2 sm:$0xff] %v1618
        %2342 = vst [vmem:[%s1847] ss:$2 sm:$0xff] %v1619
        %2343 = vst [vmem:[%s1849] ss:$2 sm:$0xff] %v1620
        %2344 = vst [vmem:[%s1851] ss:$2 sm:$0xff] %v1621
        %v2345 = vld.sshfl [vmem:[#allocation1] sm:$0xff pattern:$0x75316420]
        %v2346 = vld.sshfl [vmem:[#allocation1 + $0x8] sm:$0xff pattern:$0x75316420]
        %v2347 = vld.sshfl [vmem:[#allocation1 + $0x10] sm:$0xff pattern:$0x75316420]
        %v2348 = vld.sshfl [vmem:[#allocation1 + $0x18] sm:$0xff pattern:$0x75316420]
        %v2349 = vld.sshfl [vmem:[#allocation1 + $0x20] sm:$0xff pattern:$0x75316420]
        %v2350 = vld.sshfl [vmem:[#allocation1 + $0x28] sm:$0xff pattern:$0x75316420]
        %v2351 = vld.sshfl [vmem:[#allocation1 + $0x30] sm:$0xff pattern:$0x75316420]
        %v2352 = vld.sshfl [vmem:[#allocation1 + $0x38] sm:$0xff pattern:$0x75316420]
        %2353 = vst [vmem:[#allocation1] ss:$2 sm:$0xff] %v1622
        %2354 = vst [vmem:[%s1847] ss:$2 sm:$0xff] %v1623
        %2355 = vst [vmem:[%s1849] ss:$2 sm:$0xff] %v1624
        %2356 = vst [vmem:[%s1851] ss:$2 sm:$0xff] %v1625
        %v2357 = vld.sshfl [vmem:[#allocation1] sm:$0xff pattern:$0x75316420]
        %v2358 = vld.sshfl [vmem:[#allocation1 + $0x8] sm:$0xff pattern:$0x75316420]
        %v2359 = vld.sshfl [vmem:[#allocation1 + $0x10] sm:$0xff pattern:$0x75316420]
        %v2360 = vld.sshfl [vmem:[#allocation1 + $0x18] sm:$0xff pattern:$0x75316420]
        %v2361 = vld.sshfl [vmem:[#allocation1 + $0x20] sm:$0xff pattern:$0x75316420]
        %v2362 = vld.sshfl [vmem:[#allocation1 + $0x28] sm:$0xff pattern:$0x75316420]
        %v2363 = vld.sshfl [vmem:[#allocation1 + $0x30] sm:$0xff pattern:$0x75316420]
        %v2364 = vld.sshfl [vmem:[#allocation1 + $0x38] sm:$0xff pattern:$0x75316420]
        %2365 = vst [vmem:[#allocation1] ss:$2 sm:$0xff] %v1626
        %2366 = vst [vmem:[%s1847] ss:$2 sm:$0xff] %v1627
        %2367 = vst [vmem:[%s1849] ss:$2 sm:$0xff] %v1628
        %2368 = vst [vmem:[%s1851] ss:$2 sm:$0xff] %v1629
        %v2369 = vld.sshfl [vmem:[#allocation1] sm:$0xff pattern:$0x75316420]
        %v2370 = vld.sshfl [vmem:[#allocation1 + $0x8] sm:$0xff pattern:$0x75316420]
        %v2371 = vld.sshfl [vmem:[#allocation1 + $0x10] sm:$0xff pattern:$0x75316420]
        %v2372 = vld.sshfl [vmem:[#allocation1 + $0x18] sm:$0xff pattern:$0x75316420]
        %v2373 = vld.sshfl [vmem:[#allocation1 + $0x20] sm:$0xff pattern:$0x75316420]
        %v2374 = vld.sshfl [vmem:[#allocation1 + $0x28] sm:$0xff pattern:$0x75316420]
        %v2375 = vld.sshfl [vmem:[#allocation1 + $0x30] sm:$0xff pattern:$0x75316420]
        %v2376 = vld.sshfl [vmem:[#allocation1 + $0x38] sm:$0xff pattern:$0x75316420]
        %2377 = vst [vmem:[#allocation1] ss:$2 sm:$0xff] %v1630
        %2378 = vst [vmem:[%s1847] ss:$2 sm:$0xff] %v1631
        %2379 = vst [vmem:[%s1849] ss:$2 sm:$0xff] %v1632
        %2380 = vst [vmem:[%s1851] ss:$2 sm:$0xff] %v1633
        %v2381 = vld.sshfl [vmem:[#allocation1] sm:$0xff pattern:$0x75316420]
        %v2382 = vld.sshfl [vmem:[#allocation1 + $0x8] sm:$0xff pattern:$0x75316420]
        %v2383 = vld.sshfl [vmem:[#allocation1 + $0x10] sm:$0xff pattern:$0x75316420]
        %v2384 = vld.sshfl [vmem:[#allocation1 + $0x18] sm:$0xff pattern:$0x75316420]
        %v2385 = vld.sshfl [vmem:[#allocation1 + $0x20] sm:$0xff pattern:$0x75316420]
        %v2386 = vld.sshfl [vmem:[#allocation1 + $0x28] sm:$0xff pattern:$0x75316420]
        %v2387 = vld.sshfl [vmem:[#allocation1 + $0x30] sm:$0xff pattern:$0x75316420]
        %v2388 = vld.sshfl [vmem:[#allocation1 + $0x38] sm:$0xff pattern:$0x75316420]
        %2389 = vst [vmem:[#allocation1] ss:$2 sm:$0xff] %v1634
        %2390 = vst [vmem:[%s1847] ss:$2 sm:$0xff] %v1635
        %2391 = vst [vmem:[%s1849] ss:$2 sm:$0xff] %v1636
        %2392 = vst [vmem:[%s1851] ss:$2 sm:$0xff] %v1637
        %v2393 = vld.sshfl [vmem:[#allocation1] sm:$0xff pattern:$0x75316420]
        %v2394 = vld.sshfl [vmem:[#allocation1 + $0x8] sm:$0xff pattern:$0x75316420]
        %v2395 = vld.sshfl [vmem:[#allocation1 + $0x10] sm:$0xff pattern:$0x75316420]
        %v2396 = vld.sshfl [vmem:[#allocation1 + $0x18] sm:$0xff pattern:$0x75316420]
        %v2397 = vld.sshfl [vmem:[#allocation1 + $0x20] sm:$0xff pattern:$0x75316420]
        %v2398 = vld.sshfl [vmem:[#allocation1 + $0x28] sm:$0xff pattern:$0x75316420]
        %v2399 = vld.sshfl [vmem:[#allocation1 + $0x30] sm:$0xff pattern:$0x75316420]
        %v2400 = vld.sshfl [vmem:[#allocation1 + $0x38] sm:$0xff pattern:$0x75316420]
        %2401 = vst [vmem:[#allocation1] ss:$2 sm:$0xff] %v1638
        %2402 = vst [vmem:[%s1847] ss:$2 sm:$0xff] %v1639
        %2403 = vst [vmem:[%s1849] ss:$2 sm:$0xff] %v1640
        %2404 = vst [vmem:[%s1851] ss:$2 sm:$0xff] %v1641
        %v2405 = vld.sshfl [vmem:[#allocation1] sm:$0xff pattern:$0x75316420]
        %v2406 = vld.sshfl [vmem:[#allocation1 + $0x8] sm:$0xff pattern:$0x75316420]
        %v2407 = vld.sshfl [vmem:[#allocation1 + $0x10] sm:$0xff pattern:$0x75316420]
        %v2408 = vld.sshfl [vmem:[#allocation1 + $0x18] sm:$0xff pattern:$0x75316420]
        %v2409 = vld.sshfl [vmem:[#allocation1 + $0x20] sm:$0xff pattern:$0x75316420]
        %v2410 = vld.sshfl [vmem:[#allocation1 + $0x28] sm:$0xff pattern:$0x75316420]
        %v2411 = vld.sshfl [vmem:[#allocation1 + $0x30] sm:$0xff pattern:$0x75316420]
        %v2412 = vld.sshfl [vmem:[#allocation1 + $0x38] sm:$0xff pattern:$0x75316420]
        %2413 = vst [vmem:[#allocation1] ss:$2 sm:$0xff] %v1642
        %2414 = vst [vmem:[%s1847] ss:$2 sm:$0xff] %v1643
        %2415 = vst [vmem:[%s1849] ss:$2 sm:$0xff] %v1644
        %2416 = vst [vmem:[%s1851] ss:$2 sm:$0xff] %v1645
        %v2417 = vld.sshfl [vmem:[#allocation1] sm:$0xff pattern:$0x75316420]
        %v2418 = vld.sshfl [vmem:[#allocation1 + $0x8] sm:$0xff pattern:$0x75316420]
        %v2419 = vld.sshfl [vmem:[#allocation1 + $0x10] sm:$0xff pattern:$0x75316420]
        %v2420 = vld.sshfl [vmem:[#allocation1 + $0x18] sm:$0xff pattern:$0x75316420]
        %v2421 = vld.sshfl [vmem:[#allocation1 + $0x20] sm:$0xff pattern:$0x75316420]
        %v2422 = vld.sshfl [vmem:[#allocation1 + $0x28] sm:$0xff pattern:$0x75316420]
        %v2423 = vld.sshfl [vmem:[#allocation1 + $0x30] sm:$0xff pattern:$0x75316420]
        %v2424 = vld.sshfl [vmem:[#allocation1 + $0x38] sm:$0xff pattern:$0x75316420]
        %2425 = vst [vmem:[#allocation1] ss:$2 sm:$0xff] %v1646
        %2426 = vst [vmem:[%s1847] ss:$2 sm:$0xff] %v1647
        %2427 = vst [vmem:[%s1849] ss:$2 sm:$0xff] %v1648
        %2428 = vst [vmem:[%s1851] ss:$2 sm:$0xff] %v1649
        %v2429 = vld.sshfl [vmem:[#allocation1] sm:$0xff pattern:$0x75316420]
        %v2430 = vld.sshfl [vmem:[#allocation1 + $0x8] sm:$0xff pattern:$0x75316420]
        %v2431 = vld.sshfl [vmem:[#allocation1 + $0x10] sm:$0xff pattern:$0x75316420]
        %v2432 = vld.sshfl [vmem:[#allocation1 + $0x18] sm:$0xff pattern:$0x75316420]
        %v2433 = vld.sshfl [vmem:[#allocation1 + $0x20] sm:$0xff pattern:$0x75316420]
        %v2434 = vld.sshfl [vmem:[#allocation1 + $0x28] sm:$0xff pattern:$0x75316420]
        %v2435 = vld.sshfl [vmem:[#allocation1 + $0x30] sm:$0xff pattern:$0x75316420]
        %v2436 = vld.sshfl [vmem:[#allocation1 + $0x38] sm:$0xff pattern:$0x75316420]
        %vm2829 = vcmask 1042432
        %v2830 = vsel %vm2829, %v1853, 0.0
        %v2831 = vsel %vm2829, %v1854, 0.0
        %v2832 = vadd.f32 %v2830, %v2831
        %v2833 = vsel %vm2829, %v1855, 0.0
        %v2834 = vadd.f32 %v2832, %v2833
        %v2835 = vsel %vm2829, %v1856, 0.0
        %v2836 = vadd.f32 %v2834, %v2835
        %v2837 = vsel %vm2829, %v1857, 0.0
        %v2838 = vadd.f32 %v2836, %v2837
        %v2839 = vsel %vm2829, %v1858, 0.0
        %v2840 = vadd.f32 %v2838, %v2839
        %v2841 = vsel %vm2829, %v1859, 0.0
        %v2842 = vadd.f32 %v2840, %v2841
        %v2843 = vsel %vm2829, %v1860, 0.0
        %v2844 = vadd.f32 %v2842, %v2843
        %v2845 = vsel %vm2829, %v1865, 0.0
        %v2846 = vadd.f32 %v2844, %v2845
        %v2847 = vsel %vm2829, %v1866, 0.0
        %v2848 = vadd.f32 %v2846, %v2847
        %v2849 = vsel %vm2829, %v1867, 0.0
        %v2850 = vadd.f32 %v2848, %v2849
        %v2851 = vsel %vm2829, %v1868, 0.0
        %v2852 = vadd.f32 %v2850, %v2851
        %v2853 = vsel %vm2829, %v1869, 0.0
        %v2854 = vadd.f32 %v2852, %v2853
        %v2855 = vsel %vm2829, %v1870, 0.0
        %v2856 = vadd.f32 %v2854, %v2855
        %v2857 = vsel %vm2829, %v1871, 0.0
        %v2858 = vadd.f32 %v2856, %v2857
        %v2859 = vsel %vm2829, %v1872, 0.0
        %v2860 = vadd.f32 %v2858, %v2859
        %v2861 = vsel %vm2829, %v1877, 0.0
        %v2862 = vadd.f32 %v2860, %v2861
        %v2863 = vsel %vm2829, %v1878, 0.0
        %v2864 = vadd.f32 %v2862, %v2863
        %v2865 = vsel %vm2829, %v1879, 0.0
        %v2866 = vadd.f32 %v2864, %v2865
        %v2867 = vsel %vm2829, %v1880, 0.0
        %v2868 = vadd.f32 %v2866, %v2867
        %v2869 = vsel %vm2829, %v1881, 0.0
        %v2870 = vadd.f32 %v2868, %v2869
        %v2871 = vsel %vm2829, %v1882, 0.0
        %v2872 = vadd.f32 %v2870, %v2871
        %v2873 = vsel %vm2829, %v1883, 0.0
        %v2874 = vadd.f32 %v2872, %v2873
        %v2875 = vsel %vm2829, %v1884, 0.0
        %v2876 = vadd.f32 %v2874, %v2875
        %v2877 = vsel %vm2829, %v1889, 0.0
        %v2878 = vadd.f32 %v2876, %v2877
        %v2879 = vsel %vm2829, %v1890, 0.0
        %v2880 = vadd.f32 %v2878, %v2879
        %v2881 = vsel %vm2829, %v1891, 0.0
        %v2882 = vadd.f32 %v2880, %v2881
        %v2883 = vsel %vm2829, %v1892, 0.0
        %v2884 = vadd.f32 %v2882, %v2883
        %v2885 = vsel %vm2829, %v1893, 0.0
        %v2886 = vadd.f32 %v2884, %v2885
        %v2887 = vsel %vm2829, %v1894, 0.0
        %v2888 = vadd.f32 %v2886, %v2887
        %v2889 = vsel %vm2829, %v1895, 0.0
        %v2890 = vadd.f32 %v2888, %v2889
        %v2891 = vsel %vm2829, %v1896, 0.0
        %v2892 = vadd.f32 %v2890, %v2891
        %v2893 = vsel %vm2829, %v1901, 0.0
        %v2894 = vadd.f32 %v2892, %v2893
        %v2895 = vsel %vm2829, %v1902, 0.0
        %v2896 = vadd.f32 %v2894, %v2895
        %v2897 = vsel %vm2829, %v1903, 0.0
        %v2898 = vadd.f32 %v2896, %v2897
        %v2899 = vsel %vm2829, %v1904, 0.0
        %v2900 = vadd.f32 %v2898, %v2899
        %v2901 = vsel %vm2829, %v1905, 0.0
        %v2902 = vadd.f32 %v2900, %v2901
        %v2903 = vsel %vm2829, %v1906, 0.0
        %v2904 = vadd.f32 %v2902, %v2903
        %v2905 = vsel %vm2829, %v1907, 0.0
        %v2906 = vadd.f32 %v2904, %v2905
        %v2907 = vsel %vm2829, %v1908, 0.0
        %v2908 = vadd.f32 %v2906, %v2907
        %v2909 = vsel %vm2829, %v1913, 0.0
        %v2910 = vadd.f32 %v2908, %v2909
        %v2911 = vsel %vm2829, %v1914, 0.0
        %v2912 = vadd.f32 %v2910, %v2911
        %v2913 = vsel %vm2829, %v1915, 0.0
        %v2914 = vadd.f32 %v2912, %v2913
        %v2915 = vsel %vm2829, %v1916, 0.0
        %v2916 = vadd.f32 %v2914, %v2915
        %v2917 = vsel %vm2829, %v1917, 0.0
        %v2918 = vadd.f32 %v2916, %v2917
        %v2919 = vsel %vm2829, %v1918, 0.0
        %v2920 = vadd.f32 %v2918, %v2919
        %v2921 = vsel %vm2829, %v1919, 0.0
        %v2922 = vadd.f32 %v2920, %v2921
        %v2923 = vsel %vm2829, %v1920, 0.0
        %v2924 = vadd.f32 %v2922, %v2923
        %v2925 = vsel %vm2829, %v1925, 0.0
        %v2926 = vadd.f32 %v2924, %v2925
        %v2927 = vsel %vm2829, %v1926, 0.0
        %v2928 = vadd.f32 %v2926, %v2927
        %v2929 = vsel %vm2829, %v1927, 0.0
        %v2930 = vadd.f32 %v2928, %v2929
        %v2931 = vsel %vm2829, %v1928, 0.0
        %v2932 = vadd.f32 %v2930, %v2931
        %v2933 = vsel %vm2829, %v1929, 0.0
        %v2934 = vadd.f32 %v2932, %v2933
        %v2935 = vsel %vm2829, %v1930, 0.0
        %v2936 = vadd.f32 %v2934, %v2935
        %v2937 = vsel %vm2829, %v1931, 0.0
        %v2938 = vadd.f32 %v2936, %v2937
        %v2939 = vsel %vm2829, %v1932, 0.0
        %v2940 = vadd.f32 %v2938, %v2939
        %v2941 = vsel %vm2829, %v1937, 0.0
        %v2942 = vadd.f32 %v2940, %v2941
        %v2943 = vsel %vm2829, %v1938, 0.0
        %v2944 = vadd.f32 %v2942, %v2943
        %v2945 = vsel %vm2829, %v1939, 0.0
        %v2946 = vadd.f32 %v2944, %v2945
        %v2947 = vsel %vm2829, %v1940, 0.0
        %v2948 = vadd.f32 %v2946, %v2947
        %v2949 = vsel %vm2829, %v1941, 0.0
        %v2950 = vadd.f32 %v2948, %v2949
        %v2951 = vsel %vm2829, %v1942, 0.0
        %v2952 = vadd.f32 %v2950, %v2951
        %v2953 = vsel %vm2829, %v1943, 0.0
        %v2954 = vadd.f32 %v2952, %v2953
        %v2955 = vsel %vm2829, %v1944, 0.0
        %v2956 = vadd.f32 %v2954, %v2955
        %v2957 = vsel %vm2829, %v1949, 0.0
        %v2958 = vadd.f32 %v2956, %v2957
        %v2959 = vsel %vm2829, %v1950, 0.0
        %v2960 = vadd.f32 %v2958, %v2959
        %v2961 = vsel %vm2829, %v1951, 0.0
        %v2962 = vadd.f32 %v2960, %v2961
        %v2963 = vsel %vm2829, %v1952, 0.0
        %v2964 = vadd.f32 %v2962, %v2963
        %v2965 = vsel %vm2829, %v1953, 0.0
        %v2966 = vadd.f32 %v2964, %v2965
        %v2967 = vsel %vm2829, %v1954, 0.0
        %v2968 = vadd.f32 %v2966, %v2967
        %v2969 = vsel %vm2829, %v1955, 0.0
        %v2970 = vadd.f32 %v2968, %v2969
        %v2971 = vsel %vm2829, %v1956, 0.0
        %v2972 = vadd.f32 %v2970, %v2971
        %v2973 = vsel %vm2829, %v1961, 0.0
        %v2974 = vadd.f32 %v2972, %v2973
        %v2975 = vsel %vm2829, %v1962, 0.0
        %v2976 = vadd.f32 %v2974, %v2975
        %v2977 = vsel %vm2829, %v1963, 0.0
        %v2978 = vadd.f32 %v2976, %v2977
        %v2979 = vsel %vm2829, %v1964, 0.0
        %v2980 = vadd.f32 %v2978, %v2979
        %v2981 = vsel %vm2829, %v1965, 0.0
        %v2982 = vadd.f32 %v2980, %v2981
        %v2983 = vsel %vm2829, %v1966, 0.0
        %v2984 = vadd.f32 %v2982, %v2983
        %v2985 = vsel %vm2829, %v1967, 0.0
        %v2986 = vadd.f32 %v2984, %v2985
        %v2987 = vsel %vm2829, %v1968, 0.0
        %v2988 = vadd.f32 %v2986, %v2987
        %v2989 = vsel %vm2829, %v1973, 0.0
        %v2990 = vadd.f32 %v2988, %v2989
        %v2991 = vsel %vm2829, %v1974, 0.0
        %v2992 = vadd.f32 %v2990, %v2991
        %v2993 = vsel %vm2829, %v1975, 0.0
        %v2994 = vadd.f32 %v2992, %v2993
        %v2995 = vsel %vm2829, %v1976, 0.0
        %v2996 = vadd.f32 %v2994, %v2995
        %v2997 = vsel %vm2829, %v1977, 0.0
        %v2998 = vadd.f32 %v2996, %v2997
        %v2999 = vsel %vm2829, %v1978, 0.0
        %v3000 = vadd.f32 %v2998, %v2999
        %v3001 = vsel %vm2829, %v1979, 0.0
        %v3002 = vadd.f32 %v3000, %v3001
        %v3003 = vsel %vm2829, %v1980, 0.0
        %v3004 = vadd.f32 %v3002, %v3003
        %v3005 = vsel %vm2829, %v1985, 0.0
        %v3006 = vadd.f32 %v3004, %v3005
        %v3007 = vsel %vm2829, %v1986, 0.0
        %v3008 = vadd.f32 %v3006, %v3007
        %v3009 = vsel %vm2829, %v1987, 0.0
        %v3010 = vadd.f32 %v3008, %v3009
        %v3011 = vsel %vm2829, %v1988, 0.0
        %v3012 = vadd.f32 %v3010, %v3011
        %v3013 = vsel %vm2829, %v1989, 0.0
        %v3014 = vadd.f32 %v3012, %v3013
        %v3015 = vsel %vm2829, %v1990, 0.0
        %v3016 = vadd.f32 %v3014, %v3015
        %v3017 = vsel %vm2829, %v1991, 0.0
        %v3018 = vadd.f32 %v3016, %v3017
        %v3019 = vsel %vm2829, %v1992, 0.0
        %v3020 = vadd.f32 %v3018, %v3019
        %v3021 = vsel %vm2829, %v1997, 0.0
        %v3022 = vadd.f32 %v3020, %v3021
        %v3023 = vsel %vm2829, %v1998, 0.0
        %v3024 = vadd.f32 %v3022, %v3023
        %v3025 = vsel %vm2829, %v1999, 0.0
        %v3026 = vadd.f32 %v3024, %v3025
        %v3027 = vsel %vm2829, %v2000, 0.0
        %v3028 = vadd.f32 %v3026, %v3027
        %v3029 = vsel %vm2829, %v2001, 0.0
        %v3030 = vadd.f32 %v3028, %v3029
        %v3031 = vsel %vm2829, %v2002, 0.0
        %v3032 = vadd.f32 %v3030, %v3031
        %v3033 = vsel %vm2829, %v2003, 0.0
        %v3034 = vadd.f32 %v3032, %v3033
        %v3035 = vsel %vm2829, %v2004, 0.0
        %v3036 = vadd.f32 %v3034, %v3035
        %v3037 = vsel %vm2829, %v2009, 0.0
        %v3038 = vadd.f32 %v3036, %v3037
        %v3039 = vsel %vm2829, %v2010, 0.0
        %v3040 = vadd.f32 %v3038, %v3039
        %v3041 = vsel %vm2829, %v2011, 0.0
        %v3042 = vadd.f32 %v3040, %v3041
        %v3043 = vsel %vm2829, %v2012, 0.0
        %v3044 = vadd.f32 %v3042, %v3043
        %v3045 = vsel %vm2829, %v2013, 0.0
        %v3046 = vadd.f32 %v3044, %v3045
        %v3047 = vsel %vm2829, %v2014, 0.0
        %v3048 = vadd.f32 %v3046, %v3047
        %v3049 = vsel %vm2829, %v2015, 0.0
        %v3050 = vadd.f32 %v3048, %v3049
        %v3051 = vsel %vm2829, %v2016, 0.0
        %v3052 = vadd.f32 %v3050, %v3051
        %v3053 = vsel %vm2829, %v2021, 0.0
        %v3054 = vadd.f32 %v3052, %v3053
        %v3055 = vsel %vm2829, %v2022, 0.0
        %v3056 = vadd.f32 %v3054, %v3055
        %v3057 = vsel %vm2829, %v2023, 0.0
        %v3058 = vadd.f32 %v3056, %v3057
        %v3059 = vsel %vm2829, %v2024, 0.0
        %v3060 = vadd.f32 %v3058, %v3059
        %v3061 = vsel %vm2829, %v2025, 0.0
        %v3062 = vadd.f32 %v3060, %v3061
        %v3063 = vsel %vm2829, %v2026, 0.0
        %v3064 = vadd.f32 %v3062, %v3063
        %v3065 = vsel %vm2829, %v2027, 0.0
        %v3066 = vadd.f32 %v3064, %v3065
        %v3067 = vsel %vm2829, %v2028, 0.0
        %v3068 = vadd.f32 %v3066, %v3067
        %v3069 = vsel %vm2829, %v2033, 0.0
        %v3070 = vadd.f32 %v3068, %v3069
        %v3071 = vsel %vm2829, %v2034, 0.0
        %v3072 = vadd.f32 %v3070, %v3071
        %v3073 = vsel %vm2829, %v2035, 0.0
        %v3074 = vadd.f32 %v3072, %v3073
        %v3075 = vsel %vm2829, %v2036, 0.0
        %v3076 = vadd.f32 %v3074, %v3075
        %v3077 = vsel %vm2829, %v2037, 0.0
        %v3078 = vadd.f32 %v3076, %v3077
        %v3079 = vsel %vm2829, %v2038, 0.0
        %v3080 = vadd.f32 %v3078, %v3079
        %v3081 = vsel %vm2829, %v2039, 0.0
        %v3082 = vadd.f32 %v3080, %v3081
        %v3083 = vsel %vm2829, %v2040, 0.0
        %v3084 = vadd.f32 %v3082, %v3083
        %v3085 = vsel %vm2829, %v2045, 0.0
        %v3086 = vadd.f32 %v3084, %v3085
        %v3087 = vsel %vm2829, %v2046, 0.0
        %v3088 = vadd.f32 %v3086, %v3087
        %v3089 = vsel %vm2829, %v2047, 0.0
        %v3090 = vadd.f32 %v3088, %v3089
        %v3091 = vsel %vm2829, %v2048, 0.0
        %v3092 = vadd.f32 %v3090, %v3091
        %v3093 = vsel %vm2829, %v2049, 0.0
        %v3094 = vadd.f32 %v3092, %v3093
        %v3095 = vsel %vm2829, %v2050, 0.0
        %v3096 = vadd.f32 %v3094, %v3095
        %v3097 = vsel %vm2829, %v2051, 0.0
        %v3098 = vadd.f32 %v3096, %v3097
        %v3099 = vsel %vm2829, %v2052, 0.0
        %v3100 = vadd.f32 %v3098, %v3099
        %v3101 = vsel %vm2829, %v2057, 0.0
        %v3102 = vadd.f32 %v3100, %v3101
        %v3103 = vsel %vm2829, %v2058, 0.0
        %v3104 = vadd.f32 %v3102, %v3103
        %v3105 = vsel %vm2829, %v2059, 0.0
        %v3106 = vadd.f32 %v3104, %v3105
        %v3107 = vsel %vm2829, %v2060, 0.0
        %v3108 = vadd.f32 %v3106, %v3107
        %v3109 = vsel %vm2829, %v2061, 0.0
        %v3110 = vadd.f32 %v3108, %v3109
        %v3111 = vsel %vm2829, %v2062, 0.0
        %v3112 = vadd.f32 %v3110, %v3111
        %v3113 = vsel %vm2829, %v2063, 0.0
        %v3114 = vadd.f32 %v3112, %v3113
        %v3115 = vsel %vm2829, %v2064, 0.0
        %v3116 = vadd.f32 %v3114, %v3115
        %v3117 = vsel %vm2829, %v2069, 0.0
        %v3118 = vadd.f32 %v3116, %v3117
        %v3119 = vsel %vm2829, %v2070, 0.0
        %v3120 = vadd.f32 %v3118, %v3119
        %v3121 = vsel %vm2829, %v2071, 0.0
        %v3122 = vadd.f32 %v3120, %v3121
        %v3123 = vsel %vm2829, %v2072, 0.0
        %v3124 = vadd.f32 %v3122, %v3123
        %v3125 = vsel %vm2829, %v2073, 0.0
        %v3126 = vadd.f32 %v3124, %v3125
        %v3127 = vsel %vm2829, %v2074, 0.0
        %v3128 = vadd.f32 %v3126, %v3127
        %v3129 = vsel %vm2829, %v2075, 0.0
        %v3130 = vadd.f32 %v3128, %v3129
        %v3131 = vsel %vm2829, %v2076, 0.0
        %v3132 = vadd.f32 %v3130, %v3131
        %v3133 = vsel %vm2829, %v2081, 0.0
        %v3134 = vadd.f32 %v3132, %v3133
        %v3135 = vsel %vm2829, %v2082, 0.0
        %v3136 = vadd.f32 %v3134, %v3135
        %v3137 = vsel %vm2829, %v2083, 0.0
        %v3138 = vadd.f32 %v3136, %v3137
        %v3139 = vsel %vm2829, %v2084, 0.0
        %v3140 = vadd.f32 %v3138, %v3139
        %v3141 = vsel %vm2829, %v2085, 0.0
        %v3142 = vadd.f32 %v3140, %v3141
        %v3143 = vsel %vm2829, %v2086, 0.0
        %v3144 = vadd.f32 %v3142, %v3143
        %v3145 = vsel %vm2829, %v2087, 0.0
        %v3146 = vadd.f32 %v3144, %v3145
        %v3147 = vsel %vm2829, %v2088, 0.0
        %v3148 = vadd.f32 %v3146, %v3147
        %v3149 = vsel %vm2829, %v2093, 0.0
        %v3150 = vadd.f32 %v3148, %v3149
        %v3151 = vsel %vm2829, %v2094, 0.0
        %v3152 = vadd.f32 %v3150, %v3151
        %v3153 = vsel %vm2829, %v2095, 0.0
        %v3154 = vadd.f32 %v3152, %v3153
        %v3155 = vsel %vm2829, %v2096, 0.0
        %v3156 = vadd.f32 %v3154, %v3155
        %v3157 = vsel %vm2829, %v2097, 0.0
        %v3158 = vadd.f32 %v3156, %v3157
        %v3159 = vsel %vm2829, %v2098, 0.0
        %v3160 = vadd.f32 %v3158, %v3159
        %v3161 = vsel %vm2829, %v2099, 0.0
        %v3162 = vadd.f32 %v3160, %v3161
        %v3163 = vsel %vm2829, %v2100, 0.0
        %v3164 = vadd.f32 %v3162, %v3163
        %v3165 = vsel %vm2829, %v2105, 0.0
        %v3166 = vadd.f32 %v3164, %v3165
        %v3167 = vsel %vm2829, %v2106, 0.0
        %v3168 = vadd.f32 %v3166, %v3167
        %v3169 = vsel %vm2829, %v2107, 0.0
        %v3170 = vadd.f32 %v3168, %v3169
        %v3171 = vsel %vm2829, %v2108, 0.0
        %v3172 = vadd.f32 %v3170, %v3171
        %v3173 = vsel %vm2829, %v2109, 0.0
        %v3174 = vadd.f32 %v3172, %v3173
        %v3175 = vsel %vm2829, %v2110, 0.0
        %v3176 = vadd.f32 %v3174, %v3175
        %v3177 = vsel %vm2829, %v2111, 0.0
        %v3178 = vadd.f32 %v3176, %v3177
        %v3179 = vsel %vm2829, %v2112, 0.0
        %v3180 = vadd.f32 %v3178, %v3179
        %v3181 = vsel %vm2829, %v2117, 0.0
        %v3182 = vadd.f32 %v3180, %v3181
        %v3183 = vsel %vm2829, %v2118, 0.0
        %v3184 = vadd.f32 %v3182, %v3183
        %v3185 = vsel %vm2829, %v2119, 0.0
        %v3186 = vadd.f32 %v3184, %v3185
        %v3187 = vsel %vm2829, %v2120, 0.0
        %v3188 = vadd.f32 %v3186, %v3187
        %v3189 = vsel %vm2829, %v2121, 0.0
        %v3190 = vadd.f32 %v3188, %v3189
        %v3191 = vsel %vm2829, %v2122, 0.0
        %v3192 = vadd.f32 %v3190, %v3191
        %v3193 = vsel %vm2829, %v2123, 0.0
        %v3194 = vadd.f32 %v3192, %v3193
        %v3195 = vsel %vm2829, %v2124, 0.0
        %v3196 = vadd.f32 %v3194, %v3195
        %v3197 = vsel %vm2829, %v2129, 0.0
        %v3198 = vadd.f32 %v3196, %v3197
        %v3199 = vsel %vm2829, %v2130, 0.0
        %v3200 = vadd.f32 %v3198, %v3199
        %v3201 = vsel %vm2829, %v2131, 0.0
        %v3202 = vadd.f32 %v3200, %v3201
        %v3203 = vsel %vm2829, %v2132, 0.0
        %v3204 = vadd.f32 %v3202, %v3203
        %v3205 = vsel %vm2829, %v2133, 0.0
        %v3206 = vadd.f32 %v3204, %v3205
        %v3207 = vsel %vm2829, %v2134, 0.0
        %v3208 = vadd.f32 %v3206, %v3207
        %v3209 = vsel %vm2829, %v2135, 0.0
        %v3210 = vadd.f32 %v3208, %v3209
        %v3211 = vsel %vm2829, %v2136, 0.0
        %v3212 = vadd.f32 %v3210, %v3211
        %v3213 = vsel %vm2829, %v2141, 0.0
        %v3214 = vadd.f32 %v3212, %v3213
        %v3215 = vsel %vm2829, %v2142, 0.0
        %v3216 = vadd.f32 %v3214, %v3215
        %v3217 = vsel %vm2829, %v2143, 0.0
        %v3218 = vadd.f32 %v3216, %v3217
        %v3219 = vsel %vm2829, %v2144, 0.0
        %v3220 = vadd.f32 %v3218, %v3219
        %v3221 = vsel %vm2829, %v2145, 0.0
        %v3222 = vadd.f32 %v3220, %v3221
        %v3223 = vsel %vm2829, %v2146, 0.0
        %v3224 = vadd.f32 %v3222, %v3223
        %v3225 = vsel %vm2829, %v2147, 0.0
        %v3226 = vadd.f32 %v3224, %v3225
        %v3227 = vsel %vm2829, %v2148, 0.0
        %v3228 = vadd.f32 %v3226, %v3227
        %v3229 = vsel %vm2829, %v2153, 0.0
        %v3230 = vadd.f32 %v3228, %v3229
        %v3231 = vsel %vm2829, %v2154, 0.0
        %v3232 = vadd.f32 %v3230, %v3231
        %v3233 = vsel %vm2829, %v2155, 0.0
        %v3234 = vadd.f32 %v3232, %v3233
        %v3235 = vsel %vm2829, %v2156, 0.0
        %v3236 = vadd.f32 %v3234, %v3235
        %v3237 = vsel %vm2829, %v2157, 0.0
        %v3238 = vadd.f32 %v3236, %v3237
        %v3239 = vsel %vm2829, %v2158, 0.0
        %v3240 = vadd.f32 %v3238, %v3239
        %v3241 = vsel %vm2829, %v2159, 0.0
        %v3242 = vadd.f32 %v3240, %v3241
        %v3243 = vsel %vm2829, %v2160, 0.0
        %v3244 = vadd.f32 %v3242, %v3243
        %v3245 = vsel %vm2829, %v2165, 0.0
        %v3246 = vadd.f32 %v3244, %v3245
        %v3247 = vsel %vm2829, %v2166, 0.0
        %v3248 = vadd.f32 %v3246, %v3247
        %v3249 = vsel %vm2829, %v2167, 0.0
        %v3250 = vadd.f32 %v3248, %v3249
        %v3251 = vsel %vm2829, %v2168, 0.0
        %v3252 = vadd.f32 %v3250, %v3251
        %v3253 = vsel %vm2829, %v2169, 0.0
        %v3254 = vadd.f32 %v3252, %v3253
        %v3255 = vsel %vm2829, %v2170, 0.0
        %v3256 = vadd.f32 %v3254, %v3255
        %v3257 = vsel %vm2829, %v2171, 0.0
        %v3258 = vadd.f32 %v3256, %v3257
        %v3259 = vsel %vm2829, %v2172, 0.0
        %v3260 = vadd.f32 %v3258, %v3259
        %v3261 = vsel %vm2829, %v2177, 0.0
        %v3262 = vadd.f32 %v3260, %v3261
        %v3263 = vsel %vm2829, %v2178, 0.0
        %v3264 = vadd.f32 %v3262, %v3263
        %v3265 = vsel %vm2829, %v2179, 0.0
        %v3266 = vadd.f32 %v3264, %v3265
        %v3267 = vsel %vm2829, %v2180, 0.0
        %v3268 = vadd.f32 %v3266, %v3267
        %v3269 = vsel %vm2829, %v2181, 0.0
        %v3270 = vadd.f32 %v3268, %v3269
        %v3271 = vsel %vm2829, %v2182, 0.0
        %v3272 = vadd.f32 %v3270, %v3271
        %v3273 = vsel %vm2829, %v2183, 0.0
        %v3274 = vadd.f32 %v3272, %v3273
        %v3275 = vsel %vm2829, %v2184, 0.0
        %v3276 = vadd.f32 %v3274, %v3275
        %v3277 = vsel %vm2829, %v2189, 0.0
        %v3278 = vadd.f32 %v3276, %v3277
        %v3279 = vsel %vm2829, %v2190, 0.0
        %v3280 = vadd.f32 %v3278, %v3279
        %v3281 = vsel %vm2829, %v2191, 0.0
        %v3282 = vadd.f32 %v3280, %v3281
        %v3283 = vsel %vm2829, %v2192, 0.0
        %v3284 = vadd.f32 %v3282, %v3283
        %v3285 = vsel %vm2829, %v2193, 0.0
        %v3286 = vadd.f32 %v3284, %v3285
        %v3287 = vsel %vm2829, %v2194, 0.0
        %v3288 = vadd.f32 %v3286, %v3287
        %v3289 = vsel %vm2829, %v2195, 0.0
        %v3290 = vadd.f32 %v3288, %v3289
        %v3291 = vsel %vm2829, %v2196, 0.0
        %v3292 = vadd.f32 %v3290, %v3291
        %v3293 = vsel %vm2829, %v2201, 0.0
        %v3294 = vadd.f32 %v3292, %v3293
        %v3295 = vsel %vm2829, %v2202, 0.0
        %v3296 = vadd.f32 %v3294, %v3295
        %v3297 = vsel %vm2829, %v2203, 0.0
        %v3298 = vadd.f32 %v3296, %v3297
        %v3299 = vsel %vm2829, %v2204, 0.0
        %v3300 = vadd.f32 %v3298, %v3299
        %v3301 = vsel %vm2829, %v2205, 0.0
        %v3302 = vadd.f32 %v3300, %v3301
        %v3303 = vsel %vm2829, %v2206, 0.0
        %v3304 = vadd.f32 %v3302, %v3303
        %v3305 = vsel %vm2829, %v2207, 0.0
        %v3306 = vadd.f32 %v3304, %v3305
        %v3307 = vsel %vm2829, %v2208, 0.0
        %v3308 = vadd.f32 %v3306, %v3307
        %v3309 = vsel %vm2829, %v2213, 0.0
        %v3310 = vadd.f32 %v3308, %v3309
        %v3311 = vsel %vm2829, %v2214, 0.0
        %v3312 = vadd.f32 %v3310, %v3311
        %v3313 = vsel %vm2829, %v2215, 0.0
        %v3314 = vadd.f32 %v3312, %v3313
        %v3315 = vsel %vm2829, %v2216, 0.0
        %v3316 = vadd.f32 %v3314, %v3315
        %v3317 = vsel %vm2829, %v2217, 0.0
        %v3318 = vadd.f32 %v3316, %v3317
        %v3319 = vsel %vm2829, %v2218, 0.0
        %v3320 = vadd.f32 %v3318, %v3319
        %v3321 = vsel %vm2829, %v2219, 0.0
        %v3322 = vadd.f32 %v3320, %v3321
        %v3323 = vsel %vm2829, %v2220, 0.0
        %v3324 = vadd.f32 %v3322, %v3323
        %v3325 = vsel %vm2829, %v2225, 0.0
        %v3326 = vadd.f32 %v3324, %v3325
        %v3327 = vsel %vm2829, %v2226, 0.0
        %v3328 = vadd.f32 %v3326, %v3327
        %v3329 = vsel %vm2829, %v2227, 0.0
        %v3330 = vadd.f32 %v3328, %v3329
        %v3331 = vsel %vm2829, %v2228, 0.0
        %v3332 = vadd.f32 %v3330, %v3331
        %v3333 = vsel %vm2829, %v2229, 0.0
        %v3334 = vadd.f32 %v3332, %v3333
        %v3335 = vsel %vm2829, %v2230, 0.0
        %v3336 = vadd.f32 %v3334, %v3335
        %v3337 = vsel %vm2829, %v2231, 0.0
        %v3338 = vadd.f32 %v3336, %v3337
        %v3339 = vsel %vm2829, %v2232, 0.0
        %v3340 = vadd.f32 %v3338, %v3339
        %v3341 = vsel %vm2829, %v2237, 0.0
        %v3342 = vadd.f32 %v3340, %v3341
        %v3343 = vsel %vm2829, %v2238, 0.0
        %v3344 = vadd.f32 %v3342, %v3343
        %v3345 = vsel %vm2829, %v2239, 0.0
        %v3346 = vadd.f32 %v3344, %v3345
        %v3347 = vsel %vm2829, %v2240, 0.0
        %v3348 = vadd.f32 %v3346, %v3347
        %v3349 = vsel %vm2829, %v2241, 0.0
        %v3350 = vadd.f32 %v3348, %v3349
        %v3351 = vsel %vm2829, %v2242, 0.0
        %v3352 = vadd.f32 %v3350, %v3351
        %v3353 = vsel %vm2829, %v2243, 0.0
        %v3354 = vadd.f32 %v3352, %v3353
        %v3355 = vsel %vm2829, %v2244, 0.0
        %v3356 = vadd.f32 %v3354, %v3355
        %v3357 = vsel %vm2829, %v2249, 0.0
        %v3358 = vadd.f32 %v3356, %v3357
        %v3359 = vsel %vm2829, %v2250, 0.0
        %v3360 = vadd.f32 %v3358, %v3359
        %v3361 = vsel %vm2829, %v2251, 0.0
        %v3362 = vadd.f32 %v3360, %v3361
        %v3363 = vsel %vm2829, %v2252, 0.0
        %v3364 = vadd.f32 %v3362, %v3363
        %v3365 = vsel %vm2829, %v2253, 0.0
        %v3366 = vadd.f32 %v3364, %v3365
        %v3367 = vsel %vm2829, %v2254, 0.0
        %v3368 = vadd.f32 %v3366, %v3367
        %v3369 = vsel %vm2829, %v2255, 0.0
        %v3370 = vadd.f32 %v3368, %v3369
        %v3371 = vsel %vm2829, %v2256, 0.0
        %v3372 = vadd.f32 %v3370, %v3371
        %v3373 = vsel %vm2829, %v2261, 0.0
        %v3374 = vadd.f32 %v3372, %v3373
        %v3375 = vsel %vm2829, %v2262, 0.0
        %v3376 = vadd.f32 %v3374, %v3375
        %v3377 = vsel %vm2829, %v2263, 0.0
        %v3378 = vadd.f32 %v3376, %v3377
        %v3379 = vsel %vm2829, %v2264, 0.0
        %v3380 = vadd.f32 %v3378, %v3379
        %v3381 = vsel %vm2829, %v2265, 0.0
        %v3382 = vadd.f32 %v3380, %v3381
        %v3383 = vsel %vm2829, %v2266, 0.0
        %v3384 = vadd.f32 %v3382, %v3383
        %v3385 = vsel %vm2829, %v2267, 0.0
        %v3386 = vadd.f32 %v3384, %v3385
        %v3387 = vsel %vm2829, %v2268, 0.0
        %v3388 = vadd.f32 %v3386, %v3387
        %v3389 = vsel %vm2829, %v2273, 0.0
        %v3390 = vadd.f32 %v3388, %v3389
        %v3391 = vsel %vm2829, %v2274, 0.0
        %v3392 = vadd.f32 %v3390, %v3391
        %v3393 = vsel %vm2829, %v2275, 0.0
        %v3394 = vadd.f32 %v3392, %v3393
        %v3395 = vsel %vm2829, %v2276, 0.0
        %v3396 = vadd.f32 %v3394, %v3395
        %v3397 = vsel %vm2829, %v2277, 0.0
        %v3398 = vadd.f32 %v3396, %v3397
        %v3399 = vsel %vm2829, %v2278, 0.0
        %v3400 = vadd.f32 %v3398, %v3399
        %v3401 = vsel %vm2829, %v2279, 0.0
        %v3402 = vadd.f32 %v3400, %v3401
        %v3403 = vsel %vm2829, %v2280, 0.0
        %v3404 = vadd.f32 %v3402, %v3403
        %v3405 = vsel %vm2829, %v2285, 0.0
        %v3406 = vadd.f32 %v3404, %v3405
        %v3407 = vsel %vm2829, %v2286, 0.0
        %v3408 = vadd.f32 %v3406, %v3407
        %v3409 = vsel %vm2829, %v2287, 0.0
        %v3410 = vadd.f32 %v3408, %v3409
        %v3411 = vsel %vm2829, %v2288, 0.0
        %v3412 = vadd.f32 %v3410, %v3411
        %v3413 = vsel %vm2829, %v2289, 0.0
        %v3414 = vadd.f32 %v3412, %v3413
        %v3415 = vsel %vm2829, %v2290, 0.0
        %v3416 = vadd.f32 %v3414, %v3415
        %v3417 = vsel %vm2829, %v2291, 0.0
        %v3418 = vadd.f32 %v3416, %v3417
        %v3419 = vsel %vm2829, %v2292, 0.0
        %v3420 = vadd.f32 %v3418, %v3419
        %v3421 = vsel %vm2829, %v2297, 0.0
        %v3422 = vadd.f32 %v3420, %v3421
        %v3423 = vsel %vm2829, %v2298, 0.0
        %v3424 = vadd.f32 %v3422, %v3423
        %v3425 = vsel %vm2829, %v2299, 0.0
        %v3426 = vadd.f32 %v3424, %v3425
        %v3427 = vsel %vm2829, %v2300, 0.0
        %v3428 = vadd.f32 %v3426, %v3427
        %v3429 = vsel %vm2829, %v2301, 0.0
        %v3430 = vadd.f32 %v3428, %v3429
        %v3431 = vsel %vm2829, %v2302, 0.0
        %v3432 = vadd.f32 %v3430, %v3431
        %v3433 = vsel %vm2829, %v2303, 0.0
        %v3434 = vadd.f32 %v3432, %v3433
        %v3435 = vsel %vm2829, %v2304, 0.0
        %v3436 = vadd.f32 %v3434, %v3435
        %v3437 = vsel %vm2829, %v2309, 0.0
        %v3438 = vadd.f32 %v3436, %v3437
        %v3439 = vsel %vm2829, %v2310, 0.0
        %v3440 = vadd.f32 %v3438, %v3439
        %v3441 = vsel %vm2829, %v2311, 0.0
        %v3442 = vadd.f32 %v3440, %v3441
        %v3443 = vsel %vm2829, %v2312, 0.0
        %v3444 = vadd.f32 %v3442, %v3443
        %v3445 = vsel %vm2829, %v2313, 0.0
        %v3446 = vadd.f32 %v3444, %v3445
        %v3447 = vsel %vm2829, %v2314, 0.0
        %v3448 = vadd.f32 %v3446, %v3447
        %v3449 = vsel %vm2829, %v2315, 0.0
        %v3450 = vadd.f32 %v3448, %v3449
        %v3451 = vsel %vm2829, %v2316, 0.0
        %v3452 = vadd.f32 %v3450, %v3451
        %v3453 = vsel %vm2829, %v2321, 0.0
        %v3454 = vadd.f32 %v3452, %v3453
        %v3455 = vsel %vm2829, %v2322, 0.0
        %v3456 = vadd.f32 %v3454, %v3455
        %v3457 = vsel %vm2829, %v2323, 0.0
        %v3458 = vadd.f32 %v3456, %v3457
        %v3459 = vsel %vm2829, %v2324, 0.0
        %v3460 = vadd.f32 %v3458, %v3459
        %v3461 = vsel %vm2829, %v2325, 0.0
        %v3462 = vadd.f32 %v3460, %v3461
        %v3463 = vsel %vm2829, %v2326, 0.0
        %v3464 = vadd.f32 %v3462, %v3463
        %v3465 = vsel %vm2829, %v2327, 0.0
        %v3466 = vadd.f32 %v3464, %v3465
        %v3467 = vsel %vm2829, %v2328, 0.0
        %v3468 = vadd.f32 %v3466, %v3467
        %v3469 = vsel %vm2829, %v2333, 0.0
        %v3470 = vadd.f32 %v3468, %v3469
        %v3471 = vsel %vm2829, %v2334, 0.0
        %v3472 = vadd.f32 %v3470, %v3471
        %v3473 = vsel %vm2829, %v2335, 0.0
        %v3474 = vadd.f32 %v3472, %v3473
        %v3475 = vsel %vm2829, %v2336, 0.0
        %v3476 = vadd.f32 %v3474, %v3475
        %v3477 = vsel %vm2829, %v2337, 0.0
        %v3478 = vadd.f32 %v3476, %v3477
        %v3479 = vsel %vm2829, %v2338, 0.0
        %v3480 = vadd.f32 %v3478, %v3479
        %v3481 = vsel %vm2829, %v2339, 0.0
        %v3482 = vadd.f32 %v3480, %v3481
        %v3483 = vsel %vm2829, %v2340, 0.0
        %v3484 = vadd.f32 %v3482, %v3483
        %v3485 = vsel %vm2829, %v2345, 0.0
        %v3486 = vadd.f32 %v3484, %v3485
        %v3487 = vsel %vm2829, %v2346, 0.0
        %v3488 = vadd.f32 %v3486, %v3487
        %v3489 = vsel %vm2829, %v2347, 0.0
        %v3490 = vadd.f32 %v3488, %v3489
        %v3491 = vsel %vm2829, %v2348, 0.0
        %v3492 = vadd.f32 %v3490, %v3491
        %v3493 = vsel %vm2829, %v2349, 0.0
        %v3494 = vadd.f32 %v3492, %v3493
        %v3495 = vsel %vm2829, %v2350, 0.0
        %v3496 = vadd.f32 %v3494, %v3495
        %v3497 = vsel %vm2829, %v2351, 0.0
        %v3498 = vadd.f32 %v3496, %v3497
        %v3499 = vsel %vm2829, %v2352, 0.0
        %v3500 = vadd.f32 %v3498, %v3499
        %v3501 = vsel %vm2829, %v2357, 0.0
        %v3502 = vadd.f32 %v3500, %v3501
        %v3503 = vsel %vm2829, %v2358, 0.0
        %v3504 = vadd.f32 %v3502, %v3503
        %v3505 = vsel %vm2829, %v2359, 0.0
        %v3506 = vadd.f32 %v3504, %v3505
        %v3507 = vsel %vm2829, %v2360, 0.0
        %v3508 = vadd.f32 %v3506, %v3507
        %v3509 = vsel %vm2829, %v2361, 0.0
        %v3510 = vadd.f32 %v3508, %v3509
        %v3511 = vsel %vm2829, %v2362, 0.0
        %v3512 = vadd.f32 %v3510, %v3511
        %v3513 = vsel %vm2829, %v2363, 0.0
        %v3514 = vadd.f32 %v3512, %v3513
        %v3515 = vsel %vm2829, %v2364, 0.0
        %v3516 = vadd.f32 %v3514, %v3515
        %v3517 = vsel %vm2829, %v2369, 0.0
        %v3518 = vadd.f32 %v3516, %v3517
        %v3519 = vsel %vm2829, %v2370, 0.0
        %v3520 = vadd.f32 %v3518, %v3519
        %v3521 = vsel %vm2829, %v2371, 0.0
        %v3522 = vadd.f32 %v3520, %v3521
        %v3523 = vsel %vm2829, %v2372, 0.0
        %v3524 = vadd.f32 %v3522, %v3523
        %v3525 = vsel %vm2829, %v2373, 0.0
        %v3526 = vadd.f32 %v3524, %v3525
        %v3527 = vsel %vm2829, %v2374, 0.0
        %v3528 = vadd.f32 %v3526, %v3527
        %v3529 = vsel %vm2829, %v2375, 0.0
        %v3530 = vadd.f32 %v3528, %v3529
        %v3531 = vsel %vm2829, %v2376, 0.0
        %v3532 = vadd.f32 %v3530, %v3531
        %v3533 = vsel %vm2829, %v2381, 0.0
        %v3534 = vadd.f32 %v3532, %v3533
        %v3535 = vsel %vm2829, %v2382, 0.0
        %v3536 = vadd.f32 %v3534, %v3535
        %v3537 = vsel %vm2829, %v2383, 0.0
        %v3538 = vadd.f32 %v3536, %v3537
        %v3539 = vsel %vm2829, %v2384, 0.0
        %v3540 = vadd.f32 %v3538, %v3539
        %v3541 = vsel %vm2829, %v2385, 0.0
        %v3542 = vadd.f32 %v3540, %v3541
        %v3543 = vsel %vm2829, %v2386, 0.0
        %v3544 = vadd.f32 %v3542, %v3543
        %v3545 = vsel %vm2829, %v2387, 0.0
        %v3546 = vadd.f32 %v3544, %v3545
        %v3547 = vsel %vm2829, %v2388, 0.0
        %v3548 = vadd.f32 %v3546, %v3547
        %v3549 = vsel %vm2829, %v2393, 0.0
        %v3550 = vadd.f32 %v3548, %v3549
        %v3551 = vsel %vm2829, %v2394, 0.0
        %v3552 = vadd.f32 %v3550, %v3551
        %v3553 = vsel %vm2829, %v2395, 0.0
        %v3554 = vadd.f32 %v3552, %v3553
        %v3555 = vsel %vm2829, %v2396, 0.0
        %v3556 = vadd.f32 %v3554, %v3555
        %v3557 = vsel %vm2829, %v2397, 0.0
        %v3558 = vadd.f32 %v3556, %v3557
        %v3559 = vsel %vm2829, %v2398, 0.0
        %v3560 = vadd.f32 %v3558, %v3559
        %v3561 = vsel %vm2829, %v2399, 0.0
        %v3562 = vadd.f32 %v3560, %v3561
        %v3563 = vsel %vm2829, %v2400, 0.0
        %v3564 = vadd.f32 %v3562, %v3563
        %v3565 = vsel %vm2829, %v2405, 0.0
        %v3566 = vadd.f32 %v3564, %v3565
        %v3567 = vsel %vm2829, %v2406, 0.0
        %v3568 = vadd.f32 %v3566, %v3567
        %v3569 = vsel %vm2829, %v2407, 0.0
        %v3570 = vadd.f32 %v3568, %v3569
        %v3571 = vsel %vm2829, %v2408, 0.0
        %v3572 = vadd.f32 %v3570, %v3571
        %v3573 = vsel %vm2829, %v2409, 0.0
        %v3574 = vadd.f32 %v3572, %v3573
        %v3575 = vsel %vm2829, %v2410, 0.0
        %v3576 = vadd.f32 %v3574, %v3575
        %v3577 = vsel %vm2829, %v2411, 0.0
        %v3578 = vadd.f32 %v3576, %v3577
        %v3579 = vsel %vm2829, %v2412, 0.0
        %v3580 = vadd.f32 %v3578, %v3579
        %v3581 = vsel %vm2829, %v2417, 0.0
        %v3582 = vadd.f32 %v3580, %v3581
        %v3583 = vsel %vm2829, %v2418, 0.0
        %v3584 = vadd.f32 %v3582, %v3583
        %v3585 = vsel %vm2829, %v2419, 0.0
        %v3586 = vadd.f32 %v3584, %v3585
        %v3587 = vsel %vm2829, %v2420, 0.0
        %v3588 = vadd.f32 %v3586, %v3587
        %v3589 = vsel %vm2829, %v2421, 0.0
        %v3590 = vadd.f32 %v3588, %v3589
        %v3591 = vsel %vm2829, %v2422, 0.0
        %v3592 = vadd.f32 %v3590, %v3591
        %v3593 = vsel %vm2829, %v2423, 0.0
        %v3594 = vadd.f32 %v3592, %v3593
        %v3595 = vsel %vm2829, %v2424, 0.0
        %v3596 = vadd.f32 %v3594, %v3595
        %v3597 = vsel %vm2829, %v2429, 0.0
        %v3598 = vadd.f32 %v3596, %v3597
        %v3599 = vsel %vm2829, %v2430, 0.0
        %v3600 = vadd.f32 %v3598, %v3599
        %v3601 = vsel %vm2829, %v2431, 0.0
        %v3602 = vadd.f32 %v3600, %v3601
        %v3603 = vsel %vm2829, %v2432, 0.0
        %v3604 = vadd.f32 %v3602, %v3603
        %v3605 = vsel %vm2829, %v2433, 0.0
        %v3606 = vadd.f32 %v3604, %v3605
        %v3607 = vsel %vm2829, %v2434, 0.0
        %v3608 = vadd.f32 %v3606, %v3607
        %v3609 = vsel %vm2829, %v2435, 0.0
        %v3610 = vadd.f32 %v3608, %v3609
        %v3611 = vsel %vm2829, %v2436, 0.0
        %v3612 = vadd.f32 %v3610, %v3611
        %3613 = vadd.xlane.f32.xlu0 %v3612
        %v3614 = vpop.xlane.xlu0 %3613
        %v3615 = vmul.f32 %v3614, 1.9929847e-05
        %v3616 = vld [vmem:[%s95] sm:$0x77]
        %v3617 = vld [vmem:[%s95 + $0x8] sm:$0x77]
        %v3618 = vld [vmem:[%s95 + $0x10] sm:$0x77]
        %v3619 = vld [vmem:[%s95 + $0x18] sm:$0x77]
        %v3620 = vld [vmem:[%s95 + $0x20] sm:$0x77]
        %v3621 = vld [vmem:[%s95 + $0x28] sm:$0x77]
        %v3622 = vld [vmem:[%s95 + $0x30] sm:$0x77]
        %v3623 = vld [vmem:[%s95 + $0x38] sm:$0x77]
        %3632 = vst [vmem:[#allocation1] ss:$2 sm:$0xff] %v3616
        %s3633 = scalar_lea.vmem [#allocation1], 16
        %3634 = vst [vmem:[%s3633] ss:$2 sm:$0xff] %v3617
        %s3635 = scalar_lea.vmem [#allocation1], 32
        %3636 = vst [vmem:[%s3635] ss:$2 sm:$0xff] %v3618
        %s3637 = scalar_lea.vmem [#allocation1], 48
        %3638 = vst [vmem:[%s3637] ss:$2 sm:$0xff] %v3619
        %v3639 = vld.sshfl [vmem:[#allocation1] sm:$0xff pattern:$0x75316420]
        %v3640 = vld.sshfl [vmem:[#allocation1 + $0x8] sm:$0xff pattern:$0x75316420]
        %v3641 = vld.sshfl [vmem:[#allocation1 + $0x10] sm:$0xff pattern:$0x75316420]
        %v3642 = vld.sshfl [vmem:[#allocation1 + $0x18] sm:$0xff pattern:$0x75316420]
        %v3643 = vld.sshfl [vmem:[#allocation1 + $0x20] sm:$0xff pattern:$0x75316420]
        %v3644 = vld.sshfl [vmem:[#allocation1 + $0x28] sm:$0xff pattern:$0x75316420]
        %v3645 = vld.sshfl [vmem:[#allocation1 + $0x30] sm:$0xff pattern:$0x75316420]
        %v3646 = vld.sshfl [vmem:[#allocation1 + $0x38] sm:$0xff pattern:$0x75316420]
        %3647 = vst [vmem:[#allocation1] ss:$2 sm:$0xff] %v3620
        %3648 = vst [vmem:[%s3633] ss:$2 sm:$0xff] %v3621
        %3649 = vst [vmem:[%s3635] ss:$2 sm:$0xff] %v3622
        %3650 = vst [vmem:[%s3637] ss:$2 sm:$0xff] %v3623
        %v3651 = vld.sshfl [vmem:[#allocation1] sm:$0xff pattern:$0x75316420]
        %v3652 = vld.sshfl [vmem:[#allocation1 + $0x8] sm:$0xff pattern:$0x75316420]
        %v3653 = vld.sshfl [vmem:[#allocation1 + $0x10] sm:$0xff pattern:$0x75316420]
        %v3654 = vld.sshfl [vmem:[#allocation1 + $0x18] sm:$0xff pattern:$0x75316420]
        %v3655 = vld.sshfl [vmem:[#allocation1 + $0x20] sm:$0xff pattern:$0x75316420]
        %v3656 = vld.sshfl [vmem:[#allocation1 + $0x28] sm:$0xff pattern:$0x75316420]
        %v3657 = vld.sshfl [vmem:[#allocation1 + $0x30] sm:$0xff pattern:$0x75316420]
        %v3658 = vld.sshfl [vmem:[#allocation1 + $0x38] sm:$0xff pattern:$0x75316420]
        %v3675 = vmul.f32 %v3615, %v3639
        %v3676 = vmul.f32 %v3615, %v3640
        %v3677 = vmul.f32 %v3615, %v3641
        %v3678 = vmul.f32 %v3615, %v3642
        %v3679 = vmul.f32 %v3615, %v3643
        %v3680 = vmul.f32 %v3615, %v3644
        %v3681 = vmul.f32 %v3615, %v3645
        %v3682 = vmul.f32 %v3615, %v3646
        %v3683 = vmul.f32 %v3615, %v3651
        %v3684 = vmul.f32 %v3615, %v3652
        %v3685 = vmul.f32 %v3615, %v3653
        %v3686 = vmul.f32 %v3615, %v3654
        %v3687 = vmul.f32 %v3615, %v3655
        %v3688 = vmul.f32 %v3615, %v3656
        %v3689 = vmul.f32 %v3615, %v3657
        %v3690 = vmul.f32 %v3615, %v3658
        %v3691 = vsel %vm2829, %v3675, 0.0
        %v3692 = vrot.slane %v3691, 4
        %v3693 = vadd.f32 %v3691, %v3692
        %v3694 = vrot.slane %v3693, 2
        %v3695 = vadd.f32 %v3693, %v3694
        %v3696 = vrot.slane %v3695, 1
        %v3697 = vadd.f32 %v3695, %v3696
        %v3698 = vsel %vm2829, %v3676, 0.0
        %v3699 = vrot.slane %v3698, 4
        %v3700 = vadd.f32 %v3698, %v3699
        %v3701 = vrot.slane %v3700, 2
        %v3702 = vadd.f32 %v3700, %v3701
        %v3703 = vrot.slane %v3702, 1
        %v3704 = vadd.f32 %v3702, %v3703
        %v3705 = vsel %vm2829, %v3677, 0.0
        %v3706 = vrot.slane %v3705, 4
        %v3707 = vadd.f32 %v3705, %v3706
        %v3708 = vrot.slane %v3707, 2
        %v3709 = vadd.f32 %v3707, %v3708
        %v3710 = vrot.slane %v3709, 1
        %v3711 = vadd.f32 %v3709, %v3710
        %v3712 = vsel %vm2829, %v3678, 0.0
        %v3713 = vrot.slane %v3712, 4
        %v3714 = vadd.f32 %v3712, %v3713
        %v3715 = vrot.slane %v3714, 2
        %v3716 = vadd.f32 %v3714, %v3715
        %v3717 = vrot.slane %v3716, 1
        %v3718 = vadd.f32 %v3716, %v3717
        %v3719 = vsel %vm2829, %v3679, 0.0
        %v3720 = vrot.slane %v3719, 4
        %v3721 = vadd.f32 %v3719, %v3720
        %v3722 = vrot.slane %v3721, 2
        %v3723 = vadd.f32 %v3721, %v3722
        %v3724 = vrot.slane %v3723, 1
        %v3725 = vadd.f32 %v3723, %v3724
        %v3726 = vsel %vm2829, %v3680, 0.0
        %v3727 = vrot.slane %v3726, 4
        %v3728 = vadd.f32 %v3726, %v3727
        %v3729 = vrot.slane %v3728, 2
        %v3730 = vadd.f32 %v3728, %v3729
        %v3731 = vrot.slane %v3730, 1
        %v3732 = vadd.f32 %v3730, %v3731
        %v3733 = vsel %vm2829, %v3681, 0.0
        %v3734 = vrot.slane %v3733, 4
        %v3735 = vadd.f32 %v3733, %v3734
        %v3736 = vrot.slane %v3735, 2
        %v3737 = vadd.f32 %v3735, %v3736
        %v3738 = vrot.slane %v3737, 1
        %v3739 = vadd.f32 %v3737, %v3738
        %v3740 = vsel %vm2829, %v3682, 0.0
        %v3741 = vrot.slane %v3740, 4
        %v3742 = vadd.f32 %v3740, %v3741
        %v3743 = vrot.slane %v3742, 2
        %v3744 = vadd.f32 %v3742, %v3743
        %v3745 = vrot.slane %v3744, 1
        %v3746 = vadd.f32 %v3744, %v3745
        %v3747 = vsel %vm2829, %v3683, 0.0
        %v3748 = vrot.slane %v3747, 4
        %v3749 = vadd.f32 %v3747, %v3748
        %v3750 = vrot.slane %v3749, 2
        %v3751 = vadd.f32 %v3749, %v3750
        %v3752 = vrot.slane %v3751, 1
        %v3753 = vadd.f32 %v3751, %v3752
        %v3754 = vsel %vm2829, %v3684, 0.0
        %v3755 = vrot.slane %v3754, 4
        %v3756 = vadd.f32 %v3754, %v3755
        %v3757 = vrot.slane %v3756, 2
        %v3758 = vadd.f32 %v3756, %v3757
        %v3759 = vrot.slane %v3758, 1
        %v3760 = vadd.f32 %v3758, %v3759
        %v3761 = vsel %vm2829, %v3685, 0.0
        %v3762 = vrot.slane %v3761, 4
        %v3763 = vadd.f32 %v3761, %v3762
        %v3764 = vrot.slane %v3763, 2
        %v3765 = vadd.f32 %v3763, %v3764
        %v3766 = vrot.slane %v3765, 1
        %v3767 = vadd.f32 %v3765, %v3766
        %v3768 = vsel %vm2829, %v3686, 0.0
        %v3769 = vrot.slane %v3768, 4
        %v3770 = vadd.f32 %v3768, %v3769
        %v3771 = vrot.slane %v3770, 2
        %v3772 = vadd.f32 %v3770, %v3771
        %v3773 = vrot.slane %v3772, 1
        %v3774 = vadd.f32 %v3772, %v3773
        %v3775 = vsel %vm2829, %v3687, 0.0
        %v3776 = vrot.slane %v3775, 4
        %v3777 = vadd.f32 %v3775, %v3776
        %v3778 = vrot.slane %v3777, 2
        %v3779 = vadd.f32 %v3777, %v3778
        %v3780 = vrot.slane %v3779, 1
        %v3781 = vadd.f32 %v3779, %v3780
        %v3782 = vsel %vm2829, %v3688, 0.0
        %v3783 = vrot.slane %v3782, 4
        %v3784 = vadd.f32 %v3782, %v3783
        %v3785 = vrot.slane %v3784, 2
        %v3786 = vadd.f32 %v3784, %v3785
        %v3787 = vrot.slane %v3786, 1
        %v3788 = vadd.f32 %v3786, %v3787
        %v3789 = vsel %vm2829, %v3689, 0.0
        %v3790 = vrot.slane %v3789, 4
        %v3791 = vadd.f32 %v3789, %v3790
        %v3792 = vrot.slane %v3791, 2
        %v3793 = vadd.f32 %v3791, %v3792
        %v3794 = vrot.slane %v3793, 1
        %v3795 = vadd.f32 %v3793, %v3794
        %v3796 = vsel %vm2829, %v3690, 0.0
        %v3797 = vrot.slane %v3796, 4
        %v3798 = vadd.f32 %v3796, %v3797
        %v3799 = vrot.slane %v3798, 2
        %v3800 = vadd.f32 %v3798, %v3799
        %v3801 = vrot.slane %v3800, 1
        %v3802 = vadd.f32 %v3800, %v3801
        %v3803 = vld [vmem:[%s5] sm:$0xff]
        %v3804 = vld [vmem:[%s5 + $0x8] sm:$0xff]
        %v3807 = vperm.slane %v3803, 0
        %v3808 = vperm.slane %v3803, 1
        %v3809 = vperm.slane %v3803, 2
        %v3810 = vperm.slane %v3803, 3
        %v3811 = vperm.slane %v3803, 4
        %v3812 = vperm.slane %v3803, 5
        %v3813 = vperm.slane %v3803, 6
        %v3814 = vperm.slane %v3803, 7
        %v3815 = vperm.slane %v3804, 0
        %v3816 = vperm.slane %v3804, 1
        %v3817 = vperm.slane %v3804, 2
        %v3818 = vperm.slane %v3804, 3
        %v3819 = vperm.slane %v3804, 4
        %v3820 = vperm.slane %v3804, 5
        %v3821 = vperm.slane %v3804, 6
        %v3822 = vperm.slane %v3804, 7
        %v3839 = vadd.f32 %v3697, %v3807
        %v3840 = vadd.f32 %v3704, %v3808
        %v3841 = vadd.f32 %v3711, %v3809
        %v3842 = vadd.f32 %v3718, %v3810
        %v3843 = vadd.f32 %v3725, %v3811
        %v3844 = vadd.f32 %v3732, %v3812
        %v3845 = vadd.f32 %v3739, %v3813
        %v3846 = vadd.f32 %v3746, %v3814
        %v3847 = vadd.f32 %v3753, %v3815
        %v3848 = vadd.f32 %v3760, %v3816
        %v3849 = vadd.f32 %v3767, %v3817
        %v3850 = vadd.f32 %v3774, %v3818
        %v3851 = vadd.f32 %v3781, %v3819
        %v3852 = vadd.f32 %v3788, %v3820
        %v3853 = vadd.f32 %v3795, %v3821
        %v3854 = vadd.f32 %v3802, %v3822
        %v3855 = vld [vmem:[%s73] sm:$0x3]
        %v3856 = vpack.c.bf16 %v3839, %v3839
        %v3857 = vpack.c.bf16 %v3840, %v3840
        %v3858 = vpack.c.bf16 %v3841, %v3841
        %v3859 = vpack.c.bf16 %v3842, %v3842
        %v3860 = vpack.c.bf16 %v3843, %v3843
        %v3861 = vpack.c.bf16 %v3844, %v3844
        %v3862 = vpack.c.bf16 %v3845, %v3845
        %v3863 = vpack.c.bf16 %v3846, %v3846
        %v3864 = vpack.c.bf16 %v3847, %v3847
        %v3865 = vpack.c.bf16 %v3848, %v3848
        %v3866 = vpack.c.bf16 %v3849, %v3849
        %v3867 = vpack.c.bf16 %v3850, %v3850
        %v3868 = vpack.c.bf16 %v3851, %v3851
        %v3869 = vpack.c.bf16 %v3852, %v3852
        %v3870 = vpack.c.bf16 %v3853, %v3853
        %v3871 = vpack.c.bf16 %v3854, %v3854
        %v3872 = vld [vmem:[%s75] sm:$0xff]
        %v3873 = vld [vmem:[%s75 + $0x8] sm:$0xff]
        %v3874 = vld [vmem:[%s75 + $0x10] sm:$0xff]
        %v3875 = vld [vmem:[%s75 + $0x18] sm:$0xff]
        %v3876 = vld [vmem:[%s75 + $0x20] sm:$0xff]
        %v3877 = vld [vmem:[%s75 + $0x28] sm:$0xff]
        %v3878 = vld [vmem:[%s75 + $0x30] sm:$0xff]
        %v3879 = vld [vmem:[%s75 + $0x38] sm:$0xff]
        %v3880 = vld [vmem:[%s75 + $0x40] sm:$0xff]
        %v3881 = vld [vmem:[%s75 + $0x48] sm:$0xff]
        %v3882 = vld [vmem:[%s75 + $0x50] sm:$0xff]
        %v3883 = vld [vmem:[%s75 + $0x58] sm:$0xff]
        %v3884 = vld [vmem:[%s75 + $0x60] sm:$0xff]
        %v3885 = vld [vmem:[%s75 + $0x68] sm:$0xff]
        %v3886 = vld [vmem:[%s75 + $0x70] sm:$0xff]
        %v3887 = vld [vmem:[%s75 + $0x78] sm:$0xff]
        %v3888 = vld [vmem:[%s75 + $0x80] sm:$0xff]
        %v3889 = vld [vmem:[%s75 + $0x88] sm:$0xff]
        %v3890 = vld [vmem:[%s75 + $0x90] sm:$0xff]
        %v3891 = vld [vmem:[%s75 + $0x98] sm:$0xff]
        %v3892 = vld [vmem:[%s75 + $0xa0] sm:$0xff]
        %v3893 = vld [vmem:[%s75 + $0xa8] sm:$0xff]
        %v3894 = vld [vmem:[%s75 + $0xb0] sm:$0xff]
        %v3895 = vld [vmem:[%s75 + $0xb8] sm:$0xff]
        %v3896 = vld [vmem:[%s75 + $0xc0] sm:$0xff]
        %v3897 = vld [vmem:[%s75 + $0xc8] sm:$0xff]
        %v3898 = vld [vmem:[%s75 + $0xd0] sm:$0xff]
        %v3899 = vld [vmem:[%s75 + $0xd8] sm:$0xff]
        %v3900 = vld [vmem:[%s75 + $0xe0] sm:$0xff]
        %v3901 = vld [vmem:[%s75 + $0xe8] sm:$0xff]
        %v3902 = vld [vmem:[%s75 + $0xf0] sm:$0xff]
        %v3903 = vld [vmem:[%s75 + $0xf8] sm:$0xff]
        %v3904 = vld [vmem:[%s75 + $0x100] sm:$0xff]
        %v3905 = vld [vmem:[%s75 + $0x108] sm:$0xff]
        %v3906 = vld [vmem:[%s75 + $0x110] sm:$0xff]
        %v3907 = vld [vmem:[%s75 + $0x118] sm:$0xff]
        %v3908 = vld [vmem:[%s75 + $0x120] sm:$0xff]
        %v3909 = vld [vmem:[%s75 + $0x128] sm:$0xff]
        %v3910 = vld [vmem:[%s75 + $0x130] sm:$0xff]
        %v3911 = vld [vmem:[%s75 + $0x138] sm:$0xff]
        %v3912 = vld [vmem:[%s75 + $0x140] sm:$0xff]
        %v3913 = vld [vmem:[%s75 + $0x148] sm:$0xff]
        %v3914 = vld [vmem:[%s75 + $0x150] sm:$0xff]
        %v3915 = vld [vmem:[%s75 + $0x158] sm:$0xff]
        %v3916 = vld [vmem:[%s75 + $0x160] sm:$0xff]
        %v3917 = vld [vmem:[%s75 + $0x168] sm:$0xff]
        %v3918 = vld [vmem:[%s75 + $0x170] sm:$0xff]
        %v3919 = vld [vmem:[%s75 + $0x178] sm:$0xff]
        %v3920 = vld [vmem:[%s75 + $0x180] sm:$0xff]
        %v3921 = vld [vmem:[%s75 + $0x188] sm:$0xff]
        %v3922 = vld [vmem:[%s75 + $0x190] sm:$0xff]
        %v3923 = vld [vmem:[%s75 + $0x198] sm:$0xff]
        %v3924 = vld [vmem:[%s75 + $0x1a0] sm:$0xff]
        %v3925 = vld [vmem:[%s75 + $0x1a8] sm:$0xff]
        %v3926 = vld [vmem:[%s75 + $0x1b0] sm:$0xff]
        %v3927 = vld [vmem:[%s75 + $0x1b8] sm:$0xff]
        %v3928 = vld [vmem:[%s75 + $0x1c0] sm:$0xff]
        %v3929 = vld [vmem:[%s75 + $0x1c8] sm:$0xff]
        %v3930 = vld [vmem:[%s75 + $0x1d0] sm:$0xff]
        %v3931 = vld [vmem:[%s75 + $0x1d8] sm:$0xff]
        %v3932 = vld [vmem:[%s75 + $0x1e0] sm:$0xff]
        %v3933 = vld [vmem:[%s75 + $0x1e8] sm:$0xff]
        %v3934 = vld [vmem:[%s75 + $0x1f0] sm:$0xff]
        %v3935 = vld [vmem:[%s75 + $0x1f8] sm:$0xff]
        %v3936 = vld [vmem:[%s75 + $0x200] sm:$0xff]
        %v3937 = vld [vmem:[%s75 + $0x208] sm:$0xff]
        %v3938 = vld [vmem:[%s75 + $0x210] sm:$0xff]
        %v3939 = vld [vmem:[%s75 + $0x218] sm:$0xff]
        %v3940 = vld [vmem:[%s75 + $0x220] sm:$0xff]
        %v3941 = vld [vmem:[%s75 + $0x228] sm:$0xff]
        %v3942 = vld [vmem:[%s75 + $0x230] sm:$0xff]
        %v3943 = vld [vmem:[%s75 + $0x238] sm:$0xff]
        %v3944 = vld [vmem:[%s75 + $0x240] sm:$0xff]
        %v3945 = vld [vmem:[%s75 + $0x248] sm:$0xff]
        %v3946 = vld [vmem:[%s75 + $0x250] sm:$0xff]
        %v3947 = vld [vmem:[%s75 + $0x258] sm:$0xff]
        %v3948 = vld [vmem:[%s75 + $0x260] sm:$0xff]
        %v3949 = vld [vmem:[%s75 + $0x268] sm:$0xff]
        %v3950 = vld [vmem:[%s75 + $0x270] sm:$0xff]
        %v3951 = vld [vmem:[%s75 + $0x278] sm:$0xff]
        %v3952 = vld [vmem:[%s75 + $0x280] sm:$0xff]
        %v3953 = vld [vmem:[%s75 + $0x288] sm:$0xff]
        %v3954 = vld [vmem:[%s75 + $0x290] sm:$0xff]
        %v3955 = vld [vmem:[%s75 + $0x298] sm:$0xff]
        %v3956 = vld [vmem:[%s75 + $0x2a0] sm:$0xff]
        %v3957 = vld [vmem:[%s75 + $0x2a8] sm:$0xff]
        %v3958 = vld [vmem:[%s75 + $0x2b0] sm:$0xff]
        %v3959 = vld [vmem:[%s75 + $0x2b8] sm:$0xff]
        %v3960 = vld [vmem:[%s75 + $0x2c0] sm:$0xff]
        %v3961 = vld [vmem:[%s75 + $0x2c8] sm:$0xff]
        %v3962 = vld [vmem:[%s75 + $0x2d0] sm:$0xff]
        %v3963 = vld [vmem:[%s75 + $0x2d8] sm:$0xff]
        %v3964 = vld [vmem:[%s75 + $0x2e0] sm:$0xff]
        %v3965 = vld [vmem:[%s75 + $0x2e8] sm:$0xff]
        %v3966 = vld [vmem:[%s75 + $0x2f0] sm:$0xff]
        %v3967 = vld [vmem:[%s75 + $0x2f8] sm:$0xff]
        %v3968 = vld [vmem:[%s75 + $0x300] sm:$0xff]
        %v3969 = vld [vmem:[%s75 + $0x308] sm:$0xff]
        %v3970 = vld [vmem:[%s75 + $0x310] sm:$0xff]
        %v3971 = vld [vmem:[%s75 + $0x318] sm:$0xff]
        %v3972 = vld [vmem:[%s75 + $0x320] sm:$0xff]
        %v3973 = vld [vmem:[%s75 + $0x328] sm:$0xff]
        %v3974 = vld [vmem:[%s75 + $0x330] sm:$0xff]
        %v3975 = vld [vmem:[%s75 + $0x338] sm:$0xff]
        %v3976 = vld [vmem:[%s75 + $0x340] sm:$0xff]
        %v3977 = vld [vmem:[%s75 + $0x348] sm:$0xff]
        %v3978 = vld [vmem:[%s75 + $0x350] sm:$0xff]
        %v3979 = vld [vmem:[%s75 + $0x358] sm:$0xff]
        %v3980 = vld [vmem:[%s75 + $0x360] sm:$0xff]
        %v3981 = vld [vmem:[%s75 + $0x368] sm:$0xff]
        %v3982 = vld [vmem:[%s75 + $0x370] sm:$0xff]
        %v3983 = vld [vmem:[%s75 + $0x378] sm:$0xff]
        %v3984 = vld [vmem:[%s75 + $0x380] sm:$0xff]
        %v3985 = vld [vmem:[%s75 + $0x388] sm:$0xff]
        %v3986 = vld [vmem:[%s75 + $0x390] sm:$0xff]
        %v3987 = vld [vmem:[%s75 + $0x398] sm:$0xff]
        %v3988 = vld [vmem:[%s75 + $0x3a0] sm:$0xff]
        %v3989 = vld [vmem:[%s75 + $0x3a8] sm:$0xff]
        %v3990 = vld [vmem:[%s75 + $0x3b0] sm:$0xff]
        %v3991 = vld [vmem:[%s75 + $0x3b8] sm:$0xff]
        %v3992 = vld [vmem:[%s75 + $0x3c0] sm:$0xff]
        %v3993 = vld [vmem:[%s75 + $0x3c8] sm:$0xff]
        %v3994 = vld [vmem:[%s75 + $0x3d0] sm:$0xff]
        %v3995 = vld [vmem:[%s75 + $0x3d8] sm:$0xff]
        %v3996 = vld [vmem:[%s75 + $0x3e0] sm:$0xff]
        %v3997 = vld [vmem:[%s75 + $0x3e8] sm:$0xff]
        %v3998 = vld [vmem:[%s75 + $0x3f0] sm:$0xff]
        %v3999 = vld [vmem:[%s75 + $0x3f8] sm:$0xff]
        %v4000 = vld [vmem:[%s75 + $0x400] sm:$0xff]
        %v4001 = vld [vmem:[%s75 + $0x408] sm:$0xff]
        %v4002 = vld [vmem:[%s75 + $0x410] sm:$0xff]
        %v4003 = vld [vmem:[%s75 + $0x418] sm:$0xff]
        %v4004 = vld [vmem:[%s75 + $0x420] sm:$0xff]
        %v4005 = vld [vmem:[%s75 + $0x428] sm:$0xff]
        %v4006 = vld [vmem:[%s75 + $0x430] sm:$0xff]
        %v4007 = vld [vmem:[%s75 + $0x438] sm:$0xff]
        %v4008 = vld [vmem:[%s75 + $0x440] sm:$0xff]
        %v4009 = vld [vmem:[%s75 + $0x448] sm:$0xff]
        %v4010 = vld [vmem:[%s75 + $0x450] sm:$0xff]
        %v4011 = vld [vmem:[%s75 + $0x458] sm:$0xff]
        %v4012 = vld [vmem:[%s75 + $0x460] sm:$0xff]
        %v4013 = vld [vmem:[%s75 + $0x468] sm:$0xff]
        %v4014 = vld [vmem:[%s75 + $0x470] sm:$0xff]
        %v4015 = vld [vmem:[%s75 + $0x478] sm:$0xff]
        %v4016 = vld [vmem:[%s75 + $0x480] sm:$0xff]
        %v4017 = vld [vmem:[%s75 + $0x488] sm:$0xff]
        %v4018 = vld [vmem:[%s75 + $0x490] sm:$0xff]
        %v4019 = vld [vmem:[%s75 + $0x498] sm:$0xff]
        %v4020 = vld [vmem:[%s75 + $0x4a0] sm:$0xff]
        %v4021 = vld [vmem:[%s75 + $0x4a8] sm:$0xff]
        %v4022 = vld [vmem:[%s75 + $0x4b0] sm:$0xff]
        %v4023 = vld [vmem:[%s75 + $0x4b8] sm:$0xff]
        %v4024 = vld [vmem:[%s75 + $0x4c0] sm:$0xff]
        %v4025 = vld [vmem:[%s75 + $0x4c8] sm:$0xff]
        %v4026 = vld [vmem:[%s75 + $0x4d0] sm:$0xff]
        %v4027 = vld [vmem:[%s75 + $0x4d8] sm:$0xff]
        %v4028 = vld [vmem:[%s75 + $0x4e0] sm:$0xff]
        %v4029 = vld [vmem:[%s75 + $0x4e8] sm:$0xff]
        %v4030 = vld [vmem:[%s75 + $0x4f0] sm:$0xff]
        %v4031 = vld [vmem:[%s75 + $0x4f8] sm:$0xff]
        %v4032 = vld [vmem:[%s75 + $0x500] sm:$0xff]
        %v4033 = vld [vmem:[%s75 + $0x508] sm:$0xff]
        %v4034 = vld [vmem:[%s75 + $0x510] sm:$0xff]
        %v4035 = vld [vmem:[%s75 + $0x518] sm:$0xff]
        %v4036 = vld [vmem:[%s75 + $0x520] sm:$0xff]
        %v4037 = vld [vmem:[%s75 + $0x528] sm:$0xff]
        %v4038 = vld [vmem:[%s75 + $0x530] sm:$0xff]
        %v4039 = vld [vmem:[%s75 + $0x538] sm:$0xff]
        %v4040 = vld [vmem:[%s75 + $0x540] sm:$0xff]
        %v4041 = vld [vmem:[%s75 + $0x548] sm:$0xff]
        %v4042 = vld [vmem:[%s75 + $0x550] sm:$0xff]
        %v4043 = vld [vmem:[%s75 + $0x558] sm:$0xff]
        %v4044 = vld [vmem:[%s75 + $0x560] sm:$0xff]
        %v4045 = vld [vmem:[%s75 + $0x568] sm:$0xff]
        %v4046 = vld [vmem:[%s75 + $0x570] sm:$0xff]
        %v4047 = vld [vmem:[%s75 + $0x578] sm:$0xff]
        %v4048 = vld [vmem:[%s75 + $0x580] sm:$0xff]
        %v4049 = vld [vmem:[%s75 + $0x588] sm:$0xff]
        %v4050 = vld [vmem:[%s75 + $0x590] sm:$0xff]
        %v4051 = vld [vmem:[%s75 + $0x598] sm:$0xff]
        %v4052 = vld [vmem:[%s75 + $0x5a0] sm:$0xff]
        %v4053 = vld [vmem:[%s75 + $0x5a8] sm:$0xff]
        %v4054 = vld [vmem:[%s75 + $0x5b0] sm:$0xff]
        %v4055 = vld [vmem:[%s75 + $0x5b8] sm:$0xff]
        %v4056 = vld [vmem:[%s75 + $0x5c0] sm:$0xff]
        %v4057 = vld [vmem:[%s75 + $0x5c8] sm:$0xff]
        %v4058 = vld [vmem:[%s75 + $0x5d0] sm:$0xff]
        %v4059 = vld [vmem:[%s75 + $0x5d8] sm:$0xff]
        %v4060 = vld [vmem:[%s75 + $0x5e0] sm:$0xff]
        %v4061 = vld [vmem:[%s75 + $0x5e8] sm:$0xff]
        %v4062 = vld [vmem:[%s75 + $0x5f0] sm:$0xff]
        %v4063 = vld [vmem:[%s75 + $0x5f8] sm:$0xff]
        %v4064 = vld [vmem:[%s75 + $0x600] sm:$0xff]
        %v4065 = vld [vmem:[%s75 + $0x608] sm:$0xff]
        %v4066 = vld [vmem:[%s75 + $0x610] sm:$0xff]
        %v4067 = vld [vmem:[%s75 + $0x618] sm:$0xff]
        %v4068 = vld [vmem:[%s75 + $0x620] sm:$0xff]
        %v4069 = vld [vmem:[%s75 + $0x628] sm:$0xff]
        %v4070 = vld [vmem:[%s75 + $0x630] sm:$0xff]
        %v4071 = vld [vmem:[%s75 + $0x638] sm:$0xff]
        %v4072 = vld [vmem:[%s75 + $0x640] sm:$0xff]
        %v4073 = vld [vmem:[%s75 + $0x648] sm:$0xff]
        %v4074 = vld [vmem:[%s75 + $0x650] sm:$0xff]
        %v4075 = vld [vmem:[%s75 + $0x658] sm:$0xff]
        %v4076 = vld [vmem:[%s75 + $0x660] sm:$0xff]
        %v4077 = vld [vmem:[%s75 + $0x668] sm:$0xff]
        %v4078 = vld [vmem:[%s75 + $0x670] sm:$0xff]
        %v4079 = vld [vmem:[%s75 + $0x678] sm:$0xff]
        %v4080 = vld [vmem:[%s75 + $0x680] sm:$0xff]
        %v4081 = vld [vmem:[%s75 + $0x688] sm:$0xff]
        %v4082 = vld [vmem:[%s75 + $0x690] sm:$0xff]
        %v4083 = vld [vmem:[%s75 + $0x698] sm:$0xff]
        %v4084 = vld [vmem:[%s75 + $0x6a0] sm:$0xff]
        %v4085 = vld [vmem:[%s75 + $0x6a8] sm:$0xff]
        %v4086 = vld [vmem:[%s75 + $0x6b0] sm:$0xff]
        %v4087 = vld [vmem:[%s75 + $0x6b8] sm:$0xff]
        %v4088 = vld [vmem:[%s75 + $0x6c0] sm:$0xff]
        %v4089 = vld [vmem:[%s75 + $0x6c8] sm:$0xff]
        %v4090 = vld [vmem:[%s75 + $0x6d0] sm:$0xff]
        %v4091 = vld [vmem:[%s75 + $0x6d8] sm:$0xff]
        %v4092 = vld [vmem:[%s75 + $0x6e0] sm:$0xff]
        %v4093 = vld [vmem:[%s75 + $0x6e8] sm:$0xff]
        %v4094 = vld [vmem:[%s75 + $0x6f0] sm:$0xff]
        %v4095 = vld [vmem:[%s75 + $0x6f8] sm:$0xff]
        %v4096 = vld [vmem:[%s75 + $0x700] sm:$0xff]
        %v4097 = vld [vmem:[%s75 + $0x708] sm:$0xff]
        %v4098 = vld [vmem:[%s75 + $0x710] sm:$0xff]
        %v4099 = vld [vmem:[%s75 + $0x718] sm:$0xff]
        %v4100 = vld [vmem:[%s75 + $0x720] sm:$0xff]
        %v4101 = vld [vmem:[%s75 + $0x728] sm:$0xff]
        %v4102 = vld [vmem:[%s75 + $0x730] sm:$0xff]
        %v4103 = vld [vmem:[%s75 + $0x738] sm:$0xff]
        %v4104 = vld [vmem:[%s75 + $0x740] sm:$0xff]
        %v4105 = vld [vmem:[%s75 + $0x748] sm:$0xff]
        %v4106 = vld [vmem:[%s75 + $0x750] sm:$0xff]
        %v4107 = vld [vmem:[%s75 + $0x758] sm:$0xff]
        %v4108 = vld [vmem:[%s75 + $0x760] sm:$0xff]
        %v4109 = vld [vmem:[%s75 + $0x768] sm:$0xff]
        %v4110 = vld [vmem:[%s75 + $0x770] sm:$0xff]
        %v4111 = vld [vmem:[%s75 + $0x778] sm:$0xff]
        %v4112 = vld [vmem:[%s75 + $0x780] sm:$0xff]
        %v4113 = vld [vmem:[%s75 + $0x788] sm:$0xff]
        %v4114 = vld [vmem:[%s75 + $0x790] sm:$0xff]
        %v4115 = vld [vmem:[%s75 + $0x798] sm:$0xff]
        %v4116 = vld [vmem:[%s75 + $0x7a0] sm:$0xff]
        %v4117 = vld [vmem:[%s75 + $0x7a8] sm:$0xff]
        %v4118 = vld [vmem:[%s75 + $0x7b0] sm:$0xff]
        %v4119 = vld [vmem:[%s75 + $0x7b8] sm:$0xff]
        %v4120 = vld [vmem:[%s75 + $0x7c0] sm:$0xff]
        %v4121 = vld [vmem:[%s75 + $0x7c8] sm:$0xff]
        %v4122 = vld [vmem:[%s75 + $0x7d0] sm:$0xff]
        %v4123 = vld [vmem:[%s75 + $0x7d8] sm:$0xff]
        %v4124 = vld [vmem:[%s75 + $0x7e0] sm:$0xff]
        %v4125 = vld [vmem:[%s75 + $0x7e8] sm:$0xff]
        %v4126 = vld [vmem:[%s75 + $0x7f0] sm:$0xff]
        %v4127 = vld [vmem:[%s75 + $0x7f8] sm:$0xff]
        %v4384 = vunpack.c.l.b16 %v3872
        %v4385 = vunpack.c.h.b16 %v3872
        %v4386 = vunpack.c.l.b16 %v3873
        %v4387 = vunpack.c.h.b16 %v3873
        %v4388 = vunpack.c.l.b16 %v3874
        %v4389 = vunpack.c.h.b16 %v3874
        %v4390 = vunpack.c.l.b16 %v3875
        %v4391 = vunpack.c.h.b16 %v3875
        %v4392 = vunpack.c.l.b16 %v3876
        %v4393 = vunpack.c.h.b16 %v3876
        %v4394 = vunpack.c.l.b16 %v3877
        %v4395 = vunpack.c.h.b16 %v3877
        %v4396 = vunpack.c.l.b16 %v3878
        %v4397 = vunpack.c.h.b16 %v3878
        %v4398 = vunpack.c.l.b16 %v3879
        %v4399 = vunpack.c.h.b16 %v3879
        %v4400 = vunpack.c.l.b16 %v3880
        %v4401 = vunpack.c.h.b16 %v3880
        %v4402 = vunpack.c.l.b16 %v3881
        %v4403 = vunpack.c.h.b16 %v3881
        %v4404 = vunpack.c.l.b16 %v3882
        %v4405 = vunpack.c.h.b16 %v3882
        %v4406 = vunpack.c.l.b16 %v3883
        %v4407 = vunpack.c.h.b16 %v3883
        %v4408 = vunpack.c.l.b16 %v3884
        %v4409 = vunpack.c.h.b16 %v3884
        %v4410 = vunpack.c.l.b16 %v3885
        %v4411 = vunpack.c.h.b16 %v3885
        %v4412 = vunpack.c.l.b16 %v3886
        %v4413 = vunpack.c.h.b16 %v3886
        %v4414 = vunpack.c.l.b16 %v3887
        %v4415 = vunpack.c.h.b16 %v3887
        %v4416 = vunpack.c.l.b16 %v3888
        %v4417 = vunpack.c.h.b16 %v3888
        %v4418 = vunpack.c.l.b16 %v3889
        %v4419 = vunpack.c.h.b16 %v3889
        %v4420 = vunpack.c.l.b16 %v3890
        %v4421 = vunpack.c.h.b16 %v3890
        %v4422 = vunpack.c.l.b16 %v3891
        %v4423 = vunpack.c.h.b16 %v3891
        %v4424 = vunpack.c.l.b16 %v3892
        %v4425 = vunpack.c.h.b16 %v3892
        %v4426 = vunpack.c.l.b16 %v3893
        %v4427 = vunpack.c.h.b16 %v3893
        %v4428 = vunpack.c.l.b16 %v3894
        %v4429 = vunpack.c.h.b16 %v3894
        %v4430 = vunpack.c.l.b16 %v3895
        %v4431 = vunpack.c.h.b16 %v3895
        %v4432 = vunpack.c.l.b16 %v3896
        %v4433 = vunpack.c.h.b16 %v3896
        %v4434 = vunpack.c.l.b16 %v3897
        %v4435 = vunpack.c.h.b16 %v3897
        %v4436 = vunpack.c.l.b16 %v3898
        %v4437 = vunpack.c.h.b16 %v3898
        %v4438 = vunpack.c.l.b16 %v3899
        %v4439 = vunpack.c.h.b16 %v3899
        %v4440 = vunpack.c.l.b16 %v3900
        %v4441 = vunpack.c.h.b16 %v3900
        %v4442 = vunpack.c.l.b16 %v3901
        %v4443 = vunpack.c.h.b16 %v3901
        %v4444 = vunpack.c.l.b16 %v3902
        %v4445 = vunpack.c.h.b16 %v3902
        %v4446 = vunpack.c.l.b16 %v3903
        %v4447 = vunpack.c.h.b16 %v3903
        %v4448 = vunpack.c.l.b16 %v3904
        %v4449 = vunpack.c.h.b16 %v3904
        %v4450 = vunpack.c.l.b16 %v3905
        %v4451 = vunpack.c.h.b16 %v3905
        %v4452 = vunpack.c.l.b16 %v3906
        %v4453 = vunpack.c.h.b16 %v3906
        %v4454 = vunpack.c.l.b16 %v3907
        %v4455 = vunpack.c.h.b16 %v3907
        %v4456 = vunpack.c.l.b16 %v3908
        %v4457 = vunpack.c.h.b16 %v3908
        %v4458 = vunpack.c.l.b16 %v3909
        %v4459 = vunpack.c.h.b16 %v3909
        %v4460 = vunpack.c.l.b16 %v3910
        %v4461 = vunpack.c.h.b16 %v3910
        %v4462 = vunpack.c.l.b16 %v3911
        %v4463 = vunpack.c.h.b16 %v3911
        %v4464 = vunpack.c.l.b16 %v3912
        %v4465 = vunpack.c.h.b16 %v3912
        %v4466 = vunpack.c.l.b16 %v3913
        %v4467 = vunpack.c.h.b16 %v3913
        %v4468 = vunpack.c.l.b16 %v3914
        %v4469 = vunpack.c.h.b16 %v3914
        %v4470 = vunpack.c.l.b16 %v3915
        %v4471 = vunpack.c.h.b16 %v3915
        %v4472 = vunpack.c.l.b16 %v3916
        %v4473 = vunpack.c.h.b16 %v3916
        %v4474 = vunpack.c.l.b16 %v3917
        %v4475 = vunpack.c.h.b16 %v3917
        %v4476 = vunpack.c.l.b16 %v3918
        %v4477 = vunpack.c.h.b16 %v3918
        %v4478 = vunpack.c.l.b16 %v3919
        %v4479 = vunpack.c.h.b16 %v3919
        %v4480 = vunpack.c.l.b16 %v3920
        %v4481 = vunpack.c.h.b16 %v3920
        %v4482 = vunpack.c.l.b16 %v3921
        %v4483 = vunpack.c.h.b16 %v3921
        %v4484 = vunpack.c.l.b16 %v3922
        %v4485 = vunpack.c.h.b16 %v3922
        %v4486 = vunpack.c.l.b16 %v3923
        %v4487 = vunpack.c.h.b16 %v3923
        %v4488 = vunpack.c.l.b16 %v3924
        %v4489 = vunpack.c.h.b16 %v3924
        %v4490 = vunpack.c.l.b16 %v3925
        %v4491 = vunpack.c.h.b16 %v3925
        %v4492 = vunpack.c.l.b16 %v3926
        %v4493 = vunpack.c.h.b16 %v3926
        %v4494 = vunpack.c.l.b16 %v3927
        %v4495 = vunpack.c.h.b16 %v3927
        %v4496 = vunpack.c.l.b16 %v3928
        %v4497 = vunpack.c.h.b16 %v3928
        %v4498 = vunpack.c.l.b16 %v3929
        %v4499 = vunpack.c.h.b16 %v3929
        %v4500 = vunpack.c.l.b16 %v3930
        %v4501 = vunpack.c.h.b16 %v3930
        %v4502 = vunpack.c.l.b16 %v3931
        %v4503 = vunpack.c.h.b16 %v3931
        %v4504 = vunpack.c.l.b16 %v3932
        %v4505 = vunpack.c.h.b16 %v3932
        %v4506 = vunpack.c.l.b16 %v3933
        %v4507 = vunpack.c.h.b16 %v3933
        %v4508 = vunpack.c.l.b16 %v3934
        %v4509 = vunpack.c.h.b16 %v3934
        %v4510 = vunpack.c.l.b16 %v3935
        %v4511 = vunpack.c.h.b16 %v3935
        %v4512 = vunpack.c.l.b16 %v3936
        %v4513 = vunpack.c.h.b16 %v3936
        %v4514 = vunpack.c.l.b16 %v3937
        %v4515 = vunpack.c.h.b16 %v3937
        %v4516 = vunpack.c.l.b16 %v3938
        %v4517 = vunpack.c.h.b16 %v3938
        %v4518 = vunpack.c.l.b16 %v3939
        %v4519 = vunpack.c.h.b16 %v3939
        %v4520 = vunpack.c.l.b16 %v3940
        %v4521 = vunpack.c.h.b16 %v3940
        %v4522 = vunpack.c.l.b16 %v3941
        %v4523 = vunpack.c.h.b16 %v3941
        %v4524 = vunpack.c.l.b16 %v3942
        %v4525 = vunpack.c.h.b16 %v3942
        %v4526 = vunpack.c.l.b16 %v3943
        %v4527 = vunpack.c.h.b16 %v3943
        %v4528 = vunpack.c.l.b16 %v3944
        %v4529 = vunpack.c.h.b16 %v3944
        %v4530 = vunpack.c.l.b16 %v3945
        %v4531 = vunpack.c.h.b16 %v3945
        %v4532 = vunpack.c.l.b16 %v3946
        %v4533 = vunpack.c.h.b16 %v3946
        %v4534 = vunpack.c.l.b16 %v3947
        %v4535 = vunpack.c.h.b16 %v3947
        %v4536 = vunpack.c.l.b16 %v3948
        %v4537 = vunpack.c.h.b16 %v3948
        %v4538 = vunpack.c.l.b16 %v3949
        %v4539 = vunpack.c.h.b16 %v3949
        %v4540 = vunpack.c.l.b16 %v3950
        %v4541 = vunpack.c.h.b16 %v3950
        %v4542 = vunpack.c.l.b16 %v3951
        %v4543 = vunpack.c.h.b16 %v3951
        %v4544 = vunpack.c.l.b16 %v3952
        %v4545 = vunpack.c.h.b16 %v3952
        %v4546 = vunpack.c.l.b16 %v3953
        %v4547 = vunpack.c.h.b16 %v3953
        %v4548 = vunpack.c.l.b16 %v3954
        %v4549 = vunpack.c.h.b16 %v3954
        %v4550 = vunpack.c.l.b16 %v3955
        %v4551 = vunpack.c.h.b16 %v3955
        %v4552 = vunpack.c.l.b16 %v3956
        %v4553 = vunpack.c.h.b16 %v3956
        %v4554 = vunpack.c.l.b16 %v3957
        %v4555 = vunpack.c.h.b16 %v3957
        %v4556 = vunpack.c.l.b16 %v3958
        %v4557 = vunpack.c.h.b16 %v3958
        %v4558 = vunpack.c.l.b16 %v3959
        %v4559 = vunpack.c.h.b16 %v3959
        %v4560 = vunpack.c.l.b16 %v3960
        %v4561 = vunpack.c.h.b16 %v3960
        %v4562 = vunpack.c.l.b16 %v3961
        %v4563 = vunpack.c.h.b16 %v3961
        %v4564 = vunpack.c.l.b16 %v3962
        %v4565 = vunpack.c.h.b16 %v3962
        %v4566 = vunpack.c.l.b16 %v3963
        %v4567 = vunpack.c.h.b16 %v3963
        %v4568 = vunpack.c.l.b16 %v3964
        %v4569 = vunpack.c.h.b16 %v3964
        %v4570 = vunpack.c.l.b16 %v3965
        %v4571 = vunpack.c.h.b16 %v3965
        %v4572 = vunpack.c.l.b16 %v3966
        %v4573 = vunpack.c.h.b16 %v3966
        %v4574 = vunpack.c.l.b16 %v3967
        %v4575 = vunpack.c.h.b16 %v3967
        %v4576 = vunpack.c.l.b16 %v3968
        %v4577 = vunpack.c.h.b16 %v3968
        %v4578 = vunpack.c.l.b16 %v3969
        %v4579 = vunpack.c.h.b16 %v3969
        %v4580 = vunpack.c.l.b16 %v3970
        %v4581 = vunpack.c.h.b16 %v3970
        %v4582 = vunpack.c.l.b16 %v3971
        %v4583 = vunpack.c.h.b16 %v3971
        %v4584 = vunpack.c.l.b16 %v3972
        %v4585 = vunpack.c.h.b16 %v3972
        %v4586 = vunpack.c.l.b16 %v3973
        %v4587 = vunpack.c.h.b16 %v3973
        %v4588 = vunpack.c.l.b16 %v3974
        %v4589 = vunpack.c.h.b16 %v3974
        %v4590 = vunpack.c.l.b16 %v3975
        %v4591 = vunpack.c.h.b16 %v3975
        %v4592 = vunpack.c.l.b16 %v3976
        %v4593 = vunpack.c.h.b16 %v3976
        %v4594 = vunpack.c.l.b16 %v3977
        %v4595 = vunpack.c.h.b16 %v3977
        %v4596 = vunpack.c.l.b16 %v3978
        %v4597 = vunpack.c.h.b16 %v3978
        %v4598 = vunpack.c.l.b16 %v3979
        %v4599 = vunpack.c.h.b16 %v3979
        %v4600 = vunpack.c.l.b16 %v3980
        %v4601 = vunpack.c.h.b16 %v3980
        %v4602 = vunpack.c.l.b16 %v3981
        %v4603 = vunpack.c.h.b16 %v3981
        %v4604 = vunpack.c.l.b16 %v3982
        %v4605 = vunpack.c.h.b16 %v3982
        %v4606 = vunpack.c.l.b16 %v3983
        %v4607 = vunpack.c.h.b16 %v3983
        %v4608 = vunpack.c.l.b16 %v3984
        %v4609 = vunpack.c.h.b16 %v3984
        %v4610 = vunpack.c.l.b16 %v3985
        %v4611 = vunpack.c.h.b16 %v3985
        %v4612 = vunpack.c.l.b16 %v3986
        %v4613 = vunpack.c.h.b16 %v3986
        %v4614 = vunpack.c.l.b16 %v3987
        %v4615 = vunpack.c.h.b16 %v3987
        %v4616 = vunpack.c.l.b16 %v3988
        %v4617 = vunpack.c.h.b16 %v3988
        %v4618 = vunpack.c.l.b16 %v3989
        %v4619 = vunpack.c.h.b16 %v3989
        %v4620 = vunpack.c.l.b16 %v3990
        %v4621 = vunpack.c.h.b16 %v3990
        %v4622 = vunpack.c.l.b16 %v3991
        %v4623 = vunpack.c.h.b16 %v3991
        %v4624 = vunpack.c.l.b16 %v3992
        %v4625 = vunpack.c.h.b16 %v3992
        %v4626 = vunpack.c.l.b16 %v3993
        %v4627 = vunpack.c.h.b16 %v3993
        %v4628 = vunpack.c.l.b16 %v3994
        %v4629 = vunpack.c.h.b16 %v3994
        %v4630 = vunpack.c.l.b16 %v3995
        %v4631 = vunpack.c.h.b16 %v3995
        %v4632 = vunpack.c.l.b16 %v3996
        %v4633 = vunpack.c.h.b16 %v3996
        %v4634 = vunpack.c.l.b16 %v3997
        %v4635 = vunpack.c.h.b16 %v3997
        %v4636 = vunpack.c.l.b16 %v3998
        %v4637 = vunpack.c.h.b16 %v3998
        %v4638 = vunpack.c.l.b16 %v3999
        %v4639 = vunpack.c.h.b16 %v3999
        %v4640 = vunpack.c.l.b16 %v4000
        %v4641 = vunpack.c.h.b16 %v4000
        %v4642 = vunpack.c.l.b16 %v4001
        %v4643 = vunpack.c.h.b16 %v4001
        %v4644 = vunpack.c.l.b16 %v4002
        %v4645 = vunpack.c.h.b16 %v4002
        %v4646 = vunpack.c.l.b16 %v4003
        %v4647 = vunpack.c.h.b16 %v4003
        %v4648 = vunpack.c.l.b16 %v4004
        %v4649 = vunpack.c.h.b16 %v4004
        %v4650 = vunpack.c.l.b16 %v4005
        %v4651 = vunpack.c.h.b16 %v4005
        %v4652 = vunpack.c.l.b16 %v4006
        %v4653 = vunpack.c.h.b16 %v4006
        %v4654 = vunpack.c.l.b16 %v4007
        %v4655 = vunpack.c.h.b16 %v4007
        %v4656 = vunpack.c.l.b16 %v4008
        %v4657 = vunpack.c.h.b16 %v4008
        %v4658 = vunpack.c.l.b16 %v4009
        %v4659 = vunpack.c.h.b16 %v4009
        %v4660 = vunpack.c.l.b16 %v4010
        %v4661 = vunpack.c.h.b16 %v4010
        %v4662 = vunpack.c.l.b16 %v4011
        %v4663 = vunpack.c.h.b16 %v4011
        %v4664 = vunpack.c.l.b16 %v4012
        %v4665 = vunpack.c.h.b16 %v4012
        %v4666 = vunpack.c.l.b16 %v4013
        %v4667 = vunpack.c.h.b16 %v4013
        %v4668 = vunpack.c.l.b16 %v4014
        %v4669 = vunpack.c.h.b16 %v4014
        %v4670 = vunpack.c.l.b16 %v4015
        %v4671 = vunpack.c.h.b16 %v4015
        %v4672 = vunpack.c.l.b16 %v4016
        %v4673 = vunpack.c.h.b16 %v4016
        %v4674 = vunpack.c.l.b16 %v4017
        %v4675 = vunpack.c.h.b16 %v4017
        %v4676 = vunpack.c.l.b16 %v4018
        %v4677 = vunpack.c.h.b16 %v4018
        %v4678 = vunpack.c.l.b16 %v4019
        %v4679 = vunpack.c.h.b16 %v4019
        %v4680 = vunpack.c.l.b16 %v4020
        %v4681 = vunpack.c.h.b16 %v4020
        %v4682 = vunpack.c.l.b16 %v4021
        %v4683 = vunpack.c.h.b16 %v4021
        %v4684 = vunpack.c.l.b16 %v4022
        %v4685 = vunpack.c.h.b16 %v4022
        %v4686 = vunpack.c.l.b16 %v4023
        %v4687 = vunpack.c.h.b16 %v4023
        %v4688 = vunpack.c.l.b16 %v4024
        %v4689 = vunpack.c.h.b16 %v4024
        %v4690 = vunpack.c.l.b16 %v4025
        %v4691 = vunpack.c.h.b16 %v4025
        %v4692 = vunpack.c.l.b16 %v4026
        %v4693 = vunpack.c.h.b16 %v4026
        %v4694 = vunpack.c.l.b16 %v4027
        %v4695 = vunpack.c.h.b16 %v4027
        %v4696 = vunpack.c.l.b16 %v4028
        %v4697 = vunpack.c.h.b16 %v4028
        %v4698 = vunpack.c.l.b16 %v4029
        %v4699 = vunpack.c.h.b16 %v4029
        %v4700 = vunpack.c.l.b16 %v4030
        %v4701 = vunpack.c.h.b16 %v4030
        %v4702 = vunpack.c.l.b16 %v4031
        %v4703 = vunpack.c.h.b16 %v4031
        %v4704 = vunpack.c.l.b16 %v4032
        %v4705 = vunpack.c.h.b16 %v4032
        %v4706 = vunpack.c.l.b16 %v4033
        %v4707 = vunpack.c.h.b16 %v4033
        %v4708 = vunpack.c.l.b16 %v4034
        %v4709 = vunpack.c.h.b16 %v4034
        %v4710 = vunpack.c.l.b16 %v4035
        %v4711 = vunpack.c.h.b16 %v4035
        %v4712 = vunpack.c.l.b16 %v4036
        %v4713 = vunpack.c.h.b16 %v4036
        %v4714 = vunpack.c.l.b16 %v4037
        %v4715 = vunpack.c.h.b16 %v4037
        %v4716 = vunpack.c.l.b16 %v4038
        %v4717 = vunpack.c.h.b16 %v4038
        %v4718 = vunpack.c.l.b16 %v4039
        %v4719 = vunpack.c.h.b16 %v4039
        %v4720 = vunpack.c.l.b16 %v4040
        %v4721 = vunpack.c.h.b16 %v4040
        %v4722 = vunpack.c.l.b16 %v4041
        %v4723 = vunpack.c.h.b16 %v4041
        %v4724 = vunpack.c.l.b16 %v4042
        %v4725 = vunpack.c.h.b16 %v4042
        %v4726 = vunpack.c.l.b16 %v4043
        %v4727 = vunpack.c.h.b16 %v4043
        %v4728 = vunpack.c.l.b16 %v4044
        %v4729 = vunpack.c.h.b16 %v4044
        %v4730 = vunpack.c.l.b16 %v4045
        %v4731 = vunpack.c.h.b16 %v4045
        %v4732 = vunpack.c.l.b16 %v4046
        %v4733 = vunpack.c.h.b16 %v4046
        %v4734 = vunpack.c.l.b16 %v4047
        %v4735 = vunpack.c.h.b16 %v4047
        %v4736 = vunpack.c.l.b16 %v4048
        %v4737 = vunpack.c.h.b16 %v4048
        %v4738 = vunpack.c.l.b16 %v4049
        %v4739 = vunpack.c.h.b16 %v4049
        %v4740 = vunpack.c.l.b16 %v4050
        %v4741 = vunpack.c.h.b16 %v4050
        %v4742 = vunpack.c.l.b16 %v4051
        %v4743 = vunpack.c.h.b16 %v4051
        %v4744 = vunpack.c.l.b16 %v4052
        %v4745 = vunpack.c.h.b16 %v4052
        %v4746 = vunpack.c.l.b16 %v4053
        %v4747 = vunpack.c.h.b16 %v4053
        %v4748 = vunpack.c.l.b16 %v4054
        %v4749 = vunpack.c.h.b16 %v4054
        %v4750 = vunpack.c.l.b16 %v4055
        %v4751 = vunpack.c.h.b16 %v4055
        %v4752 = vunpack.c.l.b16 %v4056
        %v4753 = vunpack.c.h.b16 %v4056
        %v4754 = vunpack.c.l.b16 %v4057
        %v4755 = vunpack.c.h.b16 %v4057
        %v4756 = vunpack.c.l.b16 %v4058
        %v4757 = vunpack.c.h.b16 %v4058
        %v4758 = vunpack.c.l.b16 %v4059
        %v4759 = vunpack.c.h.b16 %v4059
        %v4760 = vunpack.c.l.b16 %v4060
        %v4761 = vunpack.c.h.b16 %v4060
        %v4762 = vunpack.c.l.b16 %v4061
        %v4763 = vunpack.c.h.b16 %v4061
        %v4764 = vunpack.c.l.b16 %v4062
        %v4765 = vunpack.c.h.b16 %v4062
        %v4766 = vunpack.c.l.b16 %v4063
        %v4767 = vunpack.c.h.b16 %v4063
        %v4768 = vunpack.c.l.b16 %v4064
        %v4769 = vunpack.c.h.b16 %v4064
        %v4770 = vunpack.c.l.b16 %v4065
        %v4771 = vunpack.c.h.b16 %v4065
        %v4772 = vunpack.c.l.b16 %v4066
        %v4773 = vunpack.c.h.b16 %v4066
        %v4774 = vunpack.c.l.b16 %v4067
        %v4775 = vunpack.c.h.b16 %v4067
        %v4776 = vunpack.c.l.b16 %v4068
        %v4777 = vunpack.c.h.b16 %v4068
        %v4778 = vunpack.c.l.b16 %v4069
        %v4779 = vunpack.c.h.b16 %v4069
        %v4780 = vunpack.c.l.b16 %v4070
        %v4781 = vunpack.c.h.b16 %v4070
        %v4782 = vunpack.c.l.b16 %v4071
        %v4783 = vunpack.c.h.b16 %v4071
        %v4784 = vunpack.c.l.b16 %v4072
        %v4785 = vunpack.c.h.b16 %v4072
        %v4786 = vunpack.c.l.b16 %v4073
        %v4787 = vunpack.c.h.b16 %v4073
        %v4788 = vunpack.c.l.b16 %v4074
        %v4789 = vunpack.c.h.b16 %v4074
        %v4790 = vunpack.c.l.b16 %v4075
        %v4791 = vunpack.c.h.b16 %v4075
        %v4792 = vunpack.c.l.b16 %v4076
        %v4793 = vunpack.c.h.b16 %v4076
        %v4794 = vunpack.c.l.b16 %v4077
        %v4795 = vunpack.c.h.b16 %v4077
        %v4796 = vunpack.c.l.b16 %v4078
        %v4797 = vunpack.c.h.b16 %v4078
        %v4798 = vunpack.c.l.b16 %v4079
        %v4799 = vunpack.c.h.b16 %v4079
        %v4800 = vunpack.c.l.b16 %v4080
        %v4801 = vunpack.c.h.b16 %v4080
        %v4802 = vunpack.c.l.b16 %v4081
        %v4803 = vunpack.c.h.b16 %v4081
        %v4804 = vunpack.c.l.b16 %v4082
        %v4805 = vunpack.c.h.b16 %v4082
        %v4806 = vunpack.c.l.b16 %v4083
        %v4807 = vunpack.c.h.b16 %v4083
        %v4808 = vunpack.c.l.b16 %v4084
        %v4809 = vunpack.c.h.b16 %v4084
        %v4810 = vunpack.c.l.b16 %v4085
        %v4811 = vunpack.c.h.b16 %v4085
        %v4812 = vunpack.c.l.b16 %v4086
        %v4813 = vunpack.c.h.b16 %v4086
        %v4814 = vunpack.c.l.b16 %v4087
        %v4815 = vunpack.c.h.b16 %v4087
        %v4816 = vunpack.c.l.b16 %v4088
        %v4817 = vunpack.c.h.b16 %v4088
        %v4818 = vunpack.c.l.b16 %v4089
        %v4819 = vunpack.c.h.b16 %v4089
        %v4820 = vunpack.c.l.b16 %v4090
        %v4821 = vunpack.c.h.b16 %v4090
        %v4822 = vunpack.c.l.b16 %v4091
        %v4823 = vunpack.c.h.b16 %v4091
        %v4824 = vunpack.c.l.b16 %v4092
        %v4825 = vunpack.c.h.b16 %v4092
        %v4826 = vunpack.c.l.b16 %v4093
        %v4827 = vunpack.c.h.b16 %v4093
        %v4828 = vunpack.c.l.b16 %v4094
        %v4829 = vunpack.c.h.b16 %v4094
        %v4830 = vunpack.c.l.b16 %v4095
        %v4831 = vunpack.c.h.b16 %v4095
        %v4832 = vunpack.c.l.b16 %v4096
        %v4833 = vunpack.c.h.b16 %v4096
        %v4834 = vunpack.c.l.b16 %v4097
        %v4835 = vunpack.c.h.b16 %v4097
        %v4836 = vunpack.c.l.b16 %v4098
        %v4837 = vunpack.c.h.b16 %v4098
        %v4838 = vunpack.c.l.b16 %v4099
        %v4839 = vunpack.c.h.b16 %v4099
        %v4840 = vunpack.c.l.b16 %v4100
        %v4841 = vunpack.c.h.b16 %v4100
        %v4842 = vunpack.c.l.b16 %v4101
        %v4843 = vunpack.c.h.b16 %v4101
        %v4844 = vunpack.c.l.b16 %v4102
        %v4845 = vunpack.c.h.b16 %v4102
        %v4846 = vunpack.c.l.b16 %v4103
        %v4847 = vunpack.c.h.b16 %v4103
        %v4848 = vunpack.c.l.b16 %v4104
        %v4849 = vunpack.c.h.b16 %v4104
        %v4850 = vunpack.c.l.b16 %v4105
        %v4851 = vunpack.c.h.b16 %v4105
        %v4852 = vunpack.c.l.b16 %v4106
        %v4853 = vunpack.c.h.b16 %v4106
        %v4854 = vunpack.c.l.b16 %v4107
        %v4855 = vunpack.c.h.b16 %v4107
        %v4856 = vunpack.c.l.b16 %v4108
        %v4857 = vunpack.c.h.b16 %v4108
        %v4858 = vunpack.c.l.b16 %v4109
        %v4859 = vunpack.c.h.b16 %v4109
        %v4860 = vunpack.c.l.b16 %v4110
        %v4861 = vunpack.c.h.b16 %v4110
        %v4862 = vunpack.c.l.b16 %v4111
        %v4863 = vunpack.c.h.b16 %v4111
        %v4864 = vunpack.c.l.b16 %v4112
        %v4865 = vunpack.c.h.b16 %v4112
        %v4866 = vunpack.c.l.b16 %v4113
        %v4867 = vunpack.c.h.b16 %v4113
        %v4868 = vunpack.c.l.b16 %v4114
        %v4869 = vunpack.c.h.b16 %v4114
        %v4870 = vunpack.c.l.b16 %v4115
        %v4871 = vunpack.c.h.b16 %v4115
        %v4872 = vunpack.c.l.b16 %v4116
        %v4873 = vunpack.c.h.b16 %v4116
        %v4874 = vunpack.c.l.b16 %v4117
        %v4875 = vunpack.c.h.b16 %v4117
        %v4876 = vunpack.c.l.b16 %v4118
        %v4877 = vunpack.c.h.b16 %v4118
        %v4878 = vunpack.c.l.b16 %v4119
        %v4879 = vunpack.c.h.b16 %v4119
        %v4880 = vunpack.c.l.b16 %v4120
        %v4881 = vunpack.c.h.b16 %v4120
        %v4882 = vunpack.c.l.b16 %v4121
        %v4883 = vunpack.c.h.b16 %v4121
        %v4884 = vunpack.c.l.b16 %v4122
        %v4885 = vunpack.c.h.b16 %v4122
        %v4886 = vunpack.c.l.b16 %v4123
        %v4887 = vunpack.c.h.b16 %v4123
        %v4888 = vunpack.c.l.b16 %v4124
        %v4889 = vunpack.c.h.b16 %v4124
        %v4890 = vunpack.c.l.b16 %v4125
        %v4891 = vunpack.c.h.b16 %v4125
        %v4892 = vunpack.c.l.b16 %v4126
        %v4893 = vunpack.c.h.b16 %v4126
        %v4894 = vunpack.c.l.b16 %v4127
        %v4895 = vunpack.c.h.b16 %v4127
        %v4896 = vpack.c.b16 %v4386, %v4384
        %v4897 = vpack.c.b16 %v4387, %v4385
        %v4898 = vpack.c.b16 %v4390, %v4388
        %v4899 = vpack.c.b16 %v4391, %v4389
        %v4900 = vpack.c.b16 %v4394, %v4392
        %v4901 = vpack.c.b16 %v4395, %v4393
        %v4902 = vpack.c.b16 %v4398, %v4396
        %v4903 = vpack.c.b16 %v4399, %v4397
        %v4904 = vpack.c.b16 %v4402, %v4400
        %v4905 = vpack.c.b16 %v4403, %v4401
        %v4906 = vpack.c.b16 %v4406, %v4404
        %v4907 = vpack.c.b16 %v4407, %v4405
        %v4908 = vpack.c.b16 %v4410, %v4408
        %v4909 = vpack.c.b16 %v4411, %v4409
        %v4910 = vpack.c.b16 %v4414, %v4412
        %v4911 = vpack.c.b16 %v4415, %v4413
        %v4912 = vpack.c.b16 %v4418, %v4416
        %v4913 = vpack.c.b16 %v4419, %v4417
        %v4914 = vpack.c.b16 %v4422, %v4420
        %v4915 = vpack.c.b16 %v4423, %v4421
        %v4916 = vpack.c.b16 %v4426, %v4424
        %v4917 = vpack.c.b16 %v4427, %v4425
        %v4918 = vpack.c.b16 %v4430, %v4428
        %v4919 = vpack.c.b16 %v4431, %v4429
        %v4920 = vpack.c.b16 %v4434, %v4432
        %v4921 = vpack.c.b16 %v4435, %v4433
        %v4922 = vpack.c.b16 %v4438, %v4436
        %v4923 = vpack.c.b16 %v4439, %v4437
        %v4924 = vpack.c.b16 %v4442, %v4440
        %v4925 = vpack.c.b16 %v4443, %v4441
        %v4926 = vpack.c.b16 %v4446, %v4444
        %v4927 = vpack.c.b16 %v4447, %v4445
        %v4928 = vpack.c.b16 %v4450, %v4448
        %v4929 = vpack.c.b16 %v4451, %v4449
        %v4930 = vpack.c.b16 %v4454, %v4452
        %v4931 = vpack.c.b16 %v4455, %v4453
        %v4932 = vpack.c.b16 %v4458, %v4456
        %v4933 = vpack.c.b16 %v4459, %v4457
        %v4934 = vpack.c.b16 %v4462, %v4460
        %v4935 = vpack.c.b16 %v4463, %v4461
        %v4936 = vpack.c.b16 %v4466, %v4464
        %v4937 = vpack.c.b16 %v4467, %v4465
        %v4938 = vpack.c.b16 %v4470, %v4468
        %v4939 = vpack.c.b16 %v4471, %v4469
        %v4940 = vpack.c.b16 %v4474, %v4472
        %v4941 = vpack.c.b16 %v4475, %v4473
        %v4942 = vpack.c.b16 %v4478, %v4476
        %v4943 = vpack.c.b16 %v4479, %v4477
        %v4944 = vpack.c.b16 %v4482, %v4480
        %v4945 = vpack.c.b16 %v4483, %v4481
        %v4946 = vpack.c.b16 %v4486, %v4484
        %v4947 = vpack.c.b16 %v4487, %v4485
        %v4948 = vpack.c.b16 %v4490, %v4488
        %v4949 = vpack.c.b16 %v4491, %v4489
        %v4950 = vpack.c.b16 %v4494, %v4492
        %v4951 = vpack.c.b16 %v4495, %v4493
        %v4952 = vpack.c.b16 %v4498, %v4496
        %v4953 = vpack.c.b16 %v4499, %v4497
        %v4954 = vpack.c.b16 %v4502, %v4500
        %v4955 = vpack.c.b16 %v4503, %v4501
        %v4956 = vpack.c.b16 %v4506, %v4504
        %v4957 = vpack.c.b16 %v4507, %v4505
        %v4958 = vpack.c.b16 %v4510, %v4508
        %v4959 = vpack.c.b16 %v4511, %v4509
        %v4960 = vpack.c.b16 %v4514, %v4512
        %v4961 = vpack.c.b16 %v4515, %v4513
        %v4962 = vpack.c.b16 %v4518, %v4516
        %v4963 = vpack.c.b16 %v4519, %v4517
        %v4964 = vpack.c.b16 %v4522, %v4520
        %v4965 = vpack.c.b16 %v4523, %v4521
        %v4966 = vpack.c.b16 %v4526, %v4524
        %v4967 = vpack.c.b16 %v4527, %v4525
        %v4968 = vpack.c.b16 %v4530, %v4528
        %v4969 = vpack.c.b16 %v4531, %v4529
        %v4970 = vpack.c.b16 %v4534, %v4532
        %v4971 = vpack.c.b16 %v4535, %v4533
        %v4972 = vpack.c.b16 %v4538, %v4536
        %v4973 = vpack.c.b16 %v4539, %v4537
        %v4974 = vpack.c.b16 %v4542, %v4540
        %v4975 = vpack.c.b16 %v4543, %v4541
        %v4976 = vpack.c.b16 %v4546, %v4544
        %v4977 = vpack.c.b16 %v4547, %v4545
        %v4978 = vpack.c.b16 %v4550, %v4548
        %v4979 = vpack.c.b16 %v4551, %v4549
        %v4980 = vpack.c.b16 %v4554, %v4552
        %v4981 = vpack.c.b16 %v4555, %v4553
        %v4982 = vpack.c.b16 %v4558, %v4556
        %v4983 = vpack.c.b16 %v4559, %v4557
        %v4984 = vpack.c.b16 %v4562, %v4560
        %v4985 = vpack.c.b16 %v4563, %v4561
        %v4986 = vpack.c.b16 %v4566, %v4564
        %v4987 = vpack.c.b16 %v4567, %v4565
        %v4988 = vpack.c.b16 %v4570, %v4568
        %v4989 = vpack.c.b16 %v4571, %v4569
        %v4990 = vpack.c.b16 %v4574, %v4572
        %v4991 = vpack.c.b16 %v4575, %v4573
        %v4992 = vpack.c.b16 %v4578, %v4576
        %v4993 = vpack.c.b16 %v4579, %v4577
        %v4994 = vpack.c.b16 %v4582, %v4580
        %v4995 = vpack.c.b16 %v4583, %v4581
        %v4996 = vpack.c.b16 %v4586, %v4584
        %v4997 = vpack.c.b16 %v4587, %v4585
        %v4998 = vpack.c.b16 %v4590, %v4588
        %v4999 = vpack.c.b16 %v4591, %v4589
        %v5000 = vpack.c.b16 %v4594, %v4592
        %v5001 = vpack.c.b16 %v4595, %v4593
        %v5002 = vpack.c.b16 %v4598, %v4596
        %v5003 = vpack.c.b16 %v4599, %v4597
        %v5004 = vpack.c.b16 %v4602, %v4600
        %v5005 = vpack.c.b16 %v4603, %v4601
        %v5006 = vpack.c.b16 %v4606, %v4604
        %v5007 = vpack.c.b16 %v4607, %v4605
        %v5008 = vpack.c.b16 %v4610, %v4608
        %v5009 = vpack.c.b16 %v4611, %v4609
        %v5010 = vpack.c.b16 %v4614, %v4612
        %v5011 = vpack.c.b16 %v4615, %v4613
        %v5012 = vpack.c.b16 %v4618, %v4616
        %v5013 = vpack.c.b16 %v4619, %v4617
        %v5014 = vpack.c.b16 %v4622, %v4620
        %v5015 = vpack.c.b16 %v4623, %v4621
        %v5016 = vpack.c.b16 %v4626, %v4624
        %v5017 = vpack.c.b16 %v4627, %v4625
        %v5018 = vpack.c.b16 %v4630, %v4628
        %v5019 = vpack.c.b16 %v4631, %v4629
        %v5020 = vpack.c.b16 %v4634, %v4632
        %v5021 = vpack.c.b16 %v4635, %v4633
        %v5022 = vpack.c.b16 %v4638, %v4636
        %v5023 = vpack.c.b16 %v4639, %v4637
        %v5024 = vpack.c.b16 %v4642, %v4640
        %v5025 = vpack.c.b16 %v4643, %v4641
        %v5026 = vpack.c.b16 %v4646, %v4644
        %v5027 = vpack.c.b16 %v4647, %v4645
        %v5028 = vpack.c.b16 %v4650, %v4648
        %v5029 = vpack.c.b16 %v4651, %v4649
        %v5030 = vpack.c.b16 %v4654, %v4652
        %v5031 = vpack.c.b16 %v4655, %v4653
        %v5032 = vpack.c.b16 %v4658, %v4656
        %v5033 = vpack.c.b16 %v4659, %v4657
        %v5034 = vpack.c.b16 %v4662, %v4660
        %v5035 = vpack.c.b16 %v4663, %v4661
        %v5036 = vpack.c.b16 %v4666, %v4664
        %v5037 = vpack.c.b16 %v4667, %v4665
        %v5038 = vpack.c.b16 %v4670, %v4668
        %v5039 = vpack.c.b16 %v4671, %v4669
        %v5040 = vpack.c.b16 %v4674, %v4672
        %v5041 = vpack.c.b16 %v4675, %v4673
        %v5042 = vpack.c.b16 %v4678, %v4676
        %v5043 = vpack.c.b16 %v4679, %v4677
        %v5044 = vpack.c.b16 %v4682, %v4680
        %v5045 = vpack.c.b16 %v4683, %v4681
        %v5046 = vpack.c.b16 %v4686, %v4684
        %v5047 = vpack.c.b16 %v4687, %v4685
        %v5048 = vpack.c.b16 %v4690, %v4688
        %v5049 = vpack.c.b16 %v4691, %v4689
        %v5050 = vpack.c.b16 %v4694, %v4692
        %v5051 = vpack.c.b16 %v4695, %v4693
        %v5052 = vpack.c.b16 %v4698, %v4696
        %v5053 = vpack.c.b16 %v4699, %v4697
        %v5054 = vpack.c.b16 %v4702, %v4700
        %v5055 = vpack.c.b16 %v4703, %v4701
        %v5056 = vpack.c.b16 %v4706, %v4704
        %v5057 = vpack.c.b16 %v4707, %v4705
        %v5058 = vpack.c.b16 %v4710, %v4708
        %v5059 = vpack.c.b16 %v4711, %v4709
        %v5060 = vpack.c.b16 %v4714, %v4712
        %v5061 = vpack.c.b16 %v4715, %v4713
        %v5062 = vpack.c.b16 %v4718, %v4716
        %v5063 = vpack.c.b16 %v4719, %v4717
        %v5064 = vpack.c.b16 %v4722, %v4720
        %v5065 = vpack.c.b16 %v4723, %v4721
        %v5066 = vpack.c.b16 %v4726, %v4724
        %v5067 = vpack.c.b16 %v4727, %v4725
        %v5068 = vpack.c.b16 %v4730, %v4728
        %v5069 = vpack.c.b16 %v4731, %v4729
        %v5070 = vpack.c.b16 %v4734, %v4732
        %v5071 = vpack.c.b16 %v4735, %v4733
        %v5072 = vpack.c.b16 %v4738, %v4736
        %v5073 = vpack.c.b16 %v4739, %v4737
        %v5074 = vpack.c.b16 %v4742, %v4740
        %v5075 = vpack.c.b16 %v4743, %v4741
        %v5076 = vpack.c.b16 %v4746, %v4744
        %v5077 = vpack.c.b16 %v4747, %v4745
        %v5078 = vpack.c.b16 %v4750, %v4748
        %v5079 = vpack.c.b16 %v4751, %v4749
        %v5080 = vpack.c.b16 %v4754, %v4752
        %v5081 = vpack.c.b16 %v4755, %v4753
        %v5082 = vpack.c.b16 %v4758, %v4756
        %v5083 = vpack.c.b16 %v4759, %v4757
        %v5084 = vpack.c.b16 %v4762, %v4760
        %v5085 = vpack.c.b16 %v4763, %v4761
        %v5086 = vpack.c.b16 %v4766, %v4764
        %v5087 = vpack.c.b16 %v4767, %v4765
        %v5088 = vpack.c.b16 %v4770, %v4768
        %v5089 = vpack.c.b16 %v4771, %v4769
        %v5090 = vpack.c.b16 %v4774, %v4772
        %v5091 = vpack.c.b16 %v4775, %v4773
        %v5092 = vpack.c.b16 %v4778, %v4776
        %v5093 = vpack.c.b16 %v4779, %v4777
        %v5094 = vpack.c.b16 %v4782, %v4780
        %v5095 = vpack.c.b16 %v4783, %v4781
        %v5096 = vpack.c.b16 %v4786, %v4784
        %v5097 = vpack.c.b16 %v4787, %v4785
        %v5098 = vpack.c.b16 %v4790, %v4788
        %v5099 = vpack.c.b16 %v4791, %v4789
        %v5100 = vpack.c.b16 %v4794, %v4792
        %v5101 = vpack.c.b16 %v4795, %v4793
        %v5102 = vpack.c.b16 %v4798, %v4796
        %v5103 = vpack.c.b16 %v4799, %v4797
        %v5104 = vpack.c.b16 %v4802, %v4800
        %v5105 = vpack.c.b16 %v4803, %v4801
        %v5106 = vpack.c.b16 %v4806, %v4804
        %v5107 = vpack.c.b16 %v4807, %v4805
        %v5108 = vpack.c.b16 %v4810, %v4808
        %v5109 = vpack.c.b16 %v4811, %v4809
        %v5110 = vpack.c.b16 %v4814, %v4812
        %v5111 = vpack.c.b16 %v4815, %v4813
        %v5112 = vpack.c.b16 %v4818, %v4816
        %v5113 = vpack.c.b16 %v4819, %v4817
        %v5114 = vpack.c.b16 %v4822, %v4820
        %v5115 = vpack.c.b16 %v4823, %v4821
        %v5116 = vpack.c.b16 %v4826, %v4824
        %v5117 = vpack.c.b16 %v4827, %v4825
        %v5118 = vpack.c.b16 %v4830, %v4828
        %v5119 = vpack.c.b16 %v4831, %v4829
        %v5120 = vpack.c.b16 %v4834, %v4832
        %v5121 = vpack.c.b16 %v4835, %v4833
        %v5122 = vpack.c.b16 %v4838, %v4836
        %v5123 = vpack.c.b16 %v4839, %v4837
        %v5124 = vpack.c.b16 %v4842, %v4840
        %v5125 = vpack.c.b16 %v4843, %v4841
        %v5126 = vpack.c.b16 %v4846, %v4844
        %v5127 = vpack.c.b16 %v4847, %v4845
        %v5128 = vpack.c.b16 %v4850, %v4848
        %v5129 = vpack.c.b16 %v4851, %v4849
        %v5130 = vpack.c.b16 %v4854, %v4852
        %v5131 = vpack.c.b16 %v4855, %v4853
        %v5132 = vpack.c.b16 %v4858, %v4856
        %v5133 = vpack.c.b16 %v4859, %v4857
        %v5134 = vpack.c.b16 %v4862, %v4860
        %v5135 = vpack.c.b16 %v4863, %v4861
        %v5136 = vpack.c.b16 %v4866, %v4864
        %v5137 = vpack.c.b16 %v4867, %v4865
        %v5138 = vpack.c.b16 %v4870, %v4868
        %v5139 = vpack.c.b16 %v4871, %v4869
        %v5140 = vpack.c.b16 %v4874, %v4872
        %v5141 = vpack.c.b16 %v4875, %v4873
        %v5142 = vpack.c.b16 %v4878, %v4876
        %v5143 = vpack.c.b16 %v4879, %v4877
        %v5144 = vpack.c.b16 %v4882, %v4880
        %v5145 = vpack.c.b16 %v4883, %v4881
        %v5146 = vpack.c.b16 %v4886, %v4884
        %v5147 = vpack.c.b16 %v4887, %v4885
        %v5148 = vpack.c.b16 %v4890, %v4888
        %v5149 = vpack.c.b16 %v4891, %v4889
        %v5150 = vpack.c.b16 %v4894, %v4892
        %v5151 = vpack.c.b16 %v4895, %v4893
        %v5409 = vperm.slane %v3855, 0
        %v5410 = vperm.slane %v3855, 1
        %5413 = vmatpush.bf16.msra.mxu0 %v4910
        %5414 = vmatpush.bf16.msra.mxu0 %v4908
        %5415 = vmatpush.bf16.msra.mxu0 %v4906
        %5416 = vmatpush.bf16.msra.mxu0 %v4904
        %5417 = vmatpush.bf16.msra.mxu0 %v4902
        %5418 = vmatpush.bf16.msra.mxu0 %v4900
        %5419 = vmatpush.bf16.msra.mxu0 %v4898
        %5420 = vmatpush.bf16.msra.mxu0 %v4896
        %5421 = vmatmul.bf16.gmra.mxu0 %v3856
        %v5422 = vpop.f32.mrf.mxu0
        %v5423 = vadd.f32 %v5409, %v5422
        %v5424 = vpop.f32.mrf.mxu0
        %5425 = vdwg.mxu0
        %5426 = vmatpush.bf16.msra.mxu0 %v4926
        %5427 = vmatpush.bf16.msra.mxu0 %v4924
        %5428 = vmatpush.bf16.msra.mxu0 %v4922
        %5429 = vmatpush.bf16.msra.mxu0 %v4920
        %5430 = vmatpush.bf16.msra.mxu0 %v4918
        %5431 = vmatpush.bf16.msra.mxu0 %v4916
        %5432 = vmatpush.bf16.msra.mxu0 %v4914
        %5433 = vmatpush.bf16.msra.mxu0 %v4912
        %5434 = vmatmul.bf16.gmra.mxu0 %v3857
        %v5435 = vpop.f32.mrf.mxu0
        %v5436 = vadd.f32 %v5423, %v5435
        %v5437 = vpop.f32.mrf.mxu0
        %5438 = vdwg.mxu0
        %5439 = vmatpush.bf16.msra.mxu0 %v4942
        %5440 = vmatpush.bf16.msra.mxu0 %v4940
        %5441 = vmatpush.bf16.msra.mxu0 %v4938
        %5442 = vmatpush.bf16.msra.mxu0 %v4936
        %5443 = vmatpush.bf16.msra.mxu0 %v4934
        %5444 = vmatpush.bf16.msra.mxu0 %v4932
        %5445 = vmatpush.bf16.msra.mxu0 %v4930
        %5446 = vmatpush.bf16.msra.mxu0 %v4928
        %5447 = vmatmul.bf16.gmra.mxu0 %v3858
        %v5448 = vpop.f32.mrf.mxu0
        %v5449 = vadd.f32 %v5436, %v5448
        %v5450 = vpop.f32.mrf.mxu0
        %5451 = vdwg.mxu0
        %5452 = vmatpush.bf16.msra.mxu0 %v4958
        %5453 = vmatpush.bf16.msra.mxu0 %v4956
        %5454 = vmatpush.bf16.msra.mxu0 %v4954
        %5455 = vmatpush.bf16.msra.mxu0 %v4952
        %5456 = vmatpush.bf16.msra.mxu0 %v4950
        %5457 = vmatpush.bf16.msra.mxu0 %v4948
        %5458 = vmatpush.bf16.msra.mxu0 %v4946
        %5459 = vmatpush.bf16.msra.mxu0 %v4944
        %5460 = vmatmul.bf16.gmra.mxu0 %v3859
        %v5461 = vpop.f32.mrf.mxu0
        %v5462 = vadd.f32 %v5449, %v5461
        %v5463 = vpop.f32.mrf.mxu0
        %5464 = vdwg.mxu0
        %5465 = vmatpush.bf16.msra.mxu0 %v4974
        %5466 = vmatpush.bf16.msra.mxu0 %v4972
        %5467 = vmatpush.bf16.msra.mxu0 %v4970
        %5468 = vmatpush.bf16.msra.mxu0 %v4968
        %5469 = vmatpush.bf16.msra.mxu0 %v4966
        %5470 = vmatpush.bf16.msra.mxu0 %v4964
        %5471 = vmatpush.bf16.msra.mxu0 %v4962
        %5472 = vmatpush.bf16.msra.mxu0 %v4960
        %5473 = vmatmul.bf16.gmra.mxu0 %v3860
        %v5474 = vpop.f32.mrf.mxu0
        %v5475 = vadd.f32 %v5462, %v5474
        %v5476 = vpop.f32.mrf.mxu0
        %5477 = vdwg.mxu0
        %5478 = vmatpush.bf16.msra.mxu0 %v4990
        %5479 = vmatpush.bf16.msra.mxu0 %v4988
        %5480 = vmatpush.bf16.msra.mxu0 %v4986
        %5481 = vmatpush.bf16.msra.mxu0 %v4984
        %5482 = vmatpush.bf16.msra.mxu0 %v4982
        %5483 = vmatpush.bf16.msra.mxu0 %v4980
        %5484 = vmatpush.bf16.msra.mxu0 %v4978
        %5485 = vmatpush.bf16.msra.mxu0 %v4976
        %5486 = vmatmul.bf16.gmra.mxu0 %v3861
        %v5487 = vpop.f32.mrf.mxu0
        %v5488 = vadd.f32 %v5475, %v5487
        %v5489 = vpop.f32.mrf.mxu0
        %5490 = vdwg.mxu0
        %5491 = vmatpush.bf16.msra.mxu0 %v5006
        %5492 = vmatpush.bf16.msra.mxu0 %v5004
        %5493 = vmatpush.bf16.msra.mxu0 %v5002
        %5494 = vmatpush.bf16.msra.mxu0 %v5000
        %5495 = vmatpush.bf16.msra.mxu0 %v4998
        %5496 = vmatpush.bf16.msra.mxu0 %v4996
        %5497 = vmatpush.bf16.msra.mxu0 %v4994
        %5498 = vmatpush.bf16.msra.mxu0 %v4992
        %5499 = vmatmul.bf16.gmra.mxu0 %v3862
        %v5500 = vpop.f32.mrf.mxu0
        %v5501 = vadd.f32 %v5488, %v5500
        %v5502 = vpop.f32.mrf.mxu0
        %5503 = vdwg.mxu0
        %5504 = vmatpush.bf16.msra.mxu0 %v5022
        %5505 = vmatpush.bf16.msra.mxu0 %v5020
        %5506 = vmatpush.bf16.msra.mxu0 %v5018
        %5507 = vmatpush.bf16.msra.mxu0 %v5016
        %5508 = vmatpush.bf16.msra.mxu0 %v5014
        %5509 = vmatpush.bf16.msra.mxu0 %v5012
        %5510 = vmatpush.bf16.msra.mxu0 %v5010
        %5511 = vmatpush.bf16.msra.mxu0 %v5008
        %5512 = vmatmul.bf16.gmra.mxu0 %v3863
        %v5513 = vpop.f32.mrf.mxu0
        %v5514 = vadd.f32 %v5501, %v5513
        %v5515 = vpop.f32.mrf.mxu0
        %5516 = vdwg.mxu0
        %5517 = vmatpush.bf16.msra.mxu0 %v5038
        %5518 = vmatpush.bf16.msra.mxu0 %v5036
        %5519 = vmatpush.bf16.msra.mxu0 %v5034
        %5520 = vmatpush.bf16.msra.mxu0 %v5032
        %5521 = vmatpush.bf16.msra.mxu0 %v5030
        %5522 = vmatpush.bf16.msra.mxu0 %v5028
        %5523 = vmatpush.bf16.msra.mxu0 %v5026
        %5524 = vmatpush.bf16.msra.mxu0 %v5024
        %5525 = vmatmul.bf16.gmra.mxu0 %v3864
        %v5526 = vpop.f32.mrf.mxu0
        %v5527 = vadd.f32 %v5514, %v5526
        %v5528 = vpop.f32.mrf.mxu0
        %5529 = vdwg.mxu0
        %5530 = vmatpush.bf16.msra.mxu0 %v5054
        %5531 = vmatpush.bf16.msra.mxu0 %v5052
        %5532 = vmatpush.bf16.msra.mxu0 %v5050
        %5533 = vmatpush.bf16.msra.mxu0 %v5048
        %5534 = vmatpush.bf16.msra.mxu0 %v5046
        %5535 = vmatpush.bf16.msra.mxu0 %v5044
        %5536 = vmatpush.bf16.msra.mxu0 %v5042
        %5537 = vmatpush.bf16.msra.mxu0 %v5040
        %5538 = vmatmul.bf16.gmra.mxu0 %v3865
        %v5539 = vpop.f32.mrf.mxu0
        %v5540 = vadd.f32 %v5527, %v5539
        %v5541 = vpop.f32.mrf.mxu0
        %5542 = vdwg.mxu0
        %5543 = vmatpush.bf16.msra.mxu0 %v5070
        %5544 = vmatpush.bf16.msra.mxu0 %v5068
        %5545 = vmatpush.bf16.msra.mxu0 %v5066
        %5546 = vmatpush.bf16.msra.mxu0 %v5064
        %5547 = vmatpush.bf16.msra.mxu0 %v5062
        %5548 = vmatpush.bf16.msra.mxu0 %v5060
        %5549 = vmatpush.bf16.msra.mxu0 %v5058
        %5550 = vmatpush.bf16.msra.mxu0 %v5056
        %5551 = vmatmul.bf16.gmra.mxu0 %v3866
        %v5552 = vpop.f32.mrf.mxu0
        %v5553 = vadd.f32 %v5540, %v5552
        %v5554 = vpop.f32.mrf.mxu0
        %5555 = vdwg.mxu0
        %5556 = vmatpush.bf16.msra.mxu0 %v5086
        %5557 = vmatpush.bf16.msra.mxu0 %v5084
        %5558 = vmatpush.bf16.msra.mxu0 %v5082
        %5559 = vmatpush.bf16.msra.mxu0 %v5080
        %5560 = vmatpush.bf16.msra.mxu0 %v5078
        %5561 = vmatpush.bf16.msra.mxu0 %v5076
        %5562 = vmatpush.bf16.msra.mxu0 %v5074
        %5563 = vmatpush.bf16.msra.mxu0 %v5072
        %5564 = vmatmul.bf16.gmra.mxu0 %v3867
        %v5565 = vpop.f32.mrf.mxu0
        %v5566 = vadd.f32 %v5553, %v5565
        %v5567 = vpop.f32.mrf.mxu0
        %5568 = vdwg.mxu0
        %5569 = vmatpush.bf16.msra.mxu0 %v5102
        %5570 = vmatpush.bf16.msra.mxu0 %v5100
        %5571 = vmatpush.bf16.msra.mxu0 %v5098
        %5572 = vmatpush.bf16.msra.mxu0 %v5096
        %5573 = vmatpush.bf16.msra.mxu0 %v5094
        %5574 = vmatpush.bf16.msra.mxu0 %v5092
        %5575 = vmatpush.bf16.msra.mxu0 %v5090
        %5576 = vmatpush.bf16.msra.mxu0 %v5088
        %5577 = vmatmul.bf16.gmra.mxu0 %v3868
        %v5578 = vpop.f32.mrf.mxu0
        %v5579 = vadd.f32 %v5566, %v5578
        %v5580 = vpop.f32.mrf.mxu0
        %5581 = vdwg.mxu0
        %5582 = vmatpush.bf16.msra.mxu0 %v5118
        %5583 = vmatpush.bf16.msra.mxu0 %v5116
        %5584 = vmatpush.bf16.msra.mxu0 %v5114
        %5585 = vmatpush.bf16.msra.mxu0 %v5112
        %5586 = vmatpush.bf16.msra.mxu0 %v5110
        %5587 = vmatpush.bf16.msra.mxu0 %v5108
        %5588 = vmatpush.bf16.msra.mxu0 %v5106
        %5589 = vmatpush.bf16.msra.mxu0 %v5104
        %5590 = vmatmul.bf16.gmra.mxu0 %v3869
        %v5591 = vpop.f32.mrf.mxu0
        %v5592 = vadd.f32 %v5579, %v5591
        %v5593 = vpop.f32.mrf.mxu0
        %5594 = vdwg.mxu0
        %5595 = vmatpush.bf16.msra.mxu0 %v5134
        %5596 = vmatpush.bf16.msra.mxu0 %v5132
        %5597 = vmatpush.bf16.msra.mxu0 %v5130
        %5598 = vmatpush.bf16.msra.mxu0 %v5128
        %5599 = vmatpush.bf16.msra.mxu0 %v5126
        %5600 = vmatpush.bf16.msra.mxu0 %v5124
        %5601 = vmatpush.bf16.msra.mxu0 %v5122
        %5602 = vmatpush.bf16.msra.mxu0 %v5120
        %5603 = vmatmul.bf16.gmra.mxu0 %v3870
        %v5604 = vpop.f32.mrf.mxu0
        %v5605 = vadd.f32 %v5592, %v5604
        %v5606 = vpop.f32.mrf.mxu0
        %5607 = vdwg.mxu0
        %5608 = vmatpush.bf16.msra.mxu0 %v5150
        %5609 = vmatpush.bf16.msra.mxu0 %v5148
        %5610 = vmatpush.bf16.msra.mxu0 %v5146
        %5611 = vmatpush.bf16.msra.mxu0 %v5144
        %5612 = vmatpush.bf16.msra.mxu0 %v5142
        %5613 = vmatpush.bf16.msra.mxu0 %v5140
        %5614 = vmatpush.bf16.msra.mxu0 %v5138
        %5615 = vmatpush.bf16.msra.mxu0 %v5136
        %5616 = vmatmul.bf16.gmra.mxu0 %v3871
        %v5617 = vpop.f32.mrf.mxu0
        %v5618 = vadd.f32 %v5605, %v5617
        %v5619 = vpop.f32.mrf.mxu0
        %5620 = vdwg.mxu0
        %5621 = vmatpush.bf16.msra.mxu0 %v4911
        %5622 = vmatpush.bf16.msra.mxu0 %v4909
        %5623 = vmatpush.bf16.msra.mxu0 %v4907
        %5624 = vmatpush.bf16.msra.mxu0 %v4905
        %5625 = vmatpush.bf16.msra.mxu0 %v4903
        %5626 = vmatpush.bf16.msra.mxu0 %v4901
        %5627 = vmatpush.bf16.msra.mxu0 %v4899
        %5628 = vmatpush.bf16.msra.mxu0 %v4897
        %5629 = vmatmul.bf16.gmra.mxu0 %v3856
        %v5630 = vpop.f32.mrf.mxu0
        %v5631 = vadd.f32 %v5410, %v5630
        %v5632 = vpop.f32.mrf.mxu0
        %5633 = vdwg.mxu0
        %5634 = vmatpush.bf16.msra.mxu0 %v4927
        %5635 = vmatpush.bf16.msra.mxu0 %v4925
        %5636 = vmatpush.bf16.msra.mxu0 %v4923
        %5637 = vmatpush.bf16.msra.mxu0 %v4921
        %5638 = vmatpush.bf16.msra.mxu0 %v4919
        %5639 = vmatpush.bf16.msra.mxu0 %v4917
        %5640 = vmatpush.bf16.msra.mxu0 %v4915
        %5641 = vmatpush.bf16.msra.mxu0 %v4913
        %5642 = vmatmul.bf16.gmra.mxu0 %v3857
        %v5643 = vpop.f32.mrf.mxu0
        %v5644 = vadd.f32 %v5631, %v5643
        %v5645 = vpop.f32.mrf.mxu0
        %5646 = vdwg.mxu0
        %5647 = vmatpush.bf16.msra.mxu0 %v4943
        %5648 = vmatpush.bf16.msra.mxu0 %v4941
        %5649 = vmatpush.bf16.msra.mxu0 %v4939
        %5650 = vmatpush.bf16.msra.mxu0 %v4937
        %5651 = vmatpush.bf16.msra.mxu0 %v4935
        %5652 = vmatpush.bf16.msra.mxu0 %v4933
        %5653 = vmatpush.bf16.msra.mxu0 %v4931
        %5654 = vmatpush.bf16.msra.mxu0 %v4929
        %5655 = vmatmul.bf16.gmra.mxu0 %v3858
        %v5656 = vpop.f32.mrf.mxu0
        %v5657 = vadd.f32 %v5644, %v5656
        %v5658 = vpop.f32.mrf.mxu0
        %5659 = vdwg.mxu0
        %5660 = vmatpush.bf16.msra.mxu0 %v4959
        %5661 = vmatpush.bf16.msra.mxu0 %v4957
        %5662 = vmatpush.bf16.msra.mxu0 %v4955
        %5663 = vmatpush.bf16.msra.mxu0 %v4953
        %5664 = vmatpush.bf16.msra.mxu0 %v4951
        %5665 = vmatpush.bf16.msra.mxu0 %v4949
        %5666 = vmatpush.bf16.msra.mxu0 %v4947
        %5667 = vmatpush.bf16.msra.mxu0 %v4945
        %5668 = vmatmul.bf16.gmra.mxu0 %v3859
        %v5669 = vpop.f32.mrf.mxu0
        %v5670 = vadd.f32 %v5657, %v5669
        %v5671 = vpop.f32.mrf.mxu0
        %5672 = vdwg.mxu0
        %5673 = vmatpush.bf16.msra.mxu0 %v4975
        %5674 = vmatpush.bf16.msra.mxu0 %v4973
        %5675 = vmatpush.bf16.msra.mxu0 %v4971
        %5676 = vmatpush.bf16.msra.mxu0 %v4969
        %5677 = vmatpush.bf16.msra.mxu0 %v4967
        %5678 = vmatpush.bf16.msra.mxu0 %v4965
        %5679 = vmatpush.bf16.msra.mxu0 %v4963
        %5680 = vmatpush.bf16.msra.mxu0 %v4961
        %5681 = vmatmul.bf16.gmra.mxu0 %v3860
        %v5682 = vpop.f32.mrf.mxu0
        %v5683 = vadd.f32 %v5670, %v5682
        %v5684 = vpop.f32.mrf.mxu0
        %5685 = vdwg.mxu0
        %5686 = vmatpush.bf16.msra.mxu0 %v4991
        %5687 = vmatpush.bf16.msra.mxu0 %v4989
        %5688 = vmatpush.bf16.msra.mxu0 %v4987
        %5689 = vmatpush.bf16.msra.mxu0 %v4985
        %5690 = vmatpush.bf16.msra.mxu0 %v4983
        %5691 = vmatpush.bf16.msra.mxu0 %v4981
        %5692 = vmatpush.bf16.msra.mxu0 %v4979
        %5693 = vmatpush.bf16.msra.mxu0 %v4977
        %5694 = vmatmul.bf16.gmra.mxu0 %v3861
        %v5695 = vpop.f32.mrf.mxu0
        %v5696 = vadd.f32 %v5683, %v5695
        %v5697 = vpop.f32.mrf.mxu0
        %5698 = vdwg.mxu0
        %5699 = vmatpush.bf16.msra.mxu0 %v5007
        %5700 = vmatpush.bf16.msra.mxu0 %v5005
        %5701 = vmatpush.bf16.msra.mxu0 %v5003
        %5702 = vmatpush.bf16.msra.mxu0 %v5001
        %5703 = vmatpush.bf16.msra.mxu0 %v4999
        %5704 = vmatpush.bf16.msra.mxu0 %v4997
        %5705 = vmatpush.bf16.msra.mxu0 %v4995
        %5706 = vmatpush.bf16.msra.mxu0 %v4993
        %5707 = vmatmul.bf16.gmra.mxu0 %v3862
        %v5708 = vpop.f32.mrf.mxu0
        %v5709 = vadd.f32 %v5696, %v5708
        %v5710 = vpop.f32.mrf.mxu0
        %5711 = vdwg.mxu0
        %5712 = vmatpush.bf16.msra.mxu0 %v5023
        %5713 = vmatpush.bf16.msra.mxu0 %v5021
        %5714 = vmatpush.bf16.msra.mxu0 %v5019
        %5715 = vmatpush.bf16.msra.mxu0 %v5017
        %5716 = vmatpush.bf16.msra.mxu0 %v5015
        %5717 = vmatpush.bf16.msra.mxu0 %v5013
        %5718 = vmatpush.bf16.msra.mxu0 %v5011
        %5719 = vmatpush.bf16.msra.mxu0 %v5009
        %5720 = vmatmul.bf16.gmra.mxu0 %v3863
        %v5721 = vpop.f32.mrf.mxu0
        %v5722 = vadd.f32 %v5709, %v5721
        %v5723 = vpop.f32.mrf.mxu0
        %5724 = vdwg.mxu0
        %5725 = vmatpush.bf16.msra.mxu0 %v5039
        %5726 = vmatpush.bf16.msra.mxu0 %v5037
        %5727 = vmatpush.bf16.msra.mxu0 %v5035
        %5728 = vmatpush.bf16.msra.mxu0 %v5033
        %5729 = vmatpush.bf16.msra.mxu0 %v5031
        %5730 = vmatpush.bf16.msra.mxu0 %v5029
        %5731 = vmatpush.bf16.msra.mxu0 %v5027
        %5732 = vmatpush.bf16.msra.mxu0 %v5025
        %5733 = vmatmul.bf16.gmra.mxu0 %v3864
        %v5734 = vpop.f32.mrf.mxu0
        %v5735 = vadd.f32 %v5722, %v5734
        %v5736 = vpop.f32.mrf.mxu0
        %5737 = vdwg.mxu0
        %5738 = vmatpush.bf16.msra.mxu0 %v5055
        %5739 = vmatpush.bf16.msra.mxu0 %v5053
        %5740 = vmatpush.bf16.msra.mxu0 %v5051
        %5741 = vmatpush.bf16.msra.mxu0 %v5049
        %5742 = vmatpush.bf16.msra.mxu0 %v5047
        %5743 = vmatpush.bf16.msra.mxu0 %v5045
        %5744 = vmatpush.bf16.msra.mxu0 %v5043
        %5745 = vmatpush.bf16.msra.mxu0 %v5041
        %5746 = vmatmul.bf16.gmra.mxu0 %v3865
        %v5747 = vpop.f32.mrf.mxu0
        %v5748 = vadd.f32 %v5735, %v5747
        %v5749 = vpop.f32.mrf.mxu0
        %5750 = vdwg.mxu0
        %5751 = vmatpush.bf16.msra.mxu0 %v5071
        %5752 = vmatpush.bf16.msra.mxu0 %v5069
        %5753 = vmatpush.bf16.msra.mxu0 %v5067
        %5754 = vmatpush.bf16.msra.mxu0 %v5065
        %5755 = vmatpush.bf16.msra.mxu0 %v5063
        %5756 = vmatpush.bf16.msra.mxu0 %v5061
        %5757 = vmatpush.bf16.msra.mxu0 %v5059
        %5758 = vmatpush.bf16.msra.mxu0 %v5057
        %5759 = vmatmul.bf16.gmra.mxu0 %v3866
        %v5760 = vpop.f32.mrf.mxu0
        %v5761 = vadd.f32 %v5748, %v5760
        %v5762 = vpop.f32.mrf.mxu0
        %5763 = vdwg.mxu0
        %5764 = vmatpush.bf16.msra.mxu0 %v5087
        %5765 = vmatpush.bf16.msra.mxu0 %v5085
        %5766 = vmatpush.bf16.msra.mxu0 %v5083
        %5767 = vmatpush.bf16.msra.mxu0 %v5081
        %5768 = vmatpush.bf16.msra.mxu0 %v5079
        %5769 = vmatpush.bf16.msra.mxu0 %v5077
        %5770 = vmatpush.bf16.msra.mxu0 %v5075
        %5771 = vmatpush.bf16.msra.mxu0 %v5073
        %5772 = vmatmul.bf16.gmra.mxu0 %v3867
        %v5773 = vpop.f32.mrf.mxu0
        %v5774 = vadd.f32 %v5761, %v5773
        %v5775 = vpop.f32.mrf.mxu0
        %5776 = vdwg.mxu0
        %5777 = vmatpush.bf16.msra.mxu0 %v5103
        %5778 = vmatpush.bf16.msra.mxu0 %v5101
        %5779 = vmatpush.bf16.msra.mxu0 %v5099
        %5780 = vmatpush.bf16.msra.mxu0 %v5097
        %5781 = vmatpush.bf16.msra.mxu0 %v5095
        %5782 = vmatpush.bf16.msra.mxu0 %v5093
        %5783 = vmatpush.bf16.msra.mxu0 %v5091
        %5784 = vmatpush.bf16.msra.mxu0 %v5089
        %5785 = vmatmul.bf16.gmra.mxu0 %v3868
        %v5786 = vpop.f32.mrf.mxu0
        %v5787 = vadd.f32 %v5774, %v5786
        %v5788 = vpop.f32.mrf.mxu0
        %5789 = vdwg.mxu0
        %5790 = vmatpush.bf16.msra.mxu0 %v5119
        %5791 = vmatpush.bf16.msra.mxu0 %v5117
        %5792 = vmatpush.bf16.msra.mxu0 %v5115
        %5793 = vmatpush.bf16.msra.mxu0 %v5113
        %5794 = vmatpush.bf16.msra.mxu0 %v5111
        %5795 = vmatpush.bf16.msra.mxu0 %v5109
        %5796 = vmatpush.bf16.msra.mxu0 %v5107
        %5797 = vmatpush.bf16.msra.mxu0 %v5105
        %5798 = vmatmul.bf16.gmra.mxu0 %v3869
        %v5799 = vpop.f32.mrf.mxu0
        %v5800 = vadd.f32 %v5787, %v5799
        %v5801 = vpop.f32.mrf.mxu0
        %5802 = vdwg.mxu0
        %5803 = vmatpush.bf16.msra.mxu0 %v5135
        %5804 = vmatpush.bf16.msra.mxu0 %v5133
        %5805 = vmatpush.bf16.msra.mxu0 %v5131
        %5806 = vmatpush.bf16.msra.mxu0 %v5129
        %5807 = vmatpush.bf16.msra.mxu0 %v5127
        %5808 = vmatpush.bf16.msra.mxu0 %v5125
        %5809 = vmatpush.bf16.msra.mxu0 %v5123
        %5810 = vmatpush.bf16.msra.mxu0 %v5121
        %5811 = vmatmul.bf16.gmra.mxu0 %v3870
        %v5812 = vpop.f32.mrf.mxu0
        %v5813 = vadd.f32 %v5800, %v5812
        %v5814 = vpop.f32.mrf.mxu0
        %5815 = vdwg.mxu0
        %5816 = vmatpush.bf16.msra.mxu0 %v5151
        %5817 = vmatpush.bf16.msra.mxu0 %v5149
        %5818 = vmatpush.bf16.msra.mxu0 %v5147
        %5819 = vmatpush.bf16.msra.mxu0 %v5145
        %5820 = vmatpush.bf16.msra.mxu0 %v5143
        %5821 = vmatpush.bf16.msra.mxu0 %v5141
        %5822 = vmatpush.bf16.msra.mxu0 %v5139
        %5823 = vmatpush.bf16.msra.mxu0 %v5137
        %5824 = vmatmul.bf16.gmra.mxu0 %v3871
        %v5825 = vpop.f32.mrf.mxu0
        %v5826 = vadd.f32 %v5813, %v5825
        %v5827 = vpop.f32.mrf.mxu0
        %5828 = vdwg.mxu0
        %v5829 = vld [vmem:[%s7] sm:$0xf]
        %v5830 = vld [vmem:[%s9] sm:$0x3f]
        %v5831 = vld [vmem:[%s11] sm:$0x3]
        %v5832 = vld [vmem:[%s81] sm:$0xff]
        %v5833 = vld [vmem:[%s81 + $0x8] sm:$0xff]
        %v5834 = vld [vmem:[%s81 + $0x10] sm:$0xff]
        %v5835 = vld [vmem:[%s81 + $0x18] sm:$0xff]
        %v5836 = vld [vmem:[%s81 + $0x20] sm:$0xff]
        %v5837 = vld [vmem:[%s81 + $0x28] sm:$0xff]
        %v5838 = vld [vmem:[%s81 + $0x30] sm:$0xff]
        %v5839 = vld [vmem:[%s81 + $0x38] sm:$0xff]
        %v5840 = vld [vmem:[%s81 + $0x40] sm:$0xff]
        %v5841 = vld [vmem:[%s81 + $0x48] sm:$0xff]
        %v5842 = vld [vmem:[%s81 + $0x50] sm:$0xff]
        %v5843 = vld [vmem:[%s81 + $0x58] sm:$0xff]
        %v5844 = vld [vmem:[%s81 + $0x60] sm:$0xff]
        %v5845 = vld [vmem:[%s81 + $0x68] sm:$0xff]
        %v5846 = vld [vmem:[%s81 + $0x70] sm:$0xff]
        %v5847 = vld [vmem:[%s81 + $0x78] sm:$0xff]
        %v5848 = vld [vmem:[%s81 + $0x80] sm:$0xff]
        %v5849 = vld [vmem:[%s81 + $0x88] sm:$0xff]
        %v5850 = vld [vmem:[%s81 + $0x90] sm:$0xff]
        %v5851 = vld [vmem:[%s81 + $0x98] sm:$0xff]
        %v5852 = vld [vmem:[%s81 + $0xa0] sm:$0xff]
        %v5853 = vld [vmem:[%s81 + $0xa8] sm:$0xff]
        %v5854 = vld [vmem:[%s81 + $0xb0] sm:$0xff]
        %v5855 = vld [vmem:[%s81 + $0xb8] sm:$0xff]
        %v5856 = vld [vmem:[%s81 + $0xc0] sm:$0xff]
        %v5857 = vld [vmem:[%s81 + $0xc8] sm:$0xff]
        %v5858 = vld [vmem:[%s81 + $0xd0] sm:$0xff]
        %v5859 = vld [vmem:[%s81 + $0xd8] sm:$0xff]
        %v5860 = vld [vmem:[%s81 + $0xe0] sm:$0xff]
        %v5861 = vld [vmem:[%s81 + $0xe8] sm:$0xff]
        %v5862 = vld [vmem:[%s81 + $0xf0] sm:$0xff]
        %v5863 = vld [vmem:[%s81 + $0xf8] sm:$0xff]
        %v5864 = vld [vmem:[%s81 + $0x100] sm:$0xff]
        %v5865 = vld [vmem:[%s81 + $0x108] sm:$0xff]
        %v5866 = vld [vmem:[%s81 + $0x110] sm:$0xff]
        %v5867 = vld [vmem:[%s81 + $0x118] sm:$0xff]
        %v5868 = vld [vmem:[%s81 + $0x120] sm:$0xff]
        %v5869 = vld [vmem:[%s81 + $0x128] sm:$0xff]
        %v5870 = vld [vmem:[%s81 + $0x130] sm:$0xff]
        %v5871 = vld [vmem:[%s81 + $0x138] sm:$0xff]
        %v5872 = vld [vmem:[%s81 + $0x140] sm:$0xff]
        %v5873 = vld [vmem:[%s81 + $0x148] sm:$0xff]
        %v5874 = vld [vmem:[%s81 + $0x150] sm:$0xff]
        %v5875 = vld [vmem:[%s81 + $0x158] sm:$0xff]
        %v5876 = vld [vmem:[%s81 + $0x160] sm:$0xff]
        %v5877 = vld [vmem:[%s81 + $0x168] sm:$0xff]
        %v5878 = vld [vmem:[%s81 + $0x170] sm:$0xff]
        %v5879 = vld [vmem:[%s81 + $0x178] sm:$0xff]
        %v5880 = vld [vmem:[%s81 + $0x180] sm:$0xff]
        %v5881 = vld [vmem:[%s81 + $0x188] sm:$0xff]
        %v5882 = vld [vmem:[%s81 + $0x190] sm:$0xff]
        %v5883 = vld [vmem:[%s81 + $0x198] sm:$0xff]
        %v5884 = vld [vmem:[%s81 + $0x1a0] sm:$0xff]
        %v5885 = vld [vmem:[%s81 + $0x1a8] sm:$0xff]
        %v5886 = vld [vmem:[%s81 + $0x1b0] sm:$0xff]
        %v5887 = vld [vmem:[%s81 + $0x1b8] sm:$0xff]
        %v5888 = vld [vmem:[%s81 + $0x1c0] sm:$0xff]
        %v5889 = vld [vmem:[%s81 + $0x1c8] sm:$0xff]
        %v5890 = vld [vmem:[%s81 + $0x1d0] sm:$0xff]
        %v5891 = vld [vmem:[%s81 + $0x1d8] sm:$0xff]
        %v5892 = vld [vmem:[%s81 + $0x1e0] sm:$0xff]
        %v5893 = vld [vmem:[%s81 + $0x1e8] sm:$0xff]
        %v5894 = vld [vmem:[%s81 + $0x1f0] sm:$0xff]
        %v5895 = vld [vmem:[%s81 + $0x1f8] sm:$0xff]
        %v5896 = vadd.f32 %v5618, 0.0
        %v5897 = vadd.f32 %v5826, 0.0
        %5898 = vmatpush.msra.mxu0 %v5862
        %5899 = vmatpush.msra.mxu0 %v5860
        %5900 = vmatpush.msra.mxu0 %v5858
        %5901 = vmatpush.msra.mxu0 %v5856
        %5902 = vmatpush.msra.mxu0 %v5854
        %5903 = vmatpush.msra.mxu0 %v5852
        %5904 = vmatpush.msra.mxu0 %v5850
        %5905 = vmatpush.msra.mxu0 %v5848
        %5906 = vmatpush.msra.mxu0 %v5846
        %5907 = vmatpush.msra.mxu0 %v5844
        %5908 = vmatpush.msra.mxu0 %v5842
        %5909 = vmatpush.msra.mxu0 %v5840
        %5910 = vmatpush.msra.mxu0 %v5838
        %5911 = vmatpush.msra.mxu0 %v5836
        %5912 = vmatpush.msra.mxu0 %v5834
        %5913 = vmatpush.msra.mxu0 %v5832
        %5914 = vmatmul.f32.gmra.mxu0 %v5896
        %v5915 = vpop.f32.mrf.mxu0
        %v5916 = vadd.f32 0.0, %v5915
        %5917 = vdwg.mxu0
        %5918 = vmatpush.msra.mxu0 %v5894
        %5919 = vmatpush.msra.mxu0 %v5892
        %5920 = vmatpush.msra.mxu0 %v5890
        %5921 = vmatpush.msra.mxu0 %v5888
        %5922 = vmatpush.msra.mxu0 %v5886
        %5923 = vmatpush.msra.mxu0 %v5884
        %5924 = vmatpush.msra.mxu0 %v5882
        %5925 = vmatpush.msra.mxu0 %v5880
        %5926 = vmatpush.msra.mxu0 %v5878
        %5927 = vmatpush.msra.mxu0 %v5876
        %5928 = vmatpush.msra.mxu0 %v5874
        %5929 = vmatpush.msra.mxu0 %v5872
        %5930 = vmatpush.msra.mxu0 %v5870
        %5931 = vmatpush.msra.mxu0 %v5868
        %5932 = vmatpush.msra.mxu0 %v5866
        %5933 = vmatpush.msra.mxu0 %v5864
        %5934 = vmatmul.f32.gmra.mxu0 %v5897
        %v5935 = vpop.f32.mrf.mxu0
        %v5936 = vadd.f32 %v5916, %v5935
        %5937 = vdwg.mxu0
        %5938 = vmatpush.msra.mxu0 %v5863
        %5939 = vmatpush.msra.mxu0 %v5861
        %5940 = vmatpush.msra.mxu0 %v5859
        %5941 = vmatpush.msra.mxu0 %v5857
        %5942 = vmatpush.msra.mxu0 %v5855
        %5943 = vmatpush.msra.mxu0 %v5853
        %5944 = vmatpush.msra.mxu0 %v5851
        %5945 = vmatpush.msra.mxu0 %v5849
        %5946 = vmatpush.msra.mxu0 %v5847
        %5947 = vmatpush.msra.mxu0 %v5845
        %5948 = vmatpush.msra.mxu0 %v5843
        %5949 = vmatpush.msra.mxu0 %v5841
        %5950 = vmatpush.msra.mxu0 %v5839
        %5951 = vmatpush.msra.mxu0 %v5837
        %5952 = vmatpush.msra.mxu0 %v5835
        %5953 = vmatpush.msra.mxu0 %v5833
        %5954 = vmatmul.f32.gmra.mxu0 %v5896
        %v5955 = vpop.f32.mrf.mxu0
        %v5956 = vadd.f32 0.0, %v5955
        %5957 = vdwg.mxu0
        %5958 = vmatpush.msra.mxu0 %v5895
        %5959 = vmatpush.msra.mxu0 %v5893
        %5960 = vmatpush.msra.mxu0 %v5891
        %5961 = vmatpush.msra.mxu0 %v5889
        %5962 = vmatpush.msra.mxu0 %v5887
        %5963 = vmatpush.msra.mxu0 %v5885
        %5964 = vmatpush.msra.mxu0 %v5883
        %5965 = vmatpush.msra.mxu0 %v5881
        %5966 = vmatpush.msra.mxu0 %v5879
        %5967 = vmatpush.msra.mxu0 %v5877
        %5968 = vmatpush.msra.mxu0 %v5875
        %5969 = vmatpush.msra.mxu0 %v5873
        %5970 = vmatpush.msra.mxu0 %v5871
        %5971 = vmatpush.msra.mxu0 %v5869
        %5972 = vmatpush.msra.mxu0 %v5867
        %5973 = vmatpush.msra.mxu0 %v5865
        %5974 = vmatmul.f32.gmra.mxu0 %v5897
        %v5975 = vpop.f32.mrf.mxu0
        %v5976 = vadd.f32 %v5956, %v5975
        %5977 = vdwg.mxu0
        %v5978 = vmul.f32 %v5936, 0.125
        %v5979 = vmul.f32 %v5976, 0.125
        %v5980 = vsub.f32 %v5618, %v5978
        %v5981 = vsub.f32 %v5826, %v5979
        %v5982 = vmul.f32 %v5980, %v5980
        %v5983 = vmul.f32 %v5981, %v5981
        %v5984 = vadd.f32 %v5982, 0.0
        %v5985 = vadd.f32 %v5983, 0.0
        %5986 = vmatpush.msra.mxu0 %v5862
        %5987 = vmatpush.msra.mxu0 %v5860
        %5988 = vmatpush.msra.mxu0 %v5858
        %5989 = vmatpush.msra.mxu0 %v5856
        %5990 = vmatpush.msra.mxu0 %v5854
        %5991 = vmatpush.msra.mxu0 %v5852
        %5992 = vmatpush.msra.mxu0 %v5850
        %5993 = vmatpush.msra.mxu0 %v5848
        %5994 = vmatpush.msra.mxu0 %v5846
        %5995 = vmatpush.msra.mxu0 %v5844
        %5996 = vmatpush.msra.mxu0 %v5842
        %5997 = vmatpush.msra.mxu0 %v5840
        %5998 = vmatpush.msra.mxu0 %v5838
        %5999 = vmatpush.msra.mxu0 %v5836
        %6000 = vmatpush.msra.mxu0 %v5834
        %6001 = vmatpush.msra.mxu0 %v5832
        %6002 = vmatmul.f32.gmra.mxu0 %v5984
        %v6003 = vpop.f32.mrf.mxu0
        %v6004 = vadd.f32 0.0, %v6003
        %6005 = vdwg.mxu0
        %6006 = vmatpush.msra.mxu0 %v5894
        %6007 = vmatpush.msra.mxu0 %v5892
        %6008 = vmatpush.msra.mxu0 %v5890
        %6009 = vmatpush.msra.mxu0 %v5888
        %6010 = vmatpush.msra.mxu0 %v5886
        %6011 = vmatpush.msra.mxu0 %v5884
        %6012 = vmatpush.msra.mxu0 %v5882
        %6013 = vmatpush.msra.mxu0 %v5880
        %6014 = vmatpush.msra.mxu0 %v5878
        %6015 = vmatpush.msra.mxu0 %v5876
        %6016 = vmatpush.msra.mxu0 %v5874
        %6017 = vmatpush.msra.mxu0 %v5872
        %6018 = vmatpush.msra.mxu0 %v5870
        %6019 = vmatpush.msra.mxu0 %v5868
        %6020 = vmatpush.msra.mxu0 %v5866
        %6021 = vmatpush.msra.mxu0 %v5864
        %6022 = vmatmul.f32.gmra.mxu0 %v5985
        %v6023 = vpop.f32.mrf.mxu0
        %v6024 = vadd.f32 %v6004, %v6023
        %6025 = vdwg.mxu0
        %6026 = vmatpush.msra.mxu0 %v5863
        %6027 = vmatpush.msra.mxu0 %v5861
        %6028 = vmatpush.msra.mxu0 %v5859
        %6029 = vmatpush.msra.mxu0 %v5857
        %6030 = vmatpush.msra.mxu0 %v5855
        %6031 = vmatpush.msra.mxu0 %v5853
        %6032 = vmatpush.msra.mxu0 %v5851
        %6033 = vmatpush.msra.mxu0 %v5849
        %6034 = vmatpush.msra.mxu0 %v5847
        %6035 = vmatpush.msra.mxu0 %v5845
        %6036 = vmatpush.msra.mxu0 %v5843
        %6037 = vmatpush.msra.mxu0 %v5841
        %6038 = vmatpush.msra.mxu0 %v5839
        %6039 = vmatpush.msra.mxu0 %v5837
        %6040 = vmatpush.msra.mxu0 %v5835
        %6041 = vmatpush.msra.mxu0 %v5833
        %6042 = vmatmul.f32.gmra.mxu0 %v5984
        %v6043 = vpop.f32.mrf.mxu0
        %v6044 = vadd.f32 0.0, %v6043
        %6045 = vdwg.mxu0
        %6046 = vmatpush.msra.mxu0 %v5895
        %6047 = vmatpush.msra.mxu0 %v5893
        %6048 = vmatpush.msra.mxu0 %v5891
        %6049 = vmatpush.msra.mxu0 %v5889
        %6050 = vmatpush.msra.mxu0 %v5887
        %6051 = vmatpush.msra.mxu0 %v5885
        %6052 = vmatpush.msra.mxu0 %v5883
        %6053 = vmatpush.msra.mxu0 %v5881
        %6054 = vmatpush.msra.mxu0 %v5879
        %6055 = vmatpush.msra.mxu0 %v5877
        %6056 = vmatpush.msra.mxu0 %v5875
        %6057 = vmatpush.msra.mxu0 %v5873
        %6058 = vmatpush.msra.mxu0 %v5871
        %6059 = vmatpush.msra.mxu0 %v5869
        %6060 = vmatpush.msra.mxu0 %v5867
        %6061 = vmatpush.msra.mxu0 %v5865
        %6062 = vmatmul.f32.gmra.mxu0 %v5985
        %v6063 = vpop.f32.mrf.mxu0
        %v6064 = vadd.f32 %v6044, %v6063
        %6065 = vdwg.mxu0
        %v6066 = vmul.f32 %v6024, 0.125
        %v6067 = vmul.f32 %v6064, 0.125
        %v6068 = vadd.f32 %v6066, 1e-05
        %v6069 = vadd.f32 %v6067, 1e-05
        %v6070 = vrsqrt.pop %v6068
        %v6071 = vmul.f32 %v6070, %v6068
        %v6072 = vmul.f32 %v6071, %v6070
        %v6073 = vmul.f32 0.5, %v6072
        %v6074 = vsub.f32 1.5, %v6073
        %v6075 = vmul.f32 %v6070, %v6074
        %vm6076 = vweird.f32 %v6068
        %vm6077 = vweird.f32 %v6070
        %vm6078 = vmor %vm6076, %vm6077
        %v6079 = vsel %vm6078, %v6070, %v6075
        %v6080 = vrsqrt.pop %v6069
        %v6081 = vmul.f32 %v6080, %v6069
        %v6082 = vmul.f32 %v6081, %v6080
        %v6083 = vmul.f32 0.5, %v6082
        %v6084 = vsub.f32 1.5, %v6083
        %v6085 = vmul.f32 %v6080, %v6084
        %vm6086 = vweird.f32 %v6069
        %vm6087 = vweird.f32 %v6080
        %vm6088 = vmor %vm6086, %vm6087
        %v6089 = vsel %vm6088, %v6080, %v6085
        %v6091 = vperm.slane %v5829, 0
        %v6092 = vperm.slane %v5829, 2
        %v6095 = vmul.f32 %v6079, %v6091
        %v6096 = vmul.f32 %v6089, %v6092
        %v6097 = vmul.f32 %v5980, %v6095
        %v6098 = vmul.f32 %v5981, %v6096
        %v6099 = vperm.slane %v5829, 1
        %v6100 = vperm.slane %v5829, 3
        %v6103 = vadd.f32 %v6097, %v6099
        %v6104 = vadd.f32 %v6098, %v6100
        %v6105 = vmax.f32 %v6103, 0.0
        %v6106 = vmax.f32 %v6104, 0.0
        %v6107 = vpack.c.bf16 %v6105, %v6105
        %v6108 = vpack.c.bf16 %v6106, %v6106
        %v6109 = vld [vmem:[%s13] sm:$0xf]
        %v6110 = vld [vmem:[%s13 + $0x4] sm:$0xf]
        %v6111 = vld [vmem:[%s13 + $0x8] sm:$0xf]
        %v6112 = vld [vmem:[%s13 + $0xc] sm:$0xf]
        %v6113 = vld [vmem:[%s13 + $0x10] sm:$0xf]
        %v6114 = vld [vmem:[%s13 + $0x14] sm:$0xf]
        %v6115 = vld [vmem:[%s13 + $0x18] sm:$0xf]
        %v6116 = vld [vmem:[%s13 + $0x1c] sm:$0xf]
        %v6117 = vld [vmem:[%s13 + $0x20] sm:$0xf]
        %v6118 = vld [vmem:[%s13 + $0x24] sm:$0xf]
        %v6119 = vld [vmem:[%s13 + $0x28] sm:$0xf]
        %v6120 = vld [vmem:[%s13 + $0x2c] sm:$0xf]
        %v6121 = vld [vmem:[%s13 + $0x30] sm:$0xf]
        %v6122 = vld [vmem:[%s13 + $0x34] sm:$0xf]
        %v6123 = vld [vmem:[%s13 + $0x38] sm:$0xf]
        %v6124 = vld [vmem:[%s13 + $0x3c] sm:$0xf]
        %v6125 = vld [vmem:[%s13 + $0x40] sm:$0xf]
        %v6126 = vld [vmem:[%s13 + $0x44] sm:$0xf]
        %v6127 = vld [vmem:[%s13 + $0x48] sm:$0xf]
        %v6128 = vld [vmem:[%s13 + $0x4c] sm:$0xf]
        %v6129 = vld [vmem:[%s13 + $0x50] sm:$0xf]
        %v6130 = vld [vmem:[%s13 + $0x54] sm:$0xf]
        %v6131 = vld [vmem:[%s13 + $0x58] sm:$0xf]
        %v6132 = vld [vmem:[%s13 + $0x5c] sm:$0xf]
        %v6133 = vld [vmem:[%s13 + $0x60] sm:$0xf]
        %v6134 = vld [vmem:[%s13 + $0x64] sm:$0xf]
        %v6135 = vld [vmem:[%s13 + $0x68] sm:$0xf]
        %v6136 = vld [vmem:[%s13 + $0x6c] sm:$0xf]
        %v6137 = vld [vmem:[%s13 + $0x70] sm:$0xf]
        %v6138 = vld [vmem:[%s13 + $0x74] sm:$0xf]
        %v6139 = vld [vmem:[%s13 + $0x78] sm:$0xf]
        %v6140 = vld [vmem:[%s13 + $0x7c] sm:$0xf]
        %v6173 = vunpack.c.l.b16 %v6109
        %v6174 = vunpack.c.l.b16 %v6110
        %v6175 = vunpack.c.l.b16 %v6111
        %v6176 = vunpack.c.l.b16 %v6112
        %v6177 = vunpack.c.l.b16 %v6113
        %v6178 = vunpack.c.l.b16 %v6114
        %v6179 = vunpack.c.l.b16 %v6115
        %v6180 = vunpack.c.l.b16 %v6116
        %v6181 = vunpack.c.l.b16 %v6117
        %v6182 = vunpack.c.l.b16 %v6118
        %v6183 = vunpack.c.l.b16 %v6119
        %v6184 = vunpack.c.l.b16 %v6120
        %v6185 = vunpack.c.l.b16 %v6121
        %v6186 = vunpack.c.l.b16 %v6122
        %v6187 = vunpack.c.l.b16 %v6123
        %v6188 = vunpack.c.l.b16 %v6124
        %v6189 = vunpack.c.l.b16 %v6125
        %v6190 = vunpack.c.l.b16 %v6126
        %v6191 = vunpack.c.l.b16 %v6127
        %v6192 = vunpack.c.l.b16 %v6128
        %v6193 = vunpack.c.l.b16 %v6129
        %v6194 = vunpack.c.l.b16 %v6130
        %v6195 = vunpack.c.l.b16 %v6131
        %v6196 = vunpack.c.l.b16 %v6132
        %v6197 = vunpack.c.l.b16 %v6133
        %v6198 = vunpack.c.l.b16 %v6134
        %v6199 = vunpack.c.l.b16 %v6135
        %v6200 = vunpack.c.l.b16 %v6136
        %v6201 = vunpack.c.l.b16 %v6137
        %v6202 = vunpack.c.l.b16 %v6138
        %v6203 = vunpack.c.l.b16 %v6139
        %v6204 = vunpack.c.l.b16 %v6140
        %v6205 = vpack.c.b16 %v6174, %v6173
        %v6206 = vpack.c.b16 %v6176, %v6175
        %v6207 = vpack.c.b16 %v6178, %v6177
        %v6208 = vpack.c.b16 %v6180, %v6179
        %v6209 = vpack.c.b16 %v6182, %v6181
        %v6210 = vpack.c.b16 %v6184, %v6183
        %v6211 = vpack.c.b16 %v6186, %v6185
        %v6212 = vpack.c.b16 %v6188, %v6187
        %v6213 = vpack.c.b16 %v6190, %v6189
        %v6214 = vpack.c.b16 %v6192, %v6191
        %v6215 = vpack.c.b16 %v6194, %v6193
        %v6216 = vpack.c.b16 %v6196, %v6195
        %v6217 = vpack.c.b16 %v6198, %v6197
        %v6218 = vpack.c.b16 %v6200, %v6199
        %v6219 = vpack.c.b16 %v6202, %v6201
        %v6220 = vpack.c.b16 %v6204, %v6203
        %v6238 = vrot.slane %v5830, 4
        %6240 = vmatpush.bf16.msra.mxu0 %v6212
        %6241 = vmatpush.bf16.msra.mxu0 %v6211
        %6242 = vmatpush.bf16.msra.mxu0 %v6210
        %6243 = vmatpush.bf16.msra.mxu0 %v6209
        %6244 = vmatpush.bf16.msra.mxu0 %v6208
        %6245 = vmatpush.bf16.msra.mxu0 %v6207
        %6246 = vmatpush.bf16.msra.mxu0 %v6206
        %6247 = vmatpush.bf16.msra.mxu0 %v6205
        %6248 = vmatmul.bf16.gmra.mxu0 %v6107
        %v6249 = vpop.f32.mrf.mxu0
        %v6250 = vadd.f32 %v6238, %v6249
        %v6251 = vpop.f32.mrf.mxu0
        %6252 = vdwg.mxu0
        %6253 = vmatpush.bf16.msra.mxu0 %v6220
        %6254 = vmatpush.bf16.msra.mxu0 %v6219
        %6255 = vmatpush.bf16.msra.mxu0 %v6218
        %6256 = vmatpush.bf16.msra.mxu0 %v6217
        %6257 = vmatpush.bf16.msra.mxu0 %v6216
        %6258 = vmatpush.bf16.msra.mxu0 %v6215
        %6259 = vmatpush.bf16.msra.mxu0 %v6214
        %6260 = vmatpush.bf16.msra.mxu0 %v6213
        %6261 = vmatmul.bf16.gmra.mxu0 %v6108
        %v6262 = vpop.f32.mrf.mxu0
        %v6263 = vadd.f32 %v6250, %v6262
        %v6264 = vpop.f32.mrf.mxu0
        %6265 = vdwg.mxu0
        %v6266 = vld [vmem:[%s85] sm:$0xff]
        %v6267 = vld [vmem:[%s85 + $0x8] sm:$0xff]
        %v6268 = vld [vmem:[%s85 + $0x10] sm:$0xff]
        %v6269 = vld [vmem:[%s85 + $0x18] sm:$0xff]
        %v6270 = vld [vmem:[%s85 + $0x20] sm:$0xff]
        %v6271 = vld [vmem:[%s85 + $0x28] sm:$0xff]
        %v6272 = vld [vmem:[%s85 + $0x30] sm:$0xff]
        %v6273 = vld [vmem:[%s85 + $0x38] sm:$0xff]
        %v6274 = vadd.f32 %v6263, 0.0
        %vm6275 = vcmask 523264
        %v6277 = vsel %vm6275, %v6274, 0
        %6279 = vmatpush.msra.mxu0 0.0
        %6280 = vmatpush.msra.mxu0 0.0
        %6281 = vmatpush.msra.mxu0 0.0
        %6282 = vmatpush.msra.mxu0 0.0
        %6283 = vmatpush.msra.mxu0 0.0
        %6284 = vmatpush.msra.mxu0 0.0
        %6285 = vmatpush.msra.mxu0 0.0
        %6286 = vmatpush.msra.mxu0 0.0
        %6287 = vmatpush.msra.mxu0 %v6273
        %6288 = vmatpush.msra.mxu0 %v6272
        %6289 = vmatpush.msra.mxu0 %v6271
        %6290 = vmatpush.msra.mxu0 %v6270
        %6291 = vmatpush.msra.mxu0 %v6269
        %6292 = vmatpush.msra.mxu0 %v6268
        %6293 = vmatpush.msra.mxu0 %v6267
        %6294 = vmatpush.msra.mxu0 %v6266
        %6295 = vmatmul.f32.gmra.mxu0 %v6277
        %v6296 = vpop.f32.mrf.mxu0
        %v6297 = vadd.f32 0.0, %v6296
        %6298 = vdwg.mxu0
        %v6299 = vmul.f32 %v6297, 0.125
        %v6300 = vsub.f32 %v6263, %v6299
        %v6301 = vmul.f32 %v6300, %v6300
        %v6302 = vadd.f32 %v6301, 0.0
        %v6304 = vsel %vm6275, %v6302, 0
        %6306 = vmatpush.msra.mxu0 0.0
        %6307 = vmatpush.msra.mxu0 0.0
        %6308 = vmatpush.msra.mxu0 0.0
        %6309 = vmatpush.msra.mxu0 0.0
        %6310 = vmatpush.msra.mxu0 0.0
        %6311 = vmatpush.msra.mxu0 0.0
        %6312 = vmatpush.msra.mxu0 0.0
        %6313 = vmatpush.msra.mxu0 0.0
        %6314 = vmatpush.msra.mxu0 %v6273
        %6315 = vmatpush.msra.mxu0 %v6272
        %6316 = vmatpush.msra.mxu0 %v6271
        %6317 = vmatpush.msra.mxu0 %v6270
        %6318 = vmatpush.msra.mxu0 %v6269
        %6319 = vmatpush.msra.mxu0 %v6268
        %6320 = vmatpush.msra.mxu0 %v6267
        %6321 = vmatpush.msra.mxu0 %v6266
        %6322 = vmatmul.f32.gmra.mxu0 %v6304
        %v6323 = vpop.f32.mrf.mxu0
        %v6324 = vadd.f32 0.0, %v6323
        %6325 = vdwg.mxu0
        %v6326 = vmul.f32 %v6324, 0.125
        %v6327 = vadd.f32 %v6326, 1e-05
        %v6328 = vrsqrt.pop %v6327
        %v6329 = vmul.f32 %v6328, %v6327
        %v6330 = vmul.f32 %v6329, %v6328
        %v6331 = vmul.f32 0.5, %v6330
        %v6332 = vsub.f32 1.5, %v6331
        %v6333 = vmul.f32 %v6328, %v6332
        %vm6334 = vweird.f32 %v6327
        %vm6335 = vweird.f32 %v6328
        %vm6336 = vmor %vm6334, %vm6335
        %v6337 = vsel %vm6336, %v6328, %v6333
        %v6338 = vmul.f32 %v6337, %v5830
        %v6339 = vmul.f32 %v6300, %v6338
        %v6340 = vrot.slane %v5830, 1
        %v6342 = vadd.f32 %v6339, %v6340
        %v6343 = vmax.f32 %v6342, 0.0
        %v6344 = vpack.c.bf16 %v6343, %v6343
        %v6345 = vld [vmem:[%s17] sm:$0xf]
        %v6346 = vld [vmem:[%s17 + $0x4] sm:$0xf]
        %v6347 = vld [vmem:[%s17 + $0x8] sm:$0xf]
        %v6348 = vld [vmem:[%s17 + $0xc] sm:$0xf]
        %v6349 = vld [vmem:[%s17 + $0x10] sm:$0xf]
        %v6350 = vld [vmem:[%s17 + $0x14] sm:$0xf]
        %v6351 = vld [vmem:[%s17 + $0x18] sm:$0xf]
        %v6352 = vld [vmem:[%s17 + $0x1c] sm:$0xf]
        %v6361 = vunpack.c.l.b16 %v6345
        %v6362 = vunpack.c.l.b16 %v6346
        %v6363 = vunpack.c.l.b16 %v6347
        %v6364 = vunpack.c.l.b16 %v6348
        %v6365 = vunpack.c.l.b16 %v6349
        %v6366 = vunpack.c.l.b16 %v6350
        %v6367 = vunpack.c.l.b16 %v6351
        %v6368 = vunpack.c.l.b16 %v6352
        %v6369 = vpack.c.b16 %v6362, %v6361
        %v6370 = vpack.c.b16 %v6364, %v6363
        %v6371 = vpack.c.b16 %v6366, %v6365
        %v6372 = vpack.c.b16 %v6368, %v6367
        %v6378 = vsel %vm6275, %v6344, 0
        %6380 = vmatpush.bf16.msra.mxu0 0
        %6381 = vmatpush.bf16.msra.mxu0 0
        %6382 = vmatpush.bf16.msra.mxu0 0
        %6383 = vmatpush.bf16.msra.mxu0 0
        %6384 = vmatpush.bf16.msra.mxu0 %v6372
        %6385 = vmatpush.bf16.msra.mxu0 %v6371
        %6386 = vmatpush.bf16.msra.mxu0 %v6370
        %6387 = vmatpush.bf16.msra.mxu0 %v6369
        %6388 = vmatmul.bf16.gmra.mxu0 %v6378
        %v6389 = vpop.f32.mrf.mxu0
        %v6390 = vadd.f32 0.0, %v6389
        %v6391 = vpop.f32.mrf.mxu0
        %6392 = vdwg.mxu0
        %6394 = vset.pattern.permute.xlu0 0
        %6395 = vperm.xlu0 %6394, %v1451
        %v6396 = vpop.permute.xlu0 %6395
        %6399 = vset.pattern.permute.xlu0 0
        %6400 = vperm.xlu0 %6399, %v1452
        %v6401 = vpop.permute.xlu0 %6400
        %6404 = vset.pattern.permute.xlu0 0
        %6405 = vperm.xlu0 %6404, %v1453
        %v6406 = vpop.permute.xlu0 %6405
        %v6408 = vperm.slane %v6390, 0
        %v6409 = vmul.f32 %v6396, %v6408
        %v6410 = vmul.f32 %v6401, %v6408
        %v6411 = vmul.f32 %v6406, %v6408
        %v6412 = vperm.slane %v5830, 5
        %v6413 = vadd.f32 %v6409, %v6412
        %v6414 = vadd.f32 %v6410, %v6412
        %v6415 = vadd.f32 %v6411, %v6412
        %v6416 = vsel %vm6275, %v6413, 0.0
        %v6417 = vsel %vm6275, %v6414, 0.0
        %v6418 = vadd.f32 %v6416, %v6417
        %vm6419 = vcmask 520192
        %v6420 = vsel %vm6419, %v6415, 0.0
        %v6421 = vadd.f32 %v6418, %v6420
        %v6422 = vrot.slane %v6421, 4
        %v6423 = vadd.f32 %v6421, %v6422
        %v6424 = vrot.slane %v6423, 2
        %v6425 = vadd.f32 %v6423, %v6424
        %v6426 = vrot.slane %v6425, 1
        %v6427 = vadd.f32 %v6425, %v6426
        %v6429 = vsel %vm6275, %v6427, 0
        %6431 = vmatpush.msra.mxu0 0.0
        %6432 = vmatpush.msra.mxu0 0.0
        %6433 = vmatpush.msra.mxu0 0.0
        %6434 = vmatpush.msra.mxu0 0.0
        %6435 = vmatpush.msra.mxu0 0.0
        %6436 = vmatpush.msra.mxu0 0.0
        %6437 = vmatpush.msra.mxu0 0.0
        %6438 = vmatpush.msra.mxu0 0.0
        %6439 = vmatpush.msra.mxu0 %v6273
        %6440 = vmatpush.msra.mxu0 %v6272
        %6441 = vmatpush.msra.mxu0 %v6271
        %6442 = vmatpush.msra.mxu0 %v6270
        %6443 = vmatpush.msra.mxu0 %v6269
        %6444 = vmatpush.msra.mxu0 %v6268
        %6445 = vmatpush.msra.mxu0 %v6267
        %6446 = vmatpush.msra.mxu0 %v6266
        %6447 = vmatmul.f32.gmra.mxu0 %v6429
        %v6448 = vpop.f32.mrf.mxu0
        %v6449 = vadd.f32 0.0, %v6448
        %6450 = vdwg.mxu0
        %v6451 = vmul.f32 %v6449, 0.005952381
        %v6452 = vperm.slane %v6451, 0
        %v6453 = vsub.f32 %v6413, %v6452
        %v6454 = vsub.f32 %v6414, %v6452
        %v6455 = vsub.f32 %v6415, %v6452
        %v6456 = vmul.f32 %v6453, %v6453
        %v6457 = vmul.f32 %v6454, %v6454
        %v6458 = vmul.f32 %v6455, %v6455
        %v6459 = vsel %vm6275, %v6456, 0.0
        %v6460 = vsel %vm6275, %v6457, 0.0
        %v6461 = vadd.f32 %v6459, %v6460
        %v6462 = vsel %vm6419, %v6458, 0.0
        %v6463 = vadd.f32 %v6461, %v6462
        %v6464 = vrot.slane %v6463, 4
        %v6465 = vadd.f32 %v6463, %v6464
        %v6466 = vrot.slane %v6465, 2
        %v6467 = vadd.f32 %v6465, %v6466
        %v6468 = vrot.slane %v6467, 1
        %v6469 = vadd.f32 %v6467, %v6468
        %v6471 = vsel %vm6275, %v6469, 0
        %6473 = vmatpush.msra.mxu0 0.0
        %6474 = vmatpush.msra.mxu0 0.0
        %6475 = vmatpush.msra.mxu0 0.0
        %6476 = vmatpush.msra.mxu0 0.0
        %6477 = vmatpush.msra.mxu0 0.0
        %6478 = vmatpush.msra.mxu0 0.0
        %6479 = vmatpush.msra.mxu0 0.0
        %6480 = vmatpush.msra.mxu0 0.0
        %6481 = vmatpush.msra.mxu0 %v6273
        %6482 = vmatpush.msra.mxu0 %v6272
        %6483 = vmatpush.msra.mxu0 %v6271
        %6484 = vmatpush.msra.mxu0 %v6270
        %6485 = vmatpush.msra.mxu0 %v6269
        %6486 = vmatpush.msra.mxu0 %v6268
        %6487 = vmatpush.msra.mxu0 %v6267
        %6488 = vmatpush.msra.mxu0 %v6266
        %6489 = vmatmul.f32.gmra.mxu0 %v6471
        %v6490 = vpop.f32.mrf.mxu0
        %v6491 = vadd.f32 0.0, %v6490
        %6492 = vdwg.mxu0
        %v6493 = vmul.f32 %v6491, 0.005952381
        %v6494 = vadd.f32 %v6493, 1e-05
        %v6495 = vrsqrt.pop %v6494
        %v6496 = vmul.f32 %v6495, %v6494
        %v6497 = vmul.f32 %v6496, %v6495
        %v6498 = vmul.f32 0.5, %v6497
        %v6499 = vsub.f32 1.5, %v6498
        %v6500 = vmul.f32 %v6495, %v6499
        %vm6501 = vweird.f32 %v6494
        %vm6502 = vweird.f32 %v6495
        %vm6503 = vmor %vm6501, %vm6502
        %v6504 = vsel %vm6503, %v6495, %v6500
        %v6505 = vrot.slane %v5830, 2
        %v6507 = vmul.f32 %v6504, %v6505
        %v6508 = vperm.slane %v6507, 0
        %v6509 = vmul.f32 %v6453, %v6508
        %v6510 = vmul.f32 %v6454, %v6508
        %v6511 = vmul.f32 %v6455, %v6508
        %v6512 = vperm.slane %v5830, 3
        %v6513 = vadd.f32 %v6509, %v6512
        %v6514 = vadd.f32 %v6510, %v6512
        %v6515 = vadd.f32 %v6511, %v6512
        %v6516 = vmax.f32 %v6513, 0.0
        %v6517 = vmax.f32 %v6514, 0.0
        %v6518 = vmax.f32 %v6515, 0.0
        %v6519 = vpack.c.bf16 %v6517, %v6516
        %v6520 = vpack.c.bf16 %v6518, %v6518
        %v6521 = vld [vmem:[%s15] sm:$0xf]
        %v6522 = vld [vmem:[%s15 + $0x4] sm:$0xf]
        %v6523 = vld [vmem:[%s15 + $0x8] sm:$0xf]
        %v6524 = vld [vmem:[%s15 + $0xc] sm:$0xf]
        %v6525 = vld [vmem:[%s15 + $0x10] sm:$0xf]
        %v6526 = vld [vmem:[%s15 + $0x14] sm:$0xf]
        %v6527 = vld [vmem:[%s15 + $0x18] sm:$0xf]
        %v6528 = vld [vmem:[%s15 + $0x1c] sm:$0xf]
        %v6529 = vperm.slane %v5831, 0
        %v6538 = vunpack.c.l.b16 %v6521
        %v6539 = vunpack.c.l.b16 %v6522
        %v6540 = vunpack.c.l.b16 %v6523
        %v6541 = vunpack.c.l.b16 %v6524
        %v6542 = vunpack.c.l.b16 %v6525
        %v6543 = vunpack.c.l.b16 %v6526
        %v6544 = vunpack.c.l.b16 %v6527
        %v6545 = vunpack.c.l.b16 %v6528
        %v6546 = vpack.c.b16 %v6539, %v6538
        %v6547 = vpack.c.b16 %v6541, %v6540
        %v6548 = vpack.c.b16 %v6543, %v6542
        %v6549 = vpack.c.b16 %v6545, %v6544
        %v6555 = vsel %vm6275, %v6519, 0
        %v6558 = vsel %vm6275, %v6520, 0
        %6560 = vmatpush.bf16.msra.mxu0 0
        %6561 = vmatpush.bf16.msra.mxu0 0
        %6562 = vmatpush.bf16.msra.mxu0 0
        %6563 = vmatpush.bf16.msra.mxu0 0
        %6564 = vmatpush.bf16.msra.mxu0 %v6549
        %6565 = vmatpush.bf16.msra.mxu0 %v6548
        %6566 = vmatpush.bf16.msra.mxu0 %v6547
        %6567 = vmatpush.bf16.msra.mxu0 %v6546
        %6568 = vmatmul.bf16.gmra.mxu0 %v6555
        %v6569 = vpop.f32.mrf.mxu0
        %v6570 = vadd.f32 %v6529, %v6569
        %v6571 = vpop.f32.mrf.mxu0
        %v6572 = vadd.f32 %v6529, %v6571
        %6573 = vmatmul.bf16.gmra.mxu0 %v6558
        %v6574 = vpop.f32.mrf.mxu0
        %v6575 = vadd.f32 %v6529, %v6574
        %v6576 = vpop.f32.mrf.mxu0
        %6577 = vdwg.mxu0
        %v6578 = vpack.c.bf16 %v5618, %v5618
        %v6579 = vpack.c.bf16 %v5826, %v5826
        %v6580 = vld [vmem:[%s19] sm:$0xf]
        %v6581 = vld [vmem:[%s19 + $0x4] sm:$0xf]
        %v6582 = vld [vmem:[%s19 + $0x8] sm:$0xf]
        %v6583 = vld [vmem:[%s19 + $0xc] sm:$0xf]
        %v6584 = vld [vmem:[%s19 + $0x10] sm:$0xf]
        %v6585 = vld [vmem:[%s19 + $0x14] sm:$0xf]
        %v6586 = vld [vmem:[%s19 + $0x18] sm:$0xf]
        %v6587 = vld [vmem:[%s19 + $0x1c] sm:$0xf]
        %v6588 = vld [vmem:[%s19 + $0x20] sm:$0xf]
        %v6589 = vld [vmem:[%s19 + $0x24] sm:$0xf]
        %v6590 = vld [vmem:[%s19 + $0x28] sm:$0xf]
        %v6591 = vld [vmem:[%s19 + $0x2c] sm:$0xf]
        %v6592 = vld [vmem:[%s19 + $0x30] sm:$0xf]
        %v6593 = vld [vmem:[%s19 + $0x34] sm:$0xf]
        %v6594 = vld [vmem:[%s19 + $0x38] sm:$0xf]
        %v6595 = vld [vmem:[%s19 + $0x3c] sm:$0xf]
        %v6596 = vld [vmem:[%s19 + $0x40] sm:$0xf]
        %v6597 = vld [vmem:[%s19 + $0x44] sm:$0xf]
        %v6598 = vld [vmem:[%s19 + $0x48] sm:$0xf]
        %v6599 = vld [vmem:[%s19 + $0x4c] sm:$0xf]
        %v6600 = vld [vmem:[%s19 + $0x50] sm:$0xf]
        %v6601 = vld [vmem:[%s19 + $0x54] sm:$0xf]
        %v6602 = vld [vmem:[%s19 + $0x58] sm:$0xf]
        %v6603 = vld [vmem:[%s19 + $0x5c] sm:$0xf]
        %v6604 = vld [vmem:[%s19 + $0x60] sm:$0xf]
        %v6605 = vld [vmem:[%s19 + $0x64] sm:$0xf]
        %v6606 = vld [vmem:[%s19 + $0x68] sm:$0xf]
        %v6607 = vld [vmem:[%s19 + $0x6c] sm:$0xf]
        %v6608 = vld [vmem:[%s19 + $0x70] sm:$0xf]
        %v6609 = vld [vmem:[%s19 + $0x74] sm:$0xf]
        %v6610 = vld [vmem:[%s19 + $0x78] sm:$0xf]
        %v6611 = vld [vmem:[%s19 + $0x7c] sm:$0xf]
        %v6644 = vunpack.c.l.b16 %v6580
        %v6645 = vunpack.c.l.b16 %v6581
        %v6646 = vunpack.c.l.b16 %v6582
        %v6647 = vunpack.c.l.b16 %v6583
        %v6648 = vunpack.c.l.b16 %v6584
        %v6649 = vunpack.c.l.b16 %v6585
        %v6650 = vunpack.c.l.b16 %v6586
        %v6651 = vunpack.c.l.b16 %v6587
        %v6652 = vunpack.c.l.b16 %v6588
        %v6653 = vunpack.c.l.b16 %v6589
        %v6654 = vunpack.c.l.b16 %v6590
        %v6655 = vunpack.c.l.b16 %v6591
        %v6656 = vunpack.c.l.b16 %v6592
        %v6657 = vunpack.c.l.b16 %v6593
        %v6658 = vunpack.c.l.b16 %v6594
        %v6659 = vunpack.c.l.b16 %v6595
        %v6660 = vunpack.c.l.b16 %v6596
        %v6661 = vunpack.c.l.b16 %v6597
        %v6662 = vunpack.c.l.b16 %v6598
        %v6663 = vunpack.c.l.b16 %v6599
        %v6664 = vunpack.c.l.b16 %v6600
        %v6665 = vunpack.c.l.b16 %v6601
        %v6666 = vunpack.c.l.b16 %v6602
        %v6667 = vunpack.c.l.b16 %v6603
        %v6668 = vunpack.c.l.b16 %v6604
        %v6669 = vunpack.c.l.b16 %v6605
        %v6670 = vunpack.c.l.b16 %v6606
        %v6671 = vunpack.c.l.b16 %v6607
        %v6672 = vunpack.c.l.b16 %v6608
        %v6673 = vunpack.c.l.b16 %v6609
        %v6674 = vunpack.c.l.b16 %v6610
        %v6675 = vunpack.c.l.b16 %v6611
        %v6676 = vpack.c.b16 %v6645, %v6644
        %v6677 = vpack.c.b16 %v6647, %v6646
        %v6678 = vpack.c.b16 %v6649, %v6648
        %v6679 = vpack.c.b16 %v6651, %v6650
        %v6680 = vpack.c.b16 %v6653, %v6652
        %v6681 = vpack.c.b16 %v6655, %v6654
        %v6682 = vpack.c.b16 %v6657, %v6656
        %v6683 = vpack.c.b16 %v6659, %v6658
        %v6684 = vpack.c.b16 %v6661, %v6660
        %v6685 = vpack.c.b16 %v6663, %v6662
        %v6686 = vpack.c.b16 %v6665, %v6664
        %v6687 = vpack.c.b16 %v6667, %v6666
        %v6688 = vpack.c.b16 %v6669, %v6668
        %v6689 = vpack.c.b16 %v6671, %v6670
        %v6690 = vpack.c.b16 %v6673, %v6672
        %v6691 = vpack.c.b16 %v6675, %v6674
        %v6709 = vrot.slane %v5831, 1
        %6711 = vmatpush.bf16.msra.mxu0 %v6683
        %6712 = vmatpush.bf16.msra.mxu0 %v6682
        %6713 = vmatpush.bf16.msra.mxu0 %v6681
        %6714 = vmatpush.bf16.msra.mxu0 %v6680
        %6715 = vmatpush.bf16.msra.mxu0 %v6679
        %6716 = vmatpush.bf16.msra.mxu0 %v6678
        %6717 = vmatpush.bf16.msra.mxu0 %v6677
        %6718 = vmatpush.bf16.msra.mxu0 %v6676
        %6719 = vmatmul.bf16.gmra.mxu0 %v6578
        %v6720 = vpop.f32.mrf.mxu0
        %v6721 = vadd.f32 %v6709, %v6720
        %v6722 = vpop.f32.mrf.mxu0
        %6723 = vdwg.mxu0
        %6724 = vmatpush.bf16.msra.mxu0 %v6691
        %6725 = vmatpush.bf16.msra.mxu0 %v6690
        %6726 = vmatpush.bf16.msra.mxu0 %v6689
        %6727 = vmatpush.bf16.msra.mxu0 %v6688
        %6728 = vmatpush.bf16.msra.mxu0 %v6687
        %6729 = vmatpush.bf16.msra.mxu0 %v6686
        %6730 = vmatpush.bf16.msra.mxu0 %v6685
        %6731 = vmatpush.bf16.msra.mxu0 %v6684
        %6732 = vmatmul.bf16.gmra.mxu0 %v6579
        %v6733 = vpop.f32.mrf.mxu0
        %v6734 = vadd.f32 %v6721, %v6733
        %v6735 = vpop.f32.mrf.mxu0
        %6736 = vdwg.mxu0
        %v6737 = vperm.slane %v6734, 0
        %v6738 = vadd.f32 %v6570, %v6737
        %v6739 = vadd.f32 %v6572, %v6737
        %v6740 = vadd.f32 %v6575, %v6737
        %v6741 = vld [vmem:[%s21] sm:$0x3]
        %v6742 = vld [vmem:[%s23] sm:$0x3f]
        %v6743 = vld [vmem:[%s25] sm:$0x1]
        %v6744 = vld [vmem:[%s77] sm:$0xff]
        %v6745 = vld [vmem:[%s77 + $0x8] sm:$0xff]
        %v6746 = vld [vmem:[%s77 + $0x10] sm:$0xff]
        %v6747 = vld [vmem:[%s77 + $0x18] sm:$0xff]
        %v6748 = vld [vmem:[%s77 + $0x20] sm:$0xff]
        %v6749 = vld [vmem:[%s77 + $0x28] sm:$0xff]
        %v6750 = vld [vmem:[%s77 + $0x30] sm:$0xff]
        %v6751 = vld [vmem:[%s77 + $0x38] sm:$0xff]
        %v6752 = vld [vmem:[%s77 + $0x40] sm:$0xff]
        %v6753 = vld [vmem:[%s77 + $0x48] sm:$0xff]
        %v6754 = vld [vmem:[%s77 + $0x50] sm:$0xff]
        %v6755 = vld [vmem:[%s77 + $0x58] sm:$0xff]
        %v6756 = vld [vmem:[%s77 + $0x60] sm:$0xff]
        %v6757 = vld [vmem:[%s77 + $0x68] sm:$0xff]
        %v6758 = vld [vmem:[%s77 + $0x70] sm:$0xff]
        %v6759 = vld [vmem:[%s77 + $0x78] sm:$0xff]
        %v6760 = vadd.f32 %v6738, %v6739
        %vm6761 = vcmask 1044480
        %v6762 = vsel %vm6761, %v6740, 0.0
        %v6763 = vadd.f32 %v6760, %v6762
        %v6764 = vrot.slane %v6763, 4
        %v6765 = vadd.f32 %v6763, %v6764
        %v6766 = vrot.slane %v6765, 2
        %v6767 = vadd.f32 %v6765, %v6766
        %v6768 = vrot.slane %v6767, 1
        %v6769 = vadd.f32 %v6767, %v6768
        %6770 = vmatpush.msra.mxu0 %v6759
        %6771 = vmatpush.msra.mxu0 %v6758
        %6772 = vmatpush.msra.mxu0 %v6757
        %6773 = vmatpush.msra.mxu0 %v6756
        %6774 = vmatpush.msra.mxu0 %v6755
        %6775 = vmatpush.msra.mxu0 %v6754
        %6776 = vmatpush.msra.mxu0 %v6753
        %6777 = vmatpush.msra.mxu0 %v6752
        %6778 = vmatpush.msra.mxu0 %v6751
        %6779 = vmatpush.msra.mxu0 %v6750
        %6780 = vmatpush.msra.mxu0 %v6749
        %6781 = vmatpush.msra.mxu0 %v6748
        %6782 = vmatpush.msra.mxu0 %v6747
        %6783 = vmatpush.msra.mxu0 %v6746
        %6784 = vmatpush.msra.mxu0 %v6745
        %6785 = vmatpush.msra.mxu0 %v6744
        %6786 = vmatmul.f32.gmra.mxu0 %v6769
        %v6787 = vpop.f32.mrf.mxu0
        %v6788 = vadd.f32 0.0, %v6787
        %6789 = vdwg.mxu0
        %v6790 = vmul.f32 %v6788, 0.005952381
        %v6791 = vperm.slane %v6790, 0
        %v6792 = vsub.f32 %v6738, %v6791
        %v6793 = vsub.f32 %v6739, %v6791
        %v6794 = vsub.f32 %v6740, %v6791
        %v6795 = vmul.f32 %v6792, %v6792
        %v6796 = vmul.f32 %v6793, %v6793
        %v6797 = vmul.f32 %v6794, %v6794
        %v6798 = vadd.f32 %v6795, %v6796
        %v6799 = vsel %vm6761, %v6797, 0.0
        %v6800 = vadd.f32 %v6798, %v6799
        %v6801 = vrot.slane %v6800, 4
        %v6802 = vadd.f32 %v6800, %v6801
        %v6803 = vrot.slane %v6802, 2
        %v6804 = vadd.f32 %v6802, %v6803
        %v6805 = vrot.slane %v6804, 1
        %v6806 = vadd.f32 %v6804, %v6805
        %6807 = vmatpush.msra.mxu0 %v6759
        %6808 = vmatpush.msra.mxu0 %v6758
        %6809 = vmatpush.msra.mxu0 %v6757
        %6810 = vmatpush.msra.mxu0 %v6756
        %6811 = vmatpush.msra.mxu0 %v6755
        %6812 = vmatpush.msra.mxu0 %v6754
        %6813 = vmatpush.msra.mxu0 %v6753
        %6814 = vmatpush.msra.mxu0 %v6752
        %6815 = vmatpush.msra.mxu0 %v6751
        %6816 = vmatpush.msra.mxu0 %v6750
        %6817 = vmatpush.msra.mxu0 %v6749
        %6818 = vmatpush.msra.mxu0 %v6748
        %6819 = vmatpush.msra.mxu0 %v6747
        %6820 = vmatpush.msra.mxu0 %v6746
        %6821 = vmatpush.msra.mxu0 %v6745
        %6822 = vmatpush.msra.mxu0 %v6744
        %6823 = vmatmul.f32.gmra.mxu0 %v6806
        %v6824 = vpop.f32.mrf.mxu0
        %v6825 = vadd.f32 0.0, %v6824
        %6826 = vdwg.mxu0
        %v6827 = vmul.f32 %v6825, 0.005952381
        %v6828 = vadd.f32 %v6827, 1e-05
        %v6829 = vrsqrt.pop %v6828
        %v6830 = vmul.f32 %v6829, %v6828
        %v6831 = vmul.f32 %v6830, %v6829
        %v6832 = vmul.f32 0.5, %v6831
        %v6833 = vsub.f32 1.5, %v6832
        %v6834 = vmul.f32 %v6829, %v6833
        %vm6835 = vweird.f32 %v6828
        %vm6836 = vweird.f32 %v6829
        %vm6837 = vmor %vm6835, %vm6836
        %v6838 = vsel %vm6837, %v6829, %v6834
        %v6839 = vmul.f32 %v6838, %v6741
        %v6840 = vperm.slane %v6839, 0
        %v6841 = vmul.f32 %v6792, %v6840
        %v6842 = vmul.f32 %v6793, %v6840
        %v6843 = vmul.f32 %v6794, %v6840
        %v6844 = vperm.slane %v6741, 1
        %v6845 = vadd.f32 %v6841, %v6844
        %v6846 = vadd.f32 %v6842, %v6844
        %v6847 = vadd.f32 %v6843, %v6844
        %v6848 = vmax.f32 %v6845, 0.0
        %v6849 = vmax.f32 %v6846, 0.0
        %v6850 = vmax.f32 %v6847, 0.0
        %v6851 = vpack.c.bf16 %v6849, %v6848
        %v6852 = vpack.c.bf16 %v6850, %v6850
        %v6853 = vld [vmem:[%s27] sm:$0xf]
        %v6854 = vld [vmem:[%s27 + $0x4] sm:$0xf]
        %v6855 = vld [vmem:[%s27 + $0x8] sm:$0xf]
        %v6856 = vld [vmem:[%s27 + $0xc] sm:$0xf]
        %v6857 = vld [vmem:[%s27 + $0x10] sm:$0xf]
        %v6858 = vld [vmem:[%s27 + $0x14] sm:$0xf]
        %v6859 = vld [vmem:[%s27 + $0x18] sm:$0xf]
        %v6860 = vld [vmem:[%s27 + $0x1c] sm:$0xf]
        %v6861 = vld [vmem:[%s27 + $0x20] sm:$0xf]
        %v6862 = vld [vmem:[%s27 + $0x24] sm:$0xf]
        %v6863 = vld [vmem:[%s27 + $0x28] sm:$0xf]
        %v6864 = vld [vmem:[%s27 + $0x2c] sm:$0xf]
        %v6865 = vld [vmem:[%s27 + $0x30] sm:$0xf]
        %v6866 = vld [vmem:[%s27 + $0x34] sm:$0xf]
        %v6867 = vld [vmem:[%s27 + $0x38] sm:$0xf]
        %v6868 = vld [vmem:[%s27 + $0x3c] sm:$0xf]
        %v6869 = vperm.slane %v6742, 4
        %v6886 = vunpack.c.l.b16 %v6853
        %v6887 = vunpack.c.l.b16 %v6854
        %v6888 = vunpack.c.l.b16 %v6855
        %v6889 = vunpack.c.l.b16 %v6856
        %v6890 = vunpack.c.l.b16 %v6857
        %v6891 = vunpack.c.l.b16 %v6858
        %v6892 = vunpack.c.l.b16 %v6859
        %v6893 = vunpack.c.l.b16 %v6860
        %v6894 = vunpack.c.l.b16 %v6861
        %v6895 = vunpack.c.l.b16 %v6862
        %v6896 = vunpack.c.l.b16 %v6863
        %v6897 = vunpack.c.l.b16 %v6864
        %v6898 = vunpack.c.l.b16 %v6865
        %v6899 = vunpack.c.l.b16 %v6866
        %v6900 = vunpack.c.l.b16 %v6867
        %v6901 = vunpack.c.l.b16 %v6868
        %v6902 = vpack.c.b16 %v6887, %v6886
        %v6903 = vpack.c.b16 %v6889, %v6888
        %v6904 = vpack.c.b16 %v6891, %v6890
        %v6905 = vpack.c.b16 %v6893, %v6892
        %v6906 = vpack.c.b16 %v6895, %v6894
        %v6907 = vpack.c.b16 %v6897, %v6896
        %v6908 = vpack.c.b16 %v6899, %v6898
        %v6909 = vpack.c.b16 %v6901, %v6900
        %6918 = vmatpush.bf16.msra.mxu0 %v6909
        %6919 = vmatpush.bf16.msra.mxu0 %v6908
        %6920 = vmatpush.bf16.msra.mxu0 %v6907
        %6921 = vmatpush.bf16.msra.mxu0 %v6906
        %6922 = vmatpush.bf16.msra.mxu0 %v6905
        %6923 = vmatpush.bf16.msra.mxu0 %v6904
        %6924 = vmatpush.bf16.msra.mxu0 %v6903
        %6925 = vmatpush.bf16.msra.mxu0 %v6902
        %6926 = vmatmul.bf16.gmra.mxu0 %v6851
        %v6927 = vpop.f32.mrf.mxu0
        %v6928 = vadd.f32 %v6869, %v6927
        %v6929 = vpop.f32.mrf.mxu0
        %v6930 = vadd.f32 %v6869, %v6929
        %6931 = vmatmul.bf16.gmra.mxu0 %v6852
        %v6932 = vpop.f32.mrf.mxu0
        %v6933 = vadd.f32 %v6869, %v6932
        %v6934 = vpop.f32.mrf.mxu0
        %6935 = vdwg.mxu0
        %v6936 = vsel %vm6275, %v6928, 0.0
        %v6937 = vsel %vm6275, %v6930, 0.0
        %v6938 = vadd.f32 %v6936, %v6937
        %v6939 = vsel %vm6419, %v6933, 0.0
        %v6940 = vadd.f32 %v6938, %v6939
        %v6941 = vrot.slane %v6940, 4
        %v6942 = vadd.f32 %v6940, %v6941
        %v6943 = vrot.slane %v6942, 2
        %v6944 = vadd.f32 %v6942, %v6943
        %v6945 = vrot.slane %v6944, 1
        %v6946 = vadd.f32 %v6944, %v6945
        %v6948 = vsel %vm6275, %v6946, 0
        %6950 = vmatpush.msra.mxu0 0.0
        %6951 = vmatpush.msra.mxu0 0.0
        %6952 = vmatpush.msra.mxu0 0.0
        %6953 = vmatpush.msra.mxu0 0.0
        %6954 = vmatpush.msra.mxu0 0.0
        %6955 = vmatpush.msra.mxu0 0.0
        %6956 = vmatpush.msra.mxu0 0.0
        %6957 = vmatpush.msra.mxu0 0.0
        %6958 = vmatpush.msra.mxu0 %v6273
        %6959 = vmatpush.msra.mxu0 %v6272
        %6960 = vmatpush.msra.mxu0 %v6271
        %6961 = vmatpush.msra.mxu0 %v6270
        %6962 = vmatpush.msra.mxu0 %v6269
        %6963 = vmatpush.msra.mxu0 %v6268
        %6964 = vmatpush.msra.mxu0 %v6267
        %6965 = vmatpush.msra.mxu0 %v6266
        %6966 = vmatmul.f32.gmra.mxu0 %v6948
        %v6967 = vpop.f32.mrf.mxu0
        %v6968 = vadd.f32 0.0, %v6967
        %6969 = vdwg.mxu0
        %v6970 = vmul.f32 %v6968, 0.005952381
        %v6971 = vperm.slane %v6970, 0
        %v6972 = vsub.f32 %v6928, %v6971
        %v6973 = vsub.f32 %v6930, %v6971
        %v6974 = vsub.f32 %v6933, %v6971
        %v6975 = vmul.f32 %v6972, %v6972
        %v6976 = vmul.f32 %v6973, %v6973
        %v6977 = vmul.f32 %v6974, %v6974
        %v6978 = vsel %vm6275, %v6975, 0.0
        %v6979 = vsel %vm6275, %v6976, 0.0
        %v6980 = vadd.f32 %v6978, %v6979
        %v6981 = vsel %vm6419, %v6977, 0.0
        %v6982 = vadd.f32 %v6980, %v6981
        %v6983 = vrot.slane %v6982, 4
        %v6984 = vadd.f32 %v6982, %v6983
        %v6985 = vrot.slane %v6984, 2
        %v6986 = vadd.f32 %v6984, %v6985
        %v6987 = vrot.slane %v6986, 1
        %v6988 = vadd.f32 %v6986, %v6987
        %v6990 = vsel %vm6275, %v6988, 0
        %6992 = vmatpush.msra.mxu0 0.0
        %6993 = vmatpush.msra.mxu0 0.0
        %6994 = vmatpush.msra.mxu0 0.0
        %6995 = vmatpush.msra.mxu0 0.0
        %6996 = vmatpush.msra.mxu0 0.0
        %6997 = vmatpush.msra.mxu0 0.0
        %6998 = vmatpush.msra.mxu0 0.0
        %6999 = vmatpush.msra.mxu0 0.0
        %7000 = vmatpush.msra.mxu0 %v6273
        %7001 = vmatpush.msra.mxu0 %v6272
        %7002 = vmatpush.msra.mxu0 %v6271
        %7003 = vmatpush.msra.mxu0 %v6270
        %7004 = vmatpush.msra.mxu0 %v6269
        %7005 = vmatpush.msra.mxu0 %v6268
        %7006 = vmatpush.msra.mxu0 %v6267
        %7007 = vmatpush.msra.mxu0 %v6266
        %7008 = vmatmul.f32.gmra.mxu0 %v6990
        %v7009 = vpop.f32.mrf.mxu0
        %v7010 = vadd.f32 0.0, %v7009
        %7011 = vdwg.mxu0
        %v7012 = vmul.f32 %v7010, 0.005952381
        %v7013 = vadd.f32 %v7012, 1e-05
        %v7014 = vrsqrt.pop %v7013
        %v7015 = vmul.f32 %v7014, %v7013
        %v7016 = vmul.f32 %v7015, %v7014
        %v7017 = vmul.f32 0.5, %v7016
        %v7018 = vsub.f32 1.5, %v7017
        %v7019 = vmul.f32 %v7014, %v7018
        %vm7020 = vweird.f32 %v7013
        %vm7021 = vweird.f32 %v7014
        %vm7022 = vmor %vm7020, %vm7021
        %v7023 = vsel %vm7022, %v7014, %v7019
        %v7024 = vmul.f32 %v7023, %v6742
        %v7025 = vperm.slane %v7024, 0
        %v7026 = vmul.f32 %v6972, %v7025
        %v7027 = vmul.f32 %v6973, %v7025
        %v7028 = vmul.f32 %v6974, %v7025
        %v7029 = vperm.slane %v6742, 1
        %v7030 = vadd.f32 %v7026, %v7029
        %v7031 = vadd.f32 %v7027, %v7029
        %v7032 = vadd.f32 %v7028, %v7029
        %v7033 = vmax.f32 %v7030, 0.0
        %v7034 = vmax.f32 %v7031, 0.0
        %v7035 = vmax.f32 %v7032, 0.0
        %v7036 = vpack.c.bf16 %v7034, %v7033
        %v7037 = vpack.c.bf16 %v7035, %v7035
        %v7038 = vld [vmem:[%s31] sm:$0xf]
        %v7039 = vld [vmem:[%s31 + $0x4] sm:$0xf]
        %v7040 = vld [vmem:[%s31 + $0x8] sm:$0xf]
        %v7041 = vld [vmem:[%s31 + $0xc] sm:$0xf]
        %v7042 = vld [vmem:[%s31 + $0x10] sm:$0xf]
        %v7043 = vld [vmem:[%s31 + $0x14] sm:$0xf]
        %v7044 = vld [vmem:[%s31 + $0x18] sm:$0xf]
        %v7045 = vld [vmem:[%s31 + $0x1c] sm:$0xf]
        %v7054 = vunpack.c.l.b16 %v7038
        %v7055 = vunpack.c.l.b16 %v7039
        %v7056 = vunpack.c.l.b16 %v7040
        %v7057 = vunpack.c.l.b16 %v7041
        %v7058 = vunpack.c.l.b16 %v7042
        %v7059 = vunpack.c.l.b16 %v7043
        %v7060 = vunpack.c.l.b16 %v7044
        %v7061 = vunpack.c.l.b16 %v7045
        %v7062 = vpack.c.b16 %v7055, %v7054
        %v7063 = vpack.c.b16 %v7057, %v7056
        %v7064 = vpack.c.b16 %v7059, %v7058
        %v7065 = vpack.c.b16 %v7061, %v7060
        %v7071 = vsel %vm6275, %v7036, 0
        %v7074 = vsel %vm6275, %v7037, 0
        %7076 = vmatpush.bf16.msra.mxu0 0
        %7077 = vmatpush.bf16.msra.mxu0 0
        %7078 = vmatpush.bf16.msra.mxu0 0
        %7079 = vmatpush.bf16.msra.mxu0 0
        %7080 = vmatpush.bf16.msra.mxu0 %v7065
        %7081 = vmatpush.bf16.msra.mxu0 %v7064
        %7082 = vmatpush.bf16.msra.mxu0 %v7063
        %7083 = vmatpush.bf16.msra.mxu0 %v7062
        %7084 = vmatmul.bf16.gmra.mxu0 %v7071
        %v7085 = vpop.f32.mrf.mxu0
        %v7086 = vadd.f32 0.0, %v7085
        %v7087 = vpop.f32.mrf.mxu0
        %v7088 = vadd.f32 0.0, %v7087
        %7089 = vmatmul.bf16.gmra.mxu0 %v7074
        %v7090 = vpop.f32.mrf.mxu0
        %v7091 = vadd.f32 0.0, %v7090
        %v7092 = vpop.f32.mrf.mxu0
        %7093 = vdwg.mxu0
        %v7094 = vpack.c.bf16 %v7088, %v7086
        %v7095 = vpack.c.bf16 %v7091, %v7091
        %v7096 = vperm.slane %v6742, 5
        %v7100 = vunpack.c.l.b16 %v1448
        %v7101 = vunpack.c.l.b16 %v1449
        %v7102 = vunpack.c.l.b16 %v1450
        %v7103 = vpack.c.b16 %v7101, %v7100
        %v7104 = vpack.c.b16 %v7102, %v7102
        %vm7105 = vcmask 171008
        %v7107 = vsel %vm7105, %v7103, 0
        %v7110 = vsel %vm7105, %v7104, 0
        %vm7112 = vcmask 1041408
        %v7113 = vsel %vm7112, 4294967295, 65535
        %v7114 = vsel %vm2829, %v7113, 0
        %v7116 = vand.u32 %v7095, %v7114
        %7118 = vmatpush.bf16.msra.mxu0 0
        %7119 = vmatpush.bf16.msra.mxu0 0
        %7120 = vmatpush.bf16.msra.mxu0 0
        %7121 = vmatpush.bf16.msra.mxu0 0
        %7122 = vmatpush.bf16.msra.mxu0 0
        %7123 = vmatpush.bf16.msra.mxu0 0
        %7124 = vmatpush.bf16.msra.mxu0 %v7116
        %7125 = vmatpush.bf16.msra.mxu0 %v7094
        %7126 = vmatmul.bf16.gmra.mxu0 %v7107
        %v7127 = vpop.f32.mrf.mxu0
        %v7128 = vadd.f32 %v7096, %v7127
        %v7129 = vpop.f32.mrf.mxu0
        %v7130 = vadd.f32 %v7096, %v7129
        %7131 = vmatmul.bf16.gmra.mxu0 %v7110
        %v7132 = vpop.f32.mrf.mxu0
        %v7133 = vadd.f32 %v7096, %v7132
        %v7134 = vpop.f32.mrf.mxu0
        %7135 = vdwg.mxu0
        %v7136 = vsel %vm6275, %v7128, 0.0
        %v7137 = vsel %vm6275, %v7130, 0.0
        %v7138 = vadd.f32 %v7136, %v7137
        %v7139 = vsel %vm6419, %v7133, 0.0
        %v7140 = vadd.f32 %v7138, %v7139
        %v7141 = vrot.slane %v7140, 4
        %v7142 = vadd.f32 %v7140, %v7141
        %v7143 = vrot.slane %v7142, 2
        %v7144 = vadd.f32 %v7142, %v7143
        %v7145 = vrot.slane %v7144, 1
        %v7146 = vadd.f32 %v7144, %v7145
        %v7148 = vsel %vm6275, %v7146, 0
        %7150 = vmatpush.msra.mxu0 0.0
        %7151 = vmatpush.msra.mxu0 0.0
        %7152 = vmatpush.msra.mxu0 0.0
        %7153 = vmatpush.msra.mxu0 0.0
        %7154 = vmatpush.msra.mxu0 0.0
        %7155 = vmatpush.msra.mxu0 0.0
        %7156 = vmatpush.msra.mxu0 0.0
        %7157 = vmatpush.msra.mxu0 0.0
        %7158 = vmatpush.msra.mxu0 %v6273
        %7159 = vmatpush.msra.mxu0 %v6272
        %7160 = vmatpush.msra.mxu0 %v6271
        %7161 = vmatpush.msra.mxu0 %v6270
        %7162 = vmatpush.msra.mxu0 %v6269
        %7163 = vmatpush.msra.mxu0 %v6268
        %7164 = vmatpush.msra.mxu0 %v6267
        %7165 = vmatpush.msra.mxu0 %v6266
        %7166 = vmatmul.f32.gmra.mxu0 %v7148
        %v7167 = vpop.f32.mrf.mxu0
        %v7168 = vadd.f32 0.0, %v7167
        %7169 = vdwg.mxu0
        %v7170 = vmul.f32 %v7168, 0.005952381
        %v7171 = vperm.slane %v7170, 0
        %v7172 = vsub.f32 %v7128, %v7171
        %v7173 = vsub.f32 %v7130, %v7171
        %v7174 = vsub.f32 %v7133, %v7171
        %v7175 = vmul.f32 %v7172, %v7172
        %v7176 = vmul.f32 %v7173, %v7173
        %v7177 = vmul.f32 %v7174, %v7174
        %v7178 = vsel %vm6275, %v7175, 0.0
        %v7179 = vsel %vm6275, %v7176, 0.0
        %v7180 = vadd.f32 %v7178, %v7179
        %v7181 = vsel %vm6419, %v7177, 0.0
        %v7182 = vadd.f32 %v7180, %v7181
        %v7183 = vrot.slane %v7182, 4
        %v7184 = vadd.f32 %v7182, %v7183
        %v7185 = vrot.slane %v7184, 2
        %v7186 = vadd.f32 %v7184, %v7185
        %v7187 = vrot.slane %v7186, 1
        %v7188 = vadd.f32 %v7186, %v7187
        %v7190 = vsel %vm6275, %v7188, 0
        %7192 = vmatpush.msra.mxu0 0.0
        %7193 = vmatpush.msra.mxu0 0.0
        %7194 = vmatpush.msra.mxu0 0.0
        %7195 = vmatpush.msra.mxu0 0.0
        %7196 = vmatpush.msra.mxu0 0.0
        %7197 = vmatpush.msra.mxu0 0.0
        %7198 = vmatpush.msra.mxu0 0.0
        %7199 = vmatpush.msra.mxu0 0.0
        %7200 = vmatpush.msra.mxu0 %v6273
        %7201 = vmatpush.msra.mxu0 %v6272
        %7202 = vmatpush.msra.mxu0 %v6271
        %7203 = vmatpush.msra.mxu0 %v6270
        %7204 = vmatpush.msra.mxu0 %v6269
        %7205 = vmatpush.msra.mxu0 %v6268
        %7206 = vmatpush.msra.mxu0 %v6267
        %7207 = vmatpush.msra.mxu0 %v6266
        %7208 = vmatmul.f32.gmra.mxu0 %v7190
        %v7209 = vpop.f32.mrf.mxu0
        %v7210 = vadd.f32 0.0, %v7209
        %7211 = vdwg.mxu0
        %v7212 = vmul.f32 %v7210, 0.005952381
        %v7213 = vadd.f32 %v7212, 1e-05
        %v7214 = vrsqrt.pop %v7213
        %v7215 = vmul.f32 %v7214, %v7213
        %v7216 = vmul.f32 %v7215, %v7214
        %v7217 = vmul.f32 0.5, %v7216
        %v7218 = vsub.f32 1.5, %v7217
        %v7219 = vmul.f32 %v7214, %v7218
        %vm7220 = vweird.f32 %v7213
        %vm7221 = vweird.f32 %v7214
        %vm7222 = vmor %vm7220, %vm7221
        %v7223 = vsel %vm7222, %v7214, %v7219
        %v7225 = vrot.slane %v6742, 2
        %v7227 = vmul.f32 %v7223, %v7225
        %v7228 = vperm.slane %v7227, 0
        %v7229 = vmul.f32 %v7172, %v7228
        %v7230 = vmul.f32 %v7173, %v7228
        %v7231 = vmul.f32 %v7174, %v7228
        %v7232 = vperm.slane %v6742, 3
        %v7233 = vadd.f32 %v7229, %v7232
        %v7234 = vadd.f32 %v7230, %v7232
        %v7235 = vadd.f32 %v7231, %v7232
        %v7236 = vmax.f32 %v7233, 0.0
        %v7237 = vmax.f32 %v7234, 0.0
        %v7238 = vmax.f32 %v7235, 0.0
        %v7239 = vpack.c.bf16 %v7237, %v7236
        %v7240 = vpack.c.bf16 %v7238, %v7238
        %v7241 = vld [vmem:[%s29] sm:$0xf]
        %v7242 = vld [vmem:[%s29 + $0x4] sm:$0xf]
        %v7243 = vld [vmem:[%s29 + $0x8] sm:$0xf]
        %v7244 = vld [vmem:[%s29 + $0xc] sm:$0xf]
        %v7245 = vld [vmem:[%s29 + $0x10] sm:$0xf]
        %v7246 = vld [vmem:[%s29 + $0x14] sm:$0xf]
        %v7247 = vld [vmem:[%s29 + $0x18] sm:$0xf]
        %v7248 = vld [vmem:[%s29 + $0x1c] sm:$0xf]
        %v7250 = vperm.slane %v6743, 0
        %v7260 = vunpack.c.l.b16 %v7241
        %v7261 = vunpack.c.l.b16 %v7242
        %v7262 = vunpack.c.l.b16 %v7243
        %v7263 = vunpack.c.l.b16 %v7244
        %v7264 = vunpack.c.l.b16 %v7245
        %v7265 = vunpack.c.l.b16 %v7246
        %v7266 = vunpack.c.l.b16 %v7247
        %v7267 = vunpack.c.l.b16 %v7248
        %v7268 = vpack.c.b16 %v7261, %v7260
        %v7269 = vpack.c.b16 %v7263, %v7262
        %v7270 = vpack.c.b16 %v7265, %v7264
        %v7271 = vpack.c.b16 %v7267, %v7266
        %v7277 = vsel %vm6275, %v7239, 0
        %v7280 = vsel %vm6275, %v7240, 0
        %7282 = vmatpush.bf16.msra.mxu0 0
        %7283 = vmatpush.bf16.msra.mxu0 0
        %7284 = vmatpush.bf16.msra.mxu0 0
        %7285 = vmatpush.bf16.msra.mxu0 0
        %7286 = vmatpush.bf16.msra.mxu0 %v7271
        %7287 = vmatpush.bf16.msra.mxu0 %v7270
        %7288 = vmatpush.bf16.msra.mxu0 %v7269
        %7289 = vmatpush.bf16.msra.mxu0 %v7268
        %7290 = vmatmul.bf16.gmra.mxu0 %v7277
        %v7291 = vpop.f32.mrf.mxu0
        %v7292 = vadd.f32 %v7250, %v7291
        %v7293 = vpop.f32.mrf.mxu0
        %v7294 = vadd.f32 %v7250, %v7293
        %7295 = vmatmul.bf16.gmra.mxu0 %v7280
        %v7296 = vpop.f32.mrf.mxu0
        %v7297 = vadd.f32 %v7250, %v7296
        %v7298 = vpop.f32.mrf.mxu0
        %7299 = vdwg.mxu0
        %v7300 = vadd.f32 %v7292, %v6738
        %v7301 = vadd.f32 %v7294, %v6739
        %v7302 = vadd.f32 %v7297, %v6740
        %v7303 = vld [vmem:[%s33] sm:$0x3]
        %v7304 = vld [vmem:[%s35] sm:$0x3f]
        %v7305 = vld [vmem:[%s37] sm:$0x1]
        %v7306 = vadd.f32 %v7300, %v7301
        %v7307 = vsel %vm6761, %v7302, 0.0
        %v7308 = vadd.f32 %v7306, %v7307
        %v7309 = vrot.slane %v7308, 4
        %v7310 = vadd.f32 %v7308, %v7309
        %v7311 = vrot.slane %v7310, 2
        %v7312 = vadd.f32 %v7310, %v7311
        %v7313 = vrot.slane %v7312, 1
        %v7314 = vadd.f32 %v7312, %v7313
        %7315 = vmatpush.msra.mxu0 %v6759
        %7316 = vmatpush.msra.mxu0 %v6758
        %7317 = vmatpush.msra.mxu0 %v6757
        %7318 = vmatpush.msra.mxu0 %v6756
        %7319 = vmatpush.msra.mxu0 %v6755
        %7320 = vmatpush.msra.mxu0 %v6754
        %7321 = vmatpush.msra.mxu0 %v6753
        %7322 = vmatpush.msra.mxu0 %v6752
        %7323 = vmatpush.msra.mxu0 %v6751
        %7324 = vmatpush.msra.mxu0 %v6750
        %7325 = vmatpush.msra.mxu0 %v6749
        %7326 = vmatpush.msra.mxu0 %v6748
        %7327 = vmatpush.msra.mxu0 %v6747
        %7328 = vmatpush.msra.mxu0 %v6746
        %7329 = vmatpush.msra.mxu0 %v6745
        %7330 = vmatpush.msra.mxu0 %v6744
        %7331 = vmatmul.f32.gmra.mxu0 %v7314
        %v7332 = vpop.f32.mrf.mxu0
        %v7333 = vadd.f32 0.0, %v7332
        %7334 = vdwg.mxu0
        %v7335 = vmul.f32 %v7333, 0.005952381
        %v7336 = vperm.slane %v7335, 0
        %v7337 = vsub.f32 %v7300, %v7336
        %v7338 = vsub.f32 %v7301, %v7336
        %v7339 = vsub.f32 %v7302, %v7336
        %v7340 = vmul.f32 %v7337, %v7337
        %v7341 = vmul.f32 %v7338, %v7338
        %v7342 = vmul.f32 %v7339, %v7339
        %v7343 = vadd.f32 %v7340, %v7341
        %v7344 = vsel %vm6761, %v7342, 0.0
        %v7345 = vadd.f32 %v7343, %v7344
        %v7346 = vrot.slane %v7345, 4
        %v7347 = vadd.f32 %v7345, %v7346
        %v7348 = vrot.slane %v7347, 2
        %v7349 = vadd.f32 %v7347, %v7348
        %v7350 = vrot.slane %v7349, 1
        %v7351 = vadd.f32 %v7349, %v7350
        %7352 = vmatpush.msra.mxu0 %v6759
        %7353 = vmatpush.msra.mxu0 %v6758
        %7354 = vmatpush.msra.mxu0 %v6757
        %7355 = vmatpush.msra.mxu0 %v6756
        %7356 = vmatpush.msra.mxu0 %v6755
        %7357 = vmatpush.msra.mxu0 %v6754
        %7358 = vmatpush.msra.mxu0 %v6753
        %7359 = vmatpush.msra.mxu0 %v6752
        %7360 = vmatpush.msra.mxu0 %v6751
        %7361 = vmatpush.msra.mxu0 %v6750
        %7362 = vmatpush.msra.mxu0 %v6749
        %7363 = vmatpush.msra.mxu0 %v6748
        %7364 = vmatpush.msra.mxu0 %v6747
        %7365 = vmatpush.msra.mxu0 %v6746
        %7366 = vmatpush.msra.mxu0 %v6745
        %7367 = vmatpush.msra.mxu0 %v6744
        %7368 = vmatmul.f32.gmra.mxu0 %v7351
        %v7369 = vpop.f32.mrf.mxu0
        %v7370 = vadd.f32 0.0, %v7369
        %7371 = vdwg.mxu0
        %v7372 = vmul.f32 %v7370, 0.005952381
        %v7373 = vadd.f32 %v7372, 1e-05
        %v7374 = vrsqrt.pop %v7373
        %v7375 = vmul.f32 %v7374, %v7373
        %v7376 = vmul.f32 %v7375, %v7374
        %v7377 = vmul.f32 0.5, %v7376
        %v7378 = vsub.f32 1.5, %v7377
        %v7379 = vmul.f32 %v7374, %v7378
        %vm7380 = vweird.f32 %v7373
        %vm7381 = vweird.f32 %v7374
        %vm7382 = vmor %vm7380, %vm7381
        %v7383 = vsel %vm7382, %v7374, %v7379
        %v7384 = vmul.f32 %v7383, %v7303
        %v7385 = vperm.slane %v7384, 0
        %v7386 = vmul.f32 %v7337, %v7385
        %v7387 = vmul.f32 %v7338, %v7385
        %v7388 = vmul.f32 %v7339, %v7385
        %v7389 = vperm.slane %v7303, 1
        %v7390 = vadd.f32 %v7386, %v7389
        %v7391 = vadd.f32 %v7387, %v7389
        %v7392 = vadd.f32 %v7388, %v7389
        %v7393 = vmax.f32 %v7390, 0.0
        %v7394 = vmax.f32 %v7391, 0.0
        %v7395 = vmax.f32 %v7392, 0.0
        %v7396 = vpack.c.bf16 %v7394, %v7393
        %v7397 = vpack.c.bf16 %v7395, %v7395
        %v7398 = vld [vmem:[%s39] sm:$0xf]
        %v7399 = vld [vmem:[%s39 + $0x4] sm:$0xf]
        %v7400 = vld [vmem:[%s39 + $0x8] sm:$0xf]
        %v7401 = vld [vmem:[%s39 + $0xc] sm:$0xf]
        %v7402 = vld [vmem:[%s39 + $0x10] sm:$0xf]
        %v7403 = vld [vmem:[%s39 + $0x14] sm:$0xf]
        %v7404 = vld [vmem:[%s39 + $0x18] sm:$0xf]
        %v7405 = vld [vmem:[%s39 + $0x1c] sm:$0xf]
        %v7406 = vld [vmem:[%s39 + $0x20] sm:$0xf]
        %v7407 = vld [vmem:[%s39 + $0x24] sm:$0xf]
        %v7408 = vld [vmem:[%s39 + $0x28] sm:$0xf]
        %v7409 = vld [vmem:[%s39 + $0x2c] sm:$0xf]
        %v7410 = vld [vmem:[%s39 + $0x30] sm:$0xf]
        %v7411 = vld [vmem:[%s39 + $0x34] sm:$0xf]
        %v7412 = vld [vmem:[%s39 + $0x38] sm:$0xf]
        %v7413 = vld [vmem:[%s39 + $0x3c] sm:$0xf]
        %v7414 = vperm.slane %v7304, 4
        %v7431 = vunpack.c.l.b16 %v7398
        %v7432 = vunpack.c.l.b16 %v7399
        %v7433 = vunpack.c.l.b16 %v7400
        %v7434 = vunpack.c.l.b16 %v7401
        %v7435 = vunpack.c.l.b16 %v7402
        %v7436 = vunpack.c.l.b16 %v7403
        %v7437 = vunpack.c.l.b16 %v7404
        %v7438 = vunpack.c.l.b16 %v7405
        %v7439 = vunpack.c.l.b16 %v7406
        %v7440 = vunpack.c.l.b16 %v7407
        %v7441 = vunpack.c.l.b16 %v7408
        %v7442 = vunpack.c.l.b16 %v7409
        %v7443 = vunpack.c.l.b16 %v7410
        %v7444 = vunpack.c.l.b16 %v7411
        %v7445 = vunpack.c.l.b16 %v7412
        %v7446 = vunpack.c.l.b16 %v7413
        %v7447 = vpack.c.b16 %v7432, %v7431
        %v7448 = vpack.c.b16 %v7434, %v7433
        %v7449 = vpack.c.b16 %v7436, %v7435
        %v7450 = vpack.c.b16 %v7438, %v7437
        %v7451 = vpack.c.b16 %v7440, %v7439
        %v7452 = vpack.c.b16 %v7442, %v7441
        %v7453 = vpack.c.b16 %v7444, %v7443
        %v7454 = vpack.c.b16 %v7446, %v7445
        %7463 = vmatpush.bf16.msra.mxu0 %v7454
        %7464 = vmatpush.bf16.msra.mxu0 %v7453
        %7465 = vmatpush.bf16.msra.mxu0 %v7452
        %7466 = vmatpush.bf16.msra.mxu0 %v7451
        %7467 = vmatpush.bf16.msra.mxu0 %v7450
        %7468 = vmatpush.bf16.msra.mxu0 %v7449
        %7469 = vmatpush.bf16.msra.mxu0 %v7448
        %7470 = vmatpush.bf16.msra.mxu0 %v7447
        %7471 = vmatmul.bf16.gmra.mxu0 %v7396
        %v7472 = vpop.f32.mrf.mxu0
        %v7473 = vadd.f32 %v7414, %v7472
        %v7474 = vpop.f32.mrf.mxu0
        %v7475 = vadd.f32 %v7414, %v7474
        %7476 = vmatmul.bf16.gmra.mxu0 %v7397
        %v7477 = vpop.f32.mrf.mxu0
        %v7478 = vadd.f32 %v7414, %v7477
        %v7479 = vpop.f32.mrf.mxu0
        %7480 = vdwg.mxu0
        %v7481 = vsel %vm6275, %v7473, 0.0
        %v7482 = vsel %vm6275, %v7475, 0.0
        %v7483 = vadd.f32 %v7481, %v7482
        %v7484 = vsel %vm6419, %v7478, 0.0
        %v7485 = vadd.f32 %v7483, %v7484
        %v7486 = vrot.slane %v7485, 4
        %v7487 = vadd.f32 %v7485, %v7486
        %v7488 = vrot.slane %v7487, 2
        %v7489 = vadd.f32 %v7487, %v7488
        %v7490 = vrot.slane %v7489, 1
        %v7491 = vadd.f32 %v7489, %v7490
        %v7493 = vsel %vm6275, %v7491, 0
        %7495 = vmatpush.msra.mxu0 0.0
        %7496 = vmatpush.msra.mxu0 0.0
        %7497 = vmatpush.msra.mxu0 0.0
        %7498 = vmatpush.msra.mxu0 0.0
        %7499 = vmatpush.msra.mxu0 0.0
        %7500 = vmatpush.msra.mxu0 0.0
        %7501 = vmatpush.msra.mxu0 0.0
        %7502 = vmatpush.msra.mxu0 0.0
        %7503 = vmatpush.msra.mxu0 %v6273
        %7504 = vmatpush.msra.mxu0 %v6272
        %7505 = vmatpush.msra.mxu0 %v6271
        %7506 = vmatpush.msra.mxu0 %v6270
        %7507 = vmatpush.msra.mxu0 %v6269
        %7508 = vmatpush.msra.mxu0 %v6268
        %7509 = vmatpush.msra.mxu0 %v6267
        %7510 = vmatpush.msra.mxu0 %v6266
        %7511 = vmatmul.f32.gmra.mxu0 %v7493
        %v7512 = vpop.f32.mrf.mxu0
        %v7513 = vadd.f32 0.0, %v7512
        %7514 = vdwg.mxu0
        %v7515 = vmul.f32 %v7513, 0.005952381
        %v7516 = vperm.slane %v7515, 0
        %v7517 = vsub.f32 %v7473, %v7516
        %v7518 = vsub.f32 %v7475, %v7516
        %v7519 = vsub.f32 %v7478, %v7516
        %v7520 = vmul.f32 %v7517, %v7517
        %v7521 = vmul.f32 %v7518, %v7518
        %v7522 = vmul.f32 %v7519, %v7519
        %v7523 = vsel %vm6275, %v7520, 0.0
        %v7524 = vsel %vm6275, %v7521, 0.0
        %v7525 = vadd.f32 %v7523, %v7524
        %v7526 = vsel %vm6419, %v7522, 0.0
        %v7527 = vadd.f32 %v7525, %v7526
        %v7528 = vrot.slane %v7527, 4
        %v7529 = vadd.f32 %v7527, %v7528
        %v7530 = vrot.slane %v7529, 2
        %v7531 = vadd.f32 %v7529, %v7530
        %v7532 = vrot.slane %v7531, 1
        %v7533 = vadd.f32 %v7531, %v7532
        %v7535 = vsel %vm6275, %v7533, 0
        %7537 = vmatpush.msra.mxu0 0.0
        %7538 = vmatpush.msra.mxu0 0.0
        %7539 = vmatpush.msra.mxu0 0.0
        %7540 = vmatpush.msra.mxu0 0.0
        %7541 = vmatpush.msra.mxu0 0.0
        %7542 = vmatpush.msra.mxu0 0.0
        %7543 = vmatpush.msra.mxu0 0.0
        %7544 = vmatpush.msra.mxu0 0.0
        %7545 = vmatpush.msra.mxu0 %v6273
        %7546 = vmatpush.msra.mxu0 %v6272
        %7547 = vmatpush.msra.mxu0 %v6271
        %7548 = vmatpush.msra.mxu0 %v6270
        %7549 = vmatpush.msra.mxu0 %v6269
        %7550 = vmatpush.msra.mxu0 %v6268
        %7551 = vmatpush.msra.mxu0 %v6267
        %7552 = vmatpush.msra.mxu0 %v6266
        %7553 = vmatmul.f32.gmra.mxu0 %v7535
        %v7554 = vpop.f32.mrf.mxu0
        %v7555 = vadd.f32 0.0, %v7554
        %7556 = vdwg.mxu0
        %v7557 = vmul.f32 %v7555, 0.005952381
        %v7558 = vadd.f32 %v7557, 1e-05
        %v7559 = vrsqrt.pop %v7558
        %v7560 = vmul.f32 %v7559, %v7558
        %v7561 = vmul.f32 %v7560, %v7559
        %v7562 = vmul.f32 0.5, %v7561
        %v7563 = vsub.f32 1.5, %v7562
        %v7564 = vmul.f32 %v7559, %v7563
        %vm7565 = vweird.f32 %v7558
        %vm7566 = vweird.f32 %v7559
        %vm7567 = vmor %vm7565, %vm7566
        %v7568 = vsel %vm7567, %v7559, %v7564
        %v7569 = vmul.f32 %v7568, %v7304
        %v7570 = vperm.slane %v7569, 0
        %v7571 = vmul.f32 %v7517, %v7570
        %v7572 = vmul.f32 %v7518, %v7570
        %v7573 = vmul.f32 %v7519, %v7570
        %v7574 = vperm.slane %v7304, 1
        %v7575 = vadd.f32 %v7571, %v7574
        %v7576 = vadd.f32 %v7572, %v7574
        %v7577 = vadd.f32 %v7573, %v7574
        %v7578 = vmax.f32 %v7575, 0.0
        %v7579 = vmax.f32 %v7576, 0.0
        %v7580 = vmax.f32 %v7577, 0.0
        %v7581 = vpack.c.bf16 %v7579, %v7578
        %v7582 = vpack.c.bf16 %v7580, %v7580
        %v7583 = vld [vmem:[%s43] sm:$0xf]
        %v7584 = vld [vmem:[%s43 + $0x4] sm:$0xf]
        %v7585 = vld [vmem:[%s43 + $0x8] sm:$0xf]
        %v7586 = vld [vmem:[%s43 + $0xc] sm:$0xf]
        %v7587 = vld [vmem:[%s43 + $0x10] sm:$0xf]
        %v7588 = vld [vmem:[%s43 + $0x14] sm:$0xf]
        %v7589 = vld [vmem:[%s43 + $0x18] sm:$0xf]
        %v7590 = vld [vmem:[%s43 + $0x1c] sm:$0xf]
        %v7599 = vunpack.c.l.b16 %v7583
        %v7600 = vunpack.c.l.b16 %v7584
        %v7601 = vunpack.c.l.b16 %v7585
        %v7602 = vunpack.c.l.b16 %v7586
        %v7603 = vunpack.c.l.b16 %v7587
        %v7604 = vunpack.c.l.b16 %v7588
        %v7605 = vunpack.c.l.b16 %v7589
        %v7606 = vunpack.c.l.b16 %v7590
        %v7607 = vpack.c.b16 %v7600, %v7599
        %v7608 = vpack.c.b16 %v7602, %v7601
        %v7609 = vpack.c.b16 %v7604, %v7603
        %v7610 = vpack.c.b16 %v7606, %v7605
        %v7616 = vsel %vm6275, %v7581, 0
        %v7619 = vsel %vm6275, %v7582, 0
        %7621 = vmatpush.bf16.msra.mxu0 0
        %7622 = vmatpush.bf16.msra.mxu0 0
        %7623 = vmatpush.bf16.msra.mxu0 0
        %7624 = vmatpush.bf16.msra.mxu0 0
        %7625 = vmatpush.bf16.msra.mxu0 %v7610
        %7626 = vmatpush.bf16.msra.mxu0 %v7609
        %7627 = vmatpush.bf16.msra.mxu0 %v7608
        %7628 = vmatpush.bf16.msra.mxu0 %v7607
        %7629 = vmatmul.bf16.gmra.mxu0 %v7616
        %v7630 = vpop.f32.mrf.mxu0
        %v7631 = vadd.f32 0.0, %v7630
        %v7632 = vpop.f32.mrf.mxu0
        %v7633 = vadd.f32 0.0, %v7632
        %7634 = vmatmul.bf16.gmra.mxu0 %v7619
        %v7635 = vpop.f32.mrf.mxu0
        %v7636 = vadd.f32 0.0, %v7635
        %v7637 = vpop.f32.mrf.mxu0
        %7638 = vdwg.mxu0
        %v7639 = vpack.c.bf16 %v7633, %v7631
        %v7640 = vpack.c.bf16 %v7636, %v7636
        %v7641 = vperm.slane %v7304, 5
        %v7643 = vand.u32 %v7640, %v7114
        %7645 = vmatpush.bf16.msra.mxu0 0
        %7646 = vmatpush.bf16.msra.mxu0 0
        %7647 = vmatpush.bf16.msra.mxu0 0
        %7648 = vmatpush.bf16.msra.mxu0 0
        %7649 = vmatpush.bf16.msra.mxu0 0
        %7650 = vmatpush.bf16.msra.mxu0 0
        %7651 = vmatpush.bf16.msra.mxu0 %v7643
        %7652 = vmatpush.bf16.msra.mxu0 %v7639
        %7653 = vmatmul.bf16.gmra.mxu0 %v7107
        %v7654 = vpop.f32.mrf.mxu0
        %v7655 = vadd.f32 %v7641, %v7654
        %v7656 = vpop.f32.mrf.mxu0
        %v7657 = vadd.f32 %v7641, %v7656
        %7658 = vmatmul.bf16.gmra.mxu0 %v7110
        %v7659 = vpop.f32.mrf.mxu0
        %v7660 = vadd.f32 %v7641, %v7659
        %v7661 = vpop.f32.mrf.mxu0
        %7662 = vdwg.mxu0
        %v7663 = vsel %vm6275, %v7655, 0.0
        %v7664 = vsel %vm6275, %v7657, 0.0
        %v7665 = vadd.f32 %v7663, %v7664
        %v7666 = vsel %vm6419, %v7660, 0.0
        %v7667 = vadd.f32 %v7665, %v7666
        %v7668 = vrot.slane %v7667, 4
        %v7669 = vadd.f32 %v7667, %v7668
        %v7670 = vrot.slane %v7669, 2
        %v7671 = vadd.f32 %v7669, %v7670
        %v7672 = vrot.slane %v7671, 1
        %v7673 = vadd.f32 %v7671, %v7672
        %v7675 = vsel %vm6275, %v7673, 0
        %7677 = vmatpush.msra.mxu0 0.0
        %7678 = vmatpush.msra.mxu0 0.0
        %7679 = vmatpush.msra.mxu0 0.0
        %7680 = vmatpush.msra.mxu0 0.0
        %7681 = vmatpush.msra.mxu0 0.0
        %7682 = vmatpush.msra.mxu0 0.0
        %7683 = vmatpush.msra.mxu0 0.0
        %7684 = vmatpush.msra.mxu0 0.0
        %7685 = vmatpush.msra.mxu0 %v6273
        %7686 = vmatpush.msra.mxu0 %v6272
        %7687 = vmatpush.msra.mxu0 %v6271
        %7688 = vmatpush.msra.mxu0 %v6270
        %7689 = vmatpush.msra.mxu0 %v6269
        %7690 = vmatpush.msra.mxu0 %v6268
        %7691 = vmatpush.msra.mxu0 %v6267
        %7692 = vmatpush.msra.mxu0 %v6266
        %7693 = vmatmul.f32.gmra.mxu0 %v7675
        %v7694 = vpop.f32.mrf.mxu0
        %v7695 = vadd.f32 0.0, %v7694
        %7696 = vdwg.mxu0
        %v7697 = vmul.f32 %v7695, 0.005952381
        %v7698 = vperm.slane %v7697, 0
        %v7699 = vsub.f32 %v7655, %v7698
        %v7700 = vsub.f32 %v7657, %v7698
        %v7701 = vsub.f32 %v7660, %v7698
        %v7702 = vmul.f32 %v7699, %v7699
        %v7703 = vmul.f32 %v7700, %v7700
        %v7704 = vmul.f32 %v7701, %v7701
        %v7705 = vsel %vm6275, %v7702, 0.0
        %v7706 = vsel %vm6275, %v7703, 0.0
        %v7707 = vadd.f32 %v7705, %v7706
        %v7708 = vsel %vm6419, %v7704, 0.0
        %v7709 = vadd.f32 %v7707, %v7708
        %v7710 = vrot.slane %v7709, 4
        %v7711 = vadd.f32 %v7709, %v7710
        %v7712 = vrot.slane %v7711, 2
        %v7713 = vadd.f32 %v7711, %v7712
        %v7714 = vrot.slane %v7713, 1
        %v7715 = vadd.f32 %v7713, %v7714
        %v7717 = vsel %vm6275, %v7715, 0
        %7719 = vmatpush.msra.mxu0 0.0
        %7720 = vmatpush.msra.mxu0 0.0
        %7721 = vmatpush.msra.mxu0 0.0
        %7722 = vmatpush.msra.mxu0 0.0
        %7723 = vmatpush.msra.mxu0 0.0
        %7724 = vmatpush.msra.mxu0 0.0
        %7725 = vmatpush.msra.mxu0 0.0
        %7726 = vmatpush.msra.mxu0 0.0
        %7727 = vmatpush.msra.mxu0 %v6273
        %7728 = vmatpush.msra.mxu0 %v6272
        %7729 = vmatpush.msra.mxu0 %v6271
        %7730 = vmatpush.msra.mxu0 %v6270
        %7731 = vmatpush.msra.mxu0 %v6269
        %7732 = vmatpush.msra.mxu0 %v6268
        %7733 = vmatpush.msra.mxu0 %v6267
        %7734 = vmatpush.msra.mxu0 %v6266
        %7735 = vmatmul.f32.gmra.mxu0 %v7717
        %v7736 = vpop.f32.mrf.mxu0
        %v7737 = vadd.f32 0.0, %v7736
        %7738 = vdwg.mxu0
        %v7739 = vmul.f32 %v7737, 0.005952381
        %v7740 = vadd.f32 %v7739, 1e-05
        %v7741 = vrsqrt.pop %v7740
        %v7742 = vmul.f32 %v7741, %v7740
        %v7743 = vmul.f32 %v7742, %v7741
        %v7744 = vmul.f32 0.5, %v7743
        %v7745 = vsub.f32 1.5, %v7744
        %v7746 = vmul.f32 %v7741, %v7745
        %vm7747 = vweird.f32 %v7740
        %vm7748 = vweird.f32 %v7741
        %vm7749 = vmor %vm7747, %vm7748
        %v7750 = vsel %vm7749, %v7741, %v7746
        %v7752 = vrot.slane %v7304, 2
        %v7754 = vmul.f32 %v7750, %v7752
        %v7755 = vperm.slane %v7754, 0
        %v7756 = vmul.f32 %v7699, %v7755
        %v7757 = vmul.f32 %v7700, %v7755
        %v7758 = vmul.f32 %v7701, %v7755
        %v7759 = vperm.slane %v7304, 3
        %v7760 = vadd.f32 %v7756, %v7759
        %v7761 = vadd.f32 %v7757, %v7759
        %v7762 = vadd.f32 %v7758, %v7759
        %v7763 = vmax.f32 %v7760, 0.0
        %v7764 = vmax.f32 %v7761, 0.0
        %v7765 = vmax.f32 %v7762, 0.0
        %v7766 = vpack.c.bf16 %v7764, %v7763
        %v7767 = vpack.c.bf16 %v7765, %v7765
        %v7768 = vld [vmem:[%s41] sm:$0xf]
        %v7769 = vld [vmem:[%s41 + $0x4] sm:$0xf]
        %v7770 = vld [vmem:[%s41 + $0x8] sm:$0xf]
        %v7771 = vld [vmem:[%s41 + $0xc] sm:$0xf]
        %v7772 = vld [vmem:[%s41 + $0x10] sm:$0xf]
        %v7773 = vld [vmem:[%s41 + $0x14] sm:$0xf]
        %v7774 = vld [vmem:[%s41 + $0x18] sm:$0xf]
        %v7775 = vld [vmem:[%s41 + $0x1c] sm:$0xf]
        %v7777 = vperm.slane %v7305, 0
        %v7787 = vunpack.c.l.b16 %v7768
        %v7788 = vunpack.c.l.b16 %v7769
        %v7789 = vunpack.c.l.b16 %v7770
        %v7790 = vunpack.c.l.b16 %v7771
        %v7791 = vunpack.c.l.b16 %v7772
        %v7792 = vunpack.c.l.b16 %v7773
        %v7793 = vunpack.c.l.b16 %v7774
        %v7794 = vunpack.c.l.b16 %v7775
        %v7795 = vpack.c.b16 %v7788, %v7787
        %v7796 = vpack.c.b16 %v7790, %v7789
        %v7797 = vpack.c.b16 %v7792, %v7791
        %v7798 = vpack.c.b16 %v7794, %v7793
        %v7804 = vsel %vm6275, %v7766, 0
        %v7807 = vsel %vm6275, %v7767, 0
        %7809 = vmatpush.bf16.msra.mxu0 0
        %7810 = vmatpush.bf16.msra.mxu0 0
        %7811 = vmatpush.bf16.msra.mxu0 0
        %7812 = vmatpush.bf16.msra.mxu0 0
        %7813 = vmatpush.bf16.msra.mxu0 %v7798
        %7814 = vmatpush.bf16.msra.mxu0 %v7797
        %7815 = vmatpush.bf16.msra.mxu0 %v7796
        %7816 = vmatpush.bf16.msra.mxu0 %v7795
        %7817 = vmatmul.bf16.gmra.mxu0 %v7804
        %v7818 = vpop.f32.mrf.mxu0
        %v7819 = vadd.f32 %v7777, %v7818
        %v7820 = vpop.f32.mrf.mxu0
        %v7821 = vadd.f32 %v7777, %v7820
        %7822 = vmatmul.bf16.gmra.mxu0 %v7807
        %v7823 = vpop.f32.mrf.mxu0
        %v7824 = vadd.f32 %v7777, %v7823
        %v7825 = vpop.f32.mrf.mxu0
        %7826 = vdwg.mxu0
        %v7827 = vadd.f32 %v7819, %v7300
        %v7828 = vadd.f32 %v7821, %v7301
        %v7829 = vadd.f32 %v7824, %v7302
        %v7830 = vld [vmem:[%s45] sm:$0x3]
        %v7831 = vld [vmem:[%s47] sm:$0x3f]
        %v7832 = vld [vmem:[%s49] sm:$0x3]
        %v7833 = vadd.f32 %v7827, %v7828
        %v7834 = vsel %vm6761, %v7829, 0.0
        %v7835 = vadd.f32 %v7833, %v7834
        %v7836 = vrot.slane %v7835, 4
        %v7837 = vadd.f32 %v7835, %v7836
        %v7838 = vrot.slane %v7837, 2
        %v7839 = vadd.f32 %v7837, %v7838
        %v7840 = vrot.slane %v7839, 1
        %v7841 = vadd.f32 %v7839, %v7840
        %7842 = vmatpush.msra.mxu0 %v6759
        %7843 = vmatpush.msra.mxu0 %v6758
        %7844 = vmatpush.msra.mxu0 %v6757
        %7845 = vmatpush.msra.mxu0 %v6756
        %7846 = vmatpush.msra.mxu0 %v6755
        %7847 = vmatpush.msra.mxu0 %v6754
        %7848 = vmatpush.msra.mxu0 %v6753
        %7849 = vmatpush.msra.mxu0 %v6752
        %7850 = vmatpush.msra.mxu0 %v6751
        %7851 = vmatpush.msra.mxu0 %v6750
        %7852 = vmatpush.msra.mxu0 %v6749
        %7853 = vmatpush.msra.mxu0 %v6748
        %7854 = vmatpush.msra.mxu0 %v6747
        %7855 = vmatpush.msra.mxu0 %v6746
        %7856 = vmatpush.msra.mxu0 %v6745
        %7857 = vmatpush.msra.mxu0 %v6744
        %7858 = vmatmul.f32.gmra.mxu0 %v7841
        %v7859 = vpop.f32.mrf.mxu0
        %v7860 = vadd.f32 0.0, %v7859
        %7861 = vdwg.mxu0
        %v7862 = vmul.f32 %v7860, 0.005952381
        %v7863 = vperm.slane %v7862, 0
        %v7864 = vsub.f32 %v7827, %v7863
        %v7865 = vsub.f32 %v7828, %v7863
        %v7866 = vsub.f32 %v7829, %v7863
        %v7867 = vmul.f32 %v7864, %v7864
        %v7868 = vmul.f32 %v7865, %v7865
        %v7869 = vmul.f32 %v7866, %v7866
        %v7870 = vadd.f32 %v7867, %v7868
        %v7871 = vsel %vm6761, %v7869, 0.0
        %v7872 = vadd.f32 %v7870, %v7871
        %v7873 = vrot.slane %v7872, 4
        %v7874 = vadd.f32 %v7872, %v7873
        %v7875 = vrot.slane %v7874, 2
        %v7876 = vadd.f32 %v7874, %v7875
        %v7877 = vrot.slane %v7876, 1
        %v7878 = vadd.f32 %v7876, %v7877
        %7879 = vmatpush.msra.mxu0 %v6759
        %7880 = vmatpush.msra.mxu0 %v6758
        %7881 = vmatpush.msra.mxu0 %v6757
        %7882 = vmatpush.msra.mxu0 %v6756
        %7883 = vmatpush.msra.mxu0 %v6755
        %7884 = vmatpush.msra.mxu0 %v6754
        %7885 = vmatpush.msra.mxu0 %v6753
        %7886 = vmatpush.msra.mxu0 %v6752
        %7887 = vmatpush.msra.mxu0 %v6751
        %7888 = vmatpush.msra.mxu0 %v6750
        %7889 = vmatpush.msra.mxu0 %v6749
        %7890 = vmatpush.msra.mxu0 %v6748
        %7891 = vmatpush.msra.mxu0 %v6747
        %7892 = vmatpush.msra.mxu0 %v6746
        %7893 = vmatpush.msra.mxu0 %v6745
        %7894 = vmatpush.msra.mxu0 %v6744
        %7895 = vmatmul.f32.gmra.mxu0 %v7878
        %v7896 = vpop.f32.mrf.mxu0
        %v7897 = vadd.f32 0.0, %v7896
        %7898 = vdwg.mxu0
        %v7899 = vmul.f32 %v7897, 0.005952381
        %v7900 = vadd.f32 %v7899, 1e-05
        %v7901 = vrsqrt.pop %v7900
        %v7902 = vmul.f32 %v7901, %v7900
        %v7903 = vmul.f32 %v7902, %v7901
        %v7904 = vmul.f32 0.5, %v7903
        %v7905 = vsub.f32 1.5, %v7904
        %v7906 = vmul.f32 %v7901, %v7905
        %vm7907 = vweird.f32 %v7900
        %vm7908 = vweird.f32 %v7901
        %vm7909 = vmor %vm7907, %vm7908
        %v7910 = vsel %vm7909, %v7901, %v7906
        %v7911 = vmul.f32 %v7910, %v7830
        %v7912 = vperm.slane %v7911, 0
        %v7913 = vmul.f32 %v7864, %v7912
        %v7914 = vmul.f32 %v7865, %v7912
        %v7915 = vmul.f32 %v7866, %v7912
        %v7916 = vperm.slane %v7830, 1
        %v7917 = vadd.f32 %v7913, %v7916
        %v7918 = vadd.f32 %v7914, %v7916
        %v7919 = vadd.f32 %v7915, %v7916
        %v7920 = vmax.f32 %v7917, 0.0
        %v7921 = vmax.f32 %v7918, 0.0
        %v7922 = vmax.f32 %v7919, 0.0
        %v7923 = vpack.c.bf16 %v7921, %v7920
        %v7924 = vpack.c.bf16 %v7922, %v7922
        %v7925 = vld [vmem:[%s51] sm:$0xf]
        %v7926 = vld [vmem:[%s51 + $0x4] sm:$0xf]
        %v7927 = vld [vmem:[%s51 + $0x8] sm:$0xf]
        %v7928 = vld [vmem:[%s51 + $0xc] sm:$0xf]
        %v7929 = vld [vmem:[%s51 + $0x10] sm:$0xf]
        %v7930 = vld [vmem:[%s51 + $0x14] sm:$0xf]
        %v7931 = vld [vmem:[%s51 + $0x18] sm:$0xf]
        %v7932 = vld [vmem:[%s51 + $0x1c] sm:$0xf]
        %v7933 = vld [vmem:[%s51 + $0x20] sm:$0xf]
        %v7934 = vld [vmem:[%s51 + $0x24] sm:$0xf]
        %v7935 = vld [vmem:[%s51 + $0x28] sm:$0xf]
        %v7936 = vld [vmem:[%s51 + $0x2c] sm:$0xf]
        %v7937 = vld [vmem:[%s51 + $0x30] sm:$0xf]
        %v7938 = vld [vmem:[%s51 + $0x34] sm:$0xf]
        %v7939 = vld [vmem:[%s51 + $0x38] sm:$0xf]
        %v7940 = vld [vmem:[%s51 + $0x3c] sm:$0xf]
        %v7941 = vperm.slane %v7831, 4
        %v7958 = vunpack.c.l.b16 %v7925
        %v7959 = vunpack.c.l.b16 %v7926
        %v7960 = vunpack.c.l.b16 %v7927
        %v7961 = vunpack.c.l.b16 %v7928
        %v7962 = vunpack.c.l.b16 %v7929
        %v7963 = vunpack.c.l.b16 %v7930
        %v7964 = vunpack.c.l.b16 %v7931
        %v7965 = vunpack.c.l.b16 %v7932
        %v7966 = vunpack.c.l.b16 %v7933
        %v7967 = vunpack.c.l.b16 %v7934
        %v7968 = vunpack.c.l.b16 %v7935
        %v7969 = vunpack.c.l.b16 %v7936
        %v7970 = vunpack.c.l.b16 %v7937
        %v7971 = vunpack.c.l.b16 %v7938
        %v7972 = vunpack.c.l.b16 %v7939
        %v7973 = vunpack.c.l.b16 %v7940
        %v7974 = vpack.c.b16 %v7959, %v7958
        %v7975 = vpack.c.b16 %v7961, %v7960
        %v7976 = vpack.c.b16 %v7963, %v7962
        %v7977 = vpack.c.b16 %v7965, %v7964
        %v7978 = vpack.c.b16 %v7967, %v7966
        %v7979 = vpack.c.b16 %v7969, %v7968
        %v7980 = vpack.c.b16 %v7971, %v7970
        %v7981 = vpack.c.b16 %v7973, %v7972
        %7990 = vmatpush.bf16.msra.mxu0 %v7981
        %7991 = vmatpush.bf16.msra.mxu0 %v7980
        %7992 = vmatpush.bf16.msra.mxu0 %v7979
        %7993 = vmatpush.bf16.msra.mxu0 %v7978
        %7994 = vmatpush.bf16.msra.mxu0 %v7977
        %7995 = vmatpush.bf16.msra.mxu0 %v7976
        %7996 = vmatpush.bf16.msra.mxu0 %v7975
        %7997 = vmatpush.bf16.msra.mxu0 %v7974
        %7998 = vmatmul.bf16.gmra.mxu0 %v7923
        %v7999 = vpop.f32.mrf.mxu0
        %v8000 = vadd.f32 %v7941, %v7999
        %v8001 = vpop.f32.mrf.mxu0
        %v8002 = vadd.f32 %v7941, %v8001
        %8003 = vmatmul.bf16.gmra.mxu0 %v7924
        %v8004 = vpop.f32.mrf.mxu0
        %v8005 = vadd.f32 %v7941, %v8004
        %v8006 = vpop.f32.mrf.mxu0
        %8007 = vdwg.mxu0
        %v8008 = vld [vmem:[%s83] sm:$0xff]
        %v8009 = vld [vmem:[%s83 + $0x8] sm:$0xff]
        %v8010 = vld [vmem:[%s83 + $0x10] sm:$0xff]
        %v8011 = vld [vmem:[%s83 + $0x18] sm:$0xff]
        %vm8012 = vcmask 261120
        %v8013 = vsel %vm8012, %v8000, 0.0
        %v8014 = vsel %vm8012, %v8002, 0.0
        %v8015 = vadd.f32 %v8013, %v8014
        %vm8016 = vcmask 258048
        %v8017 = vsel %vm8016, %v8005, 0.0
        %v8018 = vadd.f32 %v8015, %v8017
        %v8019 = vrot.slane %v8018, 4
        %v8020 = vadd.f32 %v8018, %v8019
        %v8021 = vrot.slane %v8020, 2
        %v8022 = vadd.f32 %v8020, %v8021
        %v8023 = vrot.slane %v8022, 1
        %v8024 = vadd.f32 %v8022, %v8023
        %v8026 = vsel %vm8012, %v8024, 0
        %8028 = vmatpush.msra.mxu0 0.0
        %8029 = vmatpush.msra.mxu0 0.0
        %8030 = vmatpush.msra.mxu0 0.0
        %8031 = vmatpush.msra.mxu0 0.0
        %8032 = vmatpush.msra.mxu0 0.0
        %8033 = vmatpush.msra.mxu0 0.0
        %8034 = vmatpush.msra.mxu0 0.0
        %8035 = vmatpush.msra.mxu0 0.0
        %8036 = vmatpush.msra.mxu0 0.0
        %8037 = vmatpush.msra.mxu0 0.0
        %8038 = vmatpush.msra.mxu0 0.0
        %8039 = vmatpush.msra.mxu0 0.0
        %8040 = vmatpush.msra.mxu0 %v8011
        %8041 = vmatpush.msra.mxu0 %v8010
        %8042 = vmatpush.msra.mxu0 %v8009
        %8043 = vmatpush.msra.mxu0 %v8008
        %8044 = vmatmul.f32.gmra.mxu0 %v8026
        %v8045 = vpop.f32.mrf.mxu0
        %v8046 = vadd.f32 0.0, %v8045
        %8047 = vdwg.mxu0
        %v8048 = vmul.f32 %v8046, 0.005952381
        %v8049 = vperm.slane %v8048, 0
        %v8050 = vsub.f32 %v8000, %v8049
        %v8051 = vsub.f32 %v8002, %v8049
        %v8052 = vsub.f32 %v8005, %v8049
        %v8053 = vmul.f32 %v8050, %v8050
        %v8054 = vmul.f32 %v8051, %v8051
        %v8055 = vmul.f32 %v8052, %v8052
        %v8056 = vsel %vm8012, %v8053, 0.0
        %v8057 = vsel %vm8012, %v8054, 0.0
        %v8058 = vadd.f32 %v8056, %v8057
        %v8059 = vsel %vm8016, %v8055, 0.0
        %v8060 = vadd.f32 %v8058, %v8059
        %v8061 = vrot.slane %v8060, 4
        %v8062 = vadd.f32 %v8060, %v8061
        %v8063 = vrot.slane %v8062, 2
        %v8064 = vadd.f32 %v8062, %v8063
        %v8065 = vrot.slane %v8064, 1
        %v8066 = vadd.f32 %v8064, %v8065
        %v8068 = vsel %vm8012, %v8066, 0
        %8070 = vmatpush.msra.mxu0 0.0
        %8071 = vmatpush.msra.mxu0 0.0
        %8072 = vmatpush.msra.mxu0 0.0
        %8073 = vmatpush.msra.mxu0 0.0
        %8074 = vmatpush.msra.mxu0 0.0
        %8075 = vmatpush.msra.mxu0 0.0
        %8076 = vmatpush.msra.mxu0 0.0
        %8077 = vmatpush.msra.mxu0 0.0
        %8078 = vmatpush.msra.mxu0 0.0
        %8079 = vmatpush.msra.mxu0 0.0
        %8080 = vmatpush.msra.mxu0 0.0
        %8081 = vmatpush.msra.mxu0 0.0
        %8082 = vmatpush.msra.mxu0 %v8011
        %8083 = vmatpush.msra.mxu0 %v8010
        %8084 = vmatpush.msra.mxu0 %v8009
        %8085 = vmatpush.msra.mxu0 %v8008
        %8086 = vmatmul.f32.gmra.mxu0 %v8068
        %v8087 = vpop.f32.mrf.mxu0
        %v8088 = vadd.f32 0.0, %v8087
        %8089 = vdwg.mxu0
        %v8090 = vmul.f32 %v8088, 0.005952381
        %v8091 = vadd.f32 %v8090, 1e-05
        %v8092 = vrsqrt.pop %v8091
        %v8093 = vmul.f32 %v8092, %v8091
        %v8094 = vmul.f32 %v8093, %v8092
        %v8095 = vmul.f32 0.5, %v8094
        %v8096 = vsub.f32 1.5, %v8095
        %v8097 = vmul.f32 %v8092, %v8096
        %vm8098 = vweird.f32 %v8091
        %vm8099 = vweird.f32 %v8092
        %vm8100 = vmor %vm8098, %vm8099
        %v8101 = vsel %vm8100, %v8092, %v8097
        %v8102 = vmul.f32 %v8101, %v7831
        %v8103 = vperm.slane %v8102, 0
        %v8104 = vmul.f32 %v8050, %v8103
        %v8105 = vmul.f32 %v8051, %v8103
        %v8106 = vmul.f32 %v8052, %v8103
        %v8107 = vperm.slane %v7831, 1
        %v8108 = vadd.f32 %v8104, %v8107
        %v8109 = vadd.f32 %v8105, %v8107
        %v8110 = vadd.f32 %v8106, %v8107
        %v8111 = vmax.f32 %v8108, 0.0
        %v8112 = vmax.f32 %v8109, 0.0
        %v8113 = vmax.f32 %v8110, 0.0
        %v8114 = vpack.c.bf16 %v8112, %v8111
        %v8115 = vpack.c.bf16 %v8113, %v8113
        %v8116 = vld [vmem:[%s55] sm:$0xf]
        %v8117 = vld [vmem:[%s55 + $0x4] sm:$0xf]
        %v8118 = vld [vmem:[%s55 + $0x8] sm:$0xf]
        %v8119 = vld [vmem:[%s55 + $0xc] sm:$0xf]
        %v8124 = vunpack.c.l.b16 %v8116
        %v8125 = vunpack.c.l.b16 %v8117
        %v8126 = vunpack.c.l.b16 %v8118
        %v8127 = vunpack.c.l.b16 %v8119
        %v8128 = vpack.c.b16 %v8125, %v8124
        %v8129 = vpack.c.b16 %v8127, %v8126
        %v8133 = vsel %vm8012, %v8114, 0
        %v8136 = vsel %vm8012, %v8115, 0
        %8138 = vmatpush.bf16.msra.mxu0 0
        %8139 = vmatpush.bf16.msra.mxu0 0
        %8140 = vmatpush.bf16.msra.mxu0 0
        %8141 = vmatpush.bf16.msra.mxu0 0
        %8142 = vmatpush.bf16.msra.mxu0 0
        %8143 = vmatpush.bf16.msra.mxu0 0
        %8144 = vmatpush.bf16.msra.mxu0 %v8129
        %8145 = vmatpush.bf16.msra.mxu0 %v8128
        %8146 = vmatmul.bf16.gmra.mxu0 %v8133
        %v8147 = vpop.f32.mrf.mxu0
        %v8148 = vadd.f32 0.0, %v8147
        %v8149 = vpop.f32.mrf.mxu0
        %v8150 = vadd.f32 0.0, %v8149
        %8151 = vmatmul.bf16.gmra.mxu0 %v8136
        %v8152 = vpop.f32.mrf.mxu0
        %v8153 = vadd.f32 0.0, %v8152
        %v8154 = vpop.f32.mrf.mxu0
        %8155 = vdwg.mxu0
        %v8156 = vpack.c.bf16 %v8150, %v8148
        %v8157 = vpack.c.bf16 %v8153, %v8153
        %v8158 = vperm.slane %v7831, 5
        %v8160 = vand.u32 %v8157, %v7114
        %8162 = vmatpush.bf16.msra.mxu0 0
        %8163 = vmatpush.bf16.msra.mxu0 0
        %8164 = vmatpush.bf16.msra.mxu0 0
        %8165 = vmatpush.bf16.msra.mxu0 0
        %8166 = vmatpush.bf16.msra.mxu0 0
        %8167 = vmatpush.bf16.msra.mxu0 0
        %8168 = vmatpush.bf16.msra.mxu0 %v8160
        %8169 = vmatpush.bf16.msra.mxu0 %v8156
        %8170 = vmatmul.bf16.gmra.mxu0 %v7107
        %v8171 = vpop.f32.mrf.mxu0
        %v8172 = vadd.f32 %v8158, %v8171
        %v8173 = vpop.f32.mrf.mxu0
        %v8174 = vadd.f32 %v8158, %v8173
        %8175 = vmatmul.bf16.gmra.mxu0 %v7110
        %v8176 = vpop.f32.mrf.mxu0
        %v8177 = vadd.f32 %v8158, %v8176
        %v8178 = vpop.f32.mrf.mxu0
        %8179 = vdwg.mxu0
        %v8180 = vsel %vm8012, %v8172, 0.0
        %v8181 = vsel %vm8012, %v8174, 0.0
        %v8182 = vadd.f32 %v8180, %v8181
        %v8183 = vsel %vm8016, %v8177, 0.0
        %v8184 = vadd.f32 %v8182, %v8183
        %v8185 = vrot.slane %v8184, 4
        %v8186 = vadd.f32 %v8184, %v8185
        %v8187 = vrot.slane %v8186, 2
        %v8188 = vadd.f32 %v8186, %v8187
        %v8189 = vrot.slane %v8188, 1
        %v8190 = vadd.f32 %v8188, %v8189
        %v8192 = vsel %vm8012, %v8190, 0
        %8194 = vmatpush.msra.mxu0 0.0
        %8195 = vmatpush.msra.mxu0 0.0
        %8196 = vmatpush.msra.mxu0 0.0
        %8197 = vmatpush.msra.mxu0 0.0
        %8198 = vmatpush.msra.mxu0 0.0
        %8199 = vmatpush.msra.mxu0 0.0
        %8200 = vmatpush.msra.mxu0 0.0
        %8201 = vmatpush.msra.mxu0 0.0
        %8202 = vmatpush.msra.mxu0 0.0
        %8203 = vmatpush.msra.mxu0 0.0
        %8204 = vmatpush.msra.mxu0 0.0
        %8205 = vmatpush.msra.mxu0 0.0
        %8206 = vmatpush.msra.mxu0 %v8011
        %8207 = vmatpush.msra.mxu0 %v8010
        %8208 = vmatpush.msra.mxu0 %v8009
        %8209 = vmatpush.msra.mxu0 %v8008
        %8210 = vmatmul.f32.gmra.mxu0 %v8192
        %v8211 = vpop.f32.mrf.mxu0
        %v8212 = vadd.f32 0.0, %v8211
        %8213 = vdwg.mxu0
        %v8214 = vmul.f32 %v8212, 0.005952381
        %v8215 = vperm.slane %v8214, 0
        %v8216 = vsub.f32 %v8172, %v8215
        %v8217 = vsub.f32 %v8174, %v8215
        %v8218 = vsub.f32 %v8177, %v8215
        %v8219 = vmul.f32 %v8216, %v8216
        %v8220 = vmul.f32 %v8217, %v8217
        %v8221 = vmul.f32 %v8218, %v8218
        %v8222 = vsel %vm8012, %v8219, 0.0
        %v8223 = vsel %vm8012, %v8220, 0.0
        %v8224 = vadd.f32 %v8222, %v8223
        %v8225 = vsel %vm8016, %v8221, 0.0
        %v8226 = vadd.f32 %v8224, %v8225
        %v8227 = vrot.slane %v8226, 4
        %v8228 = vadd.f32 %v8226, %v8227
        %v8229 = vrot.slane %v8228, 2
        %v8230 = vadd.f32 %v8228, %v8229
        %v8231 = vrot.slane %v8230, 1
        %v8232 = vadd.f32 %v8230, %v8231
        %v8234 = vsel %vm8012, %v8232, 0
        %8236 = vmatpush.msra.mxu0 0.0
        %8237 = vmatpush.msra.mxu0 0.0
        %8238 = vmatpush.msra.mxu0 0.0
        %8239 = vmatpush.msra.mxu0 0.0
        %8240 = vmatpush.msra.mxu0 0.0
        %8241 = vmatpush.msra.mxu0 0.0
        %8242 = vmatpush.msra.mxu0 0.0
        %8243 = vmatpush.msra.mxu0 0.0
        %8244 = vmatpush.msra.mxu0 0.0
        %8245 = vmatpush.msra.mxu0 0.0
        %8246 = vmatpush.msra.mxu0 0.0
        %8247 = vmatpush.msra.mxu0 0.0
        %8248 = vmatpush.msra.mxu0 %v8011
        %8249 = vmatpush.msra.mxu0 %v8010
        %8250 = vmatpush.msra.mxu0 %v8009
        %8251 = vmatpush.msra.mxu0 %v8008
        %8252 = vmatmul.f32.gmra.mxu0 %v8234
        %v8253 = vpop.f32.mrf.mxu0
        %v8254 = vadd.f32 0.0, %v8253
        %8255 = vdwg.mxu0
        %v8256 = vmul.f32 %v8254, 0.005952381
        %v8257 = vadd.f32 %v8256, 1e-05
        %v8258 = vrsqrt.pop %v8257
        %v8259 = vmul.f32 %v8258, %v8257
        %v8260 = vmul.f32 %v8259, %v8258
        %v8261 = vmul.f32 0.5, %v8260
        %v8262 = vsub.f32 1.5, %v8261
        %v8263 = vmul.f32 %v8258, %v8262
        %vm8264 = vweird.f32 %v8257
        %vm8265 = vweird.f32 %v8258
        %vm8266 = vmor %vm8264, %vm8265
        %v8267 = vsel %vm8266, %v8258, %v8263
        %v8269 = vrot.slane %v7831, 2
        %v8271 = vmul.f32 %v8267, %v8269
        %v8272 = vperm.slane %v8271, 0
        %v8273 = vmul.f32 %v8216, %v8272
        %v8274 = vmul.f32 %v8217, %v8272
        %v8275 = vmul.f32 %v8218, %v8272
        %v8276 = vperm.slane %v7831, 3
        %v8277 = vadd.f32 %v8273, %v8276
        %v8278 = vadd.f32 %v8274, %v8276
        %v8279 = vadd.f32 %v8275, %v8276
        %v8280 = vmax.f32 %v8277, 0.0
        %v8281 = vmax.f32 %v8278, 0.0
        %v8282 = vmax.f32 %v8279, 0.0
        %v8283 = vpack.c.bf16 %v8281, %v8280
        %v8284 = vpack.c.bf16 %v8282, %v8282
        %v8285 = vld [vmem:[%s53] sm:$0xf]
        %v8286 = vld [vmem:[%s53 + $0x4] sm:$0xf]
        %v8287 = vld [vmem:[%s53 + $0x8] sm:$0xf]
        %v8288 = vld [vmem:[%s53 + $0xc] sm:$0xf]
        %v8289 = vperm.slane %v7832, 0
        %v8294 = vunpack.c.l.b16 %v8285
        %v8295 = vunpack.c.l.b16 %v8286
        %v8296 = vunpack.c.l.b16 %v8287
        %v8297 = vunpack.c.l.b16 %v8288
        %v8298 = vpack.c.b16 %v8295, %v8294
        %v8299 = vpack.c.b16 %v8297, %v8296
        %v8303 = vsel %vm8012, %v8283, 0
        %v8306 = vsel %vm8012, %v8284, 0
        %8308 = vmatpush.bf16.msra.mxu0 0
        %8309 = vmatpush.bf16.msra.mxu0 0
        %8310 = vmatpush.bf16.msra.mxu0 0
        %8311 = vmatpush.bf16.msra.mxu0 0
        %8312 = vmatpush.bf16.msra.mxu0 0
        %8313 = vmatpush.bf16.msra.mxu0 0
        %8314 = vmatpush.bf16.msra.mxu0 %v8299
        %8315 = vmatpush.bf16.msra.mxu0 %v8298
        %8316 = vmatmul.bf16.gmra.mxu0 %v8303
        %v8317 = vpop.f32.mrf.mxu0
        %v8318 = vadd.f32 %v8289, %v8317
        %v8319 = vpop.f32.mrf.mxu0
        %v8320 = vadd.f32 %v8289, %v8319
        %8321 = vmatmul.bf16.gmra.mxu0 %v8306
        %v8322 = vpop.f32.mrf.mxu0
        %v8323 = vadd.f32 %v8289, %v8322
        %v8324 = vpop.f32.mrf.mxu0
        %8325 = vdwg.mxu0
        %v8326 = vpack.c.bf16 %v7828, %v7827
        %v8327 = vpack.c.bf16 %v7829, %v7829
        %v8328 = vld [vmem:[%s57] sm:$0xf]
        %v8329 = vld [vmem:[%s57 + $0x4] sm:$0xf]
        %v8330 = vld [vmem:[%s57 + $0x8] sm:$0xf]
        %v8331 = vld [vmem:[%s57 + $0xc] sm:$0xf]
        %v8332 = vld [vmem:[%s57 + $0x10] sm:$0xf]
        %v8333 = vld [vmem:[%s57 + $0x14] sm:$0xf]
        %v8334 = vld [vmem:[%s57 + $0x18] sm:$0xf]
        %v8335 = vld [vmem:[%s57 + $0x1c] sm:$0xf]
        %v8336 = vld [vmem:[%s57 + $0x20] sm:$0xf]
        %v8337 = vld [vmem:[%s57 + $0x24] sm:$0xf]
        %v8338 = vld [vmem:[%s57 + $0x28] sm:$0xf]
        %v8339 = vld [vmem:[%s57 + $0x2c] sm:$0xf]
        %v8340 = vld [vmem:[%s57 + $0x30] sm:$0xf]
        %v8341 = vld [vmem:[%s57 + $0x34] sm:$0xf]
        %v8342 = vld [vmem:[%s57 + $0x38] sm:$0xf]
        %v8343 = vld [vmem:[%s57 + $0x3c] sm:$0xf]
        %v8344 = vperm.slane %v7832, 1
        %v8361 = vunpack.c.l.b16 %v8328
        %v8362 = vunpack.c.l.b16 %v8329
        %v8363 = vunpack.c.l.b16 %v8330
        %v8364 = vunpack.c.l.b16 %v8331
        %v8365 = vunpack.c.l.b16 %v8332
        %v8366 = vunpack.c.l.b16 %v8333
        %v8367 = vunpack.c.l.b16 %v8334
        %v8368 = vunpack.c.l.b16 %v8335
        %v8369 = vunpack.c.l.b16 %v8336
        %v8370 = vunpack.c.l.b16 %v8337
        %v8371 = vunpack.c.l.b16 %v8338
        %v8372 = vunpack.c.l.b16 %v8339
        %v8373 = vunpack.c.l.b16 %v8340
        %v8374 = vunpack.c.l.b16 %v8341
        %v8375 = vunpack.c.l.b16 %v8342
        %v8376 = vunpack.c.l.b16 %v8343
        %v8377 = vpack.c.b16 %v8362, %v8361
        %v8378 = vpack.c.b16 %v8364, %v8363
        %v8379 = vpack.c.b16 %v8366, %v8365
        %v8380 = vpack.c.b16 %v8368, %v8367
        %v8381 = vpack.c.b16 %v8370, %v8369
        %v8382 = vpack.c.b16 %v8372, %v8371
        %v8383 = vpack.c.b16 %v8374, %v8373
        %v8384 = vpack.c.b16 %v8376, %v8375
        %8393 = vmatpush.bf16.msra.mxu0 %v8384
        %8394 = vmatpush.bf16.msra.mxu0 %v8383
        %8395 = vmatpush.bf16.msra.mxu0 %v8382
        %8396 = vmatpush.bf16.msra.mxu0 %v8381
        %8397 = vmatpush.bf16.msra.mxu0 %v8380
        %8398 = vmatpush.bf16.msra.mxu0 %v8379
        %8399 = vmatpush.bf16.msra.mxu0 %v8378
        %8400 = vmatpush.bf16.msra.mxu0 %v8377
        %8401 = vmatmul.bf16.gmra.mxu0 %v8326
        %v8402 = vpop.f32.mrf.mxu0
        %v8403 = vadd.f32 %v8344, %v8402
        %v8404 = vpop.f32.mrf.mxu0
        %v8405 = vadd.f32 %v8344, %v8404
        %8406 = vmatmul.bf16.gmra.mxu0 %v8327
        %v8407 = vpop.f32.mrf.mxu0
        %v8408 = vadd.f32 %v8344, %v8407
        %v8409 = vpop.f32.mrf.mxu0
        %8410 = vdwg.mxu0
        %v8411 = vadd.f32 %v8318, %v8403
        %v8412 = vadd.f32 %v8320, %v8405
        %v8413 = vadd.f32 %v8323, %v8408
        %v8414 = vld [vmem:[%s59] sm:$0x3]
        %v8415 = vld [vmem:[%s61] sm:$0x3f]
        %v8416 = vld [vmem:[%s63] sm:$0x3]
        %v8417 = vsel %vm6275, %v8411, 0.0
        %v8418 = vsel %vm6275, %v8412, 0.0
        %v8419 = vadd.f32 %v8417, %v8418
        %v8420 = vsel %vm6419, %v8413, 0.0
        %v8421 = vadd.f32 %v8419, %v8420
        %v8422 = vrot.slane %v8421, 4
        %v8423 = vadd.f32 %v8421, %v8422
        %v8424 = vrot.slane %v8423, 2
        %v8425 = vadd.f32 %v8423, %v8424
        %v8426 = vrot.slane %v8425, 1
        %v8427 = vadd.f32 %v8425, %v8426
        %v8429 = vsel %vm6275, %v8427, 0
        %8431 = vmatpush.msra.mxu0 0.0
        %8432 = vmatpush.msra.mxu0 0.0
        %8433 = vmatpush.msra.mxu0 0.0
        %8434 = vmatpush.msra.mxu0 0.0
        %8435 = vmatpush.msra.mxu0 0.0
        %8436 = vmatpush.msra.mxu0 0.0
        %8437 = vmatpush.msra.mxu0 0.0
        %8438 = vmatpush.msra.mxu0 0.0
        %8439 = vmatpush.msra.mxu0 %v6273
        %8440 = vmatpush.msra.mxu0 %v6272
        %8441 = vmatpush.msra.mxu0 %v6271
        %8442 = vmatpush.msra.mxu0 %v6270
        %8443 = vmatpush.msra.mxu0 %v6269
        %8444 = vmatpush.msra.mxu0 %v6268
        %8445 = vmatpush.msra.mxu0 %v6267
        %8446 = vmatpush.msra.mxu0 %v6266
        %8447 = vmatmul.f32.gmra.mxu0 %v8429
        %v8448 = vpop.f32.mrf.mxu0
        %v8449 = vadd.f32 0.0, %v8448
        %8450 = vdwg.mxu0
        %v8451 = vmul.f32 %v8449, 0.005952381
        %v8452 = vperm.slane %v8451, 0
        %v8453 = vsub.f32 %v8411, %v8452
        %v8454 = vsub.f32 %v8412, %v8452
        %v8455 = vsub.f32 %v8413, %v8452
        %v8456 = vmul.f32 %v8453, %v8453
        %v8457 = vmul.f32 %v8454, %v8454
        %v8458 = vmul.f32 %v8455, %v8455
        %v8459 = vsel %vm6275, %v8456, 0.0
        %v8460 = vsel %vm6275, %v8457, 0.0
        %v8461 = vadd.f32 %v8459, %v8460
        %v8462 = vsel %vm6419, %v8458, 0.0
        %v8463 = vadd.f32 %v8461, %v8462
        %v8464 = vrot.slane %v8463, 4
        %v8465 = vadd.f32 %v8463, %v8464
        %v8466 = vrot.slane %v8465, 2
        %v8467 = vadd.f32 %v8465, %v8466
        %v8468 = vrot.slane %v8467, 1
        %v8469 = vadd.f32 %v8467, %v8468
        %v8471 = vsel %vm6275, %v8469, 0
        %8473 = vmatpush.msra.mxu0 0.0
        %8474 = vmatpush.msra.mxu0 0.0
        %8475 = vmatpush.msra.mxu0 0.0
        %8476 = vmatpush.msra.mxu0 0.0
        %8477 = vmatpush.msra.mxu0 0.0
        %8478 = vmatpush.msra.mxu0 0.0
        %8479 = vmatpush.msra.mxu0 0.0
        %8480 = vmatpush.msra.mxu0 0.0
        %8481 = vmatpush.msra.mxu0 %v6273
        %8482 = vmatpush.msra.mxu0 %v6272
        %8483 = vmatpush.msra.mxu0 %v6271
        %8484 = vmatpush.msra.mxu0 %v6270
        %8485 = vmatpush.msra.mxu0 %v6269
        %8486 = vmatpush.msra.mxu0 %v6268
        %8487 = vmatpush.msra.mxu0 %v6267
        %8488 = vmatpush.msra.mxu0 %v6266
        %8489 = vmatmul.f32.gmra.mxu0 %v8471
        %v8490 = vpop.f32.mrf.mxu0
        %v8491 = vadd.f32 0.0, %v8490
        %8492 = vdwg.mxu0
        %v8493 = vmul.f32 %v8491, 0.005952381
        %v8494 = vadd.f32 %v8493, 1e-05
        %v8495 = vrsqrt.pop %v8494
        %v8496 = vmul.f32 %v8495, %v8494
        %v8497 = vmul.f32 %v8496, %v8495
        %v8498 = vmul.f32 0.5, %v8497
        %v8499 = vsub.f32 1.5, %v8498
        %v8500 = vmul.f32 %v8495, %v8499
        %vm8501 = vweird.f32 %v8494
        %vm8502 = vweird.f32 %v8495
        %vm8503 = vmor %vm8501, %vm8502
        %v8504 = vsel %vm8503, %v8495, %v8500
        %v8505 = vmul.f32 %v8504, %v8414
        %v8506 = vperm.slane %v8505, 0
        %v8507 = vmul.f32 %v8453, %v8506
        %v8508 = vmul.f32 %v8454, %v8506
        %v8509 = vmul.f32 %v8455, %v8506
        %v8510 = vperm.slane %v8414, 1
        %v8511 = vadd.f32 %v8507, %v8510
        %v8512 = vadd.f32 %v8508, %v8510
        %v8513 = vadd.f32 %v8509, %v8510
        %v8514 = vmax.f32 %v8511, 0.0
        %v8515 = vmax.f32 %v8512, 0.0
        %v8516 = vmax.f32 %v8513, 0.0
        %v8517 = vpack.c.bf16 %v8515, %v8514
        %v8518 = vpack.c.bf16 %v8516, %v8516
        %v8519 = vld [vmem:[%s65] sm:$0xf]
        %v8520 = vld [vmem:[%s65 + $0x4] sm:$0xf]
        %v8521 = vld [vmem:[%s65 + $0x8] sm:$0xf]
        %v8522 = vld [vmem:[%s65 + $0xc] sm:$0xf]
        %v8523 = vld [vmem:[%s65 + $0x10] sm:$0xf]
        %v8524 = vld [vmem:[%s65 + $0x14] sm:$0xf]
        %v8525 = vld [vmem:[%s65 + $0x18] sm:$0xf]
        %v8526 = vld [vmem:[%s65 + $0x1c] sm:$0xf]
        %v8527 = vperm.slane %v8415, 4
        %v8536 = vunpack.c.l.b16 %v8519
        %v8537 = vunpack.c.l.b16 %v8520
        %v8538 = vunpack.c.l.b16 %v8521
        %v8539 = vunpack.c.l.b16 %v8522
        %v8540 = vunpack.c.l.b16 %v8523
        %v8541 = vunpack.c.l.b16 %v8524
        %v8542 = vunpack.c.l.b16 %v8525
        %v8543 = vunpack.c.l.b16 %v8526
        %v8544 = vpack.c.b16 %v8537, %v8536
        %v8545 = vpack.c.b16 %v8539, %v8538
        %v8546 = vpack.c.b16 %v8541, %v8540
        %v8547 = vpack.c.b16 %v8543, %v8542
        %v8553 = vsel %vm6275, %v8517, 0
        %v8556 = vsel %vm6275, %v8518, 0
        %8558 = vmatpush.bf16.msra.mxu0 0
        %8559 = vmatpush.bf16.msra.mxu0 0
        %8560 = vmatpush.bf16.msra.mxu0 0
        %8561 = vmatpush.bf16.msra.mxu0 0
        %8562 = vmatpush.bf16.msra.mxu0 %v8547
        %8563 = vmatpush.bf16.msra.mxu0 %v8546
        %8564 = vmatpush.bf16.msra.mxu0 %v8545
        %8565 = vmatpush.bf16.msra.mxu0 %v8544
        %8566 = vmatmul.bf16.gmra.mxu0 %v8553
        %v8567 = vpop.f32.mrf.mxu0
        %v8568 = vadd.f32 %v8527, %v8567
        %v8569 = vpop.f32.mrf.mxu0
        %v8570 = vadd.f32 %v8527, %v8569
        %8571 = vmatmul.bf16.gmra.mxu0 %v8556
        %v8572 = vpop.f32.mrf.mxu0
        %v8573 = vadd.f32 %v8527, %v8572
        %v8574 = vpop.f32.mrf.mxu0
        %8575 = vdwg.mxu0
        %v8576 = vld [vmem:[%s79] sm:$0xff]
        %v8577 = vld [vmem:[%s79 + $0x8] sm:$0xff]
        %vm8578 = vcmask 130048
        %v8579 = vsel %vm8578, %v8568, 0.0
        %v8580 = vsel %vm8578, %v8570, 0.0
        %v8581 = vadd.f32 %v8579, %v8580
        %vm8582 = vcmask 126976
        %v8583 = vsel %vm8582, %v8573, 0.0
        %v8584 = vadd.f32 %v8581, %v8583
        %v8585 = vrot.slane %v8584, 4
        %v8586 = vadd.f32 %v8584, %v8585
        %v8587 = vrot.slane %v8586, 2
        %v8588 = vadd.f32 %v8586, %v8587
        %v8589 = vrot.slane %v8588, 1
        %v8590 = vadd.f32 %v8588, %v8589
        %v8592 = vsel %vm8578, %v8590, 0
        %8594 = vmatpush.msra.mxu0 0.0
        %8595 = vmatpush.msra.mxu0 0.0
        %8596 = vmatpush.msra.mxu0 0.0
        %8597 = vmatpush.msra.mxu0 0.0
        %8598 = vmatpush.msra.mxu0 0.0
        %8599 = vmatpush.msra.mxu0 0.0
        %8600 = vmatpush.msra.mxu0 0.0
        %8601 = vmatpush.msra.mxu0 0.0
        %8602 = vmatpush.msra.mxu0 0.0
        %8603 = vmatpush.msra.mxu0 0.0
        %8604 = vmatpush.msra.mxu0 0.0
        %8605 = vmatpush.msra.mxu0 0.0
        %8606 = vmatpush.msra.mxu0 0.0
        %8607 = vmatpush.msra.mxu0 0.0
        %8608 = vmatpush.msra.mxu0 %v8577
        %8609 = vmatpush.msra.mxu0 %v8576
        %8610 = vmatmul.f32.gmra.mxu0 %v8592
        %v8611 = vpop.f32.mrf.mxu0
        %v8612 = vadd.f32 0.0, %v8611
        %8613 = vdwg.mxu0
        %v8614 = vmul.f32 %v8612, 0.005952381
        %v8615 = vperm.slane %v8614, 0
        %v8616 = vsub.f32 %v8568, %v8615
        %v8617 = vsub.f32 %v8570, %v8615
        %v8618 = vsub.f32 %v8573, %v8615
        %v8619 = vmul.f32 %v8616, %v8616
        %v8620 = vmul.f32 %v8617, %v8617
        %v8621 = vmul.f32 %v8618, %v8618
        %v8622 = vsel %vm8578, %v8619, 0.0
        %v8623 = vsel %vm8578, %v8620, 0.0
        %v8624 = vadd.f32 %v8622, %v8623
        %v8625 = vsel %vm8582, %v8621, 0.0
        %v8626 = vadd.f32 %v8624, %v8625
        %v8627 = vrot.slane %v8626, 4
        %v8628 = vadd.f32 %v8626, %v8627
        %v8629 = vrot.slane %v8628, 2
        %v8630 = vadd.f32 %v8628, %v8629
        %v8631 = vrot.slane %v8630, 1
        %v8632 = vadd.f32 %v8630, %v8631
        %v8634 = vsel %vm8578, %v8632, 0
        %8636 = vmatpush.msra.mxu0 0.0
        %8637 = vmatpush.msra.mxu0 0.0
        %8638 = vmatpush.msra.mxu0 0.0
        %8639 = vmatpush.msra.mxu0 0.0
        %8640 = vmatpush.msra.mxu0 0.0
        %8641 = vmatpush.msra.mxu0 0.0
        %8642 = vmatpush.msra.mxu0 0.0
        %8643 = vmatpush.msra.mxu0 0.0
        %8644 = vmatpush.msra.mxu0 0.0
        %8645 = vmatpush.msra.mxu0 0.0
        %8646 = vmatpush.msra.mxu0 0.0
        %8647 = vmatpush.msra.mxu0 0.0
        %8648 = vmatpush.msra.mxu0 0.0
        %8649 = vmatpush.msra.mxu0 0.0
        %8650 = vmatpush.msra.mxu0 %v8577
        %8651 = vmatpush.msra.mxu0 %v8576
        %8652 = vmatmul.f32.gmra.mxu0 %v8634
        %v8653 = vpop.f32.mrf.mxu0
        %v8654 = vadd.f32 0.0, %v8653
        %8655 = vdwg.mxu0
        %v8656 = vmul.f32 %v8654, 0.005952381
        %v8657 = vadd.f32 %v8656, 1e-05
        %v8658 = vrsqrt.pop %v8657
        %v8659 = vmul.f32 %v8658, %v8657
        %v8660 = vmul.f32 %v8659, %v8658
        %v8661 = vmul.f32 0.5, %v8660
        %v8662 = vsub.f32 1.5, %v8661
        %v8663 = vmul.f32 %v8658, %v8662
        %vm8664 = vweird.f32 %v8657
        %vm8665 = vweird.f32 %v8658
        %vm8666 = vmor %vm8664, %vm8665
        %v8667 = vsel %vm8666, %v8658, %v8663
        %v8668 = vmul.f32 %v8667, %v8415
        %v8669 = vperm.slane %v8668, 0
        %v8670 = vmul.f32 %v8616, %v8669
        %v8671 = vmul.f32 %v8617, %v8669
        %v8672 = vmul.f32 %v8618, %v8669
        %v8673 = vperm.slane %v8415, 1
        %v8674 = vadd.f32 %v8670, %v8673
        %v8675 = vadd.f32 %v8671, %v8673
        %v8676 = vadd.f32 %v8672, %v8673
        %v8677 = vmax.f32 %v8674, 0.0
        %v8678 = vmax.f32 %v8675, 0.0
        %v8679 = vmax.f32 %v8676, 0.0
        %v8680 = vpack.c.bf16 %v8678, %v8677
        %v8681 = vpack.c.bf16 %v8679, %v8679
        %v8682 = vld [vmem:[%s69] sm:$0xf]
        %v8683 = vld [vmem:[%s69 + $0x4] sm:$0xf]
        %v8686 = vunpack.c.l.b16 %v8682
        %v8687 = vunpack.c.l.b16 %v8683
        %v8688 = vpack.c.b16 %v8687, %v8686
        %v8691 = vsel %vm8578, %v8680, 0
        %v8694 = vsel %vm8578, %v8681, 0
        %8696 = vmatpush.bf16.msra.mxu0 0
        %8697 = vmatpush.bf16.msra.mxu0 0
        %8698 = vmatpush.bf16.msra.mxu0 0
        %8699 = vmatpush.bf16.msra.mxu0 0
        %8700 = vmatpush.bf16.msra.mxu0 0
        %8701 = vmatpush.bf16.msra.mxu0 0
        %8702 = vmatpush.bf16.msra.mxu0 0
        %8703 = vmatpush.bf16.msra.mxu0 %v8688
        %8704 = vmatmul.bf16.gmra.mxu0 %v8691
        %v8705 = vpop.f32.mrf.mxu0
        %v8706 = vadd.f32 0.0, %v8705
        %v8707 = vpop.f32.mrf.mxu0
        %v8708 = vadd.f32 0.0, %v8707
        %8709 = vmatmul.bf16.gmra.mxu0 %v8694
        %v8710 = vpop.f32.mrf.mxu0
        %v8711 = vadd.f32 0.0, %v8710
        %v8712 = vpop.f32.mrf.mxu0
        %8713 = vdwg.mxu0
        %v8714 = vpack.c.bf16 %v8708, %v8706
        %v8715 = vpack.c.bf16 %v8711, %v8711
        %v8716 = vperm.slane %v8415, 5
        %v8718 = vand.u32 %v8715, %v7114
        %8720 = vmatpush.bf16.msra.mxu0 0
        %8721 = vmatpush.bf16.msra.mxu0 0
        %8722 = vmatpush.bf16.msra.mxu0 0
        %8723 = vmatpush.bf16.msra.mxu0 0
        %8724 = vmatpush.bf16.msra.mxu0 0
        %8725 = vmatpush.bf16.msra.mxu0 0
        %8726 = vmatpush.bf16.msra.mxu0 %v8718
        %8727 = vmatpush.bf16.msra.mxu0 %v8714
        %8728 = vmatmul.bf16.gmra.mxu0 %v7107
        %v8729 = vpop.f32.mrf.mxu0
        %v8730 = vadd.f32 %v8716, %v8729
        %v8731 = vpop.f32.mrf.mxu0
        %v8732 = vadd.f32 %v8716, %v8731
        %8733 = vmatmul.bf16.gmra.mxu0 %v7110
        %v8734 = vpop.f32.mrf.mxu0
        %v8735 = vadd.f32 %v8716, %v8734
        %v8736 = vpop.f32.mrf.mxu0
        %8737 = vdwg.mxu0
        %v8738 = vsel %vm8578, %v8730, 0.0
        %v8739 = vsel %vm8578, %v8732, 0.0
        %v8740 = vadd.f32 %v8738, %v8739
        %v8741 = vsel %vm8582, %v8735, 0.0
        %v8742 = vadd.f32 %v8740, %v8741
        %v8743 = vrot.slane %v8742, 4
        %v8744 = vadd.f32 %v8742, %v8743
        %v8745 = vrot.slane %v8744, 2
        %v8746 = vadd.f32 %v8744, %v8745
        %v8747 = vrot.slane %v8746, 1
        %v8748 = vadd.f32 %v8746, %v8747
        %v8750 = vsel %vm8578, %v8748, 0
        %8752 = vmatpush.msra.mxu0 0.0
        %8753 = vmatpush.msra.mxu0 0.0
        %8754 = vmatpush.msra.mxu0 0.0
        %8755 = vmatpush.msra.mxu0 0.0
        %8756 = vmatpush.msra.mxu0 0.0
        %8757 = vmatpush.msra.mxu0 0.0
        %8758 = vmatpush.msra.mxu0 0.0
        %8759 = vmatpush.msra.mxu0 0.0
        %8760 = vmatpush.msra.mxu0 0.0
        %8761 = vmatpush.msra.mxu0 0.0
        %8762 = vmatpush.msra.mxu0 0.0
        %8763 = vmatpush.msra.mxu0 0.0
        %8764 = vmatpush.msra.mxu0 0.0
        %8765 = vmatpush.msra.mxu0 0.0
        %8766 = vmatpush.msra.mxu0 %v8577
        %8767 = vmatpush.msra.mxu0 %v8576
        %8768 = vmatmul.f32.gmra.mxu0 %v8750
        %v8769 = vpop.f32.mrf.mxu0
        %v8770 = vadd.f32 0.0, %v8769
        %8771 = vdwg.mxu0
        %v8772 = vmul.f32 %v8770, 0.005952381
        %v8773 = vperm.slane %v8772, 0
        %v8774 = vsub.f32 %v8730, %v8773
        %v8775 = vsub.f32 %v8732, %v8773
        %v8776 = vsub.f32 %v8735, %v8773
        %v8777 = vmul.f32 %v8774, %v8774
        %v8778 = vmul.f32 %v8775, %v8775
        %v8779 = vmul.f32 %v8776, %v8776
        %v8780 = vsel %vm8578, %v8777, 0.0
        %v8781 = vsel %vm8578, %v8778, 0.0
        %v8782 = vadd.f32 %v8780, %v8781
        %v8783 = vsel %vm8582, %v8779, 0.0
        %v8784 = vadd.f32 %v8782, %v8783
        %v8785 = vrot.slane %v8784, 4
        %v8786 = vadd.f32 %v8784, %v8785
        %v8787 = vrot.slane %v8786, 2
        %v8788 = vadd.f32 %v8786, %v8787
        %v8789 = vrot.slane %v8788, 1
        %v8790 = vadd.f32 %v8788, %v8789
        %v8792 = vsel %vm8578, %v8790, 0
        %8794 = vmatpush.msra.mxu0 0.0
        %8795 = vmatpush.msra.mxu0 0.0
        %8796 = vmatpush.msra.mxu0 0.0
        %8797 = vmatpush.msra.mxu0 0.0
        %8798 = vmatpush.msra.mxu0 0.0
        %8799 = vmatpush.msra.mxu0 0.0
        %8800 = vmatpush.msra.mxu0 0.0
        %8801 = vmatpush.msra.mxu0 0.0
        %8802 = vmatpush.msra.mxu0 0.0
        %8803 = vmatpush.msra.mxu0 0.0
        %8804 = vmatpush.msra.mxu0 0.0
        %8805 = vmatpush.msra.mxu0 0.0
        %8806 = vmatpush.msra.mxu0 0.0
        %8807 = vmatpush.msra.mxu0 0.0
        %8808 = vmatpush.msra.mxu0 %v8577
        %8809 = vmatpush.msra.mxu0 %v8576
        %8810 = vmatmul.f32.gmra.mxu0 %v8792
        %v8811 = vpop.f32.mrf.mxu0
        %v8812 = vadd.f32 0.0, %v8811
        %8813 = vdwg.mxu0
        %v8814 = vmul.f32 %v8812, 0.005952381
        %v8815 = vadd.f32 %v8814, 1e-05
        %v8816 = vrsqrt.pop %v8815
        %v8817 = vmul.f32 %v8816, %v8815
        %v8818 = vmul.f32 %v8817, %v8816
        %v8819 = vmul.f32 0.5, %v8818
        %v8820 = vsub.f32 1.5, %v8819
        %v8821 = vmul.f32 %v8816, %v8820
        %vm8822 = vweird.f32 %v8815
        %vm8823 = vweird.f32 %v8816
        %vm8824 = vmor %vm8822, %vm8823
        %v8825 = vsel %vm8824, %v8816, %v8821
        %v8827 = vrot.slane %v8415, 2
        %v8829 = vmul.f32 %v8825, %v8827
        %v8830 = vperm.slane %v8829, 0
        %v8831 = vmul.f32 %v8774, %v8830
        %v8832 = vmul.f32 %v8775, %v8830
        %v8833 = vmul.f32 %v8776, %v8830
        %v8834 = vperm.slane %v8415, 3
        %v8835 = vadd.f32 %v8831, %v8834
        %v8836 = vadd.f32 %v8832, %v8834
        %v8837 = vadd.f32 %v8833, %v8834
        %v8838 = vmax.f32 %v8835, 0.0
        %v8839 = vmax.f32 %v8836, 0.0
        %v8840 = vmax.f32 %v8837, 0.0
        %v8841 = vpack.c.bf16 %v8839, %v8838
        %v8842 = vpack.c.bf16 %v8840, %v8840
        %v8843 = vld [vmem:[%s67] sm:$0xf]
        %v8844 = vld [vmem:[%s67 + $0x4] sm:$0xf]
        %v8845 = vperm.slane %v8416, 0
        %v8848 = vunpack.c.l.b16 %v8843
        %v8849 = vunpack.c.l.b16 %v8844
        %v8850 = vpack.c.b16 %v8849, %v8848
        %v8853 = vsel %vm8578, %v8841, 0
        %v8856 = vsel %vm8578, %v8842, 0
        %8858 = vmatpush.bf16.msra.mxu0 0
        %8859 = vmatpush.bf16.msra.mxu0 0
        %8860 = vmatpush.bf16.msra.mxu0 0
        %8861 = vmatpush.bf16.msra.mxu0 0
        %8862 = vmatpush.bf16.msra.mxu0 0
        %8863 = vmatpush.bf16.msra.mxu0 0
        %8864 = vmatpush.bf16.msra.mxu0 0
        %8865 = vmatpush.bf16.msra.mxu0 %v8850
        %8866 = vmatmul.bf16.gmra.mxu0 %v8853
        %v8867 = vpop.f32.mrf.mxu0
        %v8868 = vadd.f32 %v8845, %v8867
        %v8869 = vpop.f32.mrf.mxu0
        %v8870 = vadd.f32 %v8845, %v8869
        %8871 = vmatmul.bf16.gmra.mxu0 %v8856
        %v8872 = vpop.f32.mrf.mxu0
        %v8873 = vadd.f32 %v8845, %v8872
        %v8874 = vpop.f32.mrf.mxu0
        %8875 = vdwg.mxu0
        %v8876 = vpack.c.bf16 %v8412, %v8411
        %v8877 = vpack.c.bf16 %v8413, %v8413
        %v8878 = vld [vmem:[%s71] sm:$0xf]
        %v8879 = vld [vmem:[%s71 + $0x4] sm:$0xf]
        %v8880 = vld [vmem:[%s71 + $0x8] sm:$0xf]
        %v8881 = vld [vmem:[%s71 + $0xc] sm:$0xf]
        %v8882 = vld [vmem:[%s71 + $0x10] sm:$0xf]
        %v8883 = vld [vmem:[%s71 + $0x14] sm:$0xf]
        %v8884 = vld [vmem:[%s71 + $0x18] sm:$0xf]
        %v8885 = vld [vmem:[%s71 + $0x1c] sm:$0xf]
        %v8886 = vperm.slane %v8416, 1
        %v8895 = vunpack.c.l.b16 %v8878
        %v8896 = vunpack.c.l.b16 %v8879
        %v8897 = vunpack.c.l.b16 %v8880
        %v8898 = vunpack.c.l.b16 %v8881
        %v8899 = vunpack.c.l.b16 %v8882
        %v8900 = vunpack.c.l.b16 %v8883
        %v8901 = vunpack.c.l.b16 %v8884
        %v8902 = vunpack.c.l.b16 %v8885
        %v8903 = vpack.c.b16 %v8896, %v8895
        %v8904 = vpack.c.b16 %v8898, %v8897
        %v8905 = vpack.c.b16 %v8900, %v8899
        %v8906 = vpack.c.b16 %v8902, %v8901
        %v8912 = vsel %vm6275, %v8876, 0
        %v8915 = vsel %vm6275, %v8877, 0
        %8917 = vmatpush.bf16.msra.mxu0 0
        %8918 = vmatpush.bf16.msra.mxu0 0
        %8919 = vmatpush.bf16.msra.mxu0 0
        %8920 = vmatpush.bf16.msra.mxu0 0
        %8921 = vmatpush.bf16.msra.mxu0 %v8906
        %8922 = vmatpush.bf16.msra.mxu0 %v8905
        %8923 = vmatpush.bf16.msra.mxu0 %v8904
        %8924 = vmatpush.bf16.msra.mxu0 %v8903
        %8925 = vmatmul.bf16.gmra.mxu0 %v8912
        %v8926 = vpop.f32.mrf.mxu0
        %v8927 = vadd.f32 %v8886, %v8926
        %v8928 = vpop.f32.mrf.mxu0
        %v8929 = vadd.f32 %v8886, %v8928
        %8930 = vmatmul.bf16.gmra.mxu0 %v8915
        %v8931 = vpop.f32.mrf.mxu0
        %v8932 = vadd.f32 %v8886, %v8931
        %v8933 = vpop.f32.mrf.mxu0
        %8934 = vdwg.mxu0
        %v8935 = vadd.f32 %v8868, %v8927
        %v8936 = vadd.f32 %v8870, %v8929
        %v8937 = vadd.f32 %v8873, %v8932
        %v8938 = vld [vmem:[%s89] sm:$0x7]
        %v8939 = vsel %vm8012, %v8935, 0.0
        %v8940 = vsel %vm8012, %v8936, 0.0
        %v8941 = vadd.f32 %v8939, %v8940
        %v8942 = vsel %vm8016, %v8937, 0.0
        %v8943 = vadd.f32 %v8941, %v8942
        %v8944 = vrot.slane %v8943, 4
        %v8945 = vadd.f32 %v8943, %v8944
        %v8946 = vrot.slane %v8945, 2
        %v8947 = vadd.f32 %v8945, %v8946
        %v8948 = vrot.slane %v8947, 1
        %v8949 = vadd.f32 %v8947, %v8948
        %v8951 = vsel %vm8012, %v8949, 0
        %8953 = vmatpush.msra.mxu0 0.0
        %8954 = vmatpush.msra.mxu0 0.0
        %8955 = vmatpush.msra.mxu0 0.0
        %8956 = vmatpush.msra.mxu0 0.0
        %8957 = vmatpush.msra.mxu0 0.0
        %8958 = vmatpush.msra.mxu0 0.0
        %8959 = vmatpush.msra.mxu0 0.0
        %8960 = vmatpush.msra.mxu0 0.0
        %8961 = vmatpush.msra.mxu0 0.0
        %8962 = vmatpush.msra.mxu0 0.0
        %8963 = vmatpush.msra.mxu0 0.0
        %8964 = vmatpush.msra.mxu0 0.0
        %8965 = vmatpush.msra.mxu0 %v8011
        %8966 = vmatpush.msra.mxu0 %v8010
        %8967 = vmatpush.msra.mxu0 %v8009
        %8968 = vmatpush.msra.mxu0 %v8008
        %8969 = vmatmul.f32.gmra.mxu0 %v8951
        %v8970 = vpop.f32.mrf.mxu0
        %v8971 = vadd.f32 0.0, %v8970
        %8972 = vdwg.mxu0
        %v8973 = vmul.f32 %v8971, 0.005952381
        %v8974 = vperm.slane %v8973, 0
        %v8975 = vsub.f32 %v8935, %v8974
        %v8976 = vsub.f32 %v8936, %v8974
        %v8977 = vsub.f32 %v8937, %v8974
        %v8978 = vmul.f32 %v8975, %v8975
        %v8979 = vmul.f32 %v8976, %v8976
        %v8980 = vmul.f32 %v8977, %v8977
        %v8981 = vsel %vm8012, %v8978, 0.0
        %v8982 = vsel %vm8012, %v8979, 0.0
        %v8983 = vadd.f32 %v8981, %v8982
        %v8984 = vsel %vm8016, %v8980, 0.0
        %v8985 = vadd.f32 %v8983, %v8984
        %v8986 = vrot.slane %v8985, 4
        %v8987 = vadd.f32 %v8985, %v8986
        %v8988 = vrot.slane %v8987, 2
        %v8989 = vadd.f32 %v8987, %v8988
        %v8990 = vrot.slane %v8989, 1
        %v8991 = vadd.f32 %v8989, %v8990
        %v8993 = vsel %vm8012, %v8991, 0
        %8995 = vmatpush.msra.mxu0 0.0
        %8996 = vmatpush.msra.mxu0 0.0
        %8997 = vmatpush.msra.mxu0 0.0
        %8998 = vmatpush.msra.mxu0 0.0
        %8999 = vmatpush.msra.mxu0 0.0
        %9000 = vmatpush.msra.mxu0 0.0
        %9001 = vmatpush.msra.mxu0 0.0
        %9002 = vmatpush.msra.mxu0 0.0
        %9003 = vmatpush.msra.mxu0 0.0
        %9004 = vmatpush.msra.mxu0 0.0
        %9005 = vmatpush.msra.mxu0 0.0
        %9006 = vmatpush.msra.mxu0 0.0
        %9007 = vmatpush.msra.mxu0 %v8011
        %9008 = vmatpush.msra.mxu0 %v8010
        %9009 = vmatpush.msra.mxu0 %v8009
        %9010 = vmatpush.msra.mxu0 %v8008
        %9011 = vmatmul.f32.gmra.mxu0 %v8993
        %v9012 = vpop.f32.mrf.mxu0
        %v9013 = vadd.f32 0.0, %v9012
        %9014 = vdwg.mxu0
        %v9015 = vmul.f32 %v9013, 0.005952381
        %v9016 = vadd.f32 %v9015, 1e-05
        %v9017 = vrsqrt.pop %v9016
        %v9018 = vmul.f32 %v9017, %v9016
        %v9019 = vmul.f32 %v9018, %v9017
        %v9020 = vmul.f32 0.5, %v9019
        %v9021 = vsub.f32 1.5, %v9020
        %v9022 = vmul.f32 %v9017, %v9021
        %vm9023 = vweird.f32 %v9016
        %vm9024 = vweird.f32 %v9017
        %vm9025 = vmor %vm9023, %vm9024
        %v9026 = vsel %vm9025, %v9017, %v9022
        %v9027 = vmul.f32 %v9026, %v8938
        %v9028 = vperm.slane %v9027, 0
        %v9029 = vmul.f32 %v8975, %v9028
        %v9030 = vmul.f32 %v8976, %v9028
        %v9031 = vmul.f32 %v8977, %v9028
        %v9032 = vperm.slane %v8938, 1
        %v9033 = vadd.f32 %v9029, %v9032
        %v9034 = vadd.f32 %v9030, %v9032
        %v9035 = vadd.f32 %v9031, %v9032
        %v9036 = vmax.f32 %v9033, 0.0
        %v9037 = vmax.f32 %v9034, 0.0
        %v9038 = vmax.f32 %v9035, 0.0
        %v9039 = vperm.slane %v8938, 2
        %v9040 = vmul.f32 %v9036, %v9039
        %v9041 = vmul.f32 %v9037, %v9039
        %v9042 = vmul.f32 %v9038, %v9039
        %v9043 = vsel %vm8012, %v9040, 0.0
        %9044 = vadd.xlane.f32.xlu0 %v9043
        %v9045 = vpop.xlane.xlu0 %9044
        %v9046 = vsel %vm8012, %v9041, 0.0
        %9047 = vadd.xlane.f32.xlu0 %v9046
        %v9048 = vpop.xlane.xlu0 %9047
        %v9049 = vsel %vm8016, %v9042, 0.0
        %9050 = vadd.xlane.f32.xlu0 %v9049
        %v9051 = vpop.xlane.xlu0 %9050
        %v9052 = vld [vmem:[%s91] sm:$0xff]
        %v9053 = vld [vmem:[%s91 + $0x8] sm:$0xff]
        %v9054 = vld [vmem:[%s91 + $0x10] sm:$0x1f]
        %v9055 = vmul.f32 %v9045, %v9052
        %v9056 = vmul.f32 %v9048, %v9053
        %v9057 = vmul.f32 %v9051, %v9054
        %vm9058 = vcmask 15360
        %v9059 = vsel %vm9058, %v9055, 0.0
        %v9060 = vsel %vm9058, %v9056, 0.0
        %v9061 = vadd.f32 %v9059, %v9060
        %vm9062 = vcmask 12288
        %v9063 = vsel %vm9062, %v9057, 0.0
        %v9064 = vadd.f32 %v9061, %v9063
        %v9065 = vrot.slane %v9064, 4
        %v9066 = vadd.f32 %v9064, %v9065
        %v9067 = vrot.slane %v9066, 2
        %v9068 = vadd.f32 %v9066, %v9067
        %v9069 = vrot.slane %v9068, 1
        %v9070 = vadd.f32 %v9068, %v9069
        %v9071 = vld [vmem:[#allocation2] sm:$0x1]
        %v9072 = vadd.f32 %v9070, %v9071
        %vm9073 = vcmask 8192
        %9074 = vst.msk [vmem:[%s1441] sm:$0x1] %vm9073, %v9072
        %s9075 = sand.u32 %s1133, 1
        %s9076 = scalar_lea.sflag [#allocation4], %s9075
        %s9077 = sand.u32 %s1133, 1
        %s9078 = scalar_lea.vmem [#allocation5], %s9077
        // Predicated region
        $region217: #{graph_cnn_forward.1} parent=211 // pred_check
          %p9079 = pneg %p1143
        $region218: #{graph_cnn_forward.1} parent=211 // pred_check_branch
          %9081 = sbr.rel (%p9079) target = $region220
        $region219: #{graph_cnn_forward.1} parent=211 // pred_region
          %9083 = vsyncadd %s9076, 0
          %s9084 = scalar_lea.hbm %s97, %s112
          %s9086 = sshll.u32 %s9078, 4
          %s9087 = int_to_ptr.vmem [resolvable:$true] %s9086
          %s9088 = sshll.u32 %s9084, 4
          %s9089 = int_to_ptr.hbm [resolvable:$true] %s9088
          %9091 = dma.vmem_to_hbm [thread:$0]  %s9087, 16, %s9089, %s9076
        $region220: #{graph_cnn_forward.1} parent=211 // pred_fallthru
          _
      $region212: #{graph_cnn_forward.1} parent=5 // pred_fallthru
        _
      %p9092 = scmp.le.s32.totalorder 2, %s107
      // Predicated region
      $region221: #{graph_cnn_forward.1} parent=5 // pred_check
        %p9093 = pneg %p9092
      $region222: #{graph_cnn_forward.1} parent=5 // pred_check_branch
        %9095 = sbr.rel (%p9093) target = $region224
      $region223: #{graph_cnn_forward.1} parent=5 // pred_region
        %s9096 = ssub.s32 %s107, 2
        // Predicated region
        $region225: #{graph_cnn_forward.1} parent=223 // pred_check
          %p9097 = pneg %p1149
        $region226: #{graph_cnn_forward.1} parent=223 // pred_check_branch
          %9099 = sbr.rel (%p9097) target = $region228
        $region227: #{graph_cnn_forward.1} parent=223 // pred_region
          %s9100 = sand.u32 %s1134, 1
          %s9101 = scalar_lea.sflag [#allocation4], %s9100
          %s9102 = sand.u32 %s1134, 1
          %s9103 = scalar_lea.vmem [#allocation5], %s9102
          %9105 = dma.done %s9101, 16
        $region228: #{graph_cnn_forward.1} parent=223 // pred_fallthru
          _
      $region224: #{graph_cnn_forward.1} parent=5 // pred_fallthru
        _
    $region6: #{graph_cnn_forward.1} parent=1 // loop_footer
      %s111 = sadd.s32 1, %s107
    $region7: #{graph_cnn_forward.1} parent=1 // loop_footer_branch
      %106 = sbr.rel target = $region3
    $region8: #{graph_cnn_forward.1} parent=1 // loop_exit
      _
    %9106 = vsyncpa [#allocation3], 1
    %s9107 = scalar_lea.sflag [#allocation3], 1
    %9108 = vsyncpa %s9107, 1
    %9109 = vsyncpa [#allocation4], 1
    %s9110 = scalar_lea.sflag [#allocation4], 1
    %9111 = vsyncpa %s9110, 1

</llo_original>
